<compile_context>
chip_gen: v5e
topology: v5e:2x2
jax: 0.10.0
libtpu: 0.0.40
codegen_flags: <defaults>
</compile_context>

<pallas_src>
import functools

import jax
import jax.numpy as jnp
import numpy as np
from jax.experimental import pallas as pl
from jax.experimental.pallas import tpu as pltpu

_C = 512                        # conv output channels
_G1_N = 1024                    # g_fc1 output width
_FEAT = 128 + 64 + 64 + 64      # per-model feature width fed to the combine head (=320)

# Layers after g_fc2, plus the small branches and the combine head (bf16/f32 weights).
_SMALL_KEYS = ("g_fc3", "l_fc1", "l_fc2", "o_fc1", "o_fc2", "c_fc1", "c_fc2",
               "m_fc1", "m_fc2", "m_fc3", "m_fc4")
_QUANT_KEYS = ("g_fc1", "g_fc2")      # int8 + per-column scale (dominant HBM bytes)
_KEEP_F32 = ("c_fc1", "m_fc4")        # degenerate shapes; stored f32 (tiny)
_NUM_FIXED = 12                       # kernel refs before the _SMALL_KEYS (w, b) pairs


# ----------------------------- shared math (in-kernel and in the matched mirror) -------------

def _dense(x, w, b, relu=True):
    y = jnp.dot(x.astype(w.dtype), w, preferred_element_type=jnp.float32) + b
    return jnp.maximum(y, 0.0) if relu else y


def _deq(wq):
    # int8 -> f32 -> bf16 on the VPU (portable: v7x MXU has no int8 path).
    return wq.astype(jnp.float32).astype(jnp.bfloat16)


def _conv_g1_partial(x_h, conv_w, conv_b, w1_blk):
    # Conv2d(1, 512, kernel=(1, grad_out)) for one grad_in row == [MB, W] @ [W, 512] (+ReLU),
    # immediately contracted against the matching 512 rows of g_fc1 (grad_in-row-major layout).
    y = jnp.dot(x_h, conv_w, preferred_element_type=jnp.float32) + conv_b
    y = jnp.maximum(y, 0.0).astype(jnp.bfloat16)
    return jnp.dot(y, w1_blk, preferred_element_type=jnp.float32)


def _g_finish(acc, s1, b1, w2q, s2, b2):
    g1 = jnp.maximum(acc * s1 + b1, 0.0).astype(jnp.bfloat16)                  # [MB, 1024]
    g2 = jnp.dot(g1, _deq(w2q), preferred_element_type=jnp.float32) * s2 + b2  # [MB, 512]
    return jnp.maximum(g2, 0.0)


def _small_tail(g2, l, c, o, p, num_models, batch):
    g = _dense(g2, *p["g_fc3"])                          # [MB, 128]
    lb = _dense(l, *p["l_fc1"])
    lb = _dense(lb, *p["l_fc2"])                         # [B, 64]
    cw1, cb1 = p["c_fc1"]                                # K=1: VPU broadcast outer product
    cact = jnp.maximum(c * cw1 + cb1, 0.0)               # [MB, nc]
    cb_ = _dense(cact, *p["c_fc2"])                      # [MB, 64]
    ob = _dense(o, *p["o_fc1"])
    ob = _dense(ob, *p["o_fc2"])                         # [MB, 64]

    # combine head: PyTorch's com_inp = cat(g_i, l, c_i, o_i, <older models>, dim=1) is
    # reproduced as per-block dots against m_fc1's weight rows (no in-kernel concatenate).
    mw1, mb1 = p["m_fc1"]
    acc = None
    for j in range(num_models):
        i = num_models - 1 - j                           # newest model's features come first
        r = slice(i * batch, (i + 1) * batch)
        base = j * _FEAT
        part = jnp.dot(g[r].astype(mw1.dtype), mw1[base:base + 128],
                       preferred_element_type=jnp.float32)
        part = part + jnp.dot(lb.astype(mw1.dtype), mw1[base + 128:base + 192],
                              preferred_element_type=jnp.float32)
        part = part + jnp.dot(cb_[r].astype(mw1.dtype), mw1[base + 192:base + 256],
                              preferred_element_type=jnp.float32)
        part = part + jnp.dot(ob[r].astype(mw1.dtype), mw1[base + 256:base + 320],
                              preferred_element_type=jnp.float32)
        acc = part if acc is None else acc + part
    h = jnp.maximum(acc + mb1, 0.0)
    h = _dense(h, *p["m_fc2"])
    h = _dense(h, *p["m_fc3"])
    logit = _dense(h, *p["m_fc4"], relu=False)           # [B, 1]
    return 1.0 / (1.0 + jnp.exp(-logit))


# ----------------------------- fused Pallas kernel -------------------------------------------

def _fused_kernel(*refs, hb, num_models, batch):
    (x_ref, cw_ref, cb_ref, l_ref, c_ref, o_ref,
     g1w_ref, g1s_ref, g1b_ref, g2w_ref, g2s_ref, g2b_ref) = refs[:_NUM_FIXED]
    small = refs[_NUM_FIXED:_NUM_FIXED + 2 * len(_SMALL_KEYS)]
    out_ref = refs[_NUM_FIXED + 2 * len(_SMALL_KEYS)]
    acc_ref = refs[-1]

    k = pl.program_id(0)

    @pl.when(k == 0)
    def _init():
        acc_ref[...] = jnp.zeros_like(acc_ref)

    # ---- fused conv + int8-dequant partial g_fc1 over this K block (hb grad_in rows) -------
    conv_w = cw_ref[...]
    conv_b = cb_ref[...]
    for hh in range(hb):
        w1_blk = _deq(g1w_ref[hh * _C:(hh + 1) * _C, :])
        acc_ref[...] += _conv_g1_partial(x_ref[hh], conv_w, conv_b, w1_blk)

    # ---- everything after g_fc1 runs once, on the final reduction step ----------------------
    @pl.when(k == pl.num_programs(0) - 1)
    def _finalize():
        p = {key: (small[2 * n][...], small[2 * n + 1][...])
             for n, key in enumerate(_SMALL_KEYS)}
        g2 = _g_finish(acc_ref[...], g1s_ref[...], g1b_ref[...],
                       g2w_ref[...], g2s_ref[...], g2b_ref[...])
        out = _small_tail(g2, l_ref[...], c_ref[...], o_ref[...], p, num_models, batch)
        out_ref[...] = out.astype(out_ref.dtype)


def _vmem_limit_bytes(arrs, specs, out_shape, extra_bytes):
    # double-buffered per-block residency + explicit dequant/accumulator temporaries + headroom
    need = 2 * int(np.prod(out_shape)) * 4 + int(extra_bytes)
    for a, s in zip(arrs, specs):
        need += 2 * int(np.prod(s.block_shape)) * int(a.dtype.itemsize)
    need = int(need * 1.25) + (8 << 20)
    return int(min(max(need, 24 << 20), 56 << 20))     # always below v7x's 64 MiB physical VMEM


def nasr_forward_pallas(kp, gs, l, cs, os_, num_models):
    """gs: [NM, B, 1, grad_in, grad_out], l: [B, nc], cs: [NM, B, 1], os_: [NM, B, nc]."""
    NM, B, _, H, W = gs.shape
    MB = NM * B
    hb = 2 if H % 2 == 0 else 1             # grad_in rows per reduction step (K block = hb*512)
    kt = H // hb

    # x rows are grad_in-row-major so each K block of g_fc1 pairs with whole conv rows.
    x = gs[:, :, 0].transpose(2, 0, 1, 3).reshape(H, MB, W).astype(jnp.bfloat16)
    g1w, g1s, g1b = kp["g_fc1"]
    g2w, g2s, g2b = kp["g_fc2"]
    inputs = [x, kp["conv"][0], kp["conv"][1],
              l.astype(jnp.bfloat16),
              cs.reshape(MB, 1).astype(jnp.float32),
              os_.reshape(MB, -1).astype(jnp.bfloat16),
              g1w, g1s, g1b, g2w, g2s, g2b]
    in_specs = [
        pl.BlockSpec((hb, MB, W), lambda k: (k, 0, 0)),          # conv input (K-tiled)
        pl.BlockSpec(inputs[1].shape, lambda k: (0, 0)),         # conv weight (resident)
        pl.BlockSpec(inputs[2].shape, lambda k: (0, 0)),
        pl.BlockSpec(inputs[3].shape, lambda k: (0, 0)),
        pl.BlockSpec(inputs[4].shape, lambda k: (0, 0)),
        pl.BlockSpec(inputs[5].shape, lambda k: (0, 0)),
        pl.BlockSpec((hb * _C, _G1_N), lambda k: (k, 0)),        # g_fc1 int8 (K-tiled stream)
        pl.BlockSpec(g1s.shape, lambda k: (0, 0)),
        pl.BlockSpec(g1b.shape, lambda k: (0, 0)),
        pl.BlockSpec(g2w.shape, lambda k: (0, 0)),
        pl.BlockSpec(g2s.shape, lambda k: (0, 0)),
        pl.BlockSpec(g2b.shape, lambda k: (0, 0)),
    ]
    for key in _SMALL_KEYS:
        w, b = kp[key]
        inputs += [w, b]
        in_specs += [pl.BlockSpec(w.shape, lambda k: (0, 0)),
                     pl.BlockSpec(b.shape, lambda k: (0, 0))]

    out_shape = (B, 1)
    # int8 blocks get dequantized in-kernel (f32 + bf16 temporaries) + the f32 accumulator.
    extra = 6 * hb * _C * _G1_N + 6 * int(np.prod(g2w.shape)) + MB * _G1_N * 4
    return pl.pallas_call(
        functools.partial(_fused_kernel, hb=hb, num_models=num_models, batch=B),
        out_shape=jax.ShapeDtypeStruct(out_shape, jnp.float32),
        grid_spec=pltpu.PrefetchScalarGridSpec(
            num_scalar_prefetch=0,
            grid=(kt,),
            in_specs=in_specs,
            out_specs=pl.BlockSpec(out_shape, lambda k: (0, 0)),
            scratch_shapes=[pltpu.VMEM((MB, _G1_N), jnp.float32)]),
        compiler_params=pltpu.CompilerParams(
            dimension_semantics=("arbitrary",),
            vmem_limit_bytes=_vmem_limit_bytes(inputs, in_specs, out_shape, extra)),
    )(*inputs)


# ----------------------------- parameters ----------------------------------------------------

def init_params(key, num_classes, grad_out, grad_in, num_models=1):
    """Synthetic init matching nn.init.normal_(std=0.01), bias=0.  Weights are [in, out];
    g_fc1's input rows follow PyTorch's Flatten order of the conv output [B, 512, grad_in, 1],
    i.e. row index = c*grad_in + h."""
    def lin(k, fan_in, fan_out):
        w = jax.random.normal(k, (fan_in, fan_out), jnp.float32) * 0.01
        b = jnp.zeros((fan_out,), jnp.float32)
        return w, b

    keys = iter(jax.random.split(key, 16))
    p = {}
    p["conv"] = lin(next(keys), grad_out, _C)
    p["g_fc1"] = lin(next(keys), grad_in * _C, _G1_N)
    p["g_fc2"] = lin(next(keys), _G1_N, 512)
    p["g_fc3"] = lin(next(keys), 512, 128)
    p["l_fc1"] = lin(next(keys), num_classes, 128)
    p["l_fc2"] = lin(next(keys), 128, 64)
    p["o_fc1"] = lin(next(keys), num_classes, 100)
    p["o_fc2"] = lin(next(keys), 100, 64)
    p["c_fc1"] = lin(next(keys), 1, num_classes)
    p["c_fc2"] = lin(next(keys), num_classes, 64)
    p["m_fc1"] = lin(next(keys), _FEAT * num_models, 256)
    p["m_fc2"] = lin(next(keys), 256, 128)
    p["m_fc3"] = lin(next(keys), 128, 64)
    p["m_fc4"] = lin(next(keys), 64, 1)
    return p


def prepare_params(params, grad_in):
    """One-time repack: int8 (+ per-output-column scale) for the two dominant weights, bf16 for
    the other matmul weights, [1, N] f32 biases, and PyTorch's channel-major Flatten folded
    into a row permutation of g_fc1 so the conv output feeds it in (grad_in-row, ch) order."""
    kp = {}
    for name, (w, b) in params.items():
        b2 = b.reshape(1, -1).astype(jnp.float32)
        if name == "g_fc1":
            hc, n = w.shape
            w = w.reshape(_C, grad_in, n).transpose(1, 0, 2).reshape(hc, n)
        if name in _QUANT_KEYS:
            scale = (jnp.maximum(jnp.max(jnp.abs(w), axis=0, keepdims=True), 1e-30)
                     / 127.0).astype(jnp.float32)
            q = jnp.clip(jnp.round(w / scale), -127.0, 127.0).astype(jnp.int8)
            kp[name] = (q, scale, b2)
        else:
            wd = jnp.float32 if name in _KEEP_F32 else jnp.bfloat16
            kp[name] = (w.astype(wd), b2)
    return kp


# ------------------------------ references ----------------------------------------------------

def nasr_forward_mirror(kp, gs, l, cs, os_, num_models):
    """Pure-JAX mirror of exactly the math the fused kernel runs (same int8/bf16 casts)."""
    NM, B, _, H, W = gs.shape
    MB = NM * B
    x = gs[:, :, 0].transpose(2, 0, 1, 3).reshape(H, MB, W).astype(jnp.bfloat16)
    cw, cb = kp["conv"]
    w1q, s1, b1 = kp["g_fc1"]
    w1 = _deq(w1q)
    acc = jnp.zeros((MB, _G1_N), jnp.float32)
    for h in range(H):
        acc = acc + _conv_g1_partial(x[h], cw, cb, w1[h * _C:(h + 1) * _C])
    g2 = _g_finish(acc, s1, b1, *kp["g_fc2"])
    p = {key: kp[key] for key in _SMALL_KEYS}
    return _small_tail(g2,
                       l.astype(jnp.bfloat16),
                       cs.reshape(MB, 1).astype(jnp.float32),
                       os_.reshape(MB, -1).astype(jnp.bfloat16),
                       p, NM, B)


def nasr_forward_ref(params, gs, l, cs, os_, num_models):
    """f32 reference following the PyTorch module layout (channel-major Flatten + transpose)."""
    def lin(x, wb, act="relu"):
        w, b = wb
        y = x @ w + b.reshape(1, -1)
        if act == "relu":
            y = jnp.maximum(y, 0.0)
        elif act == "sigmoid":
            y = 1.0 / (1.0 + jnp.exp(-y))
        return y

    com = None
    for i in range(num_models):
        g = gs[i]
        B, _, H, W = g.shape
        y = lin(g.reshape(B * H, W), params["conv"])                   # [B*H, 512]
        y = y.reshape(B, H, -1).transpose(0, 2, 1).reshape(B, -1)      # PyTorch Flatten (c-major)
        y = lin(y, params["g_fc1"])
        y = lin(y, params["g_fc2"])
        out_g = lin(y, params["g_fc3"])
        z = lin(l, params["l_fc1"]); out_l = lin(z, params["l_fc2"])
        cc = lin(cs[i], params["c_fc1"]); out_c = lin(cc, params["c_fc2"])
        oo = lin(os_[i], params["o_fc1"]); out_o = lin(oo, params["o_fc2"])
        cur = jnp.concatenate([out_g, out_l, out_c, out_o], axis=1)
        com = cur if com is None else jnp.concatenate([cur, com], axis=1)
    h = lin(com, params["m_fc1"]); h = lin(h, params["m_fc2"]); h = lin(h, params["m_fc3"])
    return lin(h, params["m_fc4"], act="sigmoid")


# --------------------------------- main --------------------------------------------------------

if __name__ == "__main__":
    B = 2
    num_classes = 10
    grad_in, grad_out = 8, 16     # gradient_shape = (grad_out, grad_in) in the torch ctor

    for num_models in (1, 2):     # num_models=2 exercises the combine-head concat ordering
        key = jax.random.PRNGKey(0)
        k_par, k_g, k_l, k_c, k_o = jax.random.split(key, 5)

        params = init_params(k_par, num_classes, grad_out, grad_in, num_models)
        kp = prepare_params(params, grad_in)

        gs = jax.random.normal(k_g, (num_models, B, 1, grad_in, grad_out), jnp.float32)
        l = jax.random.normal(k_l, (B, num_classes), jnp.float32)
        cs = jax.random.normal(k_c, (num_models, B, 1), jnp.float32)
        os_ = jax.random.normal(k_o, (num_models, B, num_classes), jnp.float32)

        fwd = jax.jit(functools.partial(nasr_forward_pallas, num_models=num_models))
        out = jax.block_until_ready(fwd(kp, gs, l, cs, os_))

        # 1) tight check vs a pure-JAX mirror of the identical (int8/bf16-matched) math
        mirror = jax.block_until_ready(nasr_forward_mirror(kp, gs, l, cs, os_, num_models))
        # 2) loose check vs the f32 PyTorch-layout reference
        gold = jax.block_until_ready(nasr_forward_ref(params, gs, l, cs, os_, num_models))

        assert out.shape == (B, 1)
        assert np.allclose(np.asarray(out), np.asarray(mirror), rtol=1e-2, atol=1e-4), \
            f"Pallas mismatch vs quantized-matched reference (num_models={num_models})"
        assert np.allclose(np.asarray(out), np.asarray(gold), rtol=5e-2, atol=1e-3), \
            f"Pallas mismatch vs f32 PyTorch-layout reference (num_models={num_models})"

    print("KERNEL_OK")
</pallas_src>

<mosaic_0001>
module attributes {stable_mosaic.version = 11 : i64} {
  func.func @_fused_kernel(%arg0: i32, %arg1: memref<2x2x16xbf16, #tpu.memory_space<vmem>>, %arg2: memref<16x512xbf16, #tpu.memory_space<vmem>>, %arg3: memref<1x512xf32, #tpu.memory_space<vmem>>, %arg4: memref<2x10xbf16, #tpu.memory_space<vmem>>, %arg5: memref<2x1xf32, #tpu.memory_space<vmem>>, %arg6: memref<2x10xbf16, #tpu.memory_space<vmem>>, %arg7: memref<1024x1024xi8, #tpu.memory_space<vmem>>, %arg8: memref<1x1024xf32, #tpu.memory_space<vmem>>, %arg9: memref<1x1024xf32, #tpu.memory_space<vmem>>, %arg10: memref<1024x512xi8, #tpu.memory_space<vmem>>, %arg11: memref<1x512xf32, #tpu.memory_space<vmem>>, %arg12: memref<1x512xf32, #tpu.memory_space<vmem>>, %arg13: memref<512x128xbf16, #tpu.memory_space<vmem>>, %arg14: memref<1x128xf32, #tpu.memory_space<vmem>>, %arg15: memref<10x128xbf16, #tpu.memory_space<vmem>>, %arg16: memref<1x128xf32, #tpu.memory_space<vmem>>, %arg17: memref<128x64xbf16, #tpu.memory_space<vmem>>, %arg18: memref<1x64xf32, #tpu.memory_space<vmem>>, %arg19: memref<10x100xbf16, #tpu.memory_space<vmem>>, %arg20: memref<1x100xf32, #tpu.memory_space<vmem>>, %arg21: memref<100x64xbf16, #tpu.memory_space<vmem>>, %arg22: memref<1x64xf32, #tpu.memory_space<vmem>>, %arg23: memref<1x10xf32, #tpu.memory_space<vmem>>, %arg24: memref<1x10xf32, #tpu.memory_space<vmem>>, %arg25: memref<10x64xbf16, #tpu.memory_space<vmem>>, %arg26: memref<1x64xf32, #tpu.memory_space<vmem>>, %arg27: memref<320x256xbf16, #tpu.memory_space<vmem>>, %arg28: memref<1x256xf32, #tpu.memory_space<vmem>>, %arg29: memref<256x128xbf16, #tpu.memory_space<vmem>>, %arg30: memref<1x128xf32, #tpu.memory_space<vmem>>, %arg31: memref<128x64xbf16, #tpu.memory_space<vmem>>, %arg32: memref<1x64xf32, #tpu.memory_space<vmem>>, %arg33: memref<64x1xf32, #tpu.memory_space<vmem>>, %arg34: memref<1x1xf32, #tpu.memory_space<vmem>>, %arg35: memref<2x1xf32, #tpu.memory_space<vmem>>, %arg36: memref<2x1024xf32, #tpu.memory_space<vmem>>) attributes {dimension_semantics = [#tpu.dimension_semantics<arbitrary>], iteration_bounds = array<i64: 4>, scalar_prefetch = 0 : i64, scratch_operands = 1 : i64, tpu.core_type = #tpu.core_type<tc>, window_params = [{transform_indices = @transform_0, window_bounds = array<i64: 2, 2, 16>}, {pipeline_mode = #tpu.pipeline_mode<synchronous>, transform_indices = @transform_1, window_bounds = array<i64: 16, 512>}, {pipeline_mode = #tpu.pipeline_mode<synchronous>, transform_indices = @transform_2, window_bounds = array<i64: 1, 512>}, {pipeline_mode = #tpu.pipeline_mode<synchronous>, transform_indices = @transform_3, window_bounds = array<i64: 2, 10>}, {pipeline_mode = #tpu.pipeline_mode<synchronous>, transform_indices = @transform_4, window_bounds = array<i64: 2, 1>}, {pipeline_mode = #tpu.pipeline_mode<synchronous>, transform_indices = @transform_5, window_bounds = array<i64: 2, 10>}, {transform_indices = @transform_6, window_bounds = array<i64: 1024, 1024>}, {pipeline_mode = #tpu.pipeline_mode<synchronous>, transform_indices = @transform_7, window_bounds = array<i64: 1, 1024>}, {pipeline_mode = #tpu.pipeline_mode<synchronous>, transform_indices = @transform_8, window_bounds = array<i64: 1, 1024>}, {pipeline_mode = #tpu.pipeline_mode<synchronous>, transform_indices = @transform_9, window_bounds = array<i64: 1024, 512>}, {pipeline_mode = #tpu.pipeline_mode<synchronous>, transform_indices = @transform_10, window_bounds = array<i64: 1, 512>}, {pipeline_mode = #tpu.pipeline_mode<synchronous>, transform_indices = @transform_11, window_bounds = array<i64: 1, 512>}, {pipeline_mode = #tpu.pipeline_mode<synchronous>, transform_indices = @transform_12, window_bounds = array<i64: 512, 128>}, {pipeline_mode = #tpu.pipeline_mode<synchronous>, transform_indices = @transform_13, window_bounds = array<i64: 1, 128>}, {pipeline_mode = #tpu.pipeline_mode<synchronous>, transform_indices = @transform_14, window_bounds = array<i64: 10, 128>}, {pipeline_mode = #tpu.pipeline_mode<synchronous>, transform_indices = @transform_15, window_bounds = array<i64: 1, 128>}, {pipeline_mode = #tpu.pipeline_mode<synchronous>, transform_indices = @transform_16, window_bounds = array<i64: 128, 64>}, {pipeline_mode = #tpu.pipeline_mode<synchronous>, transform_indices = @transform_17, window_bounds = array<i64: 1, 64>}, {pipeline_mode = #tpu.pipeline_mode<synchronous>, transform_indices = @transform_18, window_bounds = array<i64: 10, 100>}, {pipeline_mode = #tpu.pipeline_mode<synchronous>, transform_indices = @transform_19, window_bounds = array<i64: 1, 100>}, {pipeline_mode = #tpu.pipeline_mode<synchronous>, transform_indices = @transform_20, window_bounds = array<i64: 100, 64>}, {pipeline_mode = #tpu.pipeline_mode<synchronous>, transform_indices = @transform_21, window_bounds = array<i64: 1, 64>}, {pipeline_mode = #tpu.pipeline_mode<synchronous>, transform_indices = @transform_22, window_bounds = array<i64: 1, 10>}, {pipeline_mode = #tpu.pipeline_mode<synchronous>, transform_indices = @transform_23, window_bounds = array<i64: 1, 10>}, {pipeline_mode = #tpu.pipeline_mode<synchronous>, transform_indices = @transform_24, window_bounds = array<i64: 10, 64>}, {pipeline_mode = #tpu.pipeline_mode<synchronous>, transform_indices = @transform_25, window_bounds = array<i64: 1, 64>}, {pipeline_mode = #tpu.pipeline_mode<synchronous>, transform_indices = @transform_26, window_bounds = array<i64: 320, 256>}, {pipeline_mode = #tpu.pipeline_mode<synchronous>, transform_indices = @transform_27, window_bounds = array<i64: 1, 256>}, {pipeline_mode = #tpu.pipeline_mode<synchronous>, transform_indices = @transform_28, window_bounds = array<i64: 256, 128>}, {pipeline_mode = #tpu.pipeline_mode<synchronous>, transform_indices = @transform_29, window_bounds = array<i64: 1, 128>}, {pipeline_mode = #tpu.pipeline_mode<synchronous>, transform_indices = @transform_30, window_bounds = array<i64: 128, 64>}, {pipeline_mode = #tpu.pipeline_mode<synchronous>, transform_indices = @transform_31, window_bounds = array<i64: 1, 64>}, {pipeline_mode = #tpu.pipeline_mode<synchronous>, transform_indices = @transform_32, window_bounds = array<i64: 64, 1>}, {pipeline_mode = #tpu.pipeline_mode<synchronous>, transform_indices = @transform_33, window_bounds = array<i64: 1, 1>}, {pipeline_mode = #tpu.pipeline_mode<synchronous>, transform_indices = @transform_34, window_bounds = array<i64: 2, 1>}]} {
    %c0_i32 = arith.constant 0 : i32
    %0 = arith.cmpi eq, %arg0, %c0_i32 : i32
    %1 = arith.extui %0 : i1 to i32
    %c0_i32_0 = arith.constant 0 : i32
    %2 = arith.cmpi ne, %1, %c0_i32_0 : i32
    scf.if %2 {
      %cst_26 = arith.constant 0.000000e+00 : f32
      %38 = vector.broadcast %cst_26 : f32 to vector<2x1024xf32>
      %c0_27 = arith.constant 0 : index
      %c0_28 = arith.constant 0 : index
      %39 = vector.load %arg36[%c0_27, %c0_28] : memref<2x1024xf32, #tpu.memory_space<vmem>>, vector<2x1024xf32>
      tpu.vector_store %arg36[%c0_27, %c0_28], %38 {strides = array<i32>} : memref<2x1024xf32, #tpu.memory_space<vmem>>, vector<2x1024xf32>,
    } else {
    }
    %c0 = arith.constant 0 : index
    %c0_1 = arith.constant 0 : index
    %3 = vector.load %arg2[%c0, %c0_1] : memref<16x512xbf16, #tpu.memory_space<vmem>>, vector<16x512xbf16>
    %c0_2 = arith.constant 0 : index
    %c0_3 = arith.constant 0 : index
    %4 = vector.load %arg3[%c0_2, %c0_3] : memref<1x512xf32, #tpu.memory_space<vmem>>, vector<1x512xf32>
    %c0_4 = arith.constant 0 : index
    %c0_5 = arith.constant 0 : index
    %5 = vector.load %arg7[%c0_4, %c0_5] : memref<1024x1024xi8, #tpu.memory_space<vmem>>, vector<512x1024xi8>
    %6 = arith.sitofp %5 : vector<512x1024xi8> to vector<512x1024xf32>
    %7 = arith.truncf %6 : vector<512x1024xf32> to vector<512x1024xbf16>
    %c0_6 = arith.constant 0 : index
    %c0_7 = arith.constant 0 : index
    %8 = vector.load %arg36[%c0_6, %c0_7] : memref<2x1024xf32, #tpu.memory_space<vmem>>, vector<2x1024xf32>
    %c0_8 = arith.constant 0 : index
    %c0_9 = arith.constant 0 : index
    %c0_10 = arith.constant 0 : index
    %9 = vector.load %arg1[%c0_8, %c0_9, %c0_10] : memref<2x2x16xbf16, #tpu.memory_space<vmem>>, vector<1x2x16xbf16>
    %10 = vector.shape_cast %9 : vector<1x2x16xbf16> to vector<2x16xbf16>
    %cst = arith.constant dense<0.000000e+00> : vector<2x512xf32>
    %11 = tpu.matmul %10, %3, %cst {dimension_numbers = #tpu.dot_dimension_numbers<[1], [0], [0], [1], [0, 0, 1, 1], [], []>} : vector<2x16xbf16>, vector<16x512xbf16>, vector<2x512xf32> -> vector<2x512xf32>
    %12 = vector.broadcast %4 : vector<1x512xf32> to vector<2x512xf32>
    %13 = arith.addf %11, %12 : vector<2x512xf32>
    %cst_11 = arith.constant 0.000000e+00 : f32
    %14 = vector.broadcast %cst_11 : f32 to vector<2x512xf32>
    %15 = arith.maximumf %13, %14 : vector<2x512xf32>
    %16 = arith.truncf %15 : vector<2x512xf32> to vector<2x512xbf16>
    %cst_12 = arith.constant dense<0.000000e+00> : vector<2x1024xf32>
    %17 = tpu.matmul %16, %7, %cst_12 {dimension_numbers = #tpu.dot_dimension_numbers<[1], [0], [0], [1], [0, 0, 1, 1], [], []>} : vector<2x512xbf16>, vector<512x1024xbf16>, vector<2x1024xf32> -> vector<2x1024xf32>
    %18 = arith.addf %8, %17 : vector<2x1024xf32>
    %c0_13 = arith.constant 0 : index
    %c0_14 = arith.constant 0 : index
    %19 = vector.load %arg36[%c0_13, %c0_14] : memref<2x1024xf32, #tpu.memory_space<vmem>>, vector<2x1024xf32>
    tpu.vector_store %arg36[%c0_13, %c0_14], %18 {strides = array<i32>} : memref<2x1024xf32, #tpu.memory_space<vmem>>, vector<2x1024xf32>,
    %c512 = arith.constant 512 : index
    %c0_15 = arith.constant 0 : index
    %20 = vector.load %arg7[%c512, %c0_15] : memref<1024x1024xi8, #tpu.memory_space<vmem>>, vector<512x1024xi8>
    %21 = arith.sitofp %20 : vector<512x1024xi8> to vector<512x1024xf32>
    %22 = arith.truncf %21 : vector<512x1024xf32> to vector<512x1024xbf16>
    %c0_16 = arith.constant 0 : index
    %c0_17 = arith.constant 0 : index
    %23 = vector.load %arg36[%c0_16, %c0_17] : memref<2x1024xf32, #tpu.memory_space<vmem>>, vector<2x1024xf32>
    %c1 = arith.constant 1 : index
    %c0_18 = arith.constant 0 : index
    %c0_19 = arith.constant 0 : index
    %24 = vector.load %arg1[%c1, %c0_18, %c0_19] : memref<2x2x16xbf16, #tpu.memory_space<vmem>>, vector<1x2x16xbf16>
    %25 = vector.shape_cast %24 : vector<1x2x16xbf16> to vector<2x16xbf16>
    %cst_20 = arith.constant dense<0.000000e+00> : vector<2x512xf32>
    %26 = tpu.matmul %25, %3, %cst_20 {dimension_numbers = #tpu.dot_dimension_numbers<[1], [0], [0], [1], [0, 0, 1, 1], [], []>} : vector<2x16xbf16>, vector<16x512xbf16>, vector<2x512xf32> -> vector<2x512xf32>
    %27 = vector.broadcast %4 : vector<1x512xf32> to vector<2x512xf32>
    %28 = arith.addf %26, %27 : vector<2x512xf32>
    %cst_21 = arith.constant 0.000000e+00 : f32
    %29 = vector.broadcast %cst_21 : f32 to vector<2x512xf32>
    %30 = arith.maximumf %28, %29 : vector<2x512xf32>
    %31 = arith.truncf %30 : vector<2x512xf32> to vector<2x512xbf16>
    %cst_22 = arith.constant dense<0.000000e+00> : vector<2x1024xf32>
    %32 = tpu.matmul %31, %22, %cst_22 {dimension_numbers = #tpu.dot_dimension_numbers<[1], [0], [0], [1], [0, 0, 1, 1], [], []>} : vector<2x512xbf16>, vector<512x1024xbf16>, vector<2x1024xf32> -> vector<2x1024xf32>
    %33 = arith.addf %23, %32 : vector<2x1024xf32>
    %c0_23 = arith.constant 0 : index
    %c0_24 = arith.constant 0 : index
    %34 = vector.load %arg36[%c0_23, %c0_24] : memref<2x1024xf32, #tpu.memory_space<vmem>>, vector<2x1024xf32>
    tpu.vector_store %arg36[%c0_23, %c0_24], %33 {strides = array<i32>} : memref<2x1024xf32, #tpu.memory_space<vmem>>, vector<2x1024xf32>,
    %c3_i32 = arith.constant 3 : i32
    %35 = arith.cmpi eq, %arg0, %c3_i32 : i32
    %36 = arith.extui %35 : i1 to i32
    %c0_i32_25 = arith.constant 0 : i32
    %37 = arith.cmpi ne, %36, %c0_i32_25 : i32
    scf.if %37 {
      %c0_26 = arith.constant 0 : index
      %c0_27 = arith.constant 0 : index
      %38 = vector.load %arg13[%c0_26, %c0_27] : memref<512x128xbf16, #tpu.memory_space<vmem>>, vector<512x128xbf16>
      %c0_28 = arith.constant 0 : index
      %c0_29 = arith.constant 0 : index
      %39 = vector.load %arg14[%c0_28, %c0_29] : memref<1x128xf32, #tpu.memory_space<vmem>>, vector<1x128xf32>
      %c0_30 = arith.constant 0 : index
      %c0_31 = arith.constant 0 : index
      %40 = vector.load %arg15[%c0_30, %c0_31] : memref<10x128xbf16, #tpu.memory_space<vmem>>, vector<10x128xbf16>
      %c0_32 = arith.constant 0 : index
      %c0_33 = arith.constant 0 : index
      %41 = vector.load %arg16[%c0_32, %c0_33] : memref<1x128xf32, #tpu.memory_space<vmem>>, vector<1x128xf32>
      %c0_34 = arith.constant 0 : index
      %c0_35 = arith.constant 0 : index
      %42 = vector.load %arg17[%c0_34, %c0_35] : memref<128x64xbf16, #tpu.memory_space<vmem>>, vector<128x64xbf16>
      %c0_36 = arith.constant 0 : index
      %c0_37 = arith.constant 0 : index
      %43 = vector.load %arg18[%c0_36, %c0_37] : memref<1x64xf32, #tpu.memory_space<vmem>>, vector<1x64xf32>
      %c0_38 = arith.constant 0 : index
      %c0_39 = arith.constant 0 : index
      %44 = vector.load %arg19[%c0_38, %c0_39] : memref<10x100xbf16, #tpu.memory_space<vmem>>, vector<10x100xbf16>
      %c0_40 = arith.constant 0 : index
      %c0_41 = arith.constant 0 : index
      %45 = vector.load %arg20[%c0_40, %c0_41] : memref<1x100xf32, #tpu.memory_space<vmem>>, vector<1x100xf32>
      %c0_42 = arith.constant 0 : index
      %c0_43 = arith.constant 0 : index
      %46 = vector.load %arg21[%c0_42, %c0_43] : memref<100x64xbf16, #tpu.memory_space<vmem>>, vector<100x64xbf16>
      %c0_44 = arith.constant 0 : index
      %c0_45 = arith.constant 0 : index
      %47 = vector.load %arg22[%c0_44, %c0_45] : memref<1x64xf32, #tpu.memory_space<vmem>>, vector<1x64xf32>
      %c0_46 = arith.constant 0 : index
      %c0_47 = arith.constant 0 : index
      %48 = vector.load %arg23[%c0_46, %c0_47] : memref<1x10xf32, #tpu.memory_space<vmem>>, vector<1x10xf32>
      %c0_48 = arith.constant 0 : index
      %c0_49 = arith.constant 0 : index
      %49 = vector.load %arg24[%c0_48, %c0_49] : memref<1x10xf32, #tpu.memory_space<vmem>>, vector<1x10xf32>
      %c0_50 = arith.constant 0 : index
      %c0_51 = arith.constant 0 : index
      %50 = vector.load %arg25[%c0_50, %c0_51] : memref<10x64xbf16, #tpu.memory_space<vmem>>, vector<10x64xbf16>
      %c0_52 = arith.constant 0 : index
      %c0_53 = arith.constant 0 : index
      %51 = vector.load %arg26[%c0_52, %c0_53] : memref<1x64xf32, #tpu.memory_space<vmem>>, vector<1x64xf32>
      %c0_54 = arith.constant 0 : index
      %c0_55 = arith.constant 0 : index
      %52 = vector.load %arg27[%c0_54, %c0_55] : memref<320x256xbf16, #tpu.memory_space<vmem>>, vector<320x256xbf16>
      %c0_56 = arith.constant 0 : index
      %c0_57 = arith.constant 0 : index
      %53 = vector.load %arg28[%c0_56, %c0_57] : memref<1x256xf32, #tpu.memory_space<vmem>>, vector<1x256xf32>
      %c0_58 = arith.constant 0 : index
      %c0_59 = arith.constant 0 : index
      %54 = vector.load %arg29[%c0_58, %c0_59] : memref<256x128xbf16, #tpu.memory_space<vmem>>, vector<256x128xbf16>
      %c0_60 = arith.constant 0 : index
      %c0_61 = arith.constant 0 : index
      %55 = vector.load %arg30[%c0_60, %c0_61] : memref<1x128xf32, #tpu.memory_space<vmem>>, vector<1x128xf32>
      %c0_62 = arith.constant 0 : index
      %c0_63 = arith.constant 0 : index
      %56 = vector.load %arg31[%c0_62, %c0_63] : memref<128x64xbf16, #tpu.memory_space<vmem>>, vector<128x64xbf16>
      %c0_64 = arith.constant 0 : index
      %c0_65 = arith.constant 0 : index
      %57 = vector.load %arg32[%c0_64, %c0_65] : memref<1x64xf32, #tpu.memory_space<vmem>>, vector<1x64xf32>
      %c0_66 = arith.constant 0 : index
      %c0_67 = arith.constant 0 : index
      %58 = vector.load %arg33[%c0_66, %c0_67] : memref<64x1xf32, #tpu.memory_space<vmem>>, vector<64x1xf32>
      %c0_68 = arith.constant 0 : index
      %c0_69 = arith.constant 0 : index
      %59 = vector.load %arg34[%c0_68, %c0_69] : memref<1x1xf32, #tpu.memory_space<vmem>>, vector<1x1xf32>
      %c0_70 = arith.constant 0 : index
      %c0_71 = arith.constant 0 : index
      %60 = vector.load %arg36[%c0_70, %c0_71] : memref<2x1024xf32, #tpu.memory_space<vmem>>, vector<2x1024xf32>
      %c0_72 = arith.constant 0 : index
      %c0_73 = arith.constant 0 : index
      %61 = vector.load %arg8[%c0_72, %c0_73] : memref<1x1024xf32, #tpu.memory_space<vmem>>, vector<1x1024xf32>
      %c0_74 = arith.constant 0 : index
      %c0_75 = arith.constant 0 : index
      %62 = vector.load %arg9[%c0_74, %c0_75] : memref<1x1024xf32, #tpu.memory_space<vmem>>, vector<1x1024xf32>
      %c0_76 = arith.constant 0 : index
      %c0_77 = arith.constant 0 : index
      %63 = vector.load %arg10[%c0_76, %c0_77] : memref<1024x512xi8, #tpu.memory_space<vmem>>, vector<1024x512xi8>
      %c0_78 = arith.constant 0 : index
      %c0_79 = arith.constant 0 : index
      %64 = vector.load %arg11[%c0_78, %c0_79] : memref<1x512xf32, #tpu.memory_space<vmem>>, vector<1x512xf32>
      %c0_80 = arith.constant 0 : index
      %c0_81 = arith.constant 0 : index
      %65 = vector.load %arg12[%c0_80, %c0_81] : memref<1x512xf32, #tpu.memory_space<vmem>>, vector<1x512xf32>
      %66 = vector.broadcast %61 : vector<1x1024xf32> to vector<2x1024xf32>
      %67 = arith.mulf %60, %66 : vector<2x1024xf32>
      %68 = vector.broadcast %62 : vector<1x1024xf32> to vector<2x1024xf32>
      %69 = arith.addf %67, %68 : vector<2x1024xf32>
      %cst_82 = arith.constant 0.000000e+00 : f32
      %70 = vector.broadcast %cst_82 : f32 to vector<2x1024xf32>
      %71 = arith.maximumf %69, %70 : vector<2x1024xf32>
      %72 = arith.truncf %71 : vector<2x1024xf32> to vector<2x1024xbf16>
      %73 = arith.sitofp %63 : vector<1024x512xi8> to vector<1024x512xf32>
      %74 = arith.truncf %73 : vector<1024x512xf32> to vector<1024x512xbf16>
      %cst_83 = arith.constant dense<0.000000e+00> : vector<2x512xf32>
      %75 = tpu.matmul %72, %74, %cst_83 {dimension_numbers = #tpu.dot_dimension_numbers<[1], [0], [0], [1], [0, 0, 1, 1], [], []>} : vector<2x1024xbf16>, vector<1024x512xbf16>, vector<2x512xf32> -> vector<2x512xf32>
      %76 = vector.broadcast %64 : vector<1x512xf32> to vector<2x512xf32>
      %77 = arith.mulf %75, %76 : vector<2x512xf32>
      %78 = vector.broadcast %65 : vector<1x512xf32> to vector<2x512xf32>
      %79 = arith.addf %77, %78 : vector<2x512xf32>
      %cst_84 = arith.constant 0.000000e+00 : f32
      %80 = vector.broadcast %cst_84 : f32 to vector<2x512xf32>
      %81 = arith.maximumf %79, %80 : vector<2x512xf32>
      %c0_85 = arith.constant 0 : index
      %c0_86 = arith.constant 0 : index
      %82 = vector.load %arg4[%c0_85, %c0_86] : memref<2x10xbf16, #tpu.memory_space<vmem>>, vector<2x10xbf16>
      %c0_87 = arith.constant 0 : index
      %c0_88 = arith.constant 0 : index
      %83 = vector.load %arg5[%c0_87, %c0_88] : memref<2x1xf32, #tpu.memory_space<vmem>>, vector<2x1xf32>
      %c0_89 = arith.constant 0 : index
      %c0_90 = arith.constant 0 : index
      %84 = vector.load %arg6[%c0_89, %c0_90] : memref<2x10xbf16, #tpu.memory_space<vmem>>, vector<2x10xbf16>
      %85 = arith.truncf %81 : vector<2x512xf32> to vector<2x512xbf16>
      %cst_91 = arith.constant dense<0.000000e+00> : vector<2x128xf32>
      %86 = tpu.matmul %85, %38, %cst_91 {dimension_numbers = #tpu.dot_dimension_numbers<[1], [0], [0], [1], [0, 0, 1, 1], [], []>} : vector<2x512xbf16>, vector<512x128xbf16>, vector<2x128xf32> -> vector<2x128xf32>
      %87 = vector.broadcast %39 : vector<1x128xf32> to vector<2x128xf32>
      %88 = arith.addf %86, %87 : vector<2x128xf32>
      %cst_92 = arith.constant 0.000000e+00 : f32
      %89 = vector.broadcast %cst_92 : f32 to vector<2x128xf32>
      %90 = arith.maximumf %88, %89 : vector<2x128xf32>
      %cst_93 = arith.constant dense<0.000000e+00> : vector<2x128xf32>
      %91 = tpu.matmul %82, %40, %cst_93 {dimension_numbers = #tpu.dot_dimension_numbers<[1], [0], [0], [1], [0, 0, 1, 1], [], []>} : vector<2x10xbf16>, vector<10x128xbf16>, vector<2x128xf32> -> vector<2x128xf32>
      %92 = vector.broadcast %41 : vector<1x128xf32> to vector<2x128xf32>
      %93 = arith.addf %91, %92 : vector<2x128xf32>
      %cst_94 = arith.constant 0.000000e+00 : f32
      %94 = vector.broadcast %cst_94 : f32 to vector<2x128xf32>
      %95 = arith.maximumf %93, %94 : vector<2x128xf32>
      %96 = arith.truncf %95 : vector<2x128xf32> to vector<2x128xbf16>
      %cst_95 = arith.constant dense<0.000000e+00> : vector<2x64xf32>
      %97 = tpu.matmul %96, %42, %cst_95 {dimension_numbers = #tpu.dot_dimension_numbers<[1], [0], [0], [1], [0, 0, 1, 1], [], []>} : vector<2x128xbf16>, vector<128x64xbf16>, vector<2x64xf32> -> vector<2x64xf32>
      %98 = vector.broadcast %43 : vector<1x64xf32> to vector<2x64xf32>
      %99 = arith.addf %97, %98 : vector<2x64xf32>
      %cst_96 = arith.constant 0.000000e+00 : f32
      %100 = vector.broadcast %cst_96 : f32 to vector<2x64xf32>
      %101 = arith.maximumf %99, %100 : vector<2x64xf32>
      %102 = vector.broadcast %83 : vector<2x1xf32> to vector<2x10xf32>
      %103 = vector.broadcast %48 : vector<1x10xf32> to vector<2x10xf32>
      %104 = arith.mulf %102, %103 : vector<2x10xf32>
      %105 = vector.broadcast %49 : vector<1x10xf32> to vector<2x10xf32>
      %106 = arith.addf %104, %105 : vector<2x10xf32>
      %cst_97 = arith.constant 0.000000e+00 : f32
      %107 = vector.broadcast %cst_97 : f32 to vector<2x10xf32>
      %108 = arith.maximumf %106, %107 : vector<2x10xf32>
      %109 = arith.truncf %108 : vector<2x10xf32> to vector<2x10xbf16>
      %cst_98 = arith.constant dense<0.000000e+00> : vector<2x64xf32>
      %110 = tpu.matmul %109, %50, %cst_98 {dimension_numbers = #tpu.dot_dimension_numbers<[1], [0], [0], [1], [0, 0, 1, 1], [], []>} : vector<2x10xbf16>, vector<10x64xbf16>, vector<2x64xf32> -> vector<2x64xf32>
      %111 = vector.broadcast %51 : vector<1x64xf32> to vector<2x64xf32>
      %112 = arith.addf %110, %111 : vector<2x64xf32>
      %cst_99 = arith.constant 0.000000e+00 : f32
      %113 = vector.broadcast %cst_99 : f32 to vector<2x64xf32>
      %114 = arith.maximumf %112, %113 : vector<2x64xf32>
      %cst_100 = arith.constant dense<0.000000e+00> : vector<2x100xf32>
      %115 = tpu.matmul %84, %44, %cst_100 {dimension_numbers = #tpu.dot_dimension_numbers<[1], [0], [0], [1], [0, 0, 1, 1], [], []>} : vector<2x10xbf16>, vector<10x100xbf16>, vector<2x100xf32> -> vector<2x100xf32>
      %116 = vector.broadcast %45 : vector<1x100xf32> to vector<2x100xf32>
      %117 = arith.addf %115, %116 : vector<2x100xf32>
      %cst_101 = arith.constant 0.000000e+00 : f32
      %118 = vector.broadcast %cst_101 : f32 to vector<2x100xf32>
      %119 = arith.maximumf %117, %118 : vector<2x100xf32>
      %120 = arith.truncf %119 : vector<2x100xf32> to vector<2x100xbf16>
      %cst_102 = arith.constant dense<0.000000e+00> : vector<2x64xf32>
      %121 = tpu.matmul %120, %46, %cst_102 {dimension_numbers = #tpu.dot_dimension_numbers<[1], [0], [0], [1], [0, 0, 1, 1], [], []>} : vector<2x100xbf16>, vector<100x64xbf16>, vector<2x64xf32> -> vector<2x64xf32>
      %122 = vector.broadcast %47 : vector<1x64xf32> to vector<2x64xf32>
      %123 = arith.addf %121, %122 : vector<2x64xf32>
      %cst_103 = arith.constant 0.000000e+00 : f32
      %124 = vector.broadcast %cst_103 : f32 to vector<2x64xf32>
      %125 = arith.maximumf %123, %124 : vector<2x64xf32>
      %126 = arith.truncf %90 : vector<2x128xf32> to vector<2x128xbf16>
      %127 = vector.extract_strided_slice %52 {offsets = [0, 0], sizes = [128, 256], strides = [1, 1]} : vector<320x256xbf16> to vector<128x256xbf16>
      %cst_104 = arith.constant dense<0.000000e+00> : vector<2x256xf32>
      %128 = tpu.matmul %126, %127, %cst_104 {dimension_numbers = #tpu.dot_dimension_numbers<[1], [0], [0], [1], [0, 0, 1, 1], [], []>} : vector<2x128xbf16>, vector<128x256xbf16>, vector<2x256xf32> -> vector<2x256xf32>
      %129 = arith.truncf %101 : vector<2x64xf32> to vector<2x64xbf16>
      %130 = vector.extract_strided_slice %52 {offsets = [128, 0], sizes = [64, 256], strides = [1, 1]} : vector<320x256xbf16> to vector<64x256xbf16>
      %cst_105 = arith.constant dense<0.000000e+00> : vector<2x256xf32>
      %131 = tpu.matmul %129, %130, %cst_105 {dimension_numbers = #tpu.dot_dimension_numbers<[1], [0], [0], [1], [0, 0, 1, 1], [], []>} : vector<2x64xbf16>, vector<64x256xbf16>, vector<2x256xf32> -> vector<2x256xf32>
      %132 = arith.addf %128, %131 : vector<2x256xf32>
      %133 = arith.truncf %114 : vector<2x64xf32> to vector<2x64xbf16>
      %134 = vector.extract_strided_slice %52 {offsets = [192, 0], sizes = [64, 256], strides = [1, 1]} : vector<320x256xbf16> to vector<64x256xbf16>
      %cst_106 = arith.constant dense<0.000000e+00> : vector<2x256xf32>
      %135 = tpu.matmul %133, %134, %cst_106 {dimension_numbers = #tpu.dot_dimension_numbers<[1], [0], [0], [1], [0, 0, 1, 1], [], []>} : vector<2x64xbf16>, vector<64x256xbf16>, vector<2x256xf32> -> vector<2x256xf32>
      %136 = arith.addf %132, %135 : vector<2x256xf32>
      %137 = arith.truncf %125 : vector<2x64xf32> to vector<2x64xbf16>
      %138 = vector.extract_strided_slice %52 {offsets = [256, 0], sizes = [64, 256], strides = [1, 1]} : vector<320x256xbf16> to vector<64x256xbf16>
      %cst_107 = arith.constant dense<0.000000e+00> : vector<2x256xf32>
      %139 = tpu.matmul %137, %138, %cst_107 {dimension_numbers = #tpu.dot_dimension_numbers<[1], [0], [0], [1], [0, 0, 1, 1], [], []>} : vector<2x64xbf16>, vector<64x256xbf16>, vector<2x256xf32> -> vector<2x256xf32>
      %140 = arith.addf %136, %139 : vector<2x256xf32>
      %141 = vector.broadcast %53 : vector<1x256xf32> to vector<2x256xf32>
      %142 = arith.addf %140, %141 : vector<2x256xf32>
      %cst_108 = arith.constant 0.000000e+00 : f32
      %143 = vector.broadcast %cst_108 : f32 to vector<2x256xf32>
      %144 = arith.maximumf %142, %143 : vector<2x256xf32>
      %145 = arith.truncf %144 : vector<2x256xf32> to vector<2x256xbf16>
      %cst_109 = arith.constant dense<0.000000e+00> : vector<2x128xf32>
      %146 = tpu.matmul %145, %54, %cst_109 {dimension_numbers = #tpu.dot_dimension_numbers<[1], [0], [0], [1], [0, 0, 1, 1], [], []>} : vector<2x256xbf16>, vector<256x128xbf16>, vector<2x128xf32> -> vector<2x128xf32>
      %147 = vector.broadcast %55 : vector<1x128xf32> to vector<2x128xf32>
      %148 = arith.addf %146, %147 : vector<2x128xf32>
      %cst_110 = arith.constant 0.000000e+00 : f32
      %149 = vector.broadcast %cst_110 : f32 to vector<2x128xf32>
      %150 = arith.maximumf %148, %149 : vector<2x128xf32>
      %151 = arith.truncf %150 : vector<2x128xf32> to vector<2x128xbf16>
      %cst_111 = arith.constant dense<0.000000e+00> : vector<2x64xf32>
      %152 = tpu.matmul %151, %56, %cst_111 {dimension_numbers = #tpu.dot_dimension_numbers<[1], [0], [0], [1], [0, 0, 1, 1], [], []>} : vector<2x128xbf16>, vector<128x64xbf16>, vector<2x64xf32> -> vector<2x64xf32>
      %153 = vector.broadcast %57 : vector<1x64xf32> to vector<2x64xf32>
      %154 = arith.addf %152, %153 : vector<2x64xf32>
      %cst_112 = arith.constant 0.000000e+00 : f32
      %155 = vector.broadcast %cst_112 : f32 to vector<2x64xf32>
      %156 = arith.maximumf %154, %155 : vector<2x64xf32>
      %cst_113 = arith.constant dense<0.000000e+00> : vector<2x1xf32>
      %157 = tpu.matmul %156, %58, %cst_113 {dimension_numbers = #tpu.dot_dimension_numbers<[1], [0], [0], [1], [0, 0, 1, 1], [], []>} : vector<2x64xf32>, vector<64x1xf32>, vector<2x1xf32> -> vector<2x1xf32>
      %158 = vector.broadcast %59 : vector<1x1xf32> to vector<2x1xf32>
      %159 = arith.addf %157, %158 : vector<2x1xf32>
      %cst_114 = arith.constant 0.000000e+00 : f32
      %160 = vector.broadcast %cst_114 : f32 to vector<2x1xf32>
      %161 = arith.subf %160, %159 : vector<2x1xf32>
      %162 = math.exp %161 : vector<2x1xf32>
      %cst_115 = arith.constant 1.000000e+00 : f32
      %163 = vector.broadcast %cst_115 : f32 to vector<2x1xf32>
      %164 = arith.addf %163, %162 : vector<2x1xf32>
      %cst_116 = arith.constant 1.000000e+00 : f32
      %165 = vector.broadcast %cst_116 : f32 to vector<2x1xf32>
      %166 = arith.divf %165, %164 : vector<2x1xf32>
      %c0_117 = arith.constant 0 : index
      %c0_118 = arith.constant 0 : index
      %167 = vector.load %arg35[%c0_117, %c0_118] : memref<2x1xf32, #tpu.memory_space<vmem>>, vector<2x1xf32>
      tpu.vector_store %arg35[%c0_117, %c0_118], %166 {strides = array<i32>} : memref<2x1xf32, #tpu.memory_space<vmem>>, vector<2x1xf32>,
    } else {
    }
    return
  }
  func.func @transform_0(%arg0: i32) -> (i32, i32, i32) {
    %c0_i32 = arith.constant 0 : i32
    %c0_i32_0 = arith.constant 0 : i32
    %c0_i32_1 = arith.constant 0 : i32
    return %arg0, %c0_i32, %c0_i32_0 : i32, i32, i32
  }
  func.func @transform_1(%arg0: i32) -> (i32, i32) {
    %c0_i32 = arith.constant 0 : i32
    %c0_i32_0 = arith.constant 0 : i32
    %c0_i32_1 = arith.constant 0 : i32
    return %c0_i32, %c0_i32_0 : i32, i32
  }
  func.func @transform_2(%arg0: i32) -> (i32, i32) {
    %c0_i32 = arith.constant 0 : i32
    %c0_i32_0 = arith.constant 0 : i32
    %c0_i32_1 = arith.constant 0 : i32
    return %c0_i32, %c0_i32_0 : i32, i32
  }
  func.func @transform_3(%arg0: i32) -> (i32, i32) {
    %c0_i32 = arith.constant 0 : i32
    %c0_i32_0 = arith.constant 0 : i32
    %c0_i32_1 = arith.constant 0 : i32
    return %c0_i32, %c0_i32_0 : i32, i32
  }
  func.func @transform_4(%arg0: i32) -> (i32, i32) {
    %c0_i32 = arith.constant 0 : i32
    %c0_i32_0 = arith.constant 0 : i32
    %c0_i32_1 = arith.constant 0 : i32
    return %c0_i32, %c0_i32_0 : i32, i32
  }
  func.func @transform_5(%arg0: i32) -> (i32, i32) {
    %c0_i32 = arith.constant 0 : i32
    %c0_i32_0 = arith.constant 0 : i32
    %c0_i32_1 = arith.constant 0 : i32
    return %c0_i32, %c0_i32_0 : i32, i32
  }
  func.func @transform_6(%arg0: i32) -> (i32, i32) {
    %c0_i32 = arith.constant 0 : i32
    %c0_i32_0 = arith.constant 0 : i32
    return %arg0, %c0_i32 : i32, i32
  }
  func.func @transform_7(%arg0: i32) -> (i32, i32) {
    %c0_i32 = arith.constant 0 : i32
    %c0_i32_0 = arith.constant 0 : i32
    %c0_i32_1 = arith.constant 0 : i32
    return %c0_i32, %c0_i32_0 : i32, i32
  }
  func.func @transform_8(%arg0: i32) -> (i32, i32) {
    %c0_i32 = arith.constant 0 : i32
    %c0_i32_0 = arith.constant 0 : i32
    %c0_i32_1 = arith.constant 0 : i32
    return %c0_i32, %c0_i32_0 : i32, i32
  }
  func.func @transform_9(%arg0: i32) -> (i32, i32) {
    %c0_i32 = arith.constant 0 : i32
    %c0_i32_0 = arith.constant 0 : i32
    %c0_i32_1 = arith.constant 0 : i32
    return %c0_i32, %c0_i32_0 : i32, i32
  }
  func.func @transform_10(%arg0: i32) -> (i32, i32) {
    %c0_i32 = arith.constant 0 : i32
    %c0_i32_0 = arith.constant 0 : i32
    %c0_i32_1 = arith.constant 0 : i32
    return %c0_i32, %c0_i32_0 : i32, i32
  }
  func.func @transform_11(%arg0: i32) -> (i32, i32) {
    %c0_i32 = arith.constant 0 : i32
    %c0_i32_0 = arith.constant 0 : i32
    %c0_i32_1 = arith.constant 0 : i32
    return %c0_i32, %c0_i32_0 : i32, i32
  }
  func.func @transform_12(%arg0: i32) -> (i32, i32) {
    %c0_i32 = arith.constant 0 : i32
    %c0_i32_0 = arith.constant 0 : i32
    %c0_i32_1 = arith.constant 0 : i32
    return %c0_i32, %c0_i32_0 : i32, i32
  }
  func.func @transform_13(%arg0: i32) -> (i32, i32) {
    %c0_i32 = arith.constant 0 : i32
    %c0_i32_0 = arith.constant 0 : i32
    %c0_i32_1 = arith.constant 0 : i32
    return %c0_i32, %c0_i32_0 : i32, i32
  }
  func.func @transform_14(%arg0: i32) -> (i32, i32) {
    %c0_i32 = arith.constant 0 : i32
    %c0_i32_0 = arith.constant 0 : i32
    %c0_i32_1 = arith.constant 0 : i32
    return %c0_i32, %c0_i32_0 : i32, i32
  }
  func.func @transform_15(%arg0: i32) -> (i32, i32) {
    %c0_i32 = arith.constant 0 : i32
    %c0_i32_0 = arith.constant 0 : i32
    %c0_i32_1 = arith.constant 0 : i32
    return %c0_i32, %c0_i32_0 : i32, i32
  }
  func.func @transform_16(%arg0: i32) -> (i32, i32) {
    %c0_i32 = arith.constant 0 : i32
    %c0_i32_0 = arith.constant 0 : i32
    %c0_i32_1 = arith.constant 0 : i32
    return %c0_i32, %c0_i32_0 : i32, i32
  }
  func.func @transform_17(%arg0: i32) -> (i32, i32) {
    %c0_i32 = arith.constant 0 : i32
    %c0_i32_0 = arith.constant 0 : i32
    %c0_i32_1 = arith.constant 0 : i32
    return %c0_i32, %c0_i32_0 : i32, i32
  }
  func.func @transform_18(%arg0: i32) -> (i32, i32) {
    %c0_i32 = arith.constant 0 : i32
    %c0_i32_0 = arith.constant 0 : i32
    %c0_i32_1 = arith.constant 0 : i32
    return %c0_i32, %c0_i32_0 : i32, i32
  }
  func.func @transform_19(%arg0: i32) -> (i32, i32) {
    %c0_i32 = arith.constant 0 : i32
    %c0_i32_0 = arith.constant 0 : i32
    %c0_i32_1 = arith.constant 0 : i32
    return %c0_i32, %c0_i32_0 : i32, i32
  }
  func.func @transform_20(%arg0: i32) -> (i32, i32) {
    %c0_i32 = arith.constant 0 : i32
    %c0_i32_0 = arith.constant 0 : i32
    %c0_i32_1 = arith.constant 0 : i32
    return %c0_i32, %c0_i32_0 : i32, i32
  }
  func.func @transform_21(%arg0: i32) -> (i32, i32) {
    %c0_i32 = arith.constant 0 : i32
    %c0_i32_0 = arith.constant 0 : i32
    %c0_i32_1 = arith.constant 0 : i32
    return %c0_i32, %c0_i32_0 : i32, i32
  }
  func.func @transform_22(%arg0: i32) -> (i32, i32) {
    %c0_i32 = arith.constant 0 : i32
    %c0_i32_0 = arith.constant 0 : i32
    %c0_i32_1 = arith.constant 0 : i32
    return %c0_i32, %c0_i32_0 : i32, i32
  }
  func.func @transform_23(%arg0: i32) -> (i32, i32) {
    %c0_i32 = arith.constant 0 : i32
    %c0_i32_0 = arith.constant 0 : i32
    %c0_i32_1 = arith.constant 0 : i32
    return %c0_i32, %c0_i32_0 : i32, i32
  }
  func.func @transform_24(%arg0: i32) -> (i32, i32) {
    %c0_i32 = arith.constant 0 : i32
    %c0_i32_0 = arith.constant 0 : i32
    %c0_i32_1 = arith.constant 0 : i32
    return %c0_i32, %c0_i32_0 : i32, i32
  }
  func.func @transform_25(%arg0: i32) -> (i32, i32) {
    %c0_i32 = arith.constant 0 : i32
    %c0_i32_0 = arith.constant 0 : i32
    %c0_i32_1 = arith.constant 0 : i32
    return %c0_i32, %c0_i32_0 : i32, i32
  }
  func.func @transform_26(%arg0: i32) -> (i32, i32) {
    %c0_i32 = arith.constant 0 : i32
    %c0_i32_0 = arith.constant 0 : i32
    %c0_i32_1 = arith.constant 0 : i32
    return %c0_i32, %c0_i32_0 : i32, i32
  }
  func.func @transform_27(%arg0: i32) -> (i32, i32) {
    %c0_i32 = arith.constant 0 : i32
    %c0_i32_0 = arith.constant 0 : i32
    %c0_i32_1 = arith.constant 0 : i32
    return %c0_i32, %c0_i32_0 : i32, i32
  }
  func.func @transform_28(%arg0: i32) -> (i32, i32) {
    %c0_i32 = arith.constant 0 : i32
    %c0_i32_0 = arith.constant 0 : i32
    %c0_i32_1 = arith.constant 0 : i32
    return %c0_i32, %c0_i32_0 : i32, i32
  }
  func.func @transform_29(%arg0: i32) -> (i32, i32) {
    %c0_i32 = arith.constant 0 : i32
    %c0_i32_0 = arith.constant 0 : i32
    %c0_i32_1 = arith.constant 0 : i32
    return %c0_i32, %c0_i32_0 : i32, i32
  }
  func.func @transform_30(%arg0: i32) -> (i32, i32) {
    %c0_i32 = arith.constant 0 : i32
    %c0_i32_0 = arith.constant 0 : i32
    %c0_i32_1 = arith.constant 0 : i32
    return %c0_i32, %c0_i32_0 : i32, i32
  }
  func.func @transform_31(%arg0: i32) -> (i32, i32) {
    %c0_i32 = arith.constant 0 : i32
    %c0_i32_0 = arith.constant 0 : i32
    %c0_i32_1 = arith.constant 0 : i32
    return %c0_i32, %c0_i32_0 : i32, i32
  }
  func.func @transform_32(%arg0: i32) -> (i32, i32) {
    %c0_i32 = arith.constant 0 : i32
    %c0_i32_0 = arith.constant 0 : i32
    %c0_i32_1 = arith.constant 0 : i32
    return %c0_i32, %c0_i32_0 : i32, i32
  }
  func.func @transform_33(%arg0: i32) -> (i32, i32) {
    %c0_i32 = arith.constant 0 : i32
    %c0_i32_0 = arith.constant 0 : i32
    %c0_i32_1 = arith.constant 0 : i32
    return %c0_i32, %c0_i32_0 : i32, i32
  }
  func.func @transform_34(%arg0: i32) -> (i32, i32) {
    %c0_i32 = arith.constant 0 : i32
    %c0_i32_0 = arith.constant 0 : i32
    %c0_i32_1 = arith.constant 0 : i32
    return %c0_i32, %c0_i32_0 : i32, i32
  }
}

</mosaic_0001>

<llo_original>
// kernel: nasr_forward_pallas.1
$region0: #{nasr_forward_pallas.1}
  #allocation0 [shape = 'u32[]', space=smem, size = 0x4, offset = 0x4, fixed_abs, tag = 'smem constant byte address 0x4 - core index']
  #allocation1 [shape = 'u32[72,128]{1,0:T(1,128)}', space=vmem, size = 0x9000, scoped, tag = 'internal scratch']
  #allocation2 [shape = 'f32[2,1024]{1,0:T(2,128)}', space=vmem, size = 0x2000, scoped, tag = 'scratch operand']
  #allocation3 [shape = 'f32[1,1]{1,0:T(1,128)S(1)}', space=vmem, size = 0x200, scoped, tag = 'scoped memory for nasr_forward_pallas.1']
  %s0 = inlined_call_operand.smem [shape: u32[35], index: -1, kind: input, shape index: {}]
  %s1 = sld [smem:[%s0]]
  %s2 = scalar_lea.smem %s0, 1
  %s3 = sld [smem:[%s2]]
  %s4 = scalar_lea.smem %s0, 2
  %s5 = sld [smem:[%s4]]
  %s6 = scalar_lea.smem %s0, 3
  %s7 = sld [smem:[%s6]]
  %s8 = scalar_lea.smem %s0, 4
  %s9 = sld [smem:[%s8]]
  %s10 = scalar_lea.smem %s0, 5
  %s11 = sld [smem:[%s10]]
  %s12 = scalar_lea.smem %s0, 6
  %s13 = sld [smem:[%s12]]
  %s14 = scalar_lea.smem %s0, 7
  %s15 = sld [smem:[%s14]]
  %s16 = scalar_lea.smem %s0, 8
  %s17 = sld [smem:[%s16]]
  %s18 = scalar_lea.smem %s0, 9
  %s19 = sld [smem:[%s18]]
  %s20 = scalar_lea.smem %s0, 10
  %s21 = sld [smem:[%s20]]
  %s22 = scalar_lea.smem %s0, 11
  %s23 = sld [smem:[%s22]]
  %s24 = scalar_lea.smem %s0, 12
  %s25 = sld [smem:[%s24]]
  %s26 = scalar_lea.smem %s0, 13
  %s27 = sld [smem:[%s26]]
  %s28 = scalar_lea.smem %s0, 14
  %s29 = sld [smem:[%s28]]
  %s30 = scalar_lea.smem %s0, 15
  %s31 = sld [smem:[%s30]]
  %s32 = scalar_lea.smem %s0, 16
  %s33 = sld [smem:[%s32]]
  %s34 = scalar_lea.smem %s0, 17
  %s35 = sld [smem:[%s34]]
  %s36 = scalar_lea.smem %s0, 18
  %s37 = sld [smem:[%s36]]
  %s38 = scalar_lea.smem %s0, 19
  %s39 = sld [smem:[%s38]]
  %s40 = scalar_lea.smem %s0, 20
  %s41 = sld [smem:[%s40]]
  %s42 = scalar_lea.smem %s0, 21
  %s43 = sld [smem:[%s42]]
  %s44 = scalar_lea.smem %s0, 22
  %s45 = sld [smem:[%s44]]
  %s46 = scalar_lea.smem %s0, 23
  %s47 = sld [smem:[%s46]]
  %s48 = scalar_lea.smem %s0, 24
  %s49 = sld [smem:[%s48]]
  %s50 = scalar_lea.smem %s0, 25
  %s51 = sld [smem:[%s50]]
  %s52 = scalar_lea.smem %s0, 26
  %s53 = sld [smem:[%s52]]
  %s54 = scalar_lea.smem %s0, 27
  %s55 = sld [smem:[%s54]]
  %s56 = scalar_lea.smem %s0, 28
  %s57 = sld [smem:[%s56]]
  %s58 = scalar_lea.smem %s0, 29
  %s59 = sld [smem:[%s58]]
  %s60 = scalar_lea.smem %s0, 30
  %s61 = sld [smem:[%s60]]
  %s62 = scalar_lea.smem %s0, 31
  %s63 = sld [smem:[%s62]]
  %s64 = scalar_lea.smem %s0, 32
  %s65 = sld [smem:[%s64]]
  %s66 = scalar_lea.smem %s0, 33
  %s67 = sld [smem:[%s66]]
  %s68 = scalar_lea.smem %s0, 34
  %s69 = sld [smem:[%s68]]
  %s70 = sld [smem:[#allocation0]]
  $region277: #{nasr_forward_pallas.1} parent=0
    _
  %s72 = ssub.s32 1, %s70
  %s73 = scalar_select 0, %s72, %s70
  %v74 = vstv %s67
  %75 = vst [vmem:[#allocation3] sm:$0x1] %v74
  $region1: #{nasr_forward_pallas.1} parent=0
    #allocation4 [shape = 'u8[16384]{0}', space=vmem, size = 0x4000, scoped, tag = 'input window, operand 1, single buffered']
    #allocation5 [shape = 's32[2]{0}', space=sflag, size = 0x8, scoped, tag = 'scoped memory for nasr_forward_pallas.1']
    #allocation6 [shape = 'u8[2048]{0}', space=vmem, size = 0x800, scoped, tag = 'input window, operand 2, single buffered']
    #allocation7 [shape = 's32[1]{0}', space=sflag, size = 0x4, scoped, tag = 'scoped memory for nasr_forward_pallas.1']
    #allocation8 [shape = 'u8[2097152]{0}', space=vmem, size = 0x200000, scoped, tag = 'input window, operand 6']
    #allocation9 [shape = 'u8[4096]{0}', space=vmem, size = 0x1000, scoped, tag = 'input window, operand 7, single buffered']
    #allocation10 [shape = 'u8[4096]{0}', space=vmem, size = 0x1000, scoped, tag = 'input window, operand 8, single buffered']
    #allocation11 [shape = 's32[1]{0}', space=sflag, size = 0x4, scoped, tag = 'scoped memory for nasr_forward_pallas.1']
    #allocation12 [shape = 'u8[524288]{0}', space=vmem, size = 0x80000, scoped, tag = 'input window, operand 9, single buffered']
    #allocation13 [shape = 'u8[2048]{0}', space=vmem, size = 0x800, scoped, tag = 'input window, operand 10, single buffered']
    #allocation14 [shape = 's32[1]{0}', space=sflag, size = 0x4, scoped, tag = 'scoped memory for nasr_forward_pallas.1']
    #allocation15 [shape = 'u8[2048]{0}', space=vmem, size = 0x800, scoped, tag = 'input window, operand 11, single buffered']
    #allocation16 [shape = 'u8[131072]{0}', space=vmem, size = 0x20000, scoped, tag = 'input window, operand 12, single buffered']
    #allocation17 [shape = 's32[1]{0}', space=sflag, size = 0x4, scoped, tag = 'scoped memory for nasr_forward_pallas.1']
    #allocation18 [shape = 'u8[512]{0}', space=vmem, size = 0x400, scoped, tag = 'input window, operand 13, single buffered']
    #allocation19 [shape = 'u8[4096]{0}', space=vmem, size = 0x1000, scoped, tag = 'input window, operand 14, single buffered']
    #allocation20 [shape = 's32[1]{0}', space=sflag, size = 0x4, scoped, tag = 'scoped memory for nasr_forward_pallas.1']
    #allocation21 [shape = 'u8[512]{0}', space=vmem, size = 0x400, scoped, tag = 'input window, operand 15, single buffered']
    #allocation22 [shape = 'u8[512]{0}', space=vmem, size = 0x400, scoped, tag = 'input window, operand 17, single buffered']
    #allocation23 [shape = 's32[1]{0}', space=sflag, size = 0x4, scoped, tag = 'scoped memory for nasr_forward_pallas.1']
    #allocation24 [shape = 'u8[4096]{0}', space=vmem, size = 0x1000, scoped, tag = 'input window, operand 18, single buffered']
    #allocation25 [shape = 'u8[512]{0}', space=vmem, size = 0x400, scoped, tag = 'input window, operand 19, single buffered']
    #allocation26 [shape = 's32[1]{0}', space=sflag, size = 0x4, scoped, tag = 'scoped memory for nasr_forward_pallas.1']
    #allocation27 [shape = 'u8[512]{0}', space=vmem, size = 0x400, scoped, tag = 'input window, operand 21, single buffered']
    #allocation28 [shape = 'u8[512]{0}', space=vmem, size = 0x400, scoped, tag = 'input window, operand 22, single buffered']
    #allocation29 [shape = 's32[1]{0}', space=sflag, size = 0x4, scoped, tag = 'scoped memory for nasr_forward_pallas.1']
    #allocation30 [shape = 'u8[512]{0}', space=vmem, size = 0x400, scoped, tag = 'input window, operand 23, single buffered']
    #allocation31 [shape = 'u8[4096]{0}', space=vmem, size = 0x1000, scoped, tag = 'input window, operand 24, single buffered']
    #allocation32 [shape = 's32[1]{0}', space=sflag, size = 0x4, scoped, tag = 'scoped memory for nasr_forward_pallas.1']
    #allocation33 [shape = 'u8[512]{0}', space=vmem, size = 0x400, scoped, tag = 'input window, operand 25, single buffered']
    #allocation34 [shape = 'u8[163840]{0}', space=vmem, size = 0x28000, scoped, tag = 'input window, operand 26, single buffered']
    #allocation35 [shape = 's32[1]{0}', space=sflag, size = 0x4, scoped, tag = 'scoped memory for nasr_forward_pallas.1']
    #allocation36 [shape = 'u8[1024]{0}', space=vmem, size = 0x400, scoped, tag = 'input window, operand 27, single buffered']
    #allocation37 [shape = 'u8[65536]{0}', space=vmem, size = 0x10000, scoped, tag = 'input window, operand 28, single buffered']
    #allocation38 [shape = 's32[1]{0}', space=sflag, size = 0x4, scoped, tag = 'scoped memory for nasr_forward_pallas.1']
    #allocation39 [shape = 'u8[512]{0}', space=vmem, size = 0x400, scoped, tag = 'input window, operand 29, single buffered']
    #allocation40 [shape = 'u8[512]{0}', space=vmem, size = 0x400, scoped, tag = 'input window, operand 31, single buffered']
    #allocation41 [shape = 's32[1]{0}', space=sflag, size = 0x4, scoped, tag = 'scoped memory for nasr_forward_pallas.1']
    %76 = vsyncpa [#allocation5], 0
    %77 = vsyncpa [#allocation7], 0
    %78 = vsyncpa [#allocation11], 0
    %79 = vsyncpa [#allocation14], 0
    %80 = vsyncpa [#allocation17], 0
    %81 = vsyncpa [#allocation20], 0
    %82 = vsyncpa [#allocation23], 0
    %83 = vsyncpa [#allocation26], 0
    %84 = vsyncpa [#allocation29], 0
    %85 = vsyncpa [#allocation32], 0
    %86 = vsyncpa [#allocation35], 0
    %87 = vsyncpa [#allocation38], 0
    %88 = vsyncpa [#allocation41], 0
    loop: start=0, step=1, limit=6
    $region2: #{nasr_forward_pallas.1} parent=1 // loop_pre_header
      _
    $region3: #{nasr_forward_pallas.1} parent=1 // loop_header
      %s90 = sphi 0, %s94
      %p91 = scmp.ge.s32.totalorder %s90, 6
      %s100 = sphi 0, %s102
      %s103 = sphi 0, %s100
      %s104 = sphi 0, %s103
      %s120 = sphi 0, %s104
      %s124 = sphi 0, %s124
      %s126 = sphi 0, %s124
      %s127 = sphi 0, %s126
      %s141 = sphi 0, %s127
      %s145 = sphi 0, %s145
      %s147 = sphi 0, %s145
      %s148 = sphi 0, %s147
      %s162 = sphi 0, %s148
      %s166 = sphi 0, %s166
      %s168 = sphi 0, %s166
      %s169 = sphi 0, %s168
      %s183 = sphi 0, %s169
      %s187 = sphi 0, %s187
      %s189 = sphi 0, %s187
      %s190 = sphi 0, %s189
      %s204 = sphi 0, %s190
      %s208 = sphi 0, %s208
      %s210 = sphi 0, %s208
      %s211 = sphi 0, %s210
      %s225 = sphi 0, %s211
      %s231 = sphi 0, %s233
      %s234 = sphi 0, %s231
      %s235 = sphi 0, %s234
      %s251 = sphi 0, %s235
      %s255 = sphi 0, %s255
      %s257 = sphi 0, %s255
      %s258 = sphi 0, %s257
      %s272 = sphi 0, %s258
      %s276 = sphi 0, %s276
      %s278 = sphi 0, %s276
      %s279 = sphi 0, %s278
      %s293 = sphi 0, %s279
      %s297 = sphi 0, %s297
      %s299 = sphi 0, %s297
      %s300 = sphi 0, %s299
      %s314 = sphi 0, %s300
      %s318 = sphi 0, %s318
      %s320 = sphi 0, %s318
      %s321 = sphi 0, %s320
      %s335 = sphi 0, %s321
      %s339 = sphi 0, %s339
      %s341 = sphi 0, %s339
      %s342 = sphi 0, %s341
      %s356 = sphi 0, %s342
      %s360 = sphi 0, %s360
      %s362 = sphi 0, %s360
      %s363 = sphi 0, %s362
      %s377 = sphi 0, %s363
      %s381 = sphi 0, %s381
      %s383 = sphi 0, %s381
      %s384 = sphi 0, %s383
      %s398 = sphi 0, %s384
      %s402 = sphi 0, %s402
      %s404 = sphi 0, %s402
      %s405 = sphi 0, %s404
      %s419 = sphi 0, %s405
      %s423 = sphi 0, %s423
      %s425 = sphi 0, %s423
      %s426 = sphi 0, %s425
      %s440 = sphi 0, %s426
      %s444 = sphi 0, %s444
      %s446 = sphi 0, %s444
      %s447 = sphi 0, %s446
      %s461 = sphi 0, %s447
      %s465 = sphi 0, %s465
      %s467 = sphi 0, %s465
      %s468 = sphi 0, %s467
      %s482 = sphi 0, %s468
      %s486 = sphi 0, %s486
      %s488 = sphi 0, %s486
      %s489 = sphi 0, %s488
      %s503 = sphi 0, %s489
      %s507 = sphi 0, %s507
      %s509 = sphi 0, %s507
      %s510 = sphi 0, %s509
      %s524 = sphi 0, %s510
      %s528 = sphi 0, %s528
      %s530 = sphi 0, %s528
      %s531 = sphi 0, %s530
      %s545 = sphi 0, %s531
      %s549 = sphi 0, %s549
      %s551 = sphi 0, %s549
      %s552 = sphi 0, %s551
      %s566 = sphi 0, %s552
      %s570 = sphi 0, %s570
      %s572 = sphi 0, %s570
      %s573 = sphi 0, %s572
      %s587 = sphi 0, %s573
      %s591 = sphi 0, %s591
      %s593 = sphi 0, %s591
      %s594 = sphi 0, %s593
      %s608 = sphi 0, %s594
      %s612 = sphi 0, %s612
      %s614 = sphi 0, %s612
      %s615 = sphi 0, %s614
      %s629 = sphi 0, %s615
      %s633 = sphi 0, %s633
      %s635 = sphi 0, %s633
      %s636 = sphi 0, %s635
      %s650 = sphi 0, %s636
      %s654 = sphi 0, %s654
      %s656 = sphi 0, %s654
      %s657 = sphi 0, %s656
      %s671 = sphi 0, %s657
      %s675 = sphi 0, %s675
      %s677 = sphi 0, %s675
      %s678 = sphi 0, %s677
      %s692 = sphi 0, %s678
      %s696 = sphi 0, %s696
      %s698 = sphi 0, %s696
      %s699 = sphi 0, %s698
      %s713 = sphi 0, %s699
      %s717 = sphi 0, %s717
      %s719 = sphi 0, %s717
      %s720 = sphi 0, %s719
      %s734 = sphi 0, %s720
      %s738 = sphi 0, %s738
      %s740 = sphi 0, %s738
      %s741 = sphi 0, %s740
      %s755 = sphi 0, %s741
      %s759 = sphi 0, %s759
      %s761 = sphi 0, %s759
      %s762 = sphi 0, %s761
      %s776 = sphi 0, %s762
      %s780 = sphi 0, %s780
      %s782 = sphi 0, %s780
      %s783 = sphi 0, %s782
      %s797 = sphi 0, %s783
      %s801 = sphi 0, %s801
      %s803 = sphi 0, %s801
      %s804 = sphi 0, %s803
      %s818 = sphi 0, %s804
      %s822 = sphi 0, %s822
      %s824 = sphi 0, %s822
      %s825 = sphi 0, %s824
      %s839 = sphi 0, %s825
    $region4: #{nasr_forward_pallas.1} parent=1 // loop_header_branch
      %93 = sbr.rel (%p91) target = $region8
    $region5: #{nasr_forward_pallas.1} parent=1 // loop_body
      %s95 = ssub.s32 %s90, 1
      %s96 = ssub.s32 %s90, 2
      %s97 = sadd.s32 %s90, 1
      %s98 = ssub.s32 %s90, %s97
      %p99 = scmp.eq.s32.totalorder %s98, 0
      %s101 = sadd.s32 %s100, 1
      %s102 = scalar_select %p99, %s100, %s101
      %p105 = pneg %p99
      %p106 = scmp.eq.s32.totalorder %s90, 3
      %p107 = por %p105, %p106
      %p108 = scmp.ne.s32.totalorder %s100, %s103
      %p109 = scmp.eq.s32.totalorder %s90, 0
      %p110 = por %p108, %p109
      %p111 = scmp.ne.s32.totalorder %s100, %s103
      %p112 = scmp.eq.s32.totalorder %s95, 3
      %p113 = por %p111, %p112
      %p114 = scmp.ne.s32.totalorder %s103, %s104
      %p115 = scmp.eq.s32.totalorder %s95, 0
      %p116 = por %p114, %p115
      %p117 = scmp.ne.s32.totalorder %s103, %s104
      %p118 = scmp.eq.s32.totalorder %s96, 3
      %p119 = por %p117, %p118
      %p121 = scmp.ne.s32.totalorder %s104, %s120
      %p122 = scmp.eq.s32.totalorder %s96, 0
      %p123 = por %p121, %p122
      %s125 = sadd.s32 %s124, 1
      %p128 = scmp.eq.s32.totalorder %s90, 3
      %p129 = scmp.ne.s32.totalorder %s124, %s126
      %p130 = scmp.eq.s32.totalorder %s90, 0
      %p131 = por %p129, %p130
      %p132 = scmp.ne.s32.totalorder %s124, %s126
      %p133 = scmp.eq.s32.totalorder %s95, 3
      %p134 = por %p132, %p133
      %p135 = scmp.ne.s32.totalorder %s126, %s127
      %p136 = scmp.eq.s32.totalorder %s95, 0
      %p137 = por %p135, %p136
      %p138 = scmp.ne.s32.totalorder %s126, %s127
      %p139 = scmp.eq.s32.totalorder %s96, 3
      %p140 = por %p138, %p139
      %p142 = scmp.ne.s32.totalorder %s127, %s141
      %p143 = scmp.eq.s32.totalorder %s96, 0
      %p144 = por %p142, %p143
      %s146 = sadd.s32 %s145, 1
      %p149 = scmp.eq.s32.totalorder %s90, 3
      %p150 = scmp.ne.s32.totalorder %s145, %s147
      %p151 = scmp.eq.s32.totalorder %s90, 0
      %p152 = por %p150, %p151
      %p153 = scmp.ne.s32.totalorder %s145, %s147
      %p154 = scmp.eq.s32.totalorder %s95, 3
      %p155 = por %p153, %p154
      %p156 = scmp.ne.s32.totalorder %s147, %s148
      %p157 = scmp.eq.s32.totalorder %s95, 0
      %p158 = por %p156, %p157
      %p159 = scmp.ne.s32.totalorder %s147, %s148
      %p160 = scmp.eq.s32.totalorder %s96, 3
      %p161 = por %p159, %p160
      %p163 = scmp.ne.s32.totalorder %s148, %s162
      %p164 = scmp.eq.s32.totalorder %s96, 0
      %p165 = por %p163, %p164
      %s167 = sadd.s32 %s166, 1
      %p170 = scmp.eq.s32.totalorder %s90, 3
      %p171 = scmp.ne.s32.totalorder %s166, %s168
      %p172 = scmp.eq.s32.totalorder %s90, 0
      %p173 = por %p171, %p172
      %p174 = scmp.ne.s32.totalorder %s166, %s168
      %p175 = scmp.eq.s32.totalorder %s95, 3
      %p176 = por %p174, %p175
      %p177 = scmp.ne.s32.totalorder %s168, %s169
      %p178 = scmp.eq.s32.totalorder %s95, 0
      %p179 = por %p177, %p178
      %p180 = scmp.ne.s32.totalorder %s168, %s169
      %p181 = scmp.eq.s32.totalorder %s96, 3
      %p182 = por %p180, %p181
      %p184 = scmp.ne.s32.totalorder %s169, %s183
      %p185 = scmp.eq.s32.totalorder %s96, 0
      %p186 = por %p184, %p185
      %s188 = sadd.s32 %s187, 1
      %p191 = scmp.eq.s32.totalorder %s90, 3
      %p192 = scmp.ne.s32.totalorder %s187, %s189
      %p193 = scmp.eq.s32.totalorder %s90, 0
      %p194 = por %p192, %p193
      %p195 = scmp.ne.s32.totalorder %s187, %s189
      %p196 = scmp.eq.s32.totalorder %s95, 3
      %p197 = por %p195, %p196
      %p198 = scmp.ne.s32.totalorder %s189, %s190
      %p199 = scmp.eq.s32.totalorder %s95, 0
      %p200 = por %p198, %p199
      %p201 = scmp.ne.s32.totalorder %s189, %s190
      %p202 = scmp.eq.s32.totalorder %s96, 3
      %p203 = por %p201, %p202
      %p205 = scmp.ne.s32.totalorder %s190, %s204
      %p206 = scmp.eq.s32.totalorder %s96, 0
      %p207 = por %p205, %p206
      %s209 = sadd.s32 %s208, 1
      %p212 = scmp.eq.s32.totalorder %s90, 3
      %p213 = scmp.ne.s32.totalorder %s208, %s210
      %p214 = scmp.eq.s32.totalorder %s90, 0
      %p215 = por %p213, %p214
      %p216 = scmp.ne.s32.totalorder %s208, %s210
      %p217 = scmp.eq.s32.totalorder %s95, 3
      %p218 = por %p216, %p217
      %p219 = scmp.ne.s32.totalorder %s210, %s211
      %p220 = scmp.eq.s32.totalorder %s95, 0
      %p221 = por %p219, %p220
      %p222 = scmp.ne.s32.totalorder %s210, %s211
      %p223 = scmp.eq.s32.totalorder %s96, 3
      %p224 = por %p222, %p223
      %p226 = scmp.ne.s32.totalorder %s211, %s225
      %p227 = scmp.eq.s32.totalorder %s96, 0
      %p228 = por %p226, %p227
      %s229 = ssub.s32 %s90, %s97
      %p230 = scmp.eq.s32.totalorder %s229, 0
      %s232 = sadd.s32 %s231, 1
      %s233 = scalar_select %p230, %s231, %s232
      %p236 = pneg %p230
      %p237 = scmp.eq.s32.totalorder %s90, 3
      %p238 = por %p236, %p237
      %p239 = scmp.ne.s32.totalorder %s231, %s234
      %p240 = scmp.eq.s32.totalorder %s90, 0
      %p241 = por %p239, %p240
      %p242 = scmp.ne.s32.totalorder %s231, %s234
      %p243 = scmp.eq.s32.totalorder %s95, 3
      %p244 = por %p242, %p243
      %p245 = scmp.ne.s32.totalorder %s234, %s235
      %p246 = scmp.eq.s32.totalorder %s95, 0
      %p247 = por %p245, %p246
      %p248 = scmp.ne.s32.totalorder %s234, %s235
      %p249 = scmp.eq.s32.totalorder %s96, 3
      %p250 = por %p248, %p249
      %p252 = scmp.ne.s32.totalorder %s235, %s251
      %p253 = scmp.eq.s32.totalorder %s96, 0
      %p254 = por %p252, %p253
      %s256 = sadd.s32 %s255, 1
      %p259 = scmp.eq.s32.totalorder %s90, 3
      %p260 = scmp.ne.s32.totalorder %s255, %s257
      %p261 = scmp.eq.s32.totalorder %s90, 0
      %p262 = por %p260, %p261
      %p263 = scmp.ne.s32.totalorder %s255, %s257
      %p264 = scmp.eq.s32.totalorder %s95, 3
      %p265 = por %p263, %p264
      %p266 = scmp.ne.s32.totalorder %s257, %s258
      %p267 = scmp.eq.s32.totalorder %s95, 0
      %p268 = por %p266, %p267
      %p269 = scmp.ne.s32.totalorder %s257, %s258
      %p270 = scmp.eq.s32.totalorder %s96, 3
      %p271 = por %p269, %p270
      %p273 = scmp.ne.s32.totalorder %s258, %s272
      %p274 = scmp.eq.s32.totalorder %s96, 0
      %p275 = por %p273, %p274
      %s277 = sadd.s32 %s276, 1
      %p280 = scmp.eq.s32.totalorder %s90, 3
      %p281 = scmp.ne.s32.totalorder %s276, %s278
      %p282 = scmp.eq.s32.totalorder %s90, 0
      %p283 = por %p281, %p282
      %p284 = scmp.ne.s32.totalorder %s276, %s278
      %p285 = scmp.eq.s32.totalorder %s95, 3
      %p286 = por %p284, %p285
      %p287 = scmp.ne.s32.totalorder %s278, %s279
      %p288 = scmp.eq.s32.totalorder %s95, 0
      %p289 = por %p287, %p288
      %p290 = scmp.ne.s32.totalorder %s278, %s279
      %p291 = scmp.eq.s32.totalorder %s96, 3
      %p292 = por %p290, %p291
      %p294 = scmp.ne.s32.totalorder %s279, %s293
      %p295 = scmp.eq.s32.totalorder %s96, 0
      %p296 = por %p294, %p295
      %s298 = sadd.s32 %s297, 1
      %p301 = scmp.eq.s32.totalorder %s90, 3
      %p302 = scmp.ne.s32.totalorder %s297, %s299
      %p303 = scmp.eq.s32.totalorder %s90, 0
      %p304 = por %p302, %p303
      %p305 = scmp.ne.s32.totalorder %s297, %s299
      %p306 = scmp.eq.s32.totalorder %s95, 3
      %p307 = por %p305, %p306
      %p308 = scmp.ne.s32.totalorder %s299, %s300
      %p309 = scmp.eq.s32.totalorder %s95, 0
      %p310 = por %p308, %p309
      %p311 = scmp.ne.s32.totalorder %s299, %s300
      %p312 = scmp.eq.s32.totalorder %s96, 3
      %p313 = por %p311, %p312
      %p315 = scmp.ne.s32.totalorder %s300, %s314
      %p316 = scmp.eq.s32.totalorder %s96, 0
      %p317 = por %p315, %p316
      %s319 = sadd.s32 %s318, 1
      %p322 = scmp.eq.s32.totalorder %s90, 3
      %p323 = scmp.ne.s32.totalorder %s318, %s320
      %p324 = scmp.eq.s32.totalorder %s90, 0
      %p325 = por %p323, %p324
      %p326 = scmp.ne.s32.totalorder %s318, %s320
      %p327 = scmp.eq.s32.totalorder %s95, 3
      %p328 = por %p326, %p327
      %p329 = scmp.ne.s32.totalorder %s320, %s321
      %p330 = scmp.eq.s32.totalorder %s95, 0
      %p331 = por %p329, %p330
      %p332 = scmp.ne.s32.totalorder %s320, %s321
      %p333 = scmp.eq.s32.totalorder %s96, 3
      %p334 = por %p332, %p333
      %p336 = scmp.ne.s32.totalorder %s321, %s335
      %p337 = scmp.eq.s32.totalorder %s96, 0
      %p338 = por %p336, %p337
      %s340 = sadd.s32 %s339, 1
      %p343 = scmp.eq.s32.totalorder %s90, 3
      %p344 = scmp.ne.s32.totalorder %s339, %s341
      %p345 = scmp.eq.s32.totalorder %s90, 0
      %p346 = por %p344, %p345
      %p347 = scmp.ne.s32.totalorder %s339, %s341
      %p348 = scmp.eq.s32.totalorder %s95, 3
      %p349 = por %p347, %p348
      %p350 = scmp.ne.s32.totalorder %s341, %s342
      %p351 = scmp.eq.s32.totalorder %s95, 0
      %p352 = por %p350, %p351
      %p353 = scmp.ne.s32.totalorder %s341, %s342
      %p354 = scmp.eq.s32.totalorder %s96, 3
      %p355 = por %p353, %p354
      %p357 = scmp.ne.s32.totalorder %s342, %s356
      %p358 = scmp.eq.s32.totalorder %s96, 0
      %p359 = por %p357, %p358
      %s361 = sadd.s32 %s360, 1
      %p364 = scmp.eq.s32.totalorder %s90, 3
      %p365 = scmp.ne.s32.totalorder %s360, %s362
      %p366 = scmp.eq.s32.totalorder %s90, 0
      %p367 = por %p365, %p366
      %p368 = scmp.ne.s32.totalorder %s360, %s362
      %p369 = scmp.eq.s32.totalorder %s95, 3
      %p370 = por %p368, %p369
      %p371 = scmp.ne.s32.totalorder %s362, %s363
      %p372 = scmp.eq.s32.totalorder %s95, 0
      %p373 = por %p371, %p372
      %p374 = scmp.ne.s32.totalorder %s362, %s363
      %p375 = scmp.eq.s32.totalorder %s96, 3
      %p376 = por %p374, %p375
      %p378 = scmp.ne.s32.totalorder %s363, %s377
      %p379 = scmp.eq.s32.totalorder %s96, 0
      %p380 = por %p378, %p379
      %s382 = sadd.s32 %s381, 1
      %p385 = scmp.eq.s32.totalorder %s90, 3
      %p386 = scmp.ne.s32.totalorder %s381, %s383
      %p387 = scmp.eq.s32.totalorder %s90, 0
      %p388 = por %p386, %p387
      %p389 = scmp.ne.s32.totalorder %s381, %s383
      %p390 = scmp.eq.s32.totalorder %s95, 3
      %p391 = por %p389, %p390
      %p392 = scmp.ne.s32.totalorder %s383, %s384
      %p393 = scmp.eq.s32.totalorder %s95, 0
      %p394 = por %p392, %p393
      %p395 = scmp.ne.s32.totalorder %s383, %s384
      %p396 = scmp.eq.s32.totalorder %s96, 3
      %p397 = por %p395, %p396
      %p399 = scmp.ne.s32.totalorder %s384, %s398
      %p400 = scmp.eq.s32.totalorder %s96, 0
      %p401 = por %p399, %p400
      %s403 = sadd.s32 %s402, 1
      %p406 = scmp.eq.s32.totalorder %s90, 3
      %p407 = scmp.ne.s32.totalorder %s402, %s404
      %p408 = scmp.eq.s32.totalorder %s90, 0
      %p409 = por %p407, %p408
      %p410 = scmp.ne.s32.totalorder %s402, %s404
      %p411 = scmp.eq.s32.totalorder %s95, 3
      %p412 = por %p410, %p411
      %p413 = scmp.ne.s32.totalorder %s404, %s405
      %p414 = scmp.eq.s32.totalorder %s95, 0
      %p415 = por %p413, %p414
      %p416 = scmp.ne.s32.totalorder %s404, %s405
      %p417 = scmp.eq.s32.totalorder %s96, 3
      %p418 = por %p416, %p417
      %p420 = scmp.ne.s32.totalorder %s405, %s419
      %p421 = scmp.eq.s32.totalorder %s96, 0
      %p422 = por %p420, %p421
      %s424 = sadd.s32 %s423, 1
      %p427 = scmp.eq.s32.totalorder %s90, 3
      %p428 = scmp.ne.s32.totalorder %s423, %s425
      %p429 = scmp.eq.s32.totalorder %s90, 0
      %p430 = por %p428, %p429
      %p431 = scmp.ne.s32.totalorder %s423, %s425
      %p432 = scmp.eq.s32.totalorder %s95, 3
      %p433 = por %p431, %p432
      %p434 = scmp.ne.s32.totalorder %s425, %s426
      %p435 = scmp.eq.s32.totalorder %s95, 0
      %p436 = por %p434, %p435
      %p437 = scmp.ne.s32.totalorder %s425, %s426
      %p438 = scmp.eq.s32.totalorder %s96, 3
      %p439 = por %p437, %p438
      %p441 = scmp.ne.s32.totalorder %s426, %s440
      %p442 = scmp.eq.s32.totalorder %s96, 0
      %p443 = por %p441, %p442
      %s445 = sadd.s32 %s444, 1
      %p448 = scmp.eq.s32.totalorder %s90, 3
      %p449 = scmp.ne.s32.totalorder %s444, %s446
      %p450 = scmp.eq.s32.totalorder %s90, 0
      %p451 = por %p449, %p450
      %p452 = scmp.ne.s32.totalorder %s444, %s446
      %p453 = scmp.eq.s32.totalorder %s95, 3
      %p454 = por %p452, %p453
      %p455 = scmp.ne.s32.totalorder %s446, %s447
      %p456 = scmp.eq.s32.totalorder %s95, 0
      %p457 = por %p455, %p456
      %p458 = scmp.ne.s32.totalorder %s446, %s447
      %p459 = scmp.eq.s32.totalorder %s96, 3
      %p460 = por %p458, %p459
      %p462 = scmp.ne.s32.totalorder %s447, %s461
      %p463 = scmp.eq.s32.totalorder %s96, 0
      %p464 = por %p462, %p463
      %s466 = sadd.s32 %s465, 1
      %p469 = scmp.eq.s32.totalorder %s90, 3
      %p470 = scmp.ne.s32.totalorder %s465, %s467
      %p471 = scmp.eq.s32.totalorder %s90, 0
      %p472 = por %p470, %p471
      %p473 = scmp.ne.s32.totalorder %s465, %s467
      %p474 = scmp.eq.s32.totalorder %s95, 3
      %p475 = por %p473, %p474
      %p476 = scmp.ne.s32.totalorder %s467, %s468
      %p477 = scmp.eq.s32.totalorder %s95, 0
      %p478 = por %p476, %p477
      %p479 = scmp.ne.s32.totalorder %s467, %s468
      %p480 = scmp.eq.s32.totalorder %s96, 3
      %p481 = por %p479, %p480
      %p483 = scmp.ne.s32.totalorder %s468, %s482
      %p484 = scmp.eq.s32.totalorder %s96, 0
      %p485 = por %p483, %p484
      %s487 = sadd.s32 %s486, 1
      %p490 = scmp.eq.s32.totalorder %s90, 3
      %p491 = scmp.ne.s32.totalorder %s486, %s488
      %p492 = scmp.eq.s32.totalorder %s90, 0
      %p493 = por %p491, %p492
      %p494 = scmp.ne.s32.totalorder %s486, %s488
      %p495 = scmp.eq.s32.totalorder %s95, 3
      %p496 = por %p494, %p495
      %p497 = scmp.ne.s32.totalorder %s488, %s489
      %p498 = scmp.eq.s32.totalorder %s95, 0
      %p499 = por %p497, %p498
      %p500 = scmp.ne.s32.totalorder %s488, %s489
      %p501 = scmp.eq.s32.totalorder %s96, 3
      %p502 = por %p500, %p501
      %p504 = scmp.ne.s32.totalorder %s489, %s503
      %p505 = scmp.eq.s32.totalorder %s96, 0
      %p506 = por %p504, %p505
      %s508 = sadd.s32 %s507, 1
      %p511 = scmp.eq.s32.totalorder %s90, 3
      %p512 = scmp.ne.s32.totalorder %s507, %s509
      %p513 = scmp.eq.s32.totalorder %s90, 0
      %p514 = por %p512, %p513
      %p515 = scmp.ne.s32.totalorder %s507, %s509
      %p516 = scmp.eq.s32.totalorder %s95, 3
      %p517 = por %p515, %p516
      %p518 = scmp.ne.s32.totalorder %s509, %s510
      %p519 = scmp.eq.s32.totalorder %s95, 0
      %p520 = por %p518, %p519
      %p521 = scmp.ne.s32.totalorder %s509, %s510
      %p522 = scmp.eq.s32.totalorder %s96, 3
      %p523 = por %p521, %p522
      %p525 = scmp.ne.s32.totalorder %s510, %s524
      %p526 = scmp.eq.s32.totalorder %s96, 0
      %p527 = por %p525, %p526
      %s529 = sadd.s32 %s528, 1
      %p532 = scmp.eq.s32.totalorder %s90, 3
      %p533 = scmp.ne.s32.totalorder %s528, %s530
      %p534 = scmp.eq.s32.totalorder %s90, 0
      %p535 = por %p533, %p534
      %p536 = scmp.ne.s32.totalorder %s528, %s530
      %p537 = scmp.eq.s32.totalorder %s95, 3
      %p538 = por %p536, %p537
      %p539 = scmp.ne.s32.totalorder %s530, %s531
      %p540 = scmp.eq.s32.totalorder %s95, 0
      %p541 = por %p539, %p540
      %p542 = scmp.ne.s32.totalorder %s530, %s531
      %p543 = scmp.eq.s32.totalorder %s96, 3
      %p544 = por %p542, %p543
      %p546 = scmp.ne.s32.totalorder %s531, %s545
      %p547 = scmp.eq.s32.totalorder %s96, 0
      %p548 = por %p546, %p547
      %s550 = sadd.s32 %s549, 1
      %p553 = scmp.eq.s32.totalorder %s90, 3
      %p554 = scmp.ne.s32.totalorder %s549, %s551
      %p555 = scmp.eq.s32.totalorder %s90, 0
      %p556 = por %p554, %p555
      %p557 = scmp.ne.s32.totalorder %s549, %s551
      %p558 = scmp.eq.s32.totalorder %s95, 3
      %p559 = por %p557, %p558
      %p560 = scmp.ne.s32.totalorder %s551, %s552
      %p561 = scmp.eq.s32.totalorder %s95, 0
      %p562 = por %p560, %p561
      %p563 = scmp.ne.s32.totalorder %s551, %s552
      %p564 = scmp.eq.s32.totalorder %s96, 3
      %p565 = por %p563, %p564
      %p567 = scmp.ne.s32.totalorder %s552, %s566
      %p568 = scmp.eq.s32.totalorder %s96, 0
      %p569 = por %p567, %p568
      %s571 = sadd.s32 %s570, 1
      %p574 = scmp.eq.s32.totalorder %s90, 3
      %p575 = scmp.ne.s32.totalorder %s570, %s572
      %p576 = scmp.eq.s32.totalorder %s90, 0
      %p577 = por %p575, %p576
      %p578 = scmp.ne.s32.totalorder %s570, %s572
      %p579 = scmp.eq.s32.totalorder %s95, 3
      %p580 = por %p578, %p579
      %p581 = scmp.ne.s32.totalorder %s572, %s573
      %p582 = scmp.eq.s32.totalorder %s95, 0
      %p583 = por %p581, %p582
      %p584 = scmp.ne.s32.totalorder %s572, %s573
      %p585 = scmp.eq.s32.totalorder %s96, 3
      %p586 = por %p584, %p585
      %p588 = scmp.ne.s32.totalorder %s573, %s587
      %p589 = scmp.eq.s32.totalorder %s96, 0
      %p590 = por %p588, %p589
      %s592 = sadd.s32 %s591, 1
      %p595 = scmp.eq.s32.totalorder %s90, 3
      %p596 = scmp.ne.s32.totalorder %s591, %s593
      %p597 = scmp.eq.s32.totalorder %s90, 0
      %p598 = por %p596, %p597
      %p599 = scmp.ne.s32.totalorder %s591, %s593
      %p600 = scmp.eq.s32.totalorder %s95, 3
      %p601 = por %p599, %p600
      %p602 = scmp.ne.s32.totalorder %s593, %s594
      %p603 = scmp.eq.s32.totalorder %s95, 0
      %p604 = por %p602, %p603
      %p605 = scmp.ne.s32.totalorder %s593, %s594
      %p606 = scmp.eq.s32.totalorder %s96, 3
      %p607 = por %p605, %p606
      %p609 = scmp.ne.s32.totalorder %s594, %s608
      %p610 = scmp.eq.s32.totalorder %s96, 0
      %p611 = por %p609, %p610
      %s613 = sadd.s32 %s612, 1
      %p616 = scmp.eq.s32.totalorder %s90, 3
      %p617 = scmp.ne.s32.totalorder %s612, %s614
      %p618 = scmp.eq.s32.totalorder %s90, 0
      %p619 = por %p617, %p618
      %p620 = scmp.ne.s32.totalorder %s612, %s614
      %p621 = scmp.eq.s32.totalorder %s95, 3
      %p622 = por %p620, %p621
      %p623 = scmp.ne.s32.totalorder %s614, %s615
      %p624 = scmp.eq.s32.totalorder %s95, 0
      %p625 = por %p623, %p624
      %p626 = scmp.ne.s32.totalorder %s614, %s615
      %p627 = scmp.eq.s32.totalorder %s96, 3
      %p628 = por %p626, %p627
      %p630 = scmp.ne.s32.totalorder %s615, %s629
      %p631 = scmp.eq.s32.totalorder %s96, 0
      %p632 = por %p630, %p631
      %s634 = sadd.s32 %s633, 1
      %p637 = scmp.eq.s32.totalorder %s90, 3
      %p638 = scmp.ne.s32.totalorder %s633, %s635
      %p639 = scmp.eq.s32.totalorder %s90, 0
      %p640 = por %p638, %p639
      %p641 = scmp.ne.s32.totalorder %s633, %s635
      %p642 = scmp.eq.s32.totalorder %s95, 3
      %p643 = por %p641, %p642
      %p644 = scmp.ne.s32.totalorder %s635, %s636
      %p645 = scmp.eq.s32.totalorder %s95, 0
      %p646 = por %p644, %p645
      %p647 = scmp.ne.s32.totalorder %s635, %s636
      %p648 = scmp.eq.s32.totalorder %s96, 3
      %p649 = por %p647, %p648
      %p651 = scmp.ne.s32.totalorder %s636, %s650
      %p652 = scmp.eq.s32.totalorder %s96, 0
      %p653 = por %p651, %p652
      %s655 = sadd.s32 %s654, 1
      %p658 = scmp.eq.s32.totalorder %s90, 3
      %p659 = scmp.ne.s32.totalorder %s654, %s656
      %p660 = scmp.eq.s32.totalorder %s90, 0
      %p661 = por %p659, %p660
      %p662 = scmp.ne.s32.totalorder %s654, %s656
      %p663 = scmp.eq.s32.totalorder %s95, 3
      %p664 = por %p662, %p663
      %p665 = scmp.ne.s32.totalorder %s656, %s657
      %p666 = scmp.eq.s32.totalorder %s95, 0
      %p667 = por %p665, %p666
      %p668 = scmp.ne.s32.totalorder %s656, %s657
      %p669 = scmp.eq.s32.totalorder %s96, 3
      %p670 = por %p668, %p669
      %p672 = scmp.ne.s32.totalorder %s657, %s671
      %p673 = scmp.eq.s32.totalorder %s96, 0
      %p674 = por %p672, %p673
      %s676 = sadd.s32 %s675, 1
      %p679 = scmp.eq.s32.totalorder %s90, 3
      %p680 = scmp.ne.s32.totalorder %s675, %s677
      %p681 = scmp.eq.s32.totalorder %s90, 0
      %p682 = por %p680, %p681
      %p683 = scmp.ne.s32.totalorder %s675, %s677
      %p684 = scmp.eq.s32.totalorder %s95, 3
      %p685 = por %p683, %p684
      %p686 = scmp.ne.s32.totalorder %s677, %s678
      %p687 = scmp.eq.s32.totalorder %s95, 0
      %p688 = por %p686, %p687
      %p689 = scmp.ne.s32.totalorder %s677, %s678
      %p690 = scmp.eq.s32.totalorder %s96, 3
      %p691 = por %p689, %p690
      %p693 = scmp.ne.s32.totalorder %s678, %s692
      %p694 = scmp.eq.s32.totalorder %s96, 0
      %p695 = por %p693, %p694
      %s697 = sadd.s32 %s696, 1
      %p700 = scmp.eq.s32.totalorder %s90, 3
      %p701 = scmp.ne.s32.totalorder %s696, %s698
      %p702 = scmp.eq.s32.totalorder %s90, 0
      %p703 = por %p701, %p702
      %p704 = scmp.ne.s32.totalorder %s696, %s698
      %p705 = scmp.eq.s32.totalorder %s95, 3
      %p706 = por %p704, %p705
      %p707 = scmp.ne.s32.totalorder %s698, %s699
      %p708 = scmp.eq.s32.totalorder %s95, 0
      %p709 = por %p707, %p708
      %p710 = scmp.ne.s32.totalorder %s698, %s699
      %p711 = scmp.eq.s32.totalorder %s96, 3
      %p712 = por %p710, %p711
      %p714 = scmp.ne.s32.totalorder %s699, %s713
      %p715 = scmp.eq.s32.totalorder %s96, 0
      %p716 = por %p714, %p715
      %s718 = sadd.s32 %s717, 1
      %p721 = scmp.eq.s32.totalorder %s90, 3
      %p722 = scmp.ne.s32.totalorder %s717, %s719
      %p723 = scmp.eq.s32.totalorder %s90, 0
      %p724 = por %p722, %p723
      %p725 = scmp.ne.s32.totalorder %s717, %s719
      %p726 = scmp.eq.s32.totalorder %s95, 3
      %p727 = por %p725, %p726
      %p728 = scmp.ne.s32.totalorder %s719, %s720
      %p729 = scmp.eq.s32.totalorder %s95, 0
      %p730 = por %p728, %p729
      %p731 = scmp.ne.s32.totalorder %s719, %s720
      %p732 = scmp.eq.s32.totalorder %s96, 3
      %p733 = por %p731, %p732
      %p735 = scmp.ne.s32.totalorder %s720, %s734
      %p736 = scmp.eq.s32.totalorder %s96, 0
      %p737 = por %p735, %p736
      %s739 = sadd.s32 %s738, 1
      %p742 = scmp.eq.s32.totalorder %s90, 3
      %p743 = scmp.ne.s32.totalorder %s738, %s740
      %p744 = scmp.eq.s32.totalorder %s90, 0
      %p745 = por %p743, %p744
      %p746 = scmp.ne.s32.totalorder %s738, %s740
      %p747 = scmp.eq.s32.totalorder %s95, 3
      %p748 = por %p746, %p747
      %p749 = scmp.ne.s32.totalorder %s740, %s741
      %p750 = scmp.eq.s32.totalorder %s95, 0
      %p751 = por %p749, %p750
      %p752 = scmp.ne.s32.totalorder %s740, %s741
      %p753 = scmp.eq.s32.totalorder %s96, 3
      %p754 = por %p752, %p753
      %p756 = scmp.ne.s32.totalorder %s741, %s755
      %p757 = scmp.eq.s32.totalorder %s96, 0
      %p758 = por %p756, %p757
      %s760 = sadd.s32 %s759, 1
      %p763 = scmp.eq.s32.totalorder %s90, 3
      %p764 = scmp.ne.s32.totalorder %s759, %s761
      %p765 = scmp.eq.s32.totalorder %s90, 0
      %p766 = por %p764, %p765
      %p767 = scmp.ne.s32.totalorder %s759, %s761
      %p768 = scmp.eq.s32.totalorder %s95, 3
      %p769 = por %p767, %p768
      %p770 = scmp.ne.s32.totalorder %s761, %s762
      %p771 = scmp.eq.s32.totalorder %s95, 0
      %p772 = por %p770, %p771
      %p773 = scmp.ne.s32.totalorder %s761, %s762
      %p774 = scmp.eq.s32.totalorder %s96, 3
      %p775 = por %p773, %p774
      %p777 = scmp.ne.s32.totalorder %s762, %s776
      %p778 = scmp.eq.s32.totalorder %s96, 0
      %p779 = por %p777, %p778
      %s781 = sadd.s32 %s780, 1
      %p784 = scmp.eq.s32.totalorder %s90, 3
      %p785 = scmp.ne.s32.totalorder %s780, %s782
      %p786 = scmp.eq.s32.totalorder %s90, 0
      %p787 = por %p785, %p786
      %p788 = scmp.ne.s32.totalorder %s780, %s782
      %p789 = scmp.eq.s32.totalorder %s95, 3
      %p790 = por %p788, %p789
      %p791 = scmp.ne.s32.totalorder %s782, %s783
      %p792 = scmp.eq.s32.totalorder %s95, 0
      %p793 = por %p791, %p792
      %p794 = scmp.ne.s32.totalorder %s782, %s783
      %p795 = scmp.eq.s32.totalorder %s96, 3
      %p796 = por %p794, %p795
      %p798 = scmp.ne.s32.totalorder %s783, %s797
      %p799 = scmp.eq.s32.totalorder %s96, 0
      %p800 = por %p798, %p799
      %s802 = sadd.s32 %s801, 1
      %p805 = scmp.eq.s32.totalorder %s90, 3
      %p806 = scmp.ne.s32.totalorder %s801, %s803
      %p807 = scmp.eq.s32.totalorder %s90, 0
      %p808 = por %p806, %p807
      %p809 = scmp.ne.s32.totalorder %s801, %s803
      %p810 = scmp.eq.s32.totalorder %s95, 3
      %p811 = por %p809, %p810
      %p812 = scmp.ne.s32.totalorder %s803, %s804
      %p813 = scmp.eq.s32.totalorder %s95, 0
      %p814 = por %p812, %p813
      %p815 = scmp.ne.s32.totalorder %s803, %s804
      %p816 = scmp.eq.s32.totalorder %s96, 3
      %p817 = por %p815, %p816
      %p819 = scmp.ne.s32.totalorder %s804, %s818
      %p820 = scmp.eq.s32.totalorder %s96, 0
      %p821 = por %p819, %p820
      %s823 = sadd.s32 %s822, 1
      %p826 = scmp.eq.s32.totalorder %s90, 3
      %p827 = scmp.ne.s32.totalorder %s822, %s824
      %p828 = scmp.eq.s32.totalorder %s90, 0
      %p829 = por %p827, %p828
      %p830 = scmp.ne.s32.totalorder %s822, %s824
      %p831 = scmp.eq.s32.totalorder %s95, 3
      %p832 = por %p830, %p831
      %p833 = scmp.ne.s32.totalorder %s824, %s825
      %p834 = scmp.eq.s32.totalorder %s95, 0
      %p835 = por %p833, %p834
      %p836 = scmp.ne.s32.totalorder %s824, %s825
      %p837 = scmp.eq.s32.totalorder %s96, 3
      %p838 = por %p836, %p837
      %p840 = scmp.ne.s32.totalorder %s825, %s839
      %p841 = scmp.eq.s32.totalorder %s96, 0
      %p842 = por %p840, %p841
      %p843 = scmp.le.s32.totalorder 1, %s90
      %p844 = scmp.lt.s32.totalorder %s90, 5
      %p845 = pnand %p843, %p844
      %p846 = pneg %p845
      // Predicated region
      $region9: #{nasr_forward_pallas.1} parent=5 // pred_check
        _
      $region10: #{nasr_forward_pallas.1} parent=5 // pred_check_branch
        %848 = sbr.rel (%p845) target = $region12
      $region11: #{nasr_forward_pallas.1} parent=5 // pred_region
        %s849 = ssub.s32 %s90, 1
        // Predicated region
        $region13: #{nasr_forward_pallas.1} parent=11 // pred_check
          %p850 = pneg %p137
        $region14: #{nasr_forward_pallas.1} parent=11 // pred_check_branch
          %852 = sbr.rel (%p850) target = $region16
        $region15: #{nasr_forward_pallas.1} parent=11 // pred_region
          %854 = vsyncadd [#allocation5], 0
          %s855 = sshll.u32 %s3, 4
          %s856 = int_to_ptr.hbm [resolvable:$true] %s855
          %s857 = sshll.u32 [#allocation4], 4
          %s858 = int_to_ptr.vmem [resolvable:$true] %s857
          %863 = dma.hbm_to_vmem [thread:$0]  %s856, 512, %s858, [#allocation5], 256, 256, 16
        $region16: #{nasr_forward_pallas.1} parent=11 // pred_fallthru
          _
        // Predicated region
        $region17: #{nasr_forward_pallas.1} parent=11 // pred_check
          %p864 = pneg %p158
        $region18: #{nasr_forward_pallas.1} parent=11 // pred_check_branch
          %866 = sbr.rel (%p864) target = $region20
        $region19: #{nasr_forward_pallas.1} parent=11 // pred_region
          %868 = vsyncadd [#allocation7], 0
          %s870 = sshll.u32 %s5, 4
          %s871 = int_to_ptr.hbm [resolvable:$true] %s870
          %s872 = sshll.u32 [#allocation6], 4
          %s873 = int_to_ptr.vmem [resolvable:$true] %s872
          %875 = dma.hbm_to_vmem [thread:$0]  %s871, 64, %s873, [#allocation7]
        $region20: #{nasr_forward_pallas.1} parent=11 // pred_fallthru
          _
        // Predicated region
        $region21: #{nasr_forward_pallas.1} parent=11 // pred_check
          %p876 = pneg %p179
        $region22: #{nasr_forward_pallas.1} parent=11 // pred_check_branch
          %878 = sbr.rel (%p876) target = $region24
        $region23: #{nasr_forward_pallas.1} parent=11 // pred_region
          _
        $region24: #{nasr_forward_pallas.1} parent=11 // pred_fallthru
          _
        // Predicated region
        $region25: #{nasr_forward_pallas.1} parent=11 // pred_check
          %p879 = pneg %p200
        $region26: #{nasr_forward_pallas.1} parent=11 // pred_check_branch
          %881 = sbr.rel (%p879) target = $region28
        $region27: #{nasr_forward_pallas.1} parent=11 // pred_region
          _
        $region28: #{nasr_forward_pallas.1} parent=11 // pred_fallthru
          _
        // Predicated region
        $region29: #{nasr_forward_pallas.1} parent=11 // pred_check
          %p882 = pneg %p221
        $region30: #{nasr_forward_pallas.1} parent=11 // pred_check_branch
          %884 = sbr.rel (%p882) target = $region32
        $region31: #{nasr_forward_pallas.1} parent=11 // pred_region
          _
        $region32: #{nasr_forward_pallas.1} parent=11 // pred_fallthru
          _
        // Predicated region
        $region33: #{nasr_forward_pallas.1} parent=11 // pred_check
          %p885 = pneg %p268
        $region34: #{nasr_forward_pallas.1} parent=11 // pred_check_branch
          %887 = sbr.rel (%p885) target = $region36
        $region35: #{nasr_forward_pallas.1} parent=11 // pred_region
          %889 = vsyncadd [#allocation7], 0
          %s891 = sshll.u32 %s15, 4
          %s892 = int_to_ptr.hbm [resolvable:$true] %s891
          %s893 = sshll.u32 [#allocation9], 4
          %s894 = int_to_ptr.vmem [resolvable:$true] %s893
          %896 = dma.hbm_to_vmem [thread:$0]  %s892, 128, %s894, [#allocation7]
        $region36: #{nasr_forward_pallas.1} parent=11 // pred_fallthru
          _
        // Predicated region
        $region37: #{nasr_forward_pallas.1} parent=11 // pred_check
          %p897 = pneg %p289
        $region38: #{nasr_forward_pallas.1} parent=11 // pred_check_branch
          %899 = sbr.rel (%p897) target = $region40
        $region39: #{nasr_forward_pallas.1} parent=11 // pred_region
          %901 = vsyncadd [#allocation11], 0
          %s903 = sshll.u32 %s17, 4
          %s904 = int_to_ptr.hbm [resolvable:$true] %s903
          %s905 = sshll.u32 [#allocation10], 4
          %s906 = int_to_ptr.vmem [resolvable:$true] %s905
          %908 = dma.hbm_to_vmem [thread:$0]  %s904, 128, %s906, [#allocation11]
        $region40: #{nasr_forward_pallas.1} parent=11 // pred_fallthru
          _
        // Predicated region
        $region41: #{nasr_forward_pallas.1} parent=11 // pred_check
          %p909 = pneg %p310
        $region42: #{nasr_forward_pallas.1} parent=11 // pred_check_branch
          %911 = sbr.rel (%p909) target = $region44
        $region43: #{nasr_forward_pallas.1} parent=11 // pred_region
          %913 = vsyncadd [#allocation11], 0
          %s914 = sshll.u32 %s19, 4
          %s915 = int_to_ptr.hbm [resolvable:$true] %s914
          %s916 = sshll.u32 [#allocation12], 4
          %s917 = int_to_ptr.vmem [resolvable:$true] %s916
          %922 = dma.hbm_to_vmem [thread:$0]  %s915, 16384, %s917, [#allocation11], 512, 512, 32
        $region44: #{nasr_forward_pallas.1} parent=11 // pred_fallthru
          _
        // Predicated region
        $region45: #{nasr_forward_pallas.1} parent=11 // pred_check
          %p923 = pneg %p331
        $region46: #{nasr_forward_pallas.1} parent=11 // pred_check_branch
          %925 = sbr.rel (%p923) target = $region48
        $region47: #{nasr_forward_pallas.1} parent=11 // pred_region
          %927 = vsyncadd [#allocation14], 0
          %s929 = sshll.u32 %s21, 4
          %s930 = int_to_ptr.hbm [resolvable:$true] %s929
          %s931 = sshll.u32 [#allocation13], 4
          %s932 = int_to_ptr.vmem [resolvable:$true] %s931
          %934 = dma.hbm_to_vmem [thread:$0]  %s930, 64, %s932, [#allocation14]
        $region48: #{nasr_forward_pallas.1} parent=11 // pred_fallthru
          _
        // Predicated region
        $region49: #{nasr_forward_pallas.1} parent=11 // pred_check
          %p935 = pneg %p352
        $region50: #{nasr_forward_pallas.1} parent=11 // pred_check_branch
          %937 = sbr.rel (%p935) target = $region52
        $region51: #{nasr_forward_pallas.1} parent=11 // pred_region
          %939 = vsyncadd [#allocation14], 0
          %s941 = sshll.u32 %s23, 4
          %s942 = int_to_ptr.hbm [resolvable:$true] %s941
          %s943 = sshll.u32 [#allocation15], 4
          %s944 = int_to_ptr.vmem [resolvable:$true] %s943
          %946 = dma.hbm_to_vmem [thread:$0]  %s942, 64, %s944, [#allocation14]
        $region52: #{nasr_forward_pallas.1} parent=11 // pred_fallthru
          _
        // Predicated region
        $region53: #{nasr_forward_pallas.1} parent=11 // pred_check
          %p947 = pneg %p373
        $region54: #{nasr_forward_pallas.1} parent=11 // pred_check_branch
          %949 = sbr.rel (%p947) target = $region56
        $region55: #{nasr_forward_pallas.1} parent=11 // pred_region
          %951 = vsyncadd [#allocation17], 0
          %s952 = sshll.u32 %s25, 4
          %s953 = int_to_ptr.hbm [resolvable:$true] %s952
          %s954 = sshll.u32 [#allocation16], 4
          %s955 = int_to_ptr.vmem [resolvable:$true] %s954
          %960 = dma.hbm_to_vmem [thread:$0]  %s953, 4096, %s955, [#allocation17], 64, 64, 4
        $region56: #{nasr_forward_pallas.1} parent=11 // pred_fallthru
          _
        // Predicated region
        $region57: #{nasr_forward_pallas.1} parent=11 // pred_check
          %p961 = pneg %p394
        $region58: #{nasr_forward_pallas.1} parent=11 // pred_check_branch
          %963 = sbr.rel (%p961) target = $region60
        $region59: #{nasr_forward_pallas.1} parent=11 // pred_region
          %965 = vsyncadd [#allocation17], 0
          %s967 = sshll.u32 %s27, 4
          %s968 = int_to_ptr.hbm [resolvable:$true] %s967
          %s969 = sshll.u32 [#allocation18], 4
          %s970 = int_to_ptr.vmem [resolvable:$true] %s969
          %972 = dma.hbm_to_vmem [thread:$0]  %s968, 16, %s970, [#allocation17]
        $region60: #{nasr_forward_pallas.1} parent=11 // pred_fallthru
          _
        // Predicated region
        $region61: #{nasr_forward_pallas.1} parent=11 // pred_check
          %p973 = pneg %p415
        $region62: #{nasr_forward_pallas.1} parent=11 // pred_check_branch
          %975 = sbr.rel (%p973) target = $region64
        $region63: #{nasr_forward_pallas.1} parent=11 // pred_region
          %977 = vsyncadd [#allocation20], 0
          %s978 = sshll.u32 %s29, 4
          %s979 = int_to_ptr.hbm [resolvable:$true] %s978
          %s980 = sshll.u32 [#allocation19], 4
          %s981 = int_to_ptr.vmem [resolvable:$true] %s980
          %986 = dma.hbm_to_vmem [thread:$0]  %s979, 128, %s981, [#allocation20], 64, 64, 4
        $region64: #{nasr_forward_pallas.1} parent=11 // pred_fallthru
          _
        // Predicated region
        $region65: #{nasr_forward_pallas.1} parent=11 // pred_check
          %p987 = pneg %p436
        $region66: #{nasr_forward_pallas.1} parent=11 // pred_check_branch
          %989 = sbr.rel (%p987) target = $region68
        $region67: #{nasr_forward_pallas.1} parent=11 // pred_region
          %991 = vsyncadd [#allocation20], 0
          %s993 = sshll.u32 %s31, 4
          %s994 = int_to_ptr.hbm [resolvable:$true] %s993
          %s995 = sshll.u32 [#allocation21], 4
          %s996 = int_to_ptr.vmem [resolvable:$true] %s995
          %998 = dma.hbm_to_vmem [thread:$0]  %s994, 16, %s996, [#allocation20]
        $region68: #{nasr_forward_pallas.1} parent=11 // pred_fallthru
          _
        // Predicated region
        $region69: #{nasr_forward_pallas.1} parent=11 // pred_check
          %p999 = pneg %p457
        $region70: #{nasr_forward_pallas.1} parent=11 // pred_check_branch
          %1001 = sbr.rel (%p999) target = $region72
        $region71: #{nasr_forward_pallas.1} parent=11 // pred_region
          _
        $region72: #{nasr_forward_pallas.1} parent=11 // pred_fallthru
          _
        // Predicated region
        $region73: #{nasr_forward_pallas.1} parent=11 // pred_check
          %p1002 = pneg %p478
        $region74: #{nasr_forward_pallas.1} parent=11 // pred_check_branch
          %1004 = sbr.rel (%p1002) target = $region76
        $region75: #{nasr_forward_pallas.1} parent=11 // pred_region
          %1006 = vsyncadd [#allocation23], 0
          %s1008 = sshll.u32 %s35, 4
          %s1009 = int_to_ptr.hbm [resolvable:$true] %s1008
          %s1010 = sshll.u32 [#allocation22], 4
          %s1011 = int_to_ptr.vmem [resolvable:$true] %s1010
          %1013 = dma.hbm_to_vmem [thread:$0]  %s1009, 16, %s1011, [#allocation23]
        $region76: #{nasr_forward_pallas.1} parent=11 // pred_fallthru
          _
        // Predicated region
        $region77: #{nasr_forward_pallas.1} parent=11 // pred_check
          %p1014 = pneg %p499
        $region78: #{nasr_forward_pallas.1} parent=11 // pred_check_branch
          %1016 = sbr.rel (%p1014) target = $region80
        $region79: #{nasr_forward_pallas.1} parent=11 // pred_region
          %1018 = vsyncadd [#allocation23], 0
          %s1019 = sshll.u32 %s37, 4
          %s1020 = int_to_ptr.hbm [resolvable:$true] %s1019
          %s1021 = sshll.u32 [#allocation24], 4
          %s1022 = int_to_ptr.vmem [resolvable:$true] %s1021
          %1027 = dma.hbm_to_vmem [thread:$0]  %s1020, 128, %s1022, [#allocation23], 64, 64, 4
        $region80: #{nasr_forward_pallas.1} parent=11 // pred_fallthru
          _
        // Predicated region
        $region81: #{nasr_forward_pallas.1} parent=11 // pred_check
          %p1028 = pneg %p520
        $region82: #{nasr_forward_pallas.1} parent=11 // pred_check_branch
          %1030 = sbr.rel (%p1028) target = $region84
        $region83: #{nasr_forward_pallas.1} parent=11 // pred_region
          %1032 = vsyncadd [#allocation26], 0
          %s1034 = sshll.u32 %s39, 4
          %s1035 = int_to_ptr.hbm [resolvable:$true] %s1034
          %s1036 = sshll.u32 [#allocation25], 4
          %s1037 = int_to_ptr.vmem [resolvable:$true] %s1036
          %1039 = dma.hbm_to_vmem [thread:$0]  %s1035, 16, %s1037, [#allocation26]
        $region84: #{nasr_forward_pallas.1} parent=11 // pred_fallthru
          _
        // Predicated region
        $region85: #{nasr_forward_pallas.1} parent=11 // pred_check
          %p1040 = pneg %p541
        $region86: #{nasr_forward_pallas.1} parent=11 // pred_check_branch
          %1042 = sbr.rel (%p1040) target = $region88
        $region87: #{nasr_forward_pallas.1} parent=11 // pred_region
          _
        $region88: #{nasr_forward_pallas.1} parent=11 // pred_fallthru
          _
        // Predicated region
        $region89: #{nasr_forward_pallas.1} parent=11 // pred_check
          %p1043 = pneg %p562
        $region90: #{nasr_forward_pallas.1} parent=11 // pred_check_branch
          %1045 = sbr.rel (%p1043) target = $region92
        $region91: #{nasr_forward_pallas.1} parent=11 // pred_region
          %1047 = vsyncadd [#allocation26], 0
          %s1049 = sshll.u32 %s43, 4
          %s1050 = int_to_ptr.hbm [resolvable:$true] %s1049
          %s1051 = sshll.u32 [#allocation27], 4
          %s1052 = int_to_ptr.vmem [resolvable:$true] %s1051
          %1054 = dma.hbm_to_vmem [thread:$0]  %s1050, 16, %s1052, [#allocation26]
        $region92: #{nasr_forward_pallas.1} parent=11 // pred_fallthru
          _
        // Predicated region
        $region93: #{nasr_forward_pallas.1} parent=11 // pred_check
          %p1055 = pneg %p583
        $region94: #{nasr_forward_pallas.1} parent=11 // pred_check_branch
          %1057 = sbr.rel (%p1055) target = $region96
        $region95: #{nasr_forward_pallas.1} parent=11 // pred_region
          %1059 = vsyncadd [#allocation29], 0
          %s1061 = sshll.u32 %s45, 4
          %s1062 = int_to_ptr.hbm [resolvable:$true] %s1061
          %s1063 = sshll.u32 [#allocation28], 4
          %s1064 = int_to_ptr.vmem [resolvable:$true] %s1063
          %1066 = dma.hbm_to_vmem [thread:$0]  %s1062, 16, %s1064, [#allocation29]
        $region96: #{nasr_forward_pallas.1} parent=11 // pred_fallthru
          _
        // Predicated region
        $region97: #{nasr_forward_pallas.1} parent=11 // pred_check
          %p1067 = pneg %p604
        $region98: #{nasr_forward_pallas.1} parent=11 // pred_check_branch
          %1069 = sbr.rel (%p1067) target = $region100
        $region99: #{nasr_forward_pallas.1} parent=11 // pred_region
          %1071 = vsyncadd [#allocation29], 0
          %s1073 = sshll.u32 %s47, 4
          %s1074 = int_to_ptr.hbm [resolvable:$true] %s1073
          %s1075 = sshll.u32 [#allocation30], 4
          %s1076 = int_to_ptr.vmem [resolvable:$true] %s1075
          %1078 = dma.hbm_to_vmem [thread:$0]  %s1074, 16, %s1076, [#allocation29]
        $region100: #{nasr_forward_pallas.1} parent=11 // pred_fallthru
          _
        // Predicated region
        $region101: #{nasr_forward_pallas.1} parent=11 // pred_check
          %p1079 = pneg %p625
        $region102: #{nasr_forward_pallas.1} parent=11 // pred_check_branch
          %1081 = sbr.rel (%p1079) target = $region104
        $region103: #{nasr_forward_pallas.1} parent=11 // pred_region
          %1083 = vsyncadd [#allocation32], 0
          %s1084 = sshll.u32 %s49, 4
          %s1085 = int_to_ptr.hbm [resolvable:$true] %s1084
          %s1086 = sshll.u32 [#allocation31], 4
          %s1087 = int_to_ptr.vmem [resolvable:$true] %s1086
          %1092 = dma.hbm_to_vmem [thread:$0]  %s1085, 128, %s1087, [#allocation32], 64, 64, 4
        $region104: #{nasr_forward_pallas.1} parent=11 // pred_fallthru
          _
        // Predicated region
        $region105: #{nasr_forward_pallas.1} parent=11 // pred_check
          %p1093 = pneg %p646
        $region106: #{nasr_forward_pallas.1} parent=11 // pred_check_branch
          %1095 = sbr.rel (%p1093) target = $region108
        $region107: #{nasr_forward_pallas.1} parent=11 // pred_region
          %1097 = vsyncadd [#allocation32], 0
          %s1099 = sshll.u32 %s51, 4
          %s1100 = int_to_ptr.hbm [resolvable:$true] %s1099
          %s1101 = sshll.u32 [#allocation33], 4
          %s1102 = int_to_ptr.vmem [resolvable:$true] %s1101
          %1104 = dma.hbm_to_vmem [thread:$0]  %s1100, 16, %s1102, [#allocation32]
        $region108: #{nasr_forward_pallas.1} parent=11 // pred_fallthru
          _
        // Predicated region
        $region109: #{nasr_forward_pallas.1} parent=11 // pred_check
          %p1105 = pneg %p667
        $region110: #{nasr_forward_pallas.1} parent=11 // pred_check_branch
          %1107 = sbr.rel (%p1105) target = $region112
        $region111: #{nasr_forward_pallas.1} parent=11 // pred_region
          %1109 = vsyncadd [#allocation35], 0
          %s1110 = sshll.u32 %s53, 4
          %s1111 = int_to_ptr.hbm [resolvable:$true] %s1110
          %s1112 = sshll.u32 [#allocation34], 4
          %s1113 = int_to_ptr.vmem [resolvable:$true] %s1112
          %1118 = dma.hbm_to_vmem [thread:$0]  %s1111, 5120, %s1113, [#allocation35], 128, 128, 8
        $region112: #{nasr_forward_pallas.1} parent=11 // pred_fallthru
          _
        // Predicated region
        $region113: #{nasr_forward_pallas.1} parent=11 // pred_check
          %p1119 = pneg %p688
        $region114: #{nasr_forward_pallas.1} parent=11 // pred_check_branch
          %1121 = sbr.rel (%p1119) target = $region116
        $region115: #{nasr_forward_pallas.1} parent=11 // pred_region
          %1123 = vsyncadd [#allocation35], 0
          %s1125 = sshll.u32 %s55, 4
          %s1126 = int_to_ptr.hbm [resolvable:$true] %s1125
          %s1127 = sshll.u32 [#allocation36], 4
          %s1128 = int_to_ptr.vmem [resolvable:$true] %s1127
          %1130 = dma.hbm_to_vmem [thread:$0]  %s1126, 32, %s1128, [#allocation35]
        $region116: #{nasr_forward_pallas.1} parent=11 // pred_fallthru
          _
        // Predicated region
        $region117: #{nasr_forward_pallas.1} parent=11 // pred_check
          %p1131 = pneg %p709
        $region118: #{nasr_forward_pallas.1} parent=11 // pred_check_branch
          %1133 = sbr.rel (%p1131) target = $region120
        $region119: #{nasr_forward_pallas.1} parent=11 // pred_region
          %1135 = vsyncadd [#allocation38], 0
          %s1136 = sshll.u32 %s57, 4
          %s1137 = int_to_ptr.hbm [resolvable:$true] %s1136
          %s1138 = sshll.u32 [#allocation37], 4
          %s1139 = int_to_ptr.vmem [resolvable:$true] %s1138
          %1144 = dma.hbm_to_vmem [thread:$0]  %s1137, 2048, %s1139, [#allocation38], 64, 64, 4
        $region120: #{nasr_forward_pallas.1} parent=11 // pred_fallthru
          _
        // Predicated region
        $region121: #{nasr_forward_pallas.1} parent=11 // pred_check
          %p1145 = pneg %p730
        $region122: #{nasr_forward_pallas.1} parent=11 // pred_check_branch
          %1147 = sbr.rel (%p1145) target = $region124
        $region123: #{nasr_forward_pallas.1} parent=11 // pred_region
          %1149 = vsyncadd [#allocation38], 0
          %s1151 = sshll.u32 %s59, 4
          %s1152 = int_to_ptr.hbm [resolvable:$true] %s1151
          %s1153 = sshll.u32 [#allocation39], 4
          %s1154 = int_to_ptr.vmem [resolvable:$true] %s1153
          %1156 = dma.hbm_to_vmem [thread:$0]  %s1152, 16, %s1154, [#allocation38]
        $region124: #{nasr_forward_pallas.1} parent=11 // pred_fallthru
          _
        // Predicated region
        $region125: #{nasr_forward_pallas.1} parent=11 // pred_check
          %p1157 = pneg %p751
        $region126: #{nasr_forward_pallas.1} parent=11 // pred_check_branch
          %1159 = sbr.rel (%p1157) target = $region128
        $region127: #{nasr_forward_pallas.1} parent=11 // pred_region
          _
        $region128: #{nasr_forward_pallas.1} parent=11 // pred_fallthru
          _
        // Predicated region
        $region129: #{nasr_forward_pallas.1} parent=11 // pred_check
          %p1160 = pneg %p772
        $region130: #{nasr_forward_pallas.1} parent=11 // pred_check_branch
          %1162 = sbr.rel (%p1160) target = $region132
        $region131: #{nasr_forward_pallas.1} parent=11 // pred_region
          %1164 = vsyncadd [#allocation41], 0
          %s1166 = sshll.u32 %s63, 4
          %s1167 = int_to_ptr.hbm [resolvable:$true] %s1166
          %s1168 = sshll.u32 [#allocation40], 4
          %s1169 = int_to_ptr.vmem [resolvable:$true] %s1168
          %1171 = dma.hbm_to_vmem [thread:$0]  %s1167, 16, %s1169, [#allocation41]
        $region132: #{nasr_forward_pallas.1} parent=11 // pred_fallthru
          _
        // Predicated region
        $region133: #{nasr_forward_pallas.1} parent=11 // pred_check
          %p1172 = pneg %p793
        $region134: #{nasr_forward_pallas.1} parent=11 // pred_check_branch
          %1174 = sbr.rel (%p1172) target = $region136
        $region135: #{nasr_forward_pallas.1} parent=11 // pred_region
          _
        $region136: #{nasr_forward_pallas.1} parent=11 // pred_fallthru
          _
        // Predicated region
        $region137: #{nasr_forward_pallas.1} parent=11 // pred_check
          %p1175 = pneg %p814
        $region138: #{nasr_forward_pallas.1} parent=11 // pred_check_branch
          %1177 = sbr.rel (%p1175) target = $region140
        $region139: #{nasr_forward_pallas.1} parent=11 // pred_region
          _
        $region140: #{nasr_forward_pallas.1} parent=11 // pred_fallthru
          _
      $region12: #{nasr_forward_pallas.1} parent=5 // pred_fallthru
        _
      %p1178 = scmp.lt.s32.totalorder %s90, 4
      // Predicated region
      $region141: #{nasr_forward_pallas.1} parent=5 // pred_check
        %p1179 = pneg %p1178
      $region142: #{nasr_forward_pallas.1} parent=5 // pred_check_branch
        %1181 = sbr.rel (%p1179) target = $region144
      $region143: #{nasr_forward_pallas.1} parent=5 // pred_region
        // Predicated region
        $region145: #{nasr_forward_pallas.1} parent=143 // pred_check
          %p1182 = pneg %p110
        $region146: #{nasr_forward_pallas.1} parent=143 // pred_check_branch
          %1184 = sbr.rel (%p1182) target = $region148
        $region147: #{nasr_forward_pallas.1} parent=143 // pred_region
          %s1185 = smul.u32 2, %s90
          %p1186 = scmp.lt.s32.totalorder %s1185, 7
          %s1187 = scalar_select %p1186, %s1185, 7
          %s1188 = scalar_lea.vmem %s1, %s1187
          %s1189 = smul.u32 2, %s90
        $region148: #{nasr_forward_pallas.1} parent=143 // pred_fallthru
          _
        // Predicated region
        $region149: #{nasr_forward_pallas.1} parent=143 // pred_check
          %p1190 = pneg %p241
        $region150: #{nasr_forward_pallas.1} parent=143 // pred_check_branch
          %1192 = sbr.rel (%p1190) target = $region152
        $region151: #{nasr_forward_pallas.1} parent=143 // pred_region
          %s1193 = sand.u32 %s90, 1
          %s1194 = scalar_lea.sflag [#allocation5], %s1193
          %s1195 = sand.u32 %s231, 1
          %s1196 = smul.addr %s1195, 2048
          %s1197 = scalar_lea.vmem [#allocation8], %s1196
          %s1198 = smul.u32 32, %s90
          %1200 = vsyncadd %s1194, 0
          %s1201 = smul.addr %s1198, 8
          %s1202 = smul.addr %s1201, 8
          %s1203 = scalar_lea.hbm %s13, %s1202
          %s1204 = sshll.u32 %s1203, 4
          %s1205 = int_to_ptr.hbm [resolvable:$true] %s1204
          %s1206 = sshll.u32 %s1197, 4
          %s1207 = int_to_ptr.vmem [resolvable:$true] %s1206
          %1212 = dma.hbm_to_vmem [thread:$0]  %s1205, 32768, %s1207, %s1194, 1024, 1024, 64
        $region152: #{nasr_forward_pallas.1} parent=143 // pred_fallthru
          _
      $region144: #{nasr_forward_pallas.1} parent=5 // pred_fallthru
        _
      %p1213 = scmp.le.s32.totalorder 1, %s90
      %p1214 = scmp.lt.s32.totalorder %s90, 5
      %p1215 = pnand %p1213, %p1214
      %p1216 = pneg %p1215
      // Predicated region
      $region153: #{nasr_forward_pallas.1} parent=5 // pred_check
        _
      $region154: #{nasr_forward_pallas.1} parent=5 // pred_check_branch
        %1218 = sbr.rel (%p1215) target = $region156
      $region155: #{nasr_forward_pallas.1} parent=5 // pred_region
        %s1219 = ssub.s32 %s90, 1
        // Predicated region
        $region157: #{nasr_forward_pallas.1} parent=155 // pred_check
          %p1220 = pneg %p137
        $region158: #{nasr_forward_pallas.1} parent=155 // pred_check_branch
          %1222 = sbr.rel (%p1220) target = $region160
        $region159: #{nasr_forward_pallas.1} parent=155 // pred_region
          %1224 = dma.done [#allocation5], 512
        $region160: #{nasr_forward_pallas.1} parent=155 // pred_fallthru
          _
        // Predicated region
        $region161: #{nasr_forward_pallas.1} parent=155 // pred_check
          %p1225 = pneg %p158
        $region162: #{nasr_forward_pallas.1} parent=155 // pred_check_branch
          %1227 = sbr.rel (%p1225) target = $region164
        $region163: #{nasr_forward_pallas.1} parent=155 // pred_region
          %1229 = dma.done [#allocation7], 64
        $region164: #{nasr_forward_pallas.1} parent=155 // pred_fallthru
          _
        %s1230 = sand.u32 %s95, 1
        %s1231 = scalar_lea.sflag [#allocation5], %s1230
        %s1232 = sand.u32 %s234, 1
        %s1233 = smul.addr %s1232, 2048
        %s1234 = scalar_lea.vmem [#allocation8], %s1233
        // Predicated region
        $region165: #{nasr_forward_pallas.1} parent=155 // pred_check
          %p1235 = pneg %p247
        $region166: #{nasr_forward_pallas.1} parent=155 // pred_check_branch
          %1237 = sbr.rel (%p1235) target = $region168
        $region167: #{nasr_forward_pallas.1} parent=155 // pred_region
          %1239 = dma.done %s1231, 32768
        $region168: #{nasr_forward_pallas.1} parent=155 // pred_fallthru
          _
        // Predicated region
        $region169: #{nasr_forward_pallas.1} parent=155 // pred_check
          %p1240 = pneg %p268
        $region170: #{nasr_forward_pallas.1} parent=155 // pred_check_branch
          %1242 = sbr.rel (%p1240) target = $region172
        $region171: #{nasr_forward_pallas.1} parent=155 // pred_region
          %1244 = dma.done [#allocation7], 128
        $region172: #{nasr_forward_pallas.1} parent=155 // pred_fallthru
          _
        // Predicated region
        $region173: #{nasr_forward_pallas.1} parent=155 // pred_check
          %p1245 = pneg %p289
        $region174: #{nasr_forward_pallas.1} parent=155 // pred_check_branch
          %1247 = sbr.rel (%p1245) target = $region176
        $region175: #{nasr_forward_pallas.1} parent=155 // pred_region
          %1249 = dma.done [#allocation11], 128
        $region176: #{nasr_forward_pallas.1} parent=155 // pred_fallthru
          _
        // Predicated region
        $region177: #{nasr_forward_pallas.1} parent=155 // pred_check
          %p1250 = pneg %p310
        $region178: #{nasr_forward_pallas.1} parent=155 // pred_check_branch
          %1252 = sbr.rel (%p1250) target = $region180
        $region179: #{nasr_forward_pallas.1} parent=155 // pred_region
          %1254 = dma.done [#allocation11], 16384
        $region180: #{nasr_forward_pallas.1} parent=155 // pred_fallthru
          _
        // Predicated region
        $region181: #{nasr_forward_pallas.1} parent=155 // pred_check
          %p1255 = pneg %p331
        $region182: #{nasr_forward_pallas.1} parent=155 // pred_check_branch
          %1257 = sbr.rel (%p1255) target = $region184
        $region183: #{nasr_forward_pallas.1} parent=155 // pred_region
          %1259 = dma.done [#allocation14], 64
        $region184: #{nasr_forward_pallas.1} parent=155 // pred_fallthru
          _
        // Predicated region
        $region185: #{nasr_forward_pallas.1} parent=155 // pred_check
          %p1260 = pneg %p352
        $region186: #{nasr_forward_pallas.1} parent=155 // pred_check_branch
          %1262 = sbr.rel (%p1260) target = $region188
        $region187: #{nasr_forward_pallas.1} parent=155 // pred_region
          %1264 = dma.done [#allocation14], 64
        $region188: #{nasr_forward_pallas.1} parent=155 // pred_fallthru
          _
        // Predicated region
        $region189: #{nasr_forward_pallas.1} parent=155 // pred_check
          %p1265 = pneg %p373
        $region190: #{nasr_forward_pallas.1} parent=155 // pred_check_branch
          %1267 = sbr.rel (%p1265) target = $region192
        $region191: #{nasr_forward_pallas.1} parent=155 // pred_region
          %1269 = dma.done [#allocation17], 4096
        $region192: #{nasr_forward_pallas.1} parent=155 // pred_fallthru
          _
        // Predicated region
        $region193: #{nasr_forward_pallas.1} parent=155 // pred_check
          %p1270 = pneg %p394
        $region194: #{nasr_forward_pallas.1} parent=155 // pred_check_branch
          %1272 = sbr.rel (%p1270) target = $region196
        $region195: #{nasr_forward_pallas.1} parent=155 // pred_region
          %1274 = dma.done [#allocation17], 16
        $region196: #{nasr_forward_pallas.1} parent=155 // pred_fallthru
          _
        // Predicated region
        $region197: #{nasr_forward_pallas.1} parent=155 // pred_check
          %p1275 = pneg %p415
        $region198: #{nasr_forward_pallas.1} parent=155 // pred_check_branch
          %1277 = sbr.rel (%p1275) target = $region200
        $region199: #{nasr_forward_pallas.1} parent=155 // pred_region
          %1279 = dma.done [#allocation20], 128
        $region200: #{nasr_forward_pallas.1} parent=155 // pred_fallthru
          _
        // Predicated region
        $region201: #{nasr_forward_pallas.1} parent=155 // pred_check
          %p1280 = pneg %p436
        $region202: #{nasr_forward_pallas.1} parent=155 // pred_check_branch
          %1282 = sbr.rel (%p1280) target = $region204
        $region203: #{nasr_forward_pallas.1} parent=155 // pred_region
          %1284 = dma.done [#allocation20], 16
        $region204: #{nasr_forward_pallas.1} parent=155 // pred_fallthru
          _
        // Predicated region
        $region205: #{nasr_forward_pallas.1} parent=155 // pred_check
          %p1285 = pneg %p478
        $region206: #{nasr_forward_pallas.1} parent=155 // pred_check_branch
          %1287 = sbr.rel (%p1285) target = $region208
        $region207: #{nasr_forward_pallas.1} parent=155 // pred_region
          %1289 = dma.done [#allocation23], 16
        $region208: #{nasr_forward_pallas.1} parent=155 // pred_fallthru
          _
        // Predicated region
        $region209: #{nasr_forward_pallas.1} parent=155 // pred_check
          %p1290 = pneg %p499
        $region210: #{nasr_forward_pallas.1} parent=155 // pred_check_branch
          %1292 = sbr.rel (%p1290) target = $region212
        $region211: #{nasr_forward_pallas.1} parent=155 // pred_region
          %1294 = dma.done [#allocation23], 128
        $region212: #{nasr_forward_pallas.1} parent=155 // pred_fallthru
          _
        // Predicated region
        $region213: #{nasr_forward_pallas.1} parent=155 // pred_check
          %p1295 = pneg %p520
        $region214: #{nasr_forward_pallas.1} parent=155 // pred_check_branch
          %1297 = sbr.rel (%p1295) target = $region216
        $region215: #{nasr_forward_pallas.1} parent=155 // pred_region
          %1299 = dma.done [#allocation26], 16
        $region216: #{nasr_forward_pallas.1} parent=155 // pred_fallthru
          _
        // Predicated region
        $region217: #{nasr_forward_pallas.1} parent=155 // pred_check
          %p1300 = pneg %p562
        $region218: #{nasr_forward_pallas.1} parent=155 // pred_check_branch
          %1302 = sbr.rel (%p1300) target = $region220
        $region219: #{nasr_forward_pallas.1} parent=155 // pred_region
          %1304 = dma.done [#allocation26], 16
        $region220: #{nasr_forward_pallas.1} parent=155 // pred_fallthru
          _
        // Predicated region
        $region221: #{nasr_forward_pallas.1} parent=155 // pred_check
          %p1305 = pneg %p583
        $region222: #{nasr_forward_pallas.1} parent=155 // pred_check_branch
          %1307 = sbr.rel (%p1305) target = $region224
        $region223: #{nasr_forward_pallas.1} parent=155 // pred_region
          %1309 = dma.done [#allocation29], 16
        $region224: #{nasr_forward_pallas.1} parent=155 // pred_fallthru
          _
        // Predicated region
        $region225: #{nasr_forward_pallas.1} parent=155 // pred_check
          %p1310 = pneg %p604
        $region226: #{nasr_forward_pallas.1} parent=155 // pred_check_branch
          %1312 = sbr.rel (%p1310) target = $region228
        $region227: #{nasr_forward_pallas.1} parent=155 // pred_region
          %1314 = dma.done [#allocation29], 16
        $region228: #{nasr_forward_pallas.1} parent=155 // pred_fallthru
          _
        // Predicated region
        $region229: #{nasr_forward_pallas.1} parent=155 // pred_check
          %p1315 = pneg %p625
        $region230: #{nasr_forward_pallas.1} parent=155 // pred_check_branch
          %1317 = sbr.rel (%p1315) target = $region232
        $region231: #{nasr_forward_pallas.1} parent=155 // pred_region
          %1319 = dma.done [#allocation32], 128
        $region232: #{nasr_forward_pallas.1} parent=155 // pred_fallthru
          _
        // Predicated region
        $region233: #{nasr_forward_pallas.1} parent=155 // pred_check
          %p1320 = pneg %p646
        $region234: #{nasr_forward_pallas.1} parent=155 // pred_check_branch
          %1322 = sbr.rel (%p1320) target = $region236
        $region235: #{nasr_forward_pallas.1} parent=155 // pred_region
          %1324 = dma.done [#allocation32], 16
        $region236: #{nasr_forward_pallas.1} parent=155 // pred_fallthru
          _
        // Predicated region
        $region237: #{nasr_forward_pallas.1} parent=155 // pred_check
          %p1325 = pneg %p667
        $region238: #{nasr_forward_pallas.1} parent=155 // pred_check_branch
          %1327 = sbr.rel (%p1325) target = $region240
        $region239: #{nasr_forward_pallas.1} parent=155 // pred_region
          %1329 = dma.done [#allocation35], 5120
        $region240: #{nasr_forward_pallas.1} parent=155 // pred_fallthru
          _
        // Predicated region
        $region241: #{nasr_forward_pallas.1} parent=155 // pred_check
          %p1330 = pneg %p688
        $region242: #{nasr_forward_pallas.1} parent=155 // pred_check_branch
          %1332 = sbr.rel (%p1330) target = $region244
        $region243: #{nasr_forward_pallas.1} parent=155 // pred_region
          %1334 = dma.done [#allocation35], 32
        $region244: #{nasr_forward_pallas.1} parent=155 // pred_fallthru
          _
        // Predicated region
        $region245: #{nasr_forward_pallas.1} parent=155 // pred_check
          %p1335 = pneg %p709
        $region246: #{nasr_forward_pallas.1} parent=155 // pred_check_branch
          %1337 = sbr.rel (%p1335) target = $region248
        $region247: #{nasr_forward_pallas.1} parent=155 // pred_region
          %1339 = dma.done [#allocation38], 2048
        $region248: #{nasr_forward_pallas.1} parent=155 // pred_fallthru
          _
        // Predicated region
        $region249: #{nasr_forward_pallas.1} parent=155 // pred_check
          %p1340 = pneg %p730
        $region250: #{nasr_forward_pallas.1} parent=155 // pred_check_branch
          %1342 = sbr.rel (%p1340) target = $region252
        $region251: #{nasr_forward_pallas.1} parent=155 // pred_region
          %1344 = dma.done [#allocation38], 16
        $region252: #{nasr_forward_pallas.1} parent=155 // pred_fallthru
          _
        // Predicated region
        $region253: #{nasr_forward_pallas.1} parent=155 // pred_check
          %p1345 = pneg %p772
        $region254: #{nasr_forward_pallas.1} parent=155 // pred_check_branch
          %1347 = sbr.rel (%p1345) target = $region256
        $region255: #{nasr_forward_pallas.1} parent=155 // pred_region
          %1349 = dma.done [#allocation41], 16
        $region256: #{nasr_forward_pallas.1} parent=155 // pred_fallthru
          _
        %s1350 = smul.u32 2, %s95
        %p1351 = scmp.lt.s32.totalorder %s1350, 7
        %s1352 = scalar_select %p1351, %s1350, 7
        %s1353 = scalar_lea.vmem %s1, %s1352
        %p1354 = pneg %p116
        %p1355 = pneg %p113
        %p1356 = pneg %p137
        %p1357 = pneg %p134
        %p1358 = pneg %p158
        %p1359 = pneg %p155
        %p1360 = pneg %p179
        %p1361 = pneg %p176
        %p1362 = pneg %p200
        %p1363 = pneg %p197
        %p1364 = pneg %p221
        %p1365 = pneg %p218
        %s1366 = sand.u32 %s95, 1
        %s1367 = scalar_lea.sflag [#allocation5], %s1366
        %s1368 = sand.u32 %s234, 1
        %s1369 = smul.addr %s1368, 2048
        %s1370 = scalar_lea.vmem [#allocation8], %s1369
        %p1371 = pneg %p247
        %p1372 = pneg %p244
        %p1373 = pneg %p268
        %p1374 = pneg %p265
        %p1375 = pneg %p289
        %p1376 = pneg %p286
        %p1377 = pneg %p310
        %p1378 = pneg %p307
        %p1379 = pneg %p331
        %p1380 = pneg %p328
        %p1381 = pneg %p352
        %p1382 = pneg %p349
        %p1383 = pneg %p373
        %p1384 = pneg %p370
        %p1385 = pneg %p394
        %p1386 = pneg %p391
        %p1387 = pneg %p415
        %p1388 = pneg %p412
        %p1389 = pneg %p436
        %p1390 = pneg %p433
        %p1391 = pneg %p457
        %p1392 = pneg %p454
        %p1393 = pneg %p478
        %p1394 = pneg %p475
        %p1395 = pneg %p499
        %p1396 = pneg %p496
        %p1397 = pneg %p520
        %p1398 = pneg %p517
        %p1399 = pneg %p541
        %p1400 = pneg %p538
        %p1401 = pneg %p562
        %p1402 = pneg %p559
        %p1403 = pneg %p583
        %p1404 = pneg %p580
        %p1405 = pneg %p604
        %p1406 = pneg %p601
        %p1407 = pneg %p625
        %p1408 = pneg %p622
        %p1409 = pneg %p646
        %p1410 = pneg %p643
        %p1411 = pneg %p667
        %p1412 = pneg %p664
        %p1413 = pneg %p688
        %p1414 = pneg %p685
        %p1415 = pneg %p709
        %p1416 = pneg %p706
        %p1417 = pneg %p730
        %p1418 = pneg %p727
        %p1419 = pneg %p751
        %p1420 = pneg %p748
        %p1421 = pneg %p772
        %p1422 = pneg %p769
        %p1423 = pneg %p793
        %p1424 = pneg %p790
        %p1425 = pneg %p814
        %p1426 = pneg %p811
        %p1427 = pneg %p835
        %p1428 = pneg %p832
        %s1429 = smul.u32 2, %s95
        %p1430 = scmp.lt.s32.totalorder %s1429, 7
        %s1431 = scalar_select %p1430, %s1429, 7
        %s1432 = scalar_lea.vmem %s1, %s1431
        %s1433 = smul.u32 2, %s95
        %s1434 = smul.u32 32, %s95
        %p1436 = scmp.eq.s32.totalorder %s95, 0
        // Predicated region
        $region257: #{nasr_forward_pallas.1} parent=155 // pred_check
          %p1437 = pneg %p1436
        $region258: #{nasr_forward_pallas.1} parent=155 // pred_check_branch
          %1439 = sbr.rel (%p1437) target = $region260
        $region259: #{nasr_forward_pallas.1} parent=155 // pred_region
          %1440 = vst [vmem:[#allocation2] sm:$0xff] 0.0
          %1441 = vst [vmem:[#allocation2 + $0x8] sm:$0xff] 0.0
        $region260: #{nasr_forward_pallas.1} parent=155 // pred_fallthru
          _
        %v1442 = vld [vmem:[#allocation4] sm:$0xff]
        %v1443 = vld [vmem:[#allocation4 + $0x8] sm:$0xff]
        %v1444 = vld [vmem:[#allocation4 + $0x10] sm:$0xff]
        %v1445 = vld [vmem:[#allocation4 + $0x18] sm:$0xff]
        %v1446 = vld [vmem:[#allocation6] sm:$0xf]
        %v1447 = vld [vmem:[%s1234] sm:$0xff]
        %v1448 = vld [vmem:[%s1234 + $0x8] sm:$0xff]
        %v1449 = vld [vmem:[%s1234 + $0x10] sm:$0xff]
        %v1450 = vld [vmem:[%s1234 + $0x18] sm:$0xff]
        %v1451 = vld [vmem:[%s1234 + $0x20] sm:$0xff]
        %v1452 = vld [vmem:[%s1234 + $0x28] sm:$0xff]
        %v1453 = vld [vmem:[%s1234 + $0x30] sm:$0xff]
        %v1454 = vld [vmem:[%s1234 + $0x38] sm:$0xff]
        %v1455 = vld [vmem:[%s1234 + $0x40] sm:$0xff]
        %v1456 = vld [vmem:[%s1234 + $0x48] sm:$0xff]
        %v1457 = vld [vmem:[%s1234 + $0x50] sm:$0xff]
        %v1458 = vld [vmem:[%s1234 + $0x58] sm:$0xff]
        %v1459 = vld [vmem:[%s1234 + $0x60] sm:$0xff]
        %v1460 = vld [vmem:[%s1234 + $0x68] sm:$0xff]
        %v1461 = vld [vmem:[%s1234 + $0x70] sm:$0xff]
        %v1462 = vld [vmem:[%s1234 + $0x78] sm:$0xff]
        %v1463 = vld [vmem:[%s1234 + $0x80] sm:$0xff]
        %v1464 = vld [vmem:[%s1234 + $0x88] sm:$0xff]
        %v1465 = vld [vmem:[%s1234 + $0x90] sm:$0xff]
        %v1466 = vld [vmem:[%s1234 + $0x98] sm:$0xff]
        %v1467 = vld [vmem:[%s1234 + $0xa0] sm:$0xff]
        %v1468 = vld [vmem:[%s1234 + $0xa8] sm:$0xff]
        %v1469 = vld [vmem:[%s1234 + $0xb0] sm:$0xff]
        %v1470 = vld [vmem:[%s1234 + $0xb8] sm:$0xff]
        %v1471 = vld [vmem:[%s1234 + $0xc0] sm:$0xff]
        %v1472 = vld [vmem:[%s1234 + $0xc8] sm:$0xff]
        %v1473 = vld [vmem:[%s1234 + $0xd0] sm:$0xff]
        %v1474 = vld [vmem:[%s1234 + $0xd8] sm:$0xff]
        %v1475 = vld [vmem:[%s1234 + $0xe0] sm:$0xff]
        %v1476 = vld [vmem:[%s1234 + $0xe8] sm:$0xff]
        %v1477 = vld [vmem:[%s1234 + $0xf0] sm:$0xff]
        %v1478 = vld [vmem:[%s1234 + $0xf8] sm:$0xff]
        %v1479 = vld [vmem:[%s1234 + $0x100] sm:$0xff]
        %v1480 = vld [vmem:[%s1234 + $0x108] sm:$0xff]
        %v1481 = vld [vmem:[%s1234 + $0x110] sm:$0xff]
        %v1482 = vld [vmem:[%s1234 + $0x118] sm:$0xff]
        %v1483 = vld [vmem:[%s1234 + $0x120] sm:$0xff]
        %v1484 = vld [vmem:[%s1234 + $0x128] sm:$0xff]
        %v1485 = vld [vmem:[%s1234 + $0x130] sm:$0xff]
        %v1486 = vld [vmem:[%s1234 + $0x138] sm:$0xff]
        %v1487 = vld [vmem:[%s1234 + $0x140] sm:$0xff]
        %v1488 = vld [vmem:[%s1234 + $0x148] sm:$0xff]
        %v1489 = vld [vmem:[%s1234 + $0x150] sm:$0xff]
        %v1490 = vld [vmem:[%s1234 + $0x158] sm:$0xff]
        %v1491 = vld [vmem:[%s1234 + $0x160] sm:$0xff]
        %v1492 = vld [vmem:[%s1234 + $0x168] sm:$0xff]
        %v1493 = vld [vmem:[%s1234 + $0x170] sm:$0xff]
        %v1494 = vld [vmem:[%s1234 + $0x178] sm:$0xff]
        %v1495 = vld [vmem:[%s1234 + $0x180] sm:$0xff]
        %v1496 = vld [vmem:[%s1234 + $0x188] sm:$0xff]
        %v1497 = vld [vmem:[%s1234 + $0x190] sm:$0xff]
        %v1498 = vld [vmem:[%s1234 + $0x198] sm:$0xff]
        %v1499 = vld [vmem:[%s1234 + $0x1a0] sm:$0xff]
        %v1500 = vld [vmem:[%s1234 + $0x1a8] sm:$0xff]
        %v1501 = vld [vmem:[%s1234 + $0x1b0] sm:$0xff]
        %v1502 = vld [vmem:[%s1234 + $0x1b8] sm:$0xff]
        %v1503 = vld [vmem:[%s1234 + $0x1c0] sm:$0xff]
        %v1504 = vld [vmem:[%s1234 + $0x1c8] sm:$0xff]
        %v1505 = vld [vmem:[%s1234 + $0x1d0] sm:$0xff]
        %v1506 = vld [vmem:[%s1234 + $0x1d8] sm:$0xff]
        %v1507 = vld [vmem:[%s1234 + $0x1e0] sm:$0xff]
        %v1508 = vld [vmem:[%s1234 + $0x1e8] sm:$0xff]
        %v1509 = vld [vmem:[%s1234 + $0x1f0] sm:$0xff]
        %v1510 = vld [vmem:[%s1234 + $0x1f8] sm:$0xff]
        %v1511 = vld [vmem:[%s1234 + $0x200] sm:$0xff]
        %v1512 = vld [vmem:[%s1234 + $0x208] sm:$0xff]
        %v1513 = vld [vmem:[%s1234 + $0x210] sm:$0xff]
        %v1514 = vld [vmem:[%s1234 + $0x218] sm:$0xff]
        %v1515 = vld [vmem:[%s1234 + $0x220] sm:$0xff]
        %v1516 = vld [vmem:[%s1234 + $0x228] sm:$0xff]
        %v1517 = vld [vmem:[%s1234 + $0x230] sm:$0xff]
        %v1518 = vld [vmem:[%s1234 + $0x238] sm:$0xff]
        %v1519 = vld [vmem:[%s1234 + $0x240] sm:$0xff]
        %v1520 = vld [vmem:[%s1234 + $0x248] sm:$0xff]
        %v1521 = vld [vmem:[%s1234 + $0x250] sm:$0xff]
        %v1522 = vld [vmem:[%s1234 + $0x258] sm:$0xff]
        %v1523 = vld [vmem:[%s1234 + $0x260] sm:$0xff]
        %v1524 = vld [vmem:[%s1234 + $0x268] sm:$0xff]
        %v1525 = vld [vmem:[%s1234 + $0x270] sm:$0xff]
        %v1526 = vld [vmem:[%s1234 + $0x278] sm:$0xff]
        %v1527 = vld [vmem:[%s1234 + $0x280] sm:$0xff]
        %v1528 = vld [vmem:[%s1234 + $0x288] sm:$0xff]
        %v1529 = vld [vmem:[%s1234 + $0x290] sm:$0xff]
        %v1530 = vld [vmem:[%s1234 + $0x298] sm:$0xff]
        %v1531 = vld [vmem:[%s1234 + $0x2a0] sm:$0xff]
        %v1532 = vld [vmem:[%s1234 + $0x2a8] sm:$0xff]
        %v1533 = vld [vmem:[%s1234 + $0x2b0] sm:$0xff]
        %v1534 = vld [vmem:[%s1234 + $0x2b8] sm:$0xff]
        %v1535 = vld [vmem:[%s1234 + $0x2c0] sm:$0xff]
        %v1536 = vld [vmem:[%s1234 + $0x2c8] sm:$0xff]
        %v1537 = vld [vmem:[%s1234 + $0x2d0] sm:$0xff]
        %v1538 = vld [vmem:[%s1234 + $0x2d8] sm:$0xff]
        %v1539 = vld [vmem:[%s1234 + $0x2e0] sm:$0xff]
        %v1540 = vld [vmem:[%s1234 + $0x2e8] sm:$0xff]
        %v1541 = vld [vmem:[%s1234 + $0x2f0] sm:$0xff]
        %v1542 = vld [vmem:[%s1234 + $0x2f8] sm:$0xff]
        %v1543 = vld [vmem:[%s1234 + $0x300] sm:$0xff]
        %v1544 = vld [vmem:[%s1234 + $0x308] sm:$0xff]
        %v1545 = vld [vmem:[%s1234 + $0x310] sm:$0xff]
        %v1546 = vld [vmem:[%s1234 + $0x318] sm:$0xff]
        %v1547 = vld [vmem:[%s1234 + $0x320] sm:$0xff]
        %v1548 = vld [vmem:[%s1234 + $0x328] sm:$0xff]
        %v1549 = vld [vmem:[%s1234 + $0x330] sm:$0xff]
        %v1550 = vld [vmem:[%s1234 + $0x338] sm:$0xff]
        %v1551 = vld [vmem:[%s1234 + $0x340] sm:$0xff]
        %v1552 = vld [vmem:[%s1234 + $0x348] sm:$0xff]
        %v1553 = vld [vmem:[%s1234 + $0x350] sm:$0xff]
        %v1554 = vld [vmem:[%s1234 + $0x358] sm:$0xff]
        %v1555 = vld [vmem:[%s1234 + $0x360] sm:$0xff]
        %v1556 = vld [vmem:[%s1234 + $0x368] sm:$0xff]
        %v1557 = vld [vmem:[%s1234 + $0x370] sm:$0xff]
        %v1558 = vld [vmem:[%s1234 + $0x378] sm:$0xff]
        %v1559 = vld [vmem:[%s1234 + $0x380] sm:$0xff]
        %v1560 = vld [vmem:[%s1234 + $0x388] sm:$0xff]
        %v1561 = vld [vmem:[%s1234 + $0x390] sm:$0xff]
        %v1562 = vld [vmem:[%s1234 + $0x398] sm:$0xff]
        %v1563 = vld [vmem:[%s1234 + $0x3a0] sm:$0xff]
        %v1564 = vld [vmem:[%s1234 + $0x3a8] sm:$0xff]
        %v1565 = vld [vmem:[%s1234 + $0x3b0] sm:$0xff]
        %v1566 = vld [vmem:[%s1234 + $0x3b8] sm:$0xff]
        %v1567 = vld [vmem:[%s1234 + $0x3c0] sm:$0xff]
        %v1568 = vld [vmem:[%s1234 + $0x3c8] sm:$0xff]
        %v1569 = vld [vmem:[%s1234 + $0x3d0] sm:$0xff]
        %v1570 = vld [vmem:[%s1234 + $0x3d8] sm:$0xff]
        %v1571 = vld [vmem:[%s1234 + $0x3e0] sm:$0xff]
        %v1572 = vld [vmem:[%s1234 + $0x3e8] sm:$0xff]
        %v1573 = vld [vmem:[%s1234 + $0x3f0] sm:$0xff]
        %v1574 = vld [vmem:[%s1234 + $0x3f8] sm:$0xff]
        %v1575 = vunpack.c.0.s8 %v1447
        %v1576 = vunpack.c.0.s8 %v1448
        %v1577 = vunpack.c.0.s8 %v1449
        %v1578 = vunpack.c.0.s8 %v1450
        %v1579 = vunpack.c.0.s8 %v1451
        %v1580 = vunpack.c.0.s8 %v1452
        %v1581 = vunpack.c.0.s8 %v1453
        %v1582 = vunpack.c.0.s8 %v1454
        %v1583 = vunpack.c.1.s8 %v1447
        %v1584 = vunpack.c.1.s8 %v1448
        %v1585 = vunpack.c.1.s8 %v1449
        %v1586 = vunpack.c.1.s8 %v1450
        %v1587 = vunpack.c.1.s8 %v1451
        %v1588 = vunpack.c.1.s8 %v1452
        %v1589 = vunpack.c.1.s8 %v1453
        %v1590 = vunpack.c.1.s8 %v1454
        %v1591 = vunpack.c.2.s8 %v1447
        %v1592 = vunpack.c.2.s8 %v1448
        %v1593 = vunpack.c.2.s8 %v1449
        %v1594 = vunpack.c.2.s8 %v1450
        %v1595 = vunpack.c.2.s8 %v1451
        %v1596 = vunpack.c.2.s8 %v1452
        %v1597 = vunpack.c.2.s8 %v1453
        %v1598 = vunpack.c.2.s8 %v1454
        %v1599 = vunpack.c.3.s8 %v1447
        %v1600 = vunpack.c.3.s8 %v1448
        %v1601 = vunpack.c.3.s8 %v1449
        %v1602 = vunpack.c.3.s8 %v1450
        %v1603 = vunpack.c.3.s8 %v1451
        %v1604 = vunpack.c.3.s8 %v1452
        %v1605 = vunpack.c.3.s8 %v1453
        %v1606 = vunpack.c.3.s8 %v1454
        %v1607 = vunpack.c.0.s8 %v1455
        %v1608 = vunpack.c.0.s8 %v1456
        %v1609 = vunpack.c.0.s8 %v1457
        %v1610 = vunpack.c.0.s8 %v1458
        %v1611 = vunpack.c.0.s8 %v1459
        %v1612 = vunpack.c.0.s8 %v1460
        %v1613 = vunpack.c.0.s8 %v1461
        %v1614 = vunpack.c.0.s8 %v1462
        %v1615 = vunpack.c.1.s8 %v1455
        %v1616 = vunpack.c.1.s8 %v1456
        %v1617 = vunpack.c.1.s8 %v1457
        %v1618 = vunpack.c.1.s8 %v1458
        %v1619 = vunpack.c.1.s8 %v1459
        %v1620 = vunpack.c.1.s8 %v1460
        %v1621 = vunpack.c.1.s8 %v1461
        %v1622 = vunpack.c.1.s8 %v1462
        %v1623 = vunpack.c.2.s8 %v1455
        %v1624 = vunpack.c.2.s8 %v1456
        %v1625 = vunpack.c.2.s8 %v1457
        %v1626 = vunpack.c.2.s8 %v1458
        %v1627 = vunpack.c.2.s8 %v1459
        %v1628 = vunpack.c.2.s8 %v1460
        %v1629 = vunpack.c.2.s8 %v1461
        %v1630 = vunpack.c.2.s8 %v1462
        %v1631 = vunpack.c.3.s8 %v1455
        %v1632 = vunpack.c.3.s8 %v1456
        %v1633 = vunpack.c.3.s8 %v1457
        %v1634 = vunpack.c.3.s8 %v1458
        %v1635 = vunpack.c.3.s8 %v1459
        %v1636 = vunpack.c.3.s8 %v1460
        %v1637 = vunpack.c.3.s8 %v1461
        %v1638 = vunpack.c.3.s8 %v1462
        %v1639 = vunpack.c.0.s8 %v1463
        %v1640 = vunpack.c.0.s8 %v1464
        %v1641 = vunpack.c.0.s8 %v1465
        %v1642 = vunpack.c.0.s8 %v1466
        %v1643 = vunpack.c.0.s8 %v1467
        %v1644 = vunpack.c.0.s8 %v1468
        %v1645 = vunpack.c.0.s8 %v1469
        %v1646 = vunpack.c.0.s8 %v1470
        %v1647 = vunpack.c.1.s8 %v1463
        %v1648 = vunpack.c.1.s8 %v1464
        %v1649 = vunpack.c.1.s8 %v1465
        %v1650 = vunpack.c.1.s8 %v1466
        %v1651 = vunpack.c.1.s8 %v1467
        %v1652 = vunpack.c.1.s8 %v1468
        %v1653 = vunpack.c.1.s8 %v1469
        %v1654 = vunpack.c.1.s8 %v1470
        %v1655 = vunpack.c.2.s8 %v1463
        %v1656 = vunpack.c.2.s8 %v1464
        %v1657 = vunpack.c.2.s8 %v1465
        %v1658 = vunpack.c.2.s8 %v1466
        %v1659 = vunpack.c.2.s8 %v1467
        %v1660 = vunpack.c.2.s8 %v1468
        %v1661 = vunpack.c.2.s8 %v1469
        %v1662 = vunpack.c.2.s8 %v1470
        %v1663 = vunpack.c.3.s8 %v1463
        %v1664 = vunpack.c.3.s8 %v1464
        %v1665 = vunpack.c.3.s8 %v1465
        %v1666 = vunpack.c.3.s8 %v1466
        %v1667 = vunpack.c.3.s8 %v1467
        %v1668 = vunpack.c.3.s8 %v1468
        %v1669 = vunpack.c.3.s8 %v1469
        %v1670 = vunpack.c.3.s8 %v1470
        %v1671 = vunpack.c.0.s8 %v1471
        %v1672 = vunpack.c.0.s8 %v1472
        %v1673 = vunpack.c.0.s8 %v1473
        %v1674 = vunpack.c.0.s8 %v1474
        %v1675 = vunpack.c.0.s8 %v1475
        %v1676 = vunpack.c.0.s8 %v1476
        %v1677 = vunpack.c.0.s8 %v1477
        %v1678 = vunpack.c.0.s8 %v1478
        %v1679 = vunpack.c.1.s8 %v1471
        %v1680 = vunpack.c.1.s8 %v1472
        %v1681 = vunpack.c.1.s8 %v1473
        %v1682 = vunpack.c.1.s8 %v1474
        %v1683 = vunpack.c.1.s8 %v1475
        %v1684 = vunpack.c.1.s8 %v1476
        %v1685 = vunpack.c.1.s8 %v1477
        %v1686 = vunpack.c.1.s8 %v1478
        %v1687 = vunpack.c.2.s8 %v1471
        %v1688 = vunpack.c.2.s8 %v1472
        %v1689 = vunpack.c.2.s8 %v1473
        %v1690 = vunpack.c.2.s8 %v1474
        %v1691 = vunpack.c.2.s8 %v1475
        %v1692 = vunpack.c.2.s8 %v1476
        %v1693 = vunpack.c.2.s8 %v1477
        %v1694 = vunpack.c.2.s8 %v1478
        %v1695 = vunpack.c.3.s8 %v1471
        %v1696 = vunpack.c.3.s8 %v1472
        %v1697 = vunpack.c.3.s8 %v1473
        %v1698 = vunpack.c.3.s8 %v1474
        %v1699 = vunpack.c.3.s8 %v1475
        %v1700 = vunpack.c.3.s8 %v1476
        %v1701 = vunpack.c.3.s8 %v1477
        %v1702 = vunpack.c.3.s8 %v1478
        %v1703 = vunpack.c.0.s8 %v1479
        %v1704 = vunpack.c.0.s8 %v1480
        %v1705 = vunpack.c.0.s8 %v1481
        %v1706 = vunpack.c.0.s8 %v1482
        %v1707 = vunpack.c.0.s8 %v1483
        %v1708 = vunpack.c.0.s8 %v1484
        %v1709 = vunpack.c.0.s8 %v1485
        %v1710 = vunpack.c.0.s8 %v1486
        %v1711 = vunpack.c.1.s8 %v1479
        %v1712 = vunpack.c.1.s8 %v1480
        %v1713 = vunpack.c.1.s8 %v1481
        %v1714 = vunpack.c.1.s8 %v1482
        %v1715 = vunpack.c.1.s8 %v1483
        %v1716 = vunpack.c.1.s8 %v1484
        %v1717 = vunpack.c.1.s8 %v1485
        %v1718 = vunpack.c.1.s8 %v1486
        %v1719 = vunpack.c.2.s8 %v1479
        %v1720 = vunpack.c.2.s8 %v1480
        %v1721 = vunpack.c.2.s8 %v1481
        %v1722 = vunpack.c.2.s8 %v1482
        %v1723 = vunpack.c.2.s8 %v1483
        %v1724 = vunpack.c.2.s8 %v1484
        %v1725 = vunpack.c.2.s8 %v1485
        %v1726 = vunpack.c.2.s8 %v1486
        %v1727 = vunpack.c.3.s8 %v1479
        %v1728 = vunpack.c.3.s8 %v1480
        %v1729 = vunpack.c.3.s8 %v1481
        %v1730 = vunpack.c.3.s8 %v1482
        %v1731 = vunpack.c.3.s8 %v1483
        %v1732 = vunpack.c.3.s8 %v1484
        %v1733 = vunpack.c.3.s8 %v1485
        %v1734 = vunpack.c.3.s8 %v1486
        %v1735 = vunpack.c.0.s8 %v1487
        %v1736 = vunpack.c.0.s8 %v1488
        %v1737 = vunpack.c.0.s8 %v1489
        %v1738 = vunpack.c.0.s8 %v1490
        %v1739 = vunpack.c.0.s8 %v1491
        %v1740 = vunpack.c.0.s8 %v1492
        %v1741 = vunpack.c.0.s8 %v1493
        %v1742 = vunpack.c.0.s8 %v1494
        %v1743 = vunpack.c.1.s8 %v1487
        %v1744 = vunpack.c.1.s8 %v1488
        %v1745 = vunpack.c.1.s8 %v1489
        %v1746 = vunpack.c.1.s8 %v1490
        %v1747 = vunpack.c.1.s8 %v1491
        %v1748 = vunpack.c.1.s8 %v1492
        %v1749 = vunpack.c.1.s8 %v1493
        %v1750 = vunpack.c.1.s8 %v1494
        %v1751 = vunpack.c.2.s8 %v1487
        %v1752 = vunpack.c.2.s8 %v1488
        %v1753 = vunpack.c.2.s8 %v1489
        %v1754 = vunpack.c.2.s8 %v1490
        %v1755 = vunpack.c.2.s8 %v1491
        %v1756 = vunpack.c.2.s8 %v1492
        %v1757 = vunpack.c.2.s8 %v1493
        %v1758 = vunpack.c.2.s8 %v1494
        %v1759 = vunpack.c.3.s8 %v1487
        %v1760 = vunpack.c.3.s8 %v1488
        %v1761 = vunpack.c.3.s8 %v1489
        %v1762 = vunpack.c.3.s8 %v1490
        %v1763 = vunpack.c.3.s8 %v1491
        %v1764 = vunpack.c.3.s8 %v1492
        %v1765 = vunpack.c.3.s8 %v1493
        %v1766 = vunpack.c.3.s8 %v1494
        %v1767 = vunpack.c.0.s8 %v1495
        %v1768 = vunpack.c.0.s8 %v1496
        %v1769 = vunpack.c.0.s8 %v1497
        %v1770 = vunpack.c.0.s8 %v1498
        %v1771 = vunpack.c.0.s8 %v1499
        %v1772 = vunpack.c.0.s8 %v1500
        %v1773 = vunpack.c.0.s8 %v1501
        %v1774 = vunpack.c.0.s8 %v1502
        %v1775 = vunpack.c.1.s8 %v1495
        %v1776 = vunpack.c.1.s8 %v1496
        %v1777 = vunpack.c.1.s8 %v1497
        %v1778 = vunpack.c.1.s8 %v1498
        %v1779 = vunpack.c.1.s8 %v1499
        %v1780 = vunpack.c.1.s8 %v1500
        %v1781 = vunpack.c.1.s8 %v1501
        %v1782 = vunpack.c.1.s8 %v1502
        %v1783 = vunpack.c.2.s8 %v1495
        %v1784 = vunpack.c.2.s8 %v1496
        %v1785 = vunpack.c.2.s8 %v1497
        %v1786 = vunpack.c.2.s8 %v1498
        %v1787 = vunpack.c.2.s8 %v1499
        %v1788 = vunpack.c.2.s8 %v1500
        %v1789 = vunpack.c.2.s8 %v1501
        %v1790 = vunpack.c.2.s8 %v1502
        %v1791 = vunpack.c.3.s8 %v1495
        %v1792 = vunpack.c.3.s8 %v1496
        %v1793 = vunpack.c.3.s8 %v1497
        %v1794 = vunpack.c.3.s8 %v1498
        %v1795 = vunpack.c.3.s8 %v1499
        %v1796 = vunpack.c.3.s8 %v1500
        %v1797 = vunpack.c.3.s8 %v1501
        %v1798 = vunpack.c.3.s8 %v1502
        %v1799 = vunpack.c.0.s8 %v1503
        %v1800 = vunpack.c.0.s8 %v1504
        %v1801 = vunpack.c.0.s8 %v1505
        %v1802 = vunpack.c.0.s8 %v1506
        %v1803 = vunpack.c.0.s8 %v1507
        %v1804 = vunpack.c.0.s8 %v1508
        %v1805 = vunpack.c.0.s8 %v1509
        %v1806 = vunpack.c.0.s8 %v1510
        %v1807 = vunpack.c.1.s8 %v1503
        %v1808 = vunpack.c.1.s8 %v1504
        %v1809 = vunpack.c.1.s8 %v1505
        %v1810 = vunpack.c.1.s8 %v1506
        %v1811 = vunpack.c.1.s8 %v1507
        %v1812 = vunpack.c.1.s8 %v1508
        %v1813 = vunpack.c.1.s8 %v1509
        %v1814 = vunpack.c.1.s8 %v1510
        %v1815 = vunpack.c.2.s8 %v1503
        %v1816 = vunpack.c.2.s8 %v1504
        %v1817 = vunpack.c.2.s8 %v1505
        %v1818 = vunpack.c.2.s8 %v1506
        %v1819 = vunpack.c.2.s8 %v1507
        %v1820 = vunpack.c.2.s8 %v1508
        %v1821 = vunpack.c.2.s8 %v1509
        %v1822 = vunpack.c.2.s8 %v1510
        %v1823 = vunpack.c.3.s8 %v1503
        %v1824 = vunpack.c.3.s8 %v1504
        %v1825 = vunpack.c.3.s8 %v1505
        %v1826 = vunpack.c.3.s8 %v1506
        %v1827 = vunpack.c.3.s8 %v1507
        %v1828 = vunpack.c.3.s8 %v1508
        %v1829 = vunpack.c.3.s8 %v1509
        %v1830 = vunpack.c.3.s8 %v1510
        %v1831 = vunpack.c.0.s8 %v1511
        %v1832 = vunpack.c.0.s8 %v1512
        %v1833 = vunpack.c.0.s8 %v1513
        %v1834 = vunpack.c.0.s8 %v1514
        %v1835 = vunpack.c.0.s8 %v1515
        %v1836 = vunpack.c.0.s8 %v1516
        %v1837 = vunpack.c.0.s8 %v1517
        %v1838 = vunpack.c.0.s8 %v1518
        %v1839 = vunpack.c.1.s8 %v1511
        %v1840 = vunpack.c.1.s8 %v1512
        %v1841 = vunpack.c.1.s8 %v1513
        %v1842 = vunpack.c.1.s8 %v1514
        %v1843 = vunpack.c.1.s8 %v1515
        %v1844 = vunpack.c.1.s8 %v1516
        %v1845 = vunpack.c.1.s8 %v1517
        %v1846 = vunpack.c.1.s8 %v1518
        %v1847 = vunpack.c.2.s8 %v1511
        %v1848 = vunpack.c.2.s8 %v1512
        %v1849 = vunpack.c.2.s8 %v1513
        %v1850 = vunpack.c.2.s8 %v1514
        %v1851 = vunpack.c.2.s8 %v1515
        %v1852 = vunpack.c.2.s8 %v1516
        %v1853 = vunpack.c.2.s8 %v1517
        %v1854 = vunpack.c.2.s8 %v1518
        %v1855 = vunpack.c.3.s8 %v1511
        %v1856 = vunpack.c.3.s8 %v1512
        %v1857 = vunpack.c.3.s8 %v1513
        %v1858 = vunpack.c.3.s8 %v1514
        %v1859 = vunpack.c.3.s8 %v1515
        %v1860 = vunpack.c.3.s8 %v1516
        %v1861 = vunpack.c.3.s8 %v1517
        %v1862 = vunpack.c.3.s8 %v1518
        %v1863 = vunpack.c.0.s8 %v1519
        %v1864 = vunpack.c.0.s8 %v1520
        %v1865 = vunpack.c.0.s8 %v1521
        %v1866 = vunpack.c.0.s8 %v1522
        %v1867 = vunpack.c.0.s8 %v1523
        %v1868 = vunpack.c.0.s8 %v1524
        %v1869 = vunpack.c.0.s8 %v1525
        %v1870 = vunpack.c.0.s8 %v1526
        %v1871 = vunpack.c.1.s8 %v1519
        %v1872 = vunpack.c.1.s8 %v1520
        %v1873 = vunpack.c.1.s8 %v1521
        %v1874 = vunpack.c.1.s8 %v1522
        %v1875 = vunpack.c.1.s8 %v1523
        %v1876 = vunpack.c.1.s8 %v1524
        %v1877 = vunpack.c.1.s8 %v1525
        %v1878 = vunpack.c.1.s8 %v1526
        %v1879 = vunpack.c.2.s8 %v1519
        %v1880 = vunpack.c.2.s8 %v1520
        %v1881 = vunpack.c.2.s8 %v1521
        %v1882 = vunpack.c.2.s8 %v1522
        %v1883 = vunpack.c.2.s8 %v1523
        %v1884 = vunpack.c.2.s8 %v1524
        %v1885 = vunpack.c.2.s8 %v1525
        %v1886 = vunpack.c.2.s8 %v1526
        %v1887 = vunpack.c.3.s8 %v1519
        %v1888 = vunpack.c.3.s8 %v1520
        %v1889 = vunpack.c.3.s8 %v1521
        %v1890 = vunpack.c.3.s8 %v1522
        %v1891 = vunpack.c.3.s8 %v1523
        %v1892 = vunpack.c.3.s8 %v1524
        %v1893 = vunpack.c.3.s8 %v1525
        %v1894 = vunpack.c.3.s8 %v1526
        %v1895 = vunpack.c.0.s8 %v1527
        %v1896 = vunpack.c.0.s8 %v1528
        %v1897 = vunpack.c.0.s8 %v1529
        %v1898 = vunpack.c.0.s8 %v1530
        %v1899 = vunpack.c.0.s8 %v1531
        %v1900 = vunpack.c.0.s8 %v1532
        %v1901 = vunpack.c.0.s8 %v1533
        %v1902 = vunpack.c.0.s8 %v1534
        %v1903 = vunpack.c.1.s8 %v1527
        %v1904 = vunpack.c.1.s8 %v1528
        %v1905 = vunpack.c.1.s8 %v1529
        %v1906 = vunpack.c.1.s8 %v1530
        %v1907 = vunpack.c.1.s8 %v1531
        %v1908 = vunpack.c.1.s8 %v1532
        %v1909 = vunpack.c.1.s8 %v1533
        %v1910 = vunpack.c.1.s8 %v1534
        %v1911 = vunpack.c.2.s8 %v1527
        %v1912 = vunpack.c.2.s8 %v1528
        %v1913 = vunpack.c.2.s8 %v1529
        %v1914 = vunpack.c.2.s8 %v1530
        %v1915 = vunpack.c.2.s8 %v1531
        %v1916 = vunpack.c.2.s8 %v1532
        %v1917 = vunpack.c.2.s8 %v1533
        %v1918 = vunpack.c.2.s8 %v1534
        %v1919 = vunpack.c.3.s8 %v1527
        %v1920 = vunpack.c.3.s8 %v1528
        %v1921 = vunpack.c.3.s8 %v1529
        %v1922 = vunpack.c.3.s8 %v1530
        %v1923 = vunpack.c.3.s8 %v1531
        %v1924 = vunpack.c.3.s8 %v1532
        %v1925 = vunpack.c.3.s8 %v1533
        %v1926 = vunpack.c.3.s8 %v1534
        %v1927 = vunpack.c.0.s8 %v1535
        %v1928 = vunpack.c.0.s8 %v1536
        %v1929 = vunpack.c.0.s8 %v1537
        %v1930 = vunpack.c.0.s8 %v1538
        %v1931 = vunpack.c.0.s8 %v1539
        %v1932 = vunpack.c.0.s8 %v1540
        %v1933 = vunpack.c.0.s8 %v1541
        %v1934 = vunpack.c.0.s8 %v1542
        %v1935 = vunpack.c.1.s8 %v1535
        %v1936 = vunpack.c.1.s8 %v1536
        %v1937 = vunpack.c.1.s8 %v1537
        %v1938 = vunpack.c.1.s8 %v1538
        %v1939 = vunpack.c.1.s8 %v1539
        %v1940 = vunpack.c.1.s8 %v1540
        %v1941 = vunpack.c.1.s8 %v1541
        %v1942 = vunpack.c.1.s8 %v1542
        %v1943 = vunpack.c.2.s8 %v1535
        %v1944 = vunpack.c.2.s8 %v1536
        %v1945 = vunpack.c.2.s8 %v1537
        %v1946 = vunpack.c.2.s8 %v1538
        %v1947 = vunpack.c.2.s8 %v1539
        %v1948 = vunpack.c.2.s8 %v1540
        %v1949 = vunpack.c.2.s8 %v1541
        %v1950 = vunpack.c.2.s8 %v1542
        %v1951 = vunpack.c.3.s8 %v1535
        %v1952 = vunpack.c.3.s8 %v1536
        %v1953 = vunpack.c.3.s8 %v1537
        %v1954 = vunpack.c.3.s8 %v1538
        %v1955 = vunpack.c.3.s8 %v1539
        %v1956 = vunpack.c.3.s8 %v1540
        %v1957 = vunpack.c.3.s8 %v1541
        %v1958 = vunpack.c.3.s8 %v1542
        %v1959 = vunpack.c.0.s8 %v1543
        %v1960 = vunpack.c.0.s8 %v1544
        %v1961 = vunpack.c.0.s8 %v1545
        %v1962 = vunpack.c.0.s8 %v1546
        %v1963 = vunpack.c.0.s8 %v1547
        %v1964 = vunpack.c.0.s8 %v1548
        %v1965 = vunpack.c.0.s8 %v1549
        %v1966 = vunpack.c.0.s8 %v1550
        %v1967 = vunpack.c.1.s8 %v1543
        %v1968 = vunpack.c.1.s8 %v1544
        %v1969 = vunpack.c.1.s8 %v1545
        %v1970 = vunpack.c.1.s8 %v1546
        %v1971 = vunpack.c.1.s8 %v1547
        %v1972 = vunpack.c.1.s8 %v1548
        %v1973 = vunpack.c.1.s8 %v1549
        %v1974 = vunpack.c.1.s8 %v1550
        %v1975 = vunpack.c.2.s8 %v1543
        %v1976 = vunpack.c.2.s8 %v1544
        %v1977 = vunpack.c.2.s8 %v1545
        %v1978 = vunpack.c.2.s8 %v1546
        %v1979 = vunpack.c.2.s8 %v1547
        %v1980 = vunpack.c.2.s8 %v1548
        %v1981 = vunpack.c.2.s8 %v1549
        %v1982 = vunpack.c.2.s8 %v1550
        %v1983 = vunpack.c.3.s8 %v1543
        %v1984 = vunpack.c.3.s8 %v1544
        %v1985 = vunpack.c.3.s8 %v1545
        %v1986 = vunpack.c.3.s8 %v1546
        %v1987 = vunpack.c.3.s8 %v1547
        %v1988 = vunpack.c.3.s8 %v1548
        %v1989 = vunpack.c.3.s8 %v1549
        %v1990 = vunpack.c.3.s8 %v1550
        %v1991 = vunpack.c.0.s8 %v1551
        %v1992 = vunpack.c.0.s8 %v1552
        %v1993 = vunpack.c.0.s8 %v1553
        %v1994 = vunpack.c.0.s8 %v1554
        %v1995 = vunpack.c.0.s8 %v1555
        %v1996 = vunpack.c.0.s8 %v1556
        %v1997 = vunpack.c.0.s8 %v1557
        %v1998 = vunpack.c.0.s8 %v1558
        %v1999 = vunpack.c.1.s8 %v1551
        %v2000 = vunpack.c.1.s8 %v1552
        %v2001 = vunpack.c.1.s8 %v1553
        %v2002 = vunpack.c.1.s8 %v1554
        %v2003 = vunpack.c.1.s8 %v1555
        %v2004 = vunpack.c.1.s8 %v1556
        %v2005 = vunpack.c.1.s8 %v1557
        %v2006 = vunpack.c.1.s8 %v1558
        %v2007 = vunpack.c.2.s8 %v1551
        %v2008 = vunpack.c.2.s8 %v1552
        %v2009 = vunpack.c.2.s8 %v1553
        %v2010 = vunpack.c.2.s8 %v1554
        %v2011 = vunpack.c.2.s8 %v1555
        %v2012 = vunpack.c.2.s8 %v1556
        %v2013 = vunpack.c.2.s8 %v1557
        %v2014 = vunpack.c.2.s8 %v1558
        %v2015 = vunpack.c.3.s8 %v1551
        %v2016 = vunpack.c.3.s8 %v1552
        %v2017 = vunpack.c.3.s8 %v1553
        %v2018 = vunpack.c.3.s8 %v1554
        %v2019 = vunpack.c.3.s8 %v1555
        %v2020 = vunpack.c.3.s8 %v1556
        %v2021 = vunpack.c.3.s8 %v1557
        %v2022 = vunpack.c.3.s8 %v1558
        %v2023 = vunpack.c.0.s8 %v1559
        %v2024 = vunpack.c.0.s8 %v1560
        %v2025 = vunpack.c.0.s8 %v1561
        %v2026 = vunpack.c.0.s8 %v1562
        %v2027 = vunpack.c.0.s8 %v1563
        %v2028 = vunpack.c.0.s8 %v1564
        %v2029 = vunpack.c.0.s8 %v1565
        %v2030 = vunpack.c.0.s8 %v1566
        %v2031 = vunpack.c.1.s8 %v1559
        %v2032 = vunpack.c.1.s8 %v1560
        %v2033 = vunpack.c.1.s8 %v1561
        %v2034 = vunpack.c.1.s8 %v1562
        %v2035 = vunpack.c.1.s8 %v1563
        %v2036 = vunpack.c.1.s8 %v1564
        %v2037 = vunpack.c.1.s8 %v1565
        %v2038 = vunpack.c.1.s8 %v1566
        %v2039 = vunpack.c.2.s8 %v1559
        %v2040 = vunpack.c.2.s8 %v1560
        %v2041 = vunpack.c.2.s8 %v1561
        %v2042 = vunpack.c.2.s8 %v1562
        %v2043 = vunpack.c.2.s8 %v1563
        %v2044 = vunpack.c.2.s8 %v1564
        %v2045 = vunpack.c.2.s8 %v1565
        %v2046 = vunpack.c.2.s8 %v1566
        %v2047 = vunpack.c.3.s8 %v1559
        %v2048 = vunpack.c.3.s8 %v1560
        %v2049 = vunpack.c.3.s8 %v1561
        %v2050 = vunpack.c.3.s8 %v1562
        %v2051 = vunpack.c.3.s8 %v1563
        %v2052 = vunpack.c.3.s8 %v1564
        %v2053 = vunpack.c.3.s8 %v1565
        %v2054 = vunpack.c.3.s8 %v1566
        %v2055 = vunpack.c.0.s8 %v1567
        %v2056 = vunpack.c.0.s8 %v1568
        %v2057 = vunpack.c.0.s8 %v1569
        %v2058 = vunpack.c.0.s8 %v1570
        %v2059 = vunpack.c.0.s8 %v1571
        %v2060 = vunpack.c.0.s8 %v1572
        %v2061 = vunpack.c.0.s8 %v1573
        %v2062 = vunpack.c.0.s8 %v1574
        %v2063 = vunpack.c.1.s8 %v1567
        %v2064 = vunpack.c.1.s8 %v1568
        %v2065 = vunpack.c.1.s8 %v1569
        %v2066 = vunpack.c.1.s8 %v1570
        %v2067 = vunpack.c.1.s8 %v1571
        %v2068 = vunpack.c.1.s8 %v1572
        %v2069 = vunpack.c.1.s8 %v1573
        %v2070 = vunpack.c.1.s8 %v1574
        %v2071 = vunpack.c.2.s8 %v1567
        %v2072 = vunpack.c.2.s8 %v1568
        %v2073 = vunpack.c.2.s8 %v1569
        %v2074 = vunpack.c.2.s8 %v1570
        %v2075 = vunpack.c.2.s8 %v1571
        %v2076 = vunpack.c.2.s8 %v1572
        %v2077 = vunpack.c.2.s8 %v1573
        %v2078 = vunpack.c.2.s8 %v1574
        %v2079 = vunpack.c.3.s8 %v1567
        %v2080 = vunpack.c.3.s8 %v1568
        %v2081 = vunpack.c.3.s8 %v1569
        %v2082 = vunpack.c.3.s8 %v1570
        %v2083 = vunpack.c.3.s8 %v1571
        %v2084 = vunpack.c.3.s8 %v1572
        %v2085 = vunpack.c.3.s8 %v1573
        %v2086 = vunpack.c.3.s8 %v1574
        %v2087 = vcvt.s32.f32 %v1575
        %v2088 = vcvt.s32.f32 %v1576
        %v2089 = vcvt.s32.f32 %v1577
        %v2090 = vcvt.s32.f32 %v1578
        %v2091 = vcvt.s32.f32 %v1579
        %v2092 = vcvt.s32.f32 %v1580
        %v2093 = vcvt.s32.f32 %v1581
        %v2094 = vcvt.s32.f32 %v1582
        %v2095 = vcvt.s32.f32 %v1583
        %v2096 = vcvt.s32.f32 %v1584
        %v2097 = vcvt.s32.f32 %v1585
        %v2098 = vcvt.s32.f32 %v1586
        %v2099 = vcvt.s32.f32 %v1587
        %v2100 = vcvt.s32.f32 %v1588
        %v2101 = vcvt.s32.f32 %v1589
        %v2102 = vcvt.s32.f32 %v1590
        %v2103 = vcvt.s32.f32 %v1591
        %v2104 = vcvt.s32.f32 %v1592
        %v2105 = vcvt.s32.f32 %v1593
        %v2106 = vcvt.s32.f32 %v1594
        %v2107 = vcvt.s32.f32 %v1595
        %v2108 = vcvt.s32.f32 %v1596
        %v2109 = vcvt.s32.f32 %v1597
        %v2110 = vcvt.s32.f32 %v1598
        %v2111 = vcvt.s32.f32 %v1599
        %v2112 = vcvt.s32.f32 %v1600
        %v2113 = vcvt.s32.f32 %v1601
        %v2114 = vcvt.s32.f32 %v1602
        %v2115 = vcvt.s32.f32 %v1603
        %v2116 = vcvt.s32.f32 %v1604
        %v2117 = vcvt.s32.f32 %v1605
        %v2118 = vcvt.s32.f32 %v1606
        %v2119 = vcvt.s32.f32 %v1607
        %v2120 = vcvt.s32.f32 %v1608
        %v2121 = vcvt.s32.f32 %v1609
        %v2122 = vcvt.s32.f32 %v1610
        %v2123 = vcvt.s32.f32 %v1611
        %v2124 = vcvt.s32.f32 %v1612
        %v2125 = vcvt.s32.f32 %v1613
        %v2126 = vcvt.s32.f32 %v1614
        %v2127 = vcvt.s32.f32 %v1615
        %v2128 = vcvt.s32.f32 %v1616
        %v2129 = vcvt.s32.f32 %v1617
        %v2130 = vcvt.s32.f32 %v1618
        %v2131 = vcvt.s32.f32 %v1619
        %v2132 = vcvt.s32.f32 %v1620
        %v2133 = vcvt.s32.f32 %v1621
        %v2134 = vcvt.s32.f32 %v1622
        %v2135 = vcvt.s32.f32 %v1623
        %v2136 = vcvt.s32.f32 %v1624
        %v2137 = vcvt.s32.f32 %v1625
        %v2138 = vcvt.s32.f32 %v1626
        %v2139 = vcvt.s32.f32 %v1627
        %v2140 = vcvt.s32.f32 %v1628
        %v2141 = vcvt.s32.f32 %v1629
        %v2142 = vcvt.s32.f32 %v1630
        %v2143 = vcvt.s32.f32 %v1631
        %v2144 = vcvt.s32.f32 %v1632
        %v2145 = vcvt.s32.f32 %v1633
        %v2146 = vcvt.s32.f32 %v1634
        %v2147 = vcvt.s32.f32 %v1635
        %v2148 = vcvt.s32.f32 %v1636
        %v2149 = vcvt.s32.f32 %v1637
        %v2150 = vcvt.s32.f32 %v1638
        %v2151 = vcvt.s32.f32 %v1639
        %v2152 = vcvt.s32.f32 %v1640
        %v2153 = vcvt.s32.f32 %v1641
        %v2154 = vcvt.s32.f32 %v1642
        %v2155 = vcvt.s32.f32 %v1643
        %v2156 = vcvt.s32.f32 %v1644
        %v2157 = vcvt.s32.f32 %v1645
        %v2158 = vcvt.s32.f32 %v1646
        %v2159 = vcvt.s32.f32 %v1647
        %v2160 = vcvt.s32.f32 %v1648
        %v2161 = vcvt.s32.f32 %v1649
        %v2162 = vcvt.s32.f32 %v1650
        %v2163 = vcvt.s32.f32 %v1651
        %v2164 = vcvt.s32.f32 %v1652
        %v2165 = vcvt.s32.f32 %v1653
        %v2166 = vcvt.s32.f32 %v1654
        %v2167 = vcvt.s32.f32 %v1655
        %v2168 = vcvt.s32.f32 %v1656
        %v2169 = vcvt.s32.f32 %v1657
        %v2170 = vcvt.s32.f32 %v1658
        %v2171 = vcvt.s32.f32 %v1659
        %v2172 = vcvt.s32.f32 %v1660
        %v2173 = vcvt.s32.f32 %v1661
        %v2174 = vcvt.s32.f32 %v1662
        %v2175 = vcvt.s32.f32 %v1663
        %v2176 = vcvt.s32.f32 %v1664
        %v2177 = vcvt.s32.f32 %v1665
        %v2178 = vcvt.s32.f32 %v1666
        %v2179 = vcvt.s32.f32 %v1667
        %v2180 = vcvt.s32.f32 %v1668
        %v2181 = vcvt.s32.f32 %v1669
        %v2182 = vcvt.s32.f32 %v1670
        %v2183 = vcvt.s32.f32 %v1671
        %v2184 = vcvt.s32.f32 %v1672
        %v2185 = vcvt.s32.f32 %v1673
        %v2186 = vcvt.s32.f32 %v1674
        %v2187 = vcvt.s32.f32 %v1675
        %v2188 = vcvt.s32.f32 %v1676
        %v2189 = vcvt.s32.f32 %v1677
        %v2190 = vcvt.s32.f32 %v1678
        %v2191 = vcvt.s32.f32 %v1679
        %v2192 = vcvt.s32.f32 %v1680
        %v2193 = vcvt.s32.f32 %v1681
        %v2194 = vcvt.s32.f32 %v1682
        %v2195 = vcvt.s32.f32 %v1683
        %v2196 = vcvt.s32.f32 %v1684
        %v2197 = vcvt.s32.f32 %v1685
        %v2198 = vcvt.s32.f32 %v1686
        %v2199 = vcvt.s32.f32 %v1687
        %v2200 = vcvt.s32.f32 %v1688
        %v2201 = vcvt.s32.f32 %v1689
        %v2202 = vcvt.s32.f32 %v1690
        %v2203 = vcvt.s32.f32 %v1691
        %v2204 = vcvt.s32.f32 %v1692
        %v2205 = vcvt.s32.f32 %v1693
        %v2206 = vcvt.s32.f32 %v1694
        %v2207 = vcvt.s32.f32 %v1695
        %v2208 = vcvt.s32.f32 %v1696
        %v2209 = vcvt.s32.f32 %v1697
        %v2210 = vcvt.s32.f32 %v1698
        %v2211 = vcvt.s32.f32 %v1699
        %v2212 = vcvt.s32.f32 %v1700
        %v2213 = vcvt.s32.f32 %v1701
        %v2214 = vcvt.s32.f32 %v1702
        %v2215 = vcvt.s32.f32 %v1703
        %v2216 = vcvt.s32.f32 %v1704
        %v2217 = vcvt.s32.f32 %v1705
        %v2218 = vcvt.s32.f32 %v1706
        %v2219 = vcvt.s32.f32 %v1707
        %v2220 = vcvt.s32.f32 %v1708
        %v2221 = vcvt.s32.f32 %v1709
        %v2222 = vcvt.s32.f32 %v1710
        %v2223 = vcvt.s32.f32 %v1711
        %v2224 = vcvt.s32.f32 %v1712
        %v2225 = vcvt.s32.f32 %v1713
        %v2226 = vcvt.s32.f32 %v1714
        %v2227 = vcvt.s32.f32 %v1715
        %v2228 = vcvt.s32.f32 %v1716
        %v2229 = vcvt.s32.f32 %v1717
        %v2230 = vcvt.s32.f32 %v1718
        %v2231 = vcvt.s32.f32 %v1719
        %v2232 = vcvt.s32.f32 %v1720
        %v2233 = vcvt.s32.f32 %v1721
        %v2234 = vcvt.s32.f32 %v1722
        %v2235 = vcvt.s32.f32 %v1723
        %v2236 = vcvt.s32.f32 %v1724
        %v2237 = vcvt.s32.f32 %v1725
        %v2238 = vcvt.s32.f32 %v1726
        %v2239 = vcvt.s32.f32 %v1727
        %v2240 = vcvt.s32.f32 %v1728
        %v2241 = vcvt.s32.f32 %v1729
        %v2242 = vcvt.s32.f32 %v1730
        %v2243 = vcvt.s32.f32 %v1731
        %v2244 = vcvt.s32.f32 %v1732
        %v2245 = vcvt.s32.f32 %v1733
        %v2246 = vcvt.s32.f32 %v1734
        %v2247 = vcvt.s32.f32 %v1735
        %v2248 = vcvt.s32.f32 %v1736
        %v2249 = vcvt.s32.f32 %v1737
        %v2250 = vcvt.s32.f32 %v1738
        %v2251 = vcvt.s32.f32 %v1739
        %v2252 = vcvt.s32.f32 %v1740
        %v2253 = vcvt.s32.f32 %v1741
        %v2254 = vcvt.s32.f32 %v1742
        %v2255 = vcvt.s32.f32 %v1743
        %v2256 = vcvt.s32.f32 %v1744
        %v2257 = vcvt.s32.f32 %v1745
        %v2258 = vcvt.s32.f32 %v1746
        %v2259 = vcvt.s32.f32 %v1747
        %v2260 = vcvt.s32.f32 %v1748
        %v2261 = vcvt.s32.f32 %v1749
        %v2262 = vcvt.s32.f32 %v1750
        %v2263 = vcvt.s32.f32 %v1751
        %v2264 = vcvt.s32.f32 %v1752
        %v2265 = vcvt.s32.f32 %v1753
        %v2266 = vcvt.s32.f32 %v1754
        %v2267 = vcvt.s32.f32 %v1755
        %v2268 = vcvt.s32.f32 %v1756
        %v2269 = vcvt.s32.f32 %v1757
        %v2270 = vcvt.s32.f32 %v1758
        %v2271 = vcvt.s32.f32 %v1759
        %v2272 = vcvt.s32.f32 %v1760
        %v2273 = vcvt.s32.f32 %v1761
        %v2274 = vcvt.s32.f32 %v1762
        %v2275 = vcvt.s32.f32 %v1763
        %v2276 = vcvt.s32.f32 %v1764
        %v2277 = vcvt.s32.f32 %v1765
        %v2278 = vcvt.s32.f32 %v1766
        %v2279 = vcvt.s32.f32 %v1767
        %v2280 = vcvt.s32.f32 %v1768
        %v2281 = vcvt.s32.f32 %v1769
        %v2282 = vcvt.s32.f32 %v1770
        %v2283 = vcvt.s32.f32 %v1771
        %v2284 = vcvt.s32.f32 %v1772
        %v2285 = vcvt.s32.f32 %v1773
        %v2286 = vcvt.s32.f32 %v1774
        %v2287 = vcvt.s32.f32 %v1775
        %v2288 = vcvt.s32.f32 %v1776
        %v2289 = vcvt.s32.f32 %v1777
        %v2290 = vcvt.s32.f32 %v1778
        %v2291 = vcvt.s32.f32 %v1779
        %v2292 = vcvt.s32.f32 %v1780
        %v2293 = vcvt.s32.f32 %v1781
        %v2294 = vcvt.s32.f32 %v1782
        %v2295 = vcvt.s32.f32 %v1783
        %v2296 = vcvt.s32.f32 %v1784
        %v2297 = vcvt.s32.f32 %v1785
        %v2298 = vcvt.s32.f32 %v1786
        %v2299 = vcvt.s32.f32 %v1787
        %v2300 = vcvt.s32.f32 %v1788
        %v2301 = vcvt.s32.f32 %v1789
        %v2302 = vcvt.s32.f32 %v1790
        %v2303 = vcvt.s32.f32 %v1791
        %v2304 = vcvt.s32.f32 %v1792
        %v2305 = vcvt.s32.f32 %v1793
        %v2306 = vcvt.s32.f32 %v1794
        %v2307 = vcvt.s32.f32 %v1795
        %v2308 = vcvt.s32.f32 %v1796
        %v2309 = vcvt.s32.f32 %v1797
        %v2310 = vcvt.s32.f32 %v1798
        %v2311 = vcvt.s32.f32 %v1799
        %v2312 = vcvt.s32.f32 %v1800
        %v2313 = vcvt.s32.f32 %v1801
        %v2314 = vcvt.s32.f32 %v1802
        %v2315 = vcvt.s32.f32 %v1803
        %v2316 = vcvt.s32.f32 %v1804
        %v2317 = vcvt.s32.f32 %v1805
        %v2318 = vcvt.s32.f32 %v1806
        %v2319 = vcvt.s32.f32 %v1807
        %v2320 = vcvt.s32.f32 %v1808
        %v2321 = vcvt.s32.f32 %v1809
        %v2322 = vcvt.s32.f32 %v1810
        %v2323 = vcvt.s32.f32 %v1811
        %v2324 = vcvt.s32.f32 %v1812
        %v2325 = vcvt.s32.f32 %v1813
        %v2326 = vcvt.s32.f32 %v1814
        %v2327 = vcvt.s32.f32 %v1815
        %v2328 = vcvt.s32.f32 %v1816
        %v2329 = vcvt.s32.f32 %v1817
        %v2330 = vcvt.s32.f32 %v1818
        %v2331 = vcvt.s32.f32 %v1819
        %v2332 = vcvt.s32.f32 %v1820
        %v2333 = vcvt.s32.f32 %v1821
        %v2334 = vcvt.s32.f32 %v1822
        %v2335 = vcvt.s32.f32 %v1823
        %v2336 = vcvt.s32.f32 %v1824
        %v2337 = vcvt.s32.f32 %v1825
        %v2338 = vcvt.s32.f32 %v1826
        %v2339 = vcvt.s32.f32 %v1827
        %v2340 = vcvt.s32.f32 %v1828
        %v2341 = vcvt.s32.f32 %v1829
        %v2342 = vcvt.s32.f32 %v1830
        %v2343 = vcvt.s32.f32 %v1831
        %v2344 = vcvt.s32.f32 %v1832
        %v2345 = vcvt.s32.f32 %v1833
        %v2346 = vcvt.s32.f32 %v1834
        %v2347 = vcvt.s32.f32 %v1835
        %v2348 = vcvt.s32.f32 %v1836
        %v2349 = vcvt.s32.f32 %v1837
        %v2350 = vcvt.s32.f32 %v1838
        %v2351 = vcvt.s32.f32 %v1839
        %v2352 = vcvt.s32.f32 %v1840
        %v2353 = vcvt.s32.f32 %v1841
        %v2354 = vcvt.s32.f32 %v1842
        %v2355 = vcvt.s32.f32 %v1843
        %v2356 = vcvt.s32.f32 %v1844
        %v2357 = vcvt.s32.f32 %v1845
        %v2358 = vcvt.s32.f32 %v1846
        %v2359 = vcvt.s32.f32 %v1847
        %v2360 = vcvt.s32.f32 %v1848
        %v2361 = vcvt.s32.f32 %v1849
        %v2362 = vcvt.s32.f32 %v1850
        %v2363 = vcvt.s32.f32 %v1851
        %v2364 = vcvt.s32.f32 %v1852
        %v2365 = vcvt.s32.f32 %v1853
        %v2366 = vcvt.s32.f32 %v1854
        %v2367 = vcvt.s32.f32 %v1855
        %v2368 = vcvt.s32.f32 %v1856
        %v2369 = vcvt.s32.f32 %v1857
        %v2370 = vcvt.s32.f32 %v1858
        %v2371 = vcvt.s32.f32 %v1859
        %v2372 = vcvt.s32.f32 %v1860
        %v2373 = vcvt.s32.f32 %v1861
        %v2374 = vcvt.s32.f32 %v1862
        %v2375 = vcvt.s32.f32 %v1863
        %v2376 = vcvt.s32.f32 %v1864
        %v2377 = vcvt.s32.f32 %v1865
        %v2378 = vcvt.s32.f32 %v1866
        %v2379 = vcvt.s32.f32 %v1867
        %v2380 = vcvt.s32.f32 %v1868
        %v2381 = vcvt.s32.f32 %v1869
        %v2382 = vcvt.s32.f32 %v1870
        %v2383 = vcvt.s32.f32 %v1871
        %v2384 = vcvt.s32.f32 %v1872
        %v2385 = vcvt.s32.f32 %v1873
        %v2386 = vcvt.s32.f32 %v1874
        %v2387 = vcvt.s32.f32 %v1875
        %v2388 = vcvt.s32.f32 %v1876
        %v2389 = vcvt.s32.f32 %v1877
        %v2390 = vcvt.s32.f32 %v1878
        %v2391 = vcvt.s32.f32 %v1879
        %v2392 = vcvt.s32.f32 %v1880
        %v2393 = vcvt.s32.f32 %v1881
        %v2394 = vcvt.s32.f32 %v1882
        %v2395 = vcvt.s32.f32 %v1883
        %v2396 = vcvt.s32.f32 %v1884
        %v2397 = vcvt.s32.f32 %v1885
        %v2398 = vcvt.s32.f32 %v1886
        %v2399 = vcvt.s32.f32 %v1887
        %v2400 = vcvt.s32.f32 %v1888
        %v2401 = vcvt.s32.f32 %v1889
        %v2402 = vcvt.s32.f32 %v1890
        %v2403 = vcvt.s32.f32 %v1891
        %v2404 = vcvt.s32.f32 %v1892
        %v2405 = vcvt.s32.f32 %v1893
        %v2406 = vcvt.s32.f32 %v1894
        %v2407 = vcvt.s32.f32 %v1895
        %v2408 = vcvt.s32.f32 %v1896
        %v2409 = vcvt.s32.f32 %v1897
        %v2410 = vcvt.s32.f32 %v1898
        %v2411 = vcvt.s32.f32 %v1899
        %v2412 = vcvt.s32.f32 %v1900
        %v2413 = vcvt.s32.f32 %v1901
        %v2414 = vcvt.s32.f32 %v1902
        %v2415 = vcvt.s32.f32 %v1903
        %v2416 = vcvt.s32.f32 %v1904
        %v2417 = vcvt.s32.f32 %v1905
        %v2418 = vcvt.s32.f32 %v1906
        %v2419 = vcvt.s32.f32 %v1907
        %v2420 = vcvt.s32.f32 %v1908
        %v2421 = vcvt.s32.f32 %v1909
        %v2422 = vcvt.s32.f32 %v1910
        %v2423 = vcvt.s32.f32 %v1911
        %v2424 = vcvt.s32.f32 %v1912
        %v2425 = vcvt.s32.f32 %v1913
        %v2426 = vcvt.s32.f32 %v1914
        %v2427 = vcvt.s32.f32 %v1915
        %v2428 = vcvt.s32.f32 %v1916
        %v2429 = vcvt.s32.f32 %v1917
        %v2430 = vcvt.s32.f32 %v1918
        %v2431 = vcvt.s32.f32 %v1919
        %v2432 = vcvt.s32.f32 %v1920
        %v2433 = vcvt.s32.f32 %v1921
        %v2434 = vcvt.s32.f32 %v1922
        %v2435 = vcvt.s32.f32 %v1923
        %v2436 = vcvt.s32.f32 %v1924
        %v2437 = vcvt.s32.f32 %v1925
        %v2438 = vcvt.s32.f32 %v1926
        %v2439 = vcvt.s32.f32 %v1927
        %v2440 = vcvt.s32.f32 %v1928
        %v2441 = vcvt.s32.f32 %v1929
        %v2442 = vcvt.s32.f32 %v1930
        %v2443 = vcvt.s32.f32 %v1931
        %v2444 = vcvt.s32.f32 %v1932
        %v2445 = vcvt.s32.f32 %v1933
        %v2446 = vcvt.s32.f32 %v1934
        %v2447 = vcvt.s32.f32 %v1935
        %v2448 = vcvt.s32.f32 %v1936
        %v2449 = vcvt.s32.f32 %v1937
        %v2450 = vcvt.s32.f32 %v1938
        %v2451 = vcvt.s32.f32 %v1939
        %v2452 = vcvt.s32.f32 %v1940
        %v2453 = vcvt.s32.f32 %v1941
        %v2454 = vcvt.s32.f32 %v1942
        %v2455 = vcvt.s32.f32 %v1943
        %v2456 = vcvt.s32.f32 %v1944
        %v2457 = vcvt.s32.f32 %v1945
        %v2458 = vcvt.s32.f32 %v1946
        %v2459 = vcvt.s32.f32 %v1947
        %v2460 = vcvt.s32.f32 %v1948
        %v2461 = vcvt.s32.f32 %v1949
        %v2462 = vcvt.s32.f32 %v1950
        %v2463 = vcvt.s32.f32 %v1951
        %v2464 = vcvt.s32.f32 %v1952
        %v2465 = vcvt.s32.f32 %v1953
        %v2466 = vcvt.s32.f32 %v1954
        %v2467 = vcvt.s32.f32 %v1955
        %v2468 = vcvt.s32.f32 %v1956
        %v2469 = vcvt.s32.f32 %v1957
        %v2470 = vcvt.s32.f32 %v1958
        %v2471 = vcvt.s32.f32 %v1959
        %v2472 = vcvt.s32.f32 %v1960
        %v2473 = vcvt.s32.f32 %v1961
        %v2474 = vcvt.s32.f32 %v1962
        %v2475 = vcvt.s32.f32 %v1963
        %v2476 = vcvt.s32.f32 %v1964
        %v2477 = vcvt.s32.f32 %v1965
        %v2478 = vcvt.s32.f32 %v1966
        %v2479 = vcvt.s32.f32 %v1967
        %v2480 = vcvt.s32.f32 %v1968
        %v2481 = vcvt.s32.f32 %v1969
        %v2482 = vcvt.s32.f32 %v1970
        %v2483 = vcvt.s32.f32 %v1971
        %v2484 = vcvt.s32.f32 %v1972
        %v2485 = vcvt.s32.f32 %v1973
        %v2486 = vcvt.s32.f32 %v1974
        %v2487 = vcvt.s32.f32 %v1975
        %v2488 = vcvt.s32.f32 %v1976
        %v2489 = vcvt.s32.f32 %v1977
        %v2490 = vcvt.s32.f32 %v1978
        %v2491 = vcvt.s32.f32 %v1979
        %v2492 = vcvt.s32.f32 %v1980
        %v2493 = vcvt.s32.f32 %v1981
        %v2494 = vcvt.s32.f32 %v1982
        %v2495 = vcvt.s32.f32 %v1983
        %v2496 = vcvt.s32.f32 %v1984
        %v2497 = vcvt.s32.f32 %v1985
        %v2498 = vcvt.s32.f32 %v1986
        %v2499 = vcvt.s32.f32 %v1987
        %v2500 = vcvt.s32.f32 %v1988
        %v2501 = vcvt.s32.f32 %v1989
        %v2502 = vcvt.s32.f32 %v1990
        %v2503 = vcvt.s32.f32 %v1991
        %v2504 = vcvt.s32.f32 %v1992
        %v2505 = vcvt.s32.f32 %v1993
        %v2506 = vcvt.s32.f32 %v1994
        %v2507 = vcvt.s32.f32 %v1995
        %v2508 = vcvt.s32.f32 %v1996
        %v2509 = vcvt.s32.f32 %v1997
        %v2510 = vcvt.s32.f32 %v1998
        %v2511 = vcvt.s32.f32 %v1999
        %v2512 = vcvt.s32.f32 %v2000
        %v2513 = vcvt.s32.f32 %v2001
        %v2514 = vcvt.s32.f32 %v2002
        %v2515 = vcvt.s32.f32 %v2003
        %v2516 = vcvt.s32.f32 %v2004
        %v2517 = vcvt.s32.f32 %v2005
        %v2518 = vcvt.s32.f32 %v2006
        %v2519 = vcvt.s32.f32 %v2007
        %v2520 = vcvt.s32.f32 %v2008
        %v2521 = vcvt.s32.f32 %v2009
        %v2522 = vcvt.s32.f32 %v2010
        %v2523 = vcvt.s32.f32 %v2011
        %v2524 = vcvt.s32.f32 %v2012
        %v2525 = vcvt.s32.f32 %v2013
        %v2526 = vcvt.s32.f32 %v2014
        %v2527 = vcvt.s32.f32 %v2015
        %v2528 = vcvt.s32.f32 %v2016
        %v2529 = vcvt.s32.f32 %v2017
        %v2530 = vcvt.s32.f32 %v2018
        %v2531 = vcvt.s32.f32 %v2019
        %v2532 = vcvt.s32.f32 %v2020
        %v2533 = vcvt.s32.f32 %v2021
        %v2534 = vcvt.s32.f32 %v2022
        %v2535 = vcvt.s32.f32 %v2023
        %v2536 = vcvt.s32.f32 %v2024
        %v2537 = vcvt.s32.f32 %v2025
        %v2538 = vcvt.s32.f32 %v2026
        %v2539 = vcvt.s32.f32 %v2027
        %v2540 = vcvt.s32.f32 %v2028
        %v2541 = vcvt.s32.f32 %v2029
        %v2542 = vcvt.s32.f32 %v2030
        %v2543 = vcvt.s32.f32 %v2031
        %v2544 = vcvt.s32.f32 %v2032
        %v2545 = vcvt.s32.f32 %v2033
        %v2546 = vcvt.s32.f32 %v2034
        %v2547 = vcvt.s32.f32 %v2035
        %v2548 = vcvt.s32.f32 %v2036
        %v2549 = vcvt.s32.f32 %v2037
        %v2550 = vcvt.s32.f32 %v2038
        %v2551 = vcvt.s32.f32 %v2039
        %v2552 = vcvt.s32.f32 %v2040
        %v2553 = vcvt.s32.f32 %v2041
        %v2554 = vcvt.s32.f32 %v2042
        %v2555 = vcvt.s32.f32 %v2043
        %v2556 = vcvt.s32.f32 %v2044
        %v2557 = vcvt.s32.f32 %v2045
        %v2558 = vcvt.s32.f32 %v2046
        %v2559 = vcvt.s32.f32 %v2047
        %v2560 = vcvt.s32.f32 %v2048
        %v2561 = vcvt.s32.f32 %v2049
        %v2562 = vcvt.s32.f32 %v2050
        %v2563 = vcvt.s32.f32 %v2051
        %v2564 = vcvt.s32.f32 %v2052
        %v2565 = vcvt.s32.f32 %v2053
        %v2566 = vcvt.s32.f32 %v2054
        %v2567 = vcvt.s32.f32 %v2055
        %v2568 = vcvt.s32.f32 %v2056
        %v2569 = vcvt.s32.f32 %v2057
        %v2570 = vcvt.s32.f32 %v2058
        %v2571 = vcvt.s32.f32 %v2059
        %v2572 = vcvt.s32.f32 %v2060
        %v2573 = vcvt.s32.f32 %v2061
        %v2574 = vcvt.s32.f32 %v2062
        %v2575 = vcvt.s32.f32 %v2063
        %v2576 = vcvt.s32.f32 %v2064
        %v2577 = vcvt.s32.f32 %v2065
        %v2578 = vcvt.s32.f32 %v2066
        %v2579 = vcvt.s32.f32 %v2067
        %v2580 = vcvt.s32.f32 %v2068
        %v2581 = vcvt.s32.f32 %v2069
        %v2582 = vcvt.s32.f32 %v2070
        %v2583 = vcvt.s32.f32 %v2071
        %v2584 = vcvt.s32.f32 %v2072
        %v2585 = vcvt.s32.f32 %v2073
        %v2586 = vcvt.s32.f32 %v2074
        %v2587 = vcvt.s32.f32 %v2075
        %v2588 = vcvt.s32.f32 %v2076
        %v2589 = vcvt.s32.f32 %v2077
        %v2590 = vcvt.s32.f32 %v2078
        %v2591 = vcvt.s32.f32 %v2079
        %v2592 = vcvt.s32.f32 %v2080
        %v2593 = vcvt.s32.f32 %v2081
        %v2594 = vcvt.s32.f32 %v2082
        %v2595 = vcvt.s32.f32 %v2083
        %v2596 = vcvt.s32.f32 %v2084
        %v2597 = vcvt.s32.f32 %v2085
        %v2598 = vcvt.s32.f32 %v2086
        %v2599 = vpack.c.bf16 %v2095, %v2087
        %v2600 = vpack.c.bf16 %v2096, %v2088
        %v2601 = vpack.c.bf16 %v2097, %v2089
        %v2602 = vpack.c.bf16 %v2098, %v2090
        %v2603 = vpack.c.bf16 %v2099, %v2091
        %v2604 = vpack.c.bf16 %v2100, %v2092
        %v2605 = vpack.c.bf16 %v2101, %v2093
        %v2606 = vpack.c.bf16 %v2102, %v2094
        %v2607 = vpack.c.bf16 %v2111, %v2103
        %v2608 = vpack.c.bf16 %v2112, %v2104
        %v2609 = vpack.c.bf16 %v2113, %v2105
        %v2610 = vpack.c.bf16 %v2114, %v2106
        %v2611 = vpack.c.bf16 %v2115, %v2107
        %v2612 = vpack.c.bf16 %v2116, %v2108
        %v2613 = vpack.c.bf16 %v2117, %v2109
        %v2614 = vpack.c.bf16 %v2118, %v2110
        %v2615 = vpack.c.bf16 %v2127, %v2119
        %v2616 = vpack.c.bf16 %v2128, %v2120
        %v2617 = vpack.c.bf16 %v2129, %v2121
        %v2618 = vpack.c.bf16 %v2130, %v2122
        %v2619 = vpack.c.bf16 %v2131, %v2123
        %v2620 = vpack.c.bf16 %v2132, %v2124
        %v2621 = vpack.c.bf16 %v2133, %v2125
        %v2622 = vpack.c.bf16 %v2134, %v2126
        %v2623 = vpack.c.bf16 %v2143, %v2135
        %v2624 = vpack.c.bf16 %v2144, %v2136
        %v2625 = vpack.c.bf16 %v2145, %v2137
        %v2626 = vpack.c.bf16 %v2146, %v2138
        %v2627 = vpack.c.bf16 %v2147, %v2139
        %v2628 = vpack.c.bf16 %v2148, %v2140
        %v2629 = vpack.c.bf16 %v2149, %v2141
        %v2630 = vpack.c.bf16 %v2150, %v2142
        %v2631 = vpack.c.bf16 %v2159, %v2151
        %v2632 = vpack.c.bf16 %v2160, %v2152
        %v2633 = vpack.c.bf16 %v2161, %v2153
        %v2634 = vpack.c.bf16 %v2162, %v2154
        %v2635 = vpack.c.bf16 %v2163, %v2155
        %v2636 = vpack.c.bf16 %v2164, %v2156
        %v2637 = vpack.c.bf16 %v2165, %v2157
        %v2638 = vpack.c.bf16 %v2166, %v2158
        %v2639 = vpack.c.bf16 %v2175, %v2167
        %v2640 = vpack.c.bf16 %v2176, %v2168
        %v2641 = vpack.c.bf16 %v2177, %v2169
        %v2642 = vpack.c.bf16 %v2178, %v2170
        %v2643 = vpack.c.bf16 %v2179, %v2171
        %v2644 = vpack.c.bf16 %v2180, %v2172
        %v2645 = vpack.c.bf16 %v2181, %v2173
        %v2646 = vpack.c.bf16 %v2182, %v2174
        %v2647 = vpack.c.bf16 %v2191, %v2183
        %v2648 = vpack.c.bf16 %v2192, %v2184
        %v2649 = vpack.c.bf16 %v2193, %v2185
        %v2650 = vpack.c.bf16 %v2194, %v2186
        %v2651 = vpack.c.bf16 %v2195, %v2187
        %v2652 = vpack.c.bf16 %v2196, %v2188
        %v2653 = vpack.c.bf16 %v2197, %v2189
        %v2654 = vpack.c.bf16 %v2198, %v2190
        %v2655 = vpack.c.bf16 %v2207, %v2199
        %v2656 = vpack.c.bf16 %v2208, %v2200
        %v2657 = vpack.c.bf16 %v2209, %v2201
        %v2658 = vpack.c.bf16 %v2210, %v2202
        %v2659 = vpack.c.bf16 %v2211, %v2203
        %v2660 = vpack.c.bf16 %v2212, %v2204
        %v2661 = vpack.c.bf16 %v2213, %v2205
        %v2662 = vpack.c.bf16 %v2214, %v2206
        %v2663 = vpack.c.bf16 %v2223, %v2215
        %v2664 = vpack.c.bf16 %v2224, %v2216
        %v2665 = vpack.c.bf16 %v2225, %v2217
        %v2666 = vpack.c.bf16 %v2226, %v2218
        %v2667 = vpack.c.bf16 %v2227, %v2219
        %v2668 = vpack.c.bf16 %v2228, %v2220
        %v2669 = vpack.c.bf16 %v2229, %v2221
        %v2670 = vpack.c.bf16 %v2230, %v2222
        %v2671 = vpack.c.bf16 %v2239, %v2231
        %v2672 = vpack.c.bf16 %v2240, %v2232
        %v2673 = vpack.c.bf16 %v2241, %v2233
        %v2674 = vpack.c.bf16 %v2242, %v2234
        %v2675 = vpack.c.bf16 %v2243, %v2235
        %v2676 = vpack.c.bf16 %v2244, %v2236
        %v2677 = vpack.c.bf16 %v2245, %v2237
        %v2678 = vpack.c.bf16 %v2246, %v2238
        %v2679 = vpack.c.bf16 %v2255, %v2247
        %v2680 = vpack.c.bf16 %v2256, %v2248
        %v2681 = vpack.c.bf16 %v2257, %v2249
        %v2682 = vpack.c.bf16 %v2258, %v2250
        %v2683 = vpack.c.bf16 %v2259, %v2251
        %v2684 = vpack.c.bf16 %v2260, %v2252
        %v2685 = vpack.c.bf16 %v2261, %v2253
        %v2686 = vpack.c.bf16 %v2262, %v2254
        %v2687 = vpack.c.bf16 %v2271, %v2263
        %v2688 = vpack.c.bf16 %v2272, %v2264
        %v2689 = vpack.c.bf16 %v2273, %v2265
        %v2690 = vpack.c.bf16 %v2274, %v2266
        %v2691 = vpack.c.bf16 %v2275, %v2267
        %v2692 = vpack.c.bf16 %v2276, %v2268
        %v2693 = vpack.c.bf16 %v2277, %v2269
        %v2694 = vpack.c.bf16 %v2278, %v2270
        %v2695 = vpack.c.bf16 %v2287, %v2279
        %v2696 = vpack.c.bf16 %v2288, %v2280
        %v2697 = vpack.c.bf16 %v2289, %v2281
        %v2698 = vpack.c.bf16 %v2290, %v2282
        %v2699 = vpack.c.bf16 %v2291, %v2283
        %v2700 = vpack.c.bf16 %v2292, %v2284
        %v2701 = vpack.c.bf16 %v2293, %v2285
        %v2702 = vpack.c.bf16 %v2294, %v2286
        %v2703 = vpack.c.bf16 %v2303, %v2295
        %v2704 = vpack.c.bf16 %v2304, %v2296
        %v2705 = vpack.c.bf16 %v2305, %v2297
        %v2706 = vpack.c.bf16 %v2306, %v2298
        %v2707 = vpack.c.bf16 %v2307, %v2299
        %v2708 = vpack.c.bf16 %v2308, %v2300
        %v2709 = vpack.c.bf16 %v2309, %v2301
        %v2710 = vpack.c.bf16 %v2310, %v2302
        %v2711 = vpack.c.bf16 %v2319, %v2311
        %v2712 = vpack.c.bf16 %v2320, %v2312
        %v2713 = vpack.c.bf16 %v2321, %v2313
        %v2714 = vpack.c.bf16 %v2322, %v2314
        %v2715 = vpack.c.bf16 %v2323, %v2315
        %v2716 = vpack.c.bf16 %v2324, %v2316
        %v2717 = vpack.c.bf16 %v2325, %v2317
        %v2718 = vpack.c.bf16 %v2326, %v2318
        %v2719 = vpack.c.bf16 %v2335, %v2327
        %v2720 = vpack.c.bf16 %v2336, %v2328
        %v2721 = vpack.c.bf16 %v2337, %v2329
        %v2722 = vpack.c.bf16 %v2338, %v2330
        %v2723 = vpack.c.bf16 %v2339, %v2331
        %v2724 = vpack.c.bf16 %v2340, %v2332
        %v2725 = vpack.c.bf16 %v2341, %v2333
        %v2726 = vpack.c.bf16 %v2342, %v2334
        %v2727 = vpack.c.bf16 %v2351, %v2343
        %v2728 = vpack.c.bf16 %v2352, %v2344
        %v2729 = vpack.c.bf16 %v2353, %v2345
        %v2730 = vpack.c.bf16 %v2354, %v2346
        %v2731 = vpack.c.bf16 %v2355, %v2347
        %v2732 = vpack.c.bf16 %v2356, %v2348
        %v2733 = vpack.c.bf16 %v2357, %v2349
        %v2734 = vpack.c.bf16 %v2358, %v2350
        %v2735 = vpack.c.bf16 %v2367, %v2359
        %v2736 = vpack.c.bf16 %v2368, %v2360
        %v2737 = vpack.c.bf16 %v2369, %v2361
        %v2738 = vpack.c.bf16 %v2370, %v2362
        %v2739 = vpack.c.bf16 %v2371, %v2363
        %v2740 = vpack.c.bf16 %v2372, %v2364
        %v2741 = vpack.c.bf16 %v2373, %v2365
        %v2742 = vpack.c.bf16 %v2374, %v2366
        %v2743 = vpack.c.bf16 %v2383, %v2375
        %v2744 = vpack.c.bf16 %v2384, %v2376
        %v2745 = vpack.c.bf16 %v2385, %v2377
        %v2746 = vpack.c.bf16 %v2386, %v2378
        %v2747 = vpack.c.bf16 %v2387, %v2379
        %v2748 = vpack.c.bf16 %v2388, %v2380
        %v2749 = vpack.c.bf16 %v2389, %v2381
        %v2750 = vpack.c.bf16 %v2390, %v2382
        %v2751 = vpack.c.bf16 %v2399, %v2391
        %v2752 = vpack.c.bf16 %v2400, %v2392
        %v2753 = vpack.c.bf16 %v2401, %v2393
        %v2754 = vpack.c.bf16 %v2402, %v2394
        %v2755 = vpack.c.bf16 %v2403, %v2395
        %v2756 = vpack.c.bf16 %v2404, %v2396
        %v2757 = vpack.c.bf16 %v2405, %v2397
        %v2758 = vpack.c.bf16 %v2406, %v2398
        %v2759 = vpack.c.bf16 %v2415, %v2407
        %v2760 = vpack.c.bf16 %v2416, %v2408
        %v2761 = vpack.c.bf16 %v2417, %v2409
        %v2762 = vpack.c.bf16 %v2418, %v2410
        %v2763 = vpack.c.bf16 %v2419, %v2411
        %v2764 = vpack.c.bf16 %v2420, %v2412
        %v2765 = vpack.c.bf16 %v2421, %v2413
        %v2766 = vpack.c.bf16 %v2422, %v2414
        %v2767 = vpack.c.bf16 %v2431, %v2423
        %v2768 = vpack.c.bf16 %v2432, %v2424
        %v2769 = vpack.c.bf16 %v2433, %v2425
        %v2770 = vpack.c.bf16 %v2434, %v2426
        %v2771 = vpack.c.bf16 %v2435, %v2427
        %v2772 = vpack.c.bf16 %v2436, %v2428
        %v2773 = vpack.c.bf16 %v2437, %v2429
        %v2774 = vpack.c.bf16 %v2438, %v2430
        %v2775 = vpack.c.bf16 %v2447, %v2439
        %v2776 = vpack.c.bf16 %v2448, %v2440
        %v2777 = vpack.c.bf16 %v2449, %v2441
        %v2778 = vpack.c.bf16 %v2450, %v2442
        %v2779 = vpack.c.bf16 %v2451, %v2443
        %v2780 = vpack.c.bf16 %v2452, %v2444
        %v2781 = vpack.c.bf16 %v2453, %v2445
        %v2782 = vpack.c.bf16 %v2454, %v2446
        %v2783 = vpack.c.bf16 %v2463, %v2455
        %v2784 = vpack.c.bf16 %v2464, %v2456
        %v2785 = vpack.c.bf16 %v2465, %v2457
        %v2786 = vpack.c.bf16 %v2466, %v2458
        %v2787 = vpack.c.bf16 %v2467, %v2459
        %v2788 = vpack.c.bf16 %v2468, %v2460
        %v2789 = vpack.c.bf16 %v2469, %v2461
        %v2790 = vpack.c.bf16 %v2470, %v2462
        %v2791 = vpack.c.bf16 %v2479, %v2471
        %v2792 = vpack.c.bf16 %v2480, %v2472
        %v2793 = vpack.c.bf16 %v2481, %v2473
        %v2794 = vpack.c.bf16 %v2482, %v2474
        %v2795 = vpack.c.bf16 %v2483, %v2475
        %v2796 = vpack.c.bf16 %v2484, %v2476
        %v2797 = vpack.c.bf16 %v2485, %v2477
        %v2798 = vpack.c.bf16 %v2486, %v2478
        %v2799 = vpack.c.bf16 %v2495, %v2487
        %v2800 = vpack.c.bf16 %v2496, %v2488
        %v2801 = vpack.c.bf16 %v2497, %v2489
        %v2802 = vpack.c.bf16 %v2498, %v2490
        %v2803 = vpack.c.bf16 %v2499, %v2491
        %v2804 = vpack.c.bf16 %v2500, %v2492
        %v2805 = vpack.c.bf16 %v2501, %v2493
        %v2806 = vpack.c.bf16 %v2502, %v2494
        %v2807 = vpack.c.bf16 %v2511, %v2503
        %v2808 = vpack.c.bf16 %v2512, %v2504
        %v2809 = vpack.c.bf16 %v2513, %v2505
        %v2810 = vpack.c.bf16 %v2514, %v2506
        %v2811 = vpack.c.bf16 %v2515, %v2507
        %v2812 = vpack.c.bf16 %v2516, %v2508
        %v2813 = vpack.c.bf16 %v2517, %v2509
        %v2814 = vpack.c.bf16 %v2518, %v2510
        %v2815 = vpack.c.bf16 %v2527, %v2519
        %v2816 = vpack.c.bf16 %v2528, %v2520
        %v2817 = vpack.c.bf16 %v2529, %v2521
        %v2818 = vpack.c.bf16 %v2530, %v2522
        %v2819 = vpack.c.bf16 %v2531, %v2523
        %v2820 = vpack.c.bf16 %v2532, %v2524
        %v2821 = vpack.c.bf16 %v2533, %v2525
        %v2822 = vpack.c.bf16 %v2534, %v2526
        %v2823 = vpack.c.bf16 %v2543, %v2535
        %v2824 = vpack.c.bf16 %v2544, %v2536
        %v2825 = vpack.c.bf16 %v2545, %v2537
        %v2826 = vpack.c.bf16 %v2546, %v2538
        %v2827 = vpack.c.bf16 %v2547, %v2539
        %v2828 = vpack.c.bf16 %v2548, %v2540
        %v2829 = vpack.c.bf16 %v2549, %v2541
        %v2830 = vpack.c.bf16 %v2550, %v2542
        %v2831 = vpack.c.bf16 %v2559, %v2551
        %v2832 = vpack.c.bf16 %v2560, %v2552
        %v2833 = vpack.c.bf16 %v2561, %v2553
        %v2834 = vpack.c.bf16 %v2562, %v2554
        %v2835 = vpack.c.bf16 %v2563, %v2555
        %v2836 = vpack.c.bf16 %v2564, %v2556
        %v2837 = vpack.c.bf16 %v2565, %v2557
        %v2838 = vpack.c.bf16 %v2566, %v2558
        %v2839 = vpack.c.bf16 %v2575, %v2567
        %v2840 = vpack.c.bf16 %v2576, %v2568
        %v2841 = vpack.c.bf16 %v2577, %v2569
        %v2842 = vpack.c.bf16 %v2578, %v2570
        %v2843 = vpack.c.bf16 %v2579, %v2571
        %v2844 = vpack.c.bf16 %v2580, %v2572
        %v2845 = vpack.c.bf16 %v2581, %v2573
        %v2846 = vpack.c.bf16 %v2582, %v2574
        %v2847 = vpack.c.bf16 %v2591, %v2583
        %v2848 = vpack.c.bf16 %v2592, %v2584
        %v2849 = vpack.c.bf16 %v2593, %v2585
        %v2850 = vpack.c.bf16 %v2594, %v2586
        %v2851 = vpack.c.bf16 %v2595, %v2587
        %v2852 = vpack.c.bf16 %v2596, %v2588
        %v2853 = vpack.c.bf16 %v2597, %v2589
        %v2854 = vpack.c.bf16 %v2598, %v2590
        %v2855 = vld [vmem:[#allocation2] sm:$0xff]
        %v2856 = vld [vmem:[#allocation2 + $0x8] sm:$0xff]
        %v2857 = vld [vmem:[%s1432] sm:$0x1]
        %v2859 = vperm.slane %v1446, 0
        %v2860 = vperm.slane %v1446, 1
        %v2861 = vperm.slane %v1446, 2
        %v2862 = vperm.slane %v1446, 3
        %v2871 = vunpack.c.l.b16 %v1442
        %v2872 = vunpack.c.h.b16 %v1442
        %v2873 = vunpack.c.l.b16 %v1443
        %v2874 = vunpack.c.h.b16 %v1443
        %v2875 = vunpack.c.l.b16 %v1444
        %v2876 = vunpack.c.h.b16 %v1444
        %v2877 = vunpack.c.l.b16 %v1445
        %v2878 = vunpack.c.h.b16 %v1445
        %v2879 = vpack.c.b16 %v2875, %v2871
        %v2880 = vpack.c.b16 %v2876, %v2872
        %v2881 = vpack.c.b16 %v2877, %v2873
        %v2882 = vpack.c.b16 %v2878, %v2874
        %vm2887 = vcmask 130048
        %v2889 = vsel %vm2887, %v2857, 0
        %2891 = vmatpush.bf16.msra.mxu0 0
        %2892 = vmatpush.bf16.msra.mxu0 0
        %2893 = vmatpush.bf16.msra.mxu0 0
        %2894 = vmatpush.bf16.msra.mxu0 0
        %2895 = vmatpush.bf16.msra.mxu0 0
        %2896 = vmatpush.bf16.msra.mxu0 0
        %2897 = vmatpush.bf16.msra.mxu0 0
        %2898 = vmatpush.bf16.msra.mxu0 %v2879
        %2899 = vmatmul.bf16.gmra.mxu0 %v2889
        %v2900 = vpop.f32.mrf.mxu0
        %v2901 = vadd.f32 %v2859, %v2900
        %v2902 = vpop.f32.mrf.mxu0
        %2903 = vdwg.mxu0
        %2904 = vmatpush.bf16.msra.mxu0 0
        %2905 = vmatpush.bf16.msra.mxu0 0
        %2906 = vmatpush.bf16.msra.mxu0 0
        %2907 = vmatpush.bf16.msra.mxu0 0
        %2908 = vmatpush.bf16.msra.mxu0 0
        %2909 = vmatpush.bf16.msra.mxu0 0
        %2910 = vmatpush.bf16.msra.mxu0 0
        %2911 = vmatpush.bf16.msra.mxu0 %v2880
        %2912 = vmatmul.bf16.gmra.mxu0 %v2889
        %v2913 = vpop.f32.mrf.mxu0
        %v2914 = vadd.f32 %v2860, %v2913
        %v2915 = vpop.f32.mrf.mxu0
        %2916 = vdwg.mxu0
        %2917 = vmatpush.bf16.msra.mxu0 0
        %2918 = vmatpush.bf16.msra.mxu0 0
        %2919 = vmatpush.bf16.msra.mxu0 0
        %2920 = vmatpush.bf16.msra.mxu0 0
        %2921 = vmatpush.bf16.msra.mxu0 0
        %2922 = vmatpush.bf16.msra.mxu0 0
        %2923 = vmatpush.bf16.msra.mxu0 0
        %2924 = vmatpush.bf16.msra.mxu0 %v2881
        %2925 = vmatmul.bf16.gmra.mxu0 %v2889
        %v2926 = vpop.f32.mrf.mxu0
        %v2927 = vadd.f32 %v2861, %v2926
        %v2928 = vpop.f32.mrf.mxu0
        %2929 = vdwg.mxu0
        %2930 = vmatpush.bf16.msra.mxu0 0
        %2931 = vmatpush.bf16.msra.mxu0 0
        %2932 = vmatpush.bf16.msra.mxu0 0
        %2933 = vmatpush.bf16.msra.mxu0 0
        %2934 = vmatpush.bf16.msra.mxu0 0
        %2935 = vmatpush.bf16.msra.mxu0 0
        %2936 = vmatpush.bf16.msra.mxu0 0
        %2937 = vmatpush.bf16.msra.mxu0 %v2882
        %2938 = vmatmul.bf16.gmra.mxu0 %v2889
        %v2939 = vpop.f32.mrf.mxu0
        %v2940 = vadd.f32 %v2862, %v2939
        %v2941 = vpop.f32.mrf.mxu0
        %2942 = vdwg.mxu0
        %v2943 = vmax.f32 %v2901, 0.0
        %v2944 = vmax.f32 %v2914, 0.0
        %v2945 = vmax.f32 %v2927, 0.0
        %v2946 = vmax.f32 %v2940, 0.0
        %v2947 = vpack.c.bf16 %v2943, %v2943
        %v2948 = vpack.c.bf16 %v2944, %v2944
        %v2949 = vpack.c.bf16 %v2945, %v2945
        %v2950 = vpack.c.bf16 %v2946, %v2946
        %2951 = vmatpush.bf16.msra.mxu0 %v2655
        %2952 = vmatpush.bf16.msra.mxu0 %v2647
        %2953 = vmatpush.bf16.msra.mxu0 %v2639
        %2954 = vmatpush.bf16.msra.mxu0 %v2631
        %2955 = vmatpush.bf16.msra.mxu0 %v2623
        %2956 = vmatpush.bf16.msra.mxu0 %v2615
        %2957 = vmatpush.bf16.msra.mxu0 %v2607
        %2958 = vmatpush.bf16.msra.mxu0 %v2599
        %2959 = vmatmul.bf16.gmra.mxu0 %v2947
        %v2960 = vpop.f32.mrf.mxu0
        %v2961 = vadd.f32 0.0, %v2960
        %v2962 = vpop.f32.mrf.mxu0
        %2963 = vdwg.mxu0
        %2964 = vmatpush.bf16.msra.mxu0 %v2719
        %2965 = vmatpush.bf16.msra.mxu0 %v2711
        %2966 = vmatpush.bf16.msra.mxu0 %v2703
        %2967 = vmatpush.bf16.msra.mxu0 %v2695
        %2968 = vmatpush.bf16.msra.mxu0 %v2687
        %2969 = vmatpush.bf16.msra.mxu0 %v2679
        %2970 = vmatpush.bf16.msra.mxu0 %v2671
        %2971 = vmatpush.bf16.msra.mxu0 %v2663
        %2972 = vmatmul.bf16.gmra.mxu0 %v2948
        %v2973 = vpop.f32.mrf.mxu0
        %v2974 = vadd.f32 %v2961, %v2973
        %v2975 = vpop.f32.mrf.mxu0
        %2976 = vdwg.mxu0
        %2977 = vmatpush.bf16.msra.mxu0 %v2783
        %2978 = vmatpush.bf16.msra.mxu0 %v2775
        %2979 = vmatpush.bf16.msra.mxu0 %v2767
        %2980 = vmatpush.bf16.msra.mxu0 %v2759
        %2981 = vmatpush.bf16.msra.mxu0 %v2751
        %2982 = vmatpush.bf16.msra.mxu0 %v2743
        %2983 = vmatpush.bf16.msra.mxu0 %v2735
        %2984 = vmatpush.bf16.msra.mxu0 %v2727
        %2985 = vmatmul.bf16.gmra.mxu0 %v2949
        %v2986 = vpop.f32.mrf.mxu0
        %v2987 = vadd.f32 %v2974, %v2986
        %v2988 = vpop.f32.mrf.mxu0
        %2989 = vdwg.mxu0
        %2990 = vmatpush.bf16.msra.mxu0 %v2847
        %2991 = vmatpush.bf16.msra.mxu0 %v2839
        %2992 = vmatpush.bf16.msra.mxu0 %v2831
        %2993 = vmatpush.bf16.msra.mxu0 %v2823
        %2994 = vmatpush.bf16.msra.mxu0 %v2815
        %2995 = vmatpush.bf16.msra.mxu0 %v2807
        %2996 = vmatpush.bf16.msra.mxu0 %v2799
        %2997 = vmatpush.bf16.msra.mxu0 %v2791
        %2998 = vmatmul.bf16.gmra.mxu0 %v2950
        %v2999 = vpop.f32.mrf.mxu0
        %v3000 = vadd.f32 %v2987, %v2999
        %v3001 = vpop.f32.mrf.mxu0
        %3002 = vdwg.mxu0
        %3003 = vmatpush.bf16.msra.mxu0 %v2656
        %3004 = vmatpush.bf16.msra.mxu0 %v2648
        %3005 = vmatpush.bf16.msra.mxu0 %v2640
        %3006 = vmatpush.bf16.msra.mxu0 %v2632
        %3007 = vmatpush.bf16.msra.mxu0 %v2624
        %3008 = vmatpush.bf16.msra.mxu0 %v2616
        %3009 = vmatpush.bf16.msra.mxu0 %v2608
        %3010 = vmatpush.bf16.msra.mxu0 %v2600
        %3011 = vmatmul.bf16.gmra.mxu0 %v2947
        %v3012 = vpop.f32.mrf.mxu0
        %v3013 = vadd.f32 0.0, %v3012
        %v3014 = vpop.f32.mrf.mxu0
        %3015 = vdwg.mxu0
        %3016 = vmatpush.bf16.msra.mxu0 %v2720
        %3017 = vmatpush.bf16.msra.mxu0 %v2712
        %3018 = vmatpush.bf16.msra.mxu0 %v2704
        %3019 = vmatpush.bf16.msra.mxu0 %v2696
        %3020 = vmatpush.bf16.msra.mxu0 %v2688
        %3021 = vmatpush.bf16.msra.mxu0 %v2680
        %3022 = vmatpush.bf16.msra.mxu0 %v2672
        %3023 = vmatpush.bf16.msra.mxu0 %v2664
        %3024 = vmatmul.bf16.gmra.mxu0 %v2948
        %v3025 = vpop.f32.mrf.mxu0
        %v3026 = vadd.f32 %v3013, %v3025
        %v3027 = vpop.f32.mrf.mxu0
        %3028 = vdwg.mxu0
        %3029 = vmatpush.bf16.msra.mxu0 %v2784
        %3030 = vmatpush.bf16.msra.mxu0 %v2776
        %3031 = vmatpush.bf16.msra.mxu0 %v2768
        %3032 = vmatpush.bf16.msra.mxu0 %v2760
        %3033 = vmatpush.bf16.msra.mxu0 %v2752
        %3034 = vmatpush.bf16.msra.mxu0 %v2744
        %3035 = vmatpush.bf16.msra.mxu0 %v2736
        %3036 = vmatpush.bf16.msra.mxu0 %v2728
        %3037 = vmatmul.bf16.gmra.mxu0 %v2949
        %v3038 = vpop.f32.mrf.mxu0
        %v3039 = vadd.f32 %v3026, %v3038
        %v3040 = vpop.f32.mrf.mxu0
        %3041 = vdwg.mxu0
        %3042 = vmatpush.bf16.msra.mxu0 %v2848
        %3043 = vmatpush.bf16.msra.mxu0 %v2840
        %3044 = vmatpush.bf16.msra.mxu0 %v2832
        %3045 = vmatpush.bf16.msra.mxu0 %v2824
        %3046 = vmatpush.bf16.msra.mxu0 %v2816
        %3047 = vmatpush.bf16.msra.mxu0 %v2808
        %3048 = vmatpush.bf16.msra.mxu0 %v2800
        %3049 = vmatpush.bf16.msra.mxu0 %v2792
        %3050 = vmatmul.bf16.gmra.mxu0 %v2950
        %v3051 = vpop.f32.mrf.mxu0
        %v3052 = vadd.f32 %v3039, %v3051
        %v3053 = vpop.f32.mrf.mxu0
        %3054 = vdwg.mxu0
        %3055 = vmatpush.bf16.msra.mxu0 %v2657
        %3056 = vmatpush.bf16.msra.mxu0 %v2649
        %3057 = vmatpush.bf16.msra.mxu0 %v2641
        %3058 = vmatpush.bf16.msra.mxu0 %v2633
        %3059 = vmatpush.bf16.msra.mxu0 %v2625
        %3060 = vmatpush.bf16.msra.mxu0 %v2617
        %3061 = vmatpush.bf16.msra.mxu0 %v2609
        %3062 = vmatpush.bf16.msra.mxu0 %v2601
        %3063 = vmatmul.bf16.gmra.mxu0 %v2947
        %v3064 = vpop.f32.mrf.mxu0
        %v3065 = vadd.f32 0.0, %v3064
        %v3066 = vpop.f32.mrf.mxu0
        %3067 = vdwg.mxu0
        %3068 = vmatpush.bf16.msra.mxu0 %v2721
        %3069 = vmatpush.bf16.msra.mxu0 %v2713
        %3070 = vmatpush.bf16.msra.mxu0 %v2705
        %3071 = vmatpush.bf16.msra.mxu0 %v2697
        %3072 = vmatpush.bf16.msra.mxu0 %v2689
        %3073 = vmatpush.bf16.msra.mxu0 %v2681
        %3074 = vmatpush.bf16.msra.mxu0 %v2673
        %3075 = vmatpush.bf16.msra.mxu0 %v2665
        %3076 = vmatmul.bf16.gmra.mxu0 %v2948
        %v3077 = vpop.f32.mrf.mxu0
        %v3078 = vadd.f32 %v3065, %v3077
        %v3079 = vpop.f32.mrf.mxu0
        %3080 = vdwg.mxu0
        %3081 = vmatpush.bf16.msra.mxu0 %v2785
        %3082 = vmatpush.bf16.msra.mxu0 %v2777
        %3083 = vmatpush.bf16.msra.mxu0 %v2769
        %3084 = vmatpush.bf16.msra.mxu0 %v2761
        %3085 = vmatpush.bf16.msra.mxu0 %v2753
        %3086 = vmatpush.bf16.msra.mxu0 %v2745
        %3087 = vmatpush.bf16.msra.mxu0 %v2737
        %3088 = vmatpush.bf16.msra.mxu0 %v2729
        %3089 = vmatmul.bf16.gmra.mxu0 %v2949
        %v3090 = vpop.f32.mrf.mxu0
        %v3091 = vadd.f32 %v3078, %v3090
        %v3092 = vpop.f32.mrf.mxu0
        %3093 = vdwg.mxu0
        %3094 = vmatpush.bf16.msra.mxu0 %v2849
        %3095 = vmatpush.bf16.msra.mxu0 %v2841
        %3096 = vmatpush.bf16.msra.mxu0 %v2833
        %3097 = vmatpush.bf16.msra.mxu0 %v2825
        %3098 = vmatpush.bf16.msra.mxu0 %v2817
        %3099 = vmatpush.bf16.msra.mxu0 %v2809
        %3100 = vmatpush.bf16.msra.mxu0 %v2801
        %3101 = vmatpush.bf16.msra.mxu0 %v2793
        %3102 = vmatmul.bf16.gmra.mxu0 %v2950
        %v3103 = vpop.f32.mrf.mxu0
        %v3104 = vadd.f32 %v3091, %v3103
        %v3105 = vpop.f32.mrf.mxu0
        %3106 = vdwg.mxu0
        %3107 = vmatpush.bf16.msra.mxu0 %v2658
        %3108 = vmatpush.bf16.msra.mxu0 %v2650
        %3109 = vmatpush.bf16.msra.mxu0 %v2642
        %3110 = vmatpush.bf16.msra.mxu0 %v2634
        %3111 = vmatpush.bf16.msra.mxu0 %v2626
        %3112 = vmatpush.bf16.msra.mxu0 %v2618
        %3113 = vmatpush.bf16.msra.mxu0 %v2610
        %3114 = vmatpush.bf16.msra.mxu0 %v2602
        %3115 = vmatmul.bf16.gmra.mxu0 %v2947
        %v3116 = vpop.f32.mrf.mxu0
        %v3117 = vadd.f32 0.0, %v3116
        %v3118 = vpop.f32.mrf.mxu0
        %3119 = vdwg.mxu0
        %3120 = vmatpush.bf16.msra.mxu0 %v2722
        %3121 = vmatpush.bf16.msra.mxu0 %v2714
        %3122 = vmatpush.bf16.msra.mxu0 %v2706
        %3123 = vmatpush.bf16.msra.mxu0 %v2698
        %3124 = vmatpush.bf16.msra.mxu0 %v2690
        %3125 = vmatpush.bf16.msra.mxu0 %v2682
        %3126 = vmatpush.bf16.msra.mxu0 %v2674
        %3127 = vmatpush.bf16.msra.mxu0 %v2666
        %3128 = vmatmul.bf16.gmra.mxu0 %v2948
        %v3129 = vpop.f32.mrf.mxu0
        %v3130 = vadd.f32 %v3117, %v3129
        %v3131 = vpop.f32.mrf.mxu0
        %3132 = vdwg.mxu0
        %3133 = vmatpush.bf16.msra.mxu0 %v2786
        %3134 = vmatpush.bf16.msra.mxu0 %v2778
        %3135 = vmatpush.bf16.msra.mxu0 %v2770
        %3136 = vmatpush.bf16.msra.mxu0 %v2762
        %3137 = vmatpush.bf16.msra.mxu0 %v2754
        %3138 = vmatpush.bf16.msra.mxu0 %v2746
        %3139 = vmatpush.bf16.msra.mxu0 %v2738
        %3140 = vmatpush.bf16.msra.mxu0 %v2730
        %3141 = vmatmul.bf16.gmra.mxu0 %v2949
        %v3142 = vpop.f32.mrf.mxu0
        %v3143 = vadd.f32 %v3130, %v3142
        %v3144 = vpop.f32.mrf.mxu0
        %3145 = vdwg.mxu0
        %3146 = vmatpush.bf16.msra.mxu0 %v2850
        %3147 = vmatpush.bf16.msra.mxu0 %v2842
        %3148 = vmatpush.bf16.msra.mxu0 %v2834
        %3149 = vmatpush.bf16.msra.mxu0 %v2826
        %3150 = vmatpush.bf16.msra.mxu0 %v2818
        %3151 = vmatpush.bf16.msra.mxu0 %v2810
        %3152 = vmatpush.bf16.msra.mxu0 %v2802
        %3153 = vmatpush.bf16.msra.mxu0 %v2794
        %3154 = vmatmul.bf16.gmra.mxu0 %v2950
        %v3155 = vpop.f32.mrf.mxu0
        %v3156 = vadd.f32 %v3143, %v3155
        %v3157 = vpop.f32.mrf.mxu0
        %3158 = vdwg.mxu0
        %3159 = vmatpush.bf16.msra.mxu0 %v2659
        %3160 = vmatpush.bf16.msra.mxu0 %v2651
        %3161 = vmatpush.bf16.msra.mxu0 %v2643
        %3162 = vmatpush.bf16.msra.mxu0 %v2635
        %3163 = vmatpush.bf16.msra.mxu0 %v2627
        %3164 = vmatpush.bf16.msra.mxu0 %v2619
        %3165 = vmatpush.bf16.msra.mxu0 %v2611
        %3166 = vmatpush.bf16.msra.mxu0 %v2603
        %3167 = vmatmul.bf16.gmra.mxu0 %v2947
        %v3168 = vpop.f32.mrf.mxu0
        %v3169 = vadd.f32 0.0, %v3168
        %v3170 = vpop.f32.mrf.mxu0
        %3171 = vdwg.mxu0
        %3172 = vmatpush.bf16.msra.mxu0 %v2723
        %3173 = vmatpush.bf16.msra.mxu0 %v2715
        %3174 = vmatpush.bf16.msra.mxu0 %v2707
        %3175 = vmatpush.bf16.msra.mxu0 %v2699
        %3176 = vmatpush.bf16.msra.mxu0 %v2691
        %3177 = vmatpush.bf16.msra.mxu0 %v2683
        %3178 = vmatpush.bf16.msra.mxu0 %v2675
        %3179 = vmatpush.bf16.msra.mxu0 %v2667
        %3180 = vmatmul.bf16.gmra.mxu0 %v2948
        %v3181 = vpop.f32.mrf.mxu0
        %v3182 = vadd.f32 %v3169, %v3181
        %v3183 = vpop.f32.mrf.mxu0
        %3184 = vdwg.mxu0
        %3185 = vmatpush.bf16.msra.mxu0 %v2787
        %3186 = vmatpush.bf16.msra.mxu0 %v2779
        %3187 = vmatpush.bf16.msra.mxu0 %v2771
        %3188 = vmatpush.bf16.msra.mxu0 %v2763
        %3189 = vmatpush.bf16.msra.mxu0 %v2755
        %3190 = vmatpush.bf16.msra.mxu0 %v2747
        %3191 = vmatpush.bf16.msra.mxu0 %v2739
        %3192 = vmatpush.bf16.msra.mxu0 %v2731
        %3193 = vmatmul.bf16.gmra.mxu0 %v2949
        %v3194 = vpop.f32.mrf.mxu0
        %v3195 = vadd.f32 %v3182, %v3194
        %v3196 = vpop.f32.mrf.mxu0
        %3197 = vdwg.mxu0
        %3198 = vmatpush.bf16.msra.mxu0 %v2851
        %3199 = vmatpush.bf16.msra.mxu0 %v2843
        %3200 = vmatpush.bf16.msra.mxu0 %v2835
        %3201 = vmatpush.bf16.msra.mxu0 %v2827
        %3202 = vmatpush.bf16.msra.mxu0 %v2819
        %3203 = vmatpush.bf16.msra.mxu0 %v2811
        %3204 = vmatpush.bf16.msra.mxu0 %v2803
        %3205 = vmatpush.bf16.msra.mxu0 %v2795
        %3206 = vmatmul.bf16.gmra.mxu0 %v2950
        %v3207 = vpop.f32.mrf.mxu0
        %v3208 = vadd.f32 %v3195, %v3207
        %v3209 = vpop.f32.mrf.mxu0
        %3210 = vdwg.mxu0
        %3211 = vmatpush.bf16.msra.mxu0 %v2660
        %3212 = vmatpush.bf16.msra.mxu0 %v2652
        %3213 = vmatpush.bf16.msra.mxu0 %v2644
        %3214 = vmatpush.bf16.msra.mxu0 %v2636
        %3215 = vmatpush.bf16.msra.mxu0 %v2628
        %3216 = vmatpush.bf16.msra.mxu0 %v2620
        %3217 = vmatpush.bf16.msra.mxu0 %v2612
        %3218 = vmatpush.bf16.msra.mxu0 %v2604
        %3219 = vmatmul.bf16.gmra.mxu0 %v2947
        %v3220 = vpop.f32.mrf.mxu0
        %v3221 = vadd.f32 0.0, %v3220
        %v3222 = vpop.f32.mrf.mxu0
        %3223 = vdwg.mxu0
        %3224 = vmatpush.bf16.msra.mxu0 %v2724
        %3225 = vmatpush.bf16.msra.mxu0 %v2716
        %3226 = vmatpush.bf16.msra.mxu0 %v2708
        %3227 = vmatpush.bf16.msra.mxu0 %v2700
        %3228 = vmatpush.bf16.msra.mxu0 %v2692
        %3229 = vmatpush.bf16.msra.mxu0 %v2684
        %3230 = vmatpush.bf16.msra.mxu0 %v2676
        %3231 = vmatpush.bf16.msra.mxu0 %v2668
        %3232 = vmatmul.bf16.gmra.mxu0 %v2948
        %v3233 = vpop.f32.mrf.mxu0
        %v3234 = vadd.f32 %v3221, %v3233
        %v3235 = vpop.f32.mrf.mxu0
        %3236 = vdwg.mxu0
        %3237 = vmatpush.bf16.msra.mxu0 %v2788
        %3238 = vmatpush.bf16.msra.mxu0 %v2780
        %3239 = vmatpush.bf16.msra.mxu0 %v2772
        %3240 = vmatpush.bf16.msra.mxu0 %v2764
        %3241 = vmatpush.bf16.msra.mxu0 %v2756
        %3242 = vmatpush.bf16.msra.mxu0 %v2748
        %3243 = vmatpush.bf16.msra.mxu0 %v2740
        %3244 = vmatpush.bf16.msra.mxu0 %v2732
        %3245 = vmatmul.bf16.gmra.mxu0 %v2949
        %v3246 = vpop.f32.mrf.mxu0
        %v3247 = vadd.f32 %v3234, %v3246
        %v3248 = vpop.f32.mrf.mxu0
        %3249 = vdwg.mxu0
        %3250 = vmatpush.bf16.msra.mxu0 %v2852
        %3251 = vmatpush.bf16.msra.mxu0 %v2844
        %3252 = vmatpush.bf16.msra.mxu0 %v2836
        %3253 = vmatpush.bf16.msra.mxu0 %v2828
        %3254 = vmatpush.bf16.msra.mxu0 %v2820
        %3255 = vmatpush.bf16.msra.mxu0 %v2812
        %3256 = vmatpush.bf16.msra.mxu0 %v2804
        %3257 = vmatpush.bf16.msra.mxu0 %v2796
        %3258 = vmatmul.bf16.gmra.mxu0 %v2950
        %v3259 = vpop.f32.mrf.mxu0
        %v3260 = vadd.f32 %v3247, %v3259
        %v3261 = vpop.f32.mrf.mxu0
        %3262 = vdwg.mxu0
        %3263 = vmatpush.bf16.msra.mxu0 %v2661
        %3264 = vmatpush.bf16.msra.mxu0 %v2653
        %3265 = vmatpush.bf16.msra.mxu0 %v2645
        %3266 = vmatpush.bf16.msra.mxu0 %v2637
        %3267 = vmatpush.bf16.msra.mxu0 %v2629
        %3268 = vmatpush.bf16.msra.mxu0 %v2621
        %3269 = vmatpush.bf16.msra.mxu0 %v2613
        %3270 = vmatpush.bf16.msra.mxu0 %v2605
        %3271 = vmatmul.bf16.gmra.mxu0 %v2947
        %v3272 = vpop.f32.mrf.mxu0
        %v3273 = vadd.f32 0.0, %v3272
        %v3274 = vpop.f32.mrf.mxu0
        %3275 = vdwg.mxu0
        %3276 = vmatpush.bf16.msra.mxu0 %v2725
        %3277 = vmatpush.bf16.msra.mxu0 %v2717
        %3278 = vmatpush.bf16.msra.mxu0 %v2709
        %3279 = vmatpush.bf16.msra.mxu0 %v2701
        %3280 = vmatpush.bf16.msra.mxu0 %v2693
        %3281 = vmatpush.bf16.msra.mxu0 %v2685
        %3282 = vmatpush.bf16.msra.mxu0 %v2677
        %3283 = vmatpush.bf16.msra.mxu0 %v2669
        %3284 = vmatmul.bf16.gmra.mxu0 %v2948
        %v3285 = vpop.f32.mrf.mxu0
        %v3286 = vadd.f32 %v3273, %v3285
        %v3287 = vpop.f32.mrf.mxu0
        %3288 = vdwg.mxu0
        %3289 = vmatpush.bf16.msra.mxu0 %v2789
        %3290 = vmatpush.bf16.msra.mxu0 %v2781
        %3291 = vmatpush.bf16.msra.mxu0 %v2773
        %3292 = vmatpush.bf16.msra.mxu0 %v2765
        %3293 = vmatpush.bf16.msra.mxu0 %v2757
        %3294 = vmatpush.bf16.msra.mxu0 %v2749
        %3295 = vmatpush.bf16.msra.mxu0 %v2741
        %3296 = vmatpush.bf16.msra.mxu0 %v2733
        %3297 = vmatmul.bf16.gmra.mxu0 %v2949
        %v3298 = vpop.f32.mrf.mxu0
        %v3299 = vadd.f32 %v3286, %v3298
        %v3300 = vpop.f32.mrf.mxu0
        %3301 = vdwg.mxu0
        %3302 = vmatpush.bf16.msra.mxu0 %v2853
        %3303 = vmatpush.bf16.msra.mxu0 %v2845
        %3304 = vmatpush.bf16.msra.mxu0 %v2837
        %3305 = vmatpush.bf16.msra.mxu0 %v2829
        %3306 = vmatpush.bf16.msra.mxu0 %v2821
        %3307 = vmatpush.bf16.msra.mxu0 %v2813
        %3308 = vmatpush.bf16.msra.mxu0 %v2805
        %3309 = vmatpush.bf16.msra.mxu0 %v2797
        %3310 = vmatmul.bf16.gmra.mxu0 %v2950
        %v3311 = vpop.f32.mrf.mxu0
        %v3312 = vadd.f32 %v3299, %v3311
        %v3313 = vpop.f32.mrf.mxu0
        %3314 = vdwg.mxu0
        %3315 = vmatpush.bf16.msra.mxu0 %v2662
        %3316 = vmatpush.bf16.msra.mxu0 %v2654
        %3317 = vmatpush.bf16.msra.mxu0 %v2646
        %3318 = vmatpush.bf16.msra.mxu0 %v2638
        %3319 = vmatpush.bf16.msra.mxu0 %v2630
        %3320 = vmatpush.bf16.msra.mxu0 %v2622
        %3321 = vmatpush.bf16.msra.mxu0 %v2614
        %3322 = vmatpush.bf16.msra.mxu0 %v2606
        %3323 = vmatmul.bf16.gmra.mxu0 %v2947
        %v3324 = vpop.f32.mrf.mxu0
        %v3325 = vadd.f32 0.0, %v3324
        %v3326 = vpop.f32.mrf.mxu0
        %3327 = vdwg.mxu0
        %3328 = vmatpush.bf16.msra.mxu0 %v2726
        %3329 = vmatpush.bf16.msra.mxu0 %v2718
        %3330 = vmatpush.bf16.msra.mxu0 %v2710
        %3331 = vmatpush.bf16.msra.mxu0 %v2702
        %3332 = vmatpush.bf16.msra.mxu0 %v2694
        %3333 = vmatpush.bf16.msra.mxu0 %v2686
        %3334 = vmatpush.bf16.msra.mxu0 %v2678
        %3335 = vmatpush.bf16.msra.mxu0 %v2670
        %3336 = vmatmul.bf16.gmra.mxu0 %v2948
        %v3337 = vpop.f32.mrf.mxu0
        %v3338 = vadd.f32 %v3325, %v3337
        %v3339 = vpop.f32.mrf.mxu0
        %3340 = vdwg.mxu0
        %3341 = vmatpush.bf16.msra.mxu0 %v2790
        %3342 = vmatpush.bf16.msra.mxu0 %v2782
        %3343 = vmatpush.bf16.msra.mxu0 %v2774
        %3344 = vmatpush.bf16.msra.mxu0 %v2766
        %3345 = vmatpush.bf16.msra.mxu0 %v2758
        %3346 = vmatpush.bf16.msra.mxu0 %v2750
        %3347 = vmatpush.bf16.msra.mxu0 %v2742
        %3348 = vmatpush.bf16.msra.mxu0 %v2734
        %3349 = vmatmul.bf16.gmra.mxu0 %v2949
        %v3350 = vpop.f32.mrf.mxu0
        %v3351 = vadd.f32 %v3338, %v3350
        %v3352 = vpop.f32.mrf.mxu0
        %3353 = vdwg.mxu0
        %3354 = vmatpush.bf16.msra.mxu0 %v2854
        %3355 = vmatpush.bf16.msra.mxu0 %v2846
        %3356 = vmatpush.bf16.msra.mxu0 %v2838
        %3357 = vmatpush.bf16.msra.mxu0 %v2830
        %3358 = vmatpush.bf16.msra.mxu0 %v2822
        %3359 = vmatpush.bf16.msra.mxu0 %v2814
        %3360 = vmatpush.bf16.msra.mxu0 %v2806
        %3361 = vmatpush.bf16.msra.mxu0 %v2798
        %3362 = vmatmul.bf16.gmra.mxu0 %v2950
        %v3363 = vpop.f32.mrf.mxu0
        %v3364 = vadd.f32 %v3351, %v3363
        %v3365 = vpop.f32.mrf.mxu0
        %3366 = vdwg.mxu0
        %v3375 = vrot.slane %v3052, 6
        %v3376 = vrot.slane %v3104, 4
        %v3377 = vrot.slane %v3156, 2
        %v3378 = vrot.slane %v3260, 6
        %v3379 = vrot.slane %v3312, 4
        %v3380 = vrot.slane %v3364, 2
        %vm3381 = vcmask 1041408
        %v3382 = vsel %vm3381, %v3000, %v3375
        %vm3383 = vcmask 1045508
        %v3384 = vsel %vm3383, %v3376, %v3377
        %vm3385 = vcmask 1043456
        %v3386 = vsel %vm3385, %v3382, %v3384
        %v3387 = vsel %vm3381, %v3208, %v3378
        %v3388 = vsel %vm3383, %v3379, %v3380
        %v3389 = vsel %vm3385, %v3387, %v3388
        %v3392 = vadd.f32 %v2855, %v3386
        %v3393 = vadd.f32 %v2856, %v3389
        %3394 = vst [vmem:[#allocation2] sm:$0xff] %v3392
        %3395 = vst [vmem:[#allocation2 + $0x8] sm:$0xff] %v3393
        %v3396 = vld [vmem:[%s1234 + $0x400] sm:$0xff]
        %v3397 = vld [vmem:[%s1234 + $0x408] sm:$0xff]
        %v3398 = vld [vmem:[%s1234 + $0x410] sm:$0xff]
        %v3399 = vld [vmem:[%s1234 + $0x418] sm:$0xff]
        %v3400 = vld [vmem:[%s1234 + $0x420] sm:$0xff]
        %v3401 = vld [vmem:[%s1234 + $0x428] sm:$0xff]
        %v3402 = vld [vmem:[%s1234 + $0x430] sm:$0xff]
        %v3403 = vld [vmem:[%s1234 + $0x438] sm:$0xff]
        %v3404 = vld [vmem:[%s1234 + $0x440] sm:$0xff]
        %v3405 = vld [vmem:[%s1234 + $0x448] sm:$0xff]
        %v3406 = vld [vmem:[%s1234 + $0x450] sm:$0xff]
        %v3407 = vld [vmem:[%s1234 + $0x458] sm:$0xff]
        %v3408 = vld [vmem:[%s1234 + $0x460] sm:$0xff]
        %v3409 = vld [vmem:[%s1234 + $0x468] sm:$0xff]
        %v3410 = vld [vmem:[%s1234 + $0x470] sm:$0xff]
        %v3411 = vld [vmem:[%s1234 + $0x478] sm:$0xff]
        %v3412 = vld [vmem:[%s1234 + $0x480] sm:$0xff]
        %v3413 = vld [vmem:[%s1234 + $0x488] sm:$0xff]
        %v3414 = vld [vmem:[%s1234 + $0x490] sm:$0xff]
        %v3415 = vld [vmem:[%s1234 + $0x498] sm:$0xff]
        %v3416 = vld [vmem:[%s1234 + $0x4a0] sm:$0xff]
        %v3417 = vld [vmem:[%s1234 + $0x4a8] sm:$0xff]
        %v3418 = vld [vmem:[%s1234 + $0x4b0] sm:$0xff]
        %v3419 = vld [vmem:[%s1234 + $0x4b8] sm:$0xff]
        %v3420 = vld [vmem:[%s1234 + $0x4c0] sm:$0xff]
        %v3421 = vld [vmem:[%s1234 + $0x4c8] sm:$0xff]
        %v3422 = vld [vmem:[%s1234 + $0x4d0] sm:$0xff]
        %v3423 = vld [vmem:[%s1234 + $0x4d8] sm:$0xff]
        %v3424 = vld [vmem:[%s1234 + $0x4e0] sm:$0xff]
        %v3425 = vld [vmem:[%s1234 + $0x4e8] sm:$0xff]
        %v3426 = vld [vmem:[%s1234 + $0x4f0] sm:$0xff]
        %v3427 = vld [vmem:[%s1234 + $0x4f8] sm:$0xff]
        %v3428 = vld [vmem:[%s1234 + $0x500] sm:$0xff]
        %v3429 = vld [vmem:[%s1234 + $0x508] sm:$0xff]
        %v3430 = vld [vmem:[%s1234 + $0x510] sm:$0xff]
        %v3431 = vld [vmem:[%s1234 + $0x518] sm:$0xff]
        %v3432 = vld [vmem:[%s1234 + $0x520] sm:$0xff]
        %v3433 = vld [vmem:[%s1234 + $0x528] sm:$0xff]
        %v3434 = vld [vmem:[%s1234 + $0x530] sm:$0xff]
        %v3435 = vld [vmem:[%s1234 + $0x538] sm:$0xff]
        %v3436 = vld [vmem:[%s1234 + $0x540] sm:$0xff]
        %v3437 = vld [vmem:[%s1234 + $0x548] sm:$0xff]
        %v3438 = vld [vmem:[%s1234 + $0x550] sm:$0xff]
        %v3439 = vld [vmem:[%s1234 + $0x558] sm:$0xff]
        %v3440 = vld [vmem:[%s1234 + $0x560] sm:$0xff]
        %v3441 = vld [vmem:[%s1234 + $0x568] sm:$0xff]
        %v3442 = vld [vmem:[%s1234 + $0x570] sm:$0xff]
        %v3443 = vld [vmem:[%s1234 + $0x578] sm:$0xff]
        %v3444 = vld [vmem:[%s1234 + $0x580] sm:$0xff]
        %v3445 = vld [vmem:[%s1234 + $0x588] sm:$0xff]
        %v3446 = vld [vmem:[%s1234 + $0x590] sm:$0xff]
        %v3447 = vld [vmem:[%s1234 + $0x598] sm:$0xff]
        %v3448 = vld [vmem:[%s1234 + $0x5a0] sm:$0xff]
        %v3449 = vld [vmem:[%s1234 + $0x5a8] sm:$0xff]
        %v3450 = vld [vmem:[%s1234 + $0x5b0] sm:$0xff]
        %v3451 = vld [vmem:[%s1234 + $0x5b8] sm:$0xff]
        %v3452 = vld [vmem:[%s1234 + $0x5c0] sm:$0xff]
        %v3453 = vld [vmem:[%s1234 + $0x5c8] sm:$0xff]
        %v3454 = vld [vmem:[%s1234 + $0x5d0] sm:$0xff]
        %v3455 = vld [vmem:[%s1234 + $0x5d8] sm:$0xff]
        %v3456 = vld [vmem:[%s1234 + $0x5e0] sm:$0xff]
        %v3457 = vld [vmem:[%s1234 + $0x5e8] sm:$0xff]
        %v3458 = vld [vmem:[%s1234 + $0x5f0] sm:$0xff]
        %v3459 = vld [vmem:[%s1234 + $0x5f8] sm:$0xff]
        %v3460 = vld [vmem:[%s1234 + $0x600] sm:$0xff]
        %v3461 = vld [vmem:[%s1234 + $0x608] sm:$0xff]
        %v3462 = vld [vmem:[%s1234 + $0x610] sm:$0xff]
        %v3463 = vld [vmem:[%s1234 + $0x618] sm:$0xff]
        %v3464 = vld [vmem:[%s1234 + $0x620] sm:$0xff]
        %v3465 = vld [vmem:[%s1234 + $0x628] sm:$0xff]
        %v3466 = vld [vmem:[%s1234 + $0x630] sm:$0xff]
        %v3467 = vld [vmem:[%s1234 + $0x638] sm:$0xff]
        %v3468 = vld [vmem:[%s1234 + $0x640] sm:$0xff]
        %v3469 = vld [vmem:[%s1234 + $0x648] sm:$0xff]
        %v3470 = vld [vmem:[%s1234 + $0x650] sm:$0xff]
        %v3471 = vld [vmem:[%s1234 + $0x658] sm:$0xff]
        %v3472 = vld [vmem:[%s1234 + $0x660] sm:$0xff]
        %v3473 = vld [vmem:[%s1234 + $0x668] sm:$0xff]
        %v3474 = vld [vmem:[%s1234 + $0x670] sm:$0xff]
        %v3475 = vld [vmem:[%s1234 + $0x678] sm:$0xff]
        %v3476 = vld [vmem:[%s1234 + $0x680] sm:$0xff]
        %v3477 = vld [vmem:[%s1234 + $0x688] sm:$0xff]
        %v3478 = vld [vmem:[%s1234 + $0x690] sm:$0xff]
        %v3479 = vld [vmem:[%s1234 + $0x698] sm:$0xff]
        %v3480 = vld [vmem:[%s1234 + $0x6a0] sm:$0xff]
        %v3481 = vld [vmem:[%s1234 + $0x6a8] sm:$0xff]
        %v3482 = vld [vmem:[%s1234 + $0x6b0] sm:$0xff]
        %v3483 = vld [vmem:[%s1234 + $0x6b8] sm:$0xff]
        %v3484 = vld [vmem:[%s1234 + $0x6c0] sm:$0xff]
        %v3485 = vld [vmem:[%s1234 + $0x6c8] sm:$0xff]
        %v3486 = vld [vmem:[%s1234 + $0x6d0] sm:$0xff]
        %v3487 = vld [vmem:[%s1234 + $0x6d8] sm:$0xff]
        %v3488 = vld [vmem:[%s1234 + $0x6e0] sm:$0xff]
        %v3489 = vld [vmem:[%s1234 + $0x6e8] sm:$0xff]
        %v3490 = vld [vmem:[%s1234 + $0x6f0] sm:$0xff]
        %v3491 = vld [vmem:[%s1234 + $0x6f8] sm:$0xff]
        %v3492 = vld [vmem:[%s1234 + $0x700] sm:$0xff]
        %v3493 = vld [vmem:[%s1234 + $0x708] sm:$0xff]
        %v3494 = vld [vmem:[%s1234 + $0x710] sm:$0xff]
        %v3495 = vld [vmem:[%s1234 + $0x718] sm:$0xff]
        %v3496 = vld [vmem:[%s1234 + $0x720] sm:$0xff]
        %v3497 = vld [vmem:[%s1234 + $0x728] sm:$0xff]
        %v3498 = vld [vmem:[%s1234 + $0x730] sm:$0xff]
        %v3499 = vld [vmem:[%s1234 + $0x738] sm:$0xff]
        %v3500 = vld [vmem:[%s1234 + $0x740] sm:$0xff]
        %v3501 = vld [vmem:[%s1234 + $0x748] sm:$0xff]
        %v3502 = vld [vmem:[%s1234 + $0x750] sm:$0xff]
        %v3503 = vld [vmem:[%s1234 + $0x758] sm:$0xff]
        %v3504 = vld [vmem:[%s1234 + $0x760] sm:$0xff]
        %v3505 = vld [vmem:[%s1234 + $0x768] sm:$0xff]
        %v3506 = vld [vmem:[%s1234 + $0x770] sm:$0xff]
        %v3507 = vld [vmem:[%s1234 + $0x778] sm:$0xff]
        %v3508 = vld [vmem:[%s1234 + $0x780] sm:$0xff]
        %v3509 = vld [vmem:[%s1234 + $0x788] sm:$0xff]
        %v3510 = vld [vmem:[%s1234 + $0x790] sm:$0xff]
        %v3511 = vld [vmem:[%s1234 + $0x798] sm:$0xff]
        %v3512 = vld [vmem:[%s1234 + $0x7a0] sm:$0xff]
        %v3513 = vld [vmem:[%s1234 + $0x7a8] sm:$0xff]
        %v3514 = vld [vmem:[%s1234 + $0x7b0] sm:$0xff]
        %v3515 = vld [vmem:[%s1234 + $0x7b8] sm:$0xff]
        %v3516 = vld [vmem:[%s1234 + $0x7c0] sm:$0xff]
        %v3517 = vld [vmem:[%s1234 + $0x7c8] sm:$0xff]
        %v3518 = vld [vmem:[%s1234 + $0x7d0] sm:$0xff]
        %v3519 = vld [vmem:[%s1234 + $0x7d8] sm:$0xff]
        %v3520 = vld [vmem:[%s1234 + $0x7e0] sm:$0xff]
        %v3521 = vld [vmem:[%s1234 + $0x7e8] sm:$0xff]
        %v3522 = vld [vmem:[%s1234 + $0x7f0] sm:$0xff]
        %v3523 = vld [vmem:[%s1234 + $0x7f8] sm:$0xff]
        %v3524 = vunpack.c.0.s8 %v3396
        %v3525 = vunpack.c.0.s8 %v3397
        %v3526 = vunpack.c.0.s8 %v3398
        %v3527 = vunpack.c.0.s8 %v3399
        %v3528 = vunpack.c.0.s8 %v3400
        %v3529 = vunpack.c.0.s8 %v3401
        %v3530 = vunpack.c.0.s8 %v3402
        %v3531 = vunpack.c.0.s8 %v3403
        %v3532 = vunpack.c.1.s8 %v3396
        %v3533 = vunpack.c.1.s8 %v3397
        %v3534 = vunpack.c.1.s8 %v3398
        %v3535 = vunpack.c.1.s8 %v3399
        %v3536 = vunpack.c.1.s8 %v3400
        %v3537 = vunpack.c.1.s8 %v3401
        %v3538 = vunpack.c.1.s8 %v3402
        %v3539 = vunpack.c.1.s8 %v3403
        %v3540 = vunpack.c.2.s8 %v3396
        %v3541 = vunpack.c.2.s8 %v3397
        %v3542 = vunpack.c.2.s8 %v3398
        %v3543 = vunpack.c.2.s8 %v3399
        %v3544 = vunpack.c.2.s8 %v3400
        %v3545 = vunpack.c.2.s8 %v3401
        %v3546 = vunpack.c.2.s8 %v3402
        %v3547 = vunpack.c.2.s8 %v3403
        %v3548 = vunpack.c.3.s8 %v3396
        %v3549 = vunpack.c.3.s8 %v3397
        %v3550 = vunpack.c.3.s8 %v3398
        %v3551 = vunpack.c.3.s8 %v3399
        %v3552 = vunpack.c.3.s8 %v3400
        %v3553 = vunpack.c.3.s8 %v3401
        %v3554 = vunpack.c.3.s8 %v3402
        %v3555 = vunpack.c.3.s8 %v3403
        %v3556 = vunpack.c.0.s8 %v3404
        %v3557 = vunpack.c.0.s8 %v3405
        %v3558 = vunpack.c.0.s8 %v3406
        %v3559 = vunpack.c.0.s8 %v3407
        %v3560 = vunpack.c.0.s8 %v3408
        %v3561 = vunpack.c.0.s8 %v3409
        %v3562 = vunpack.c.0.s8 %v3410
        %v3563 = vunpack.c.0.s8 %v3411
        %v3564 = vunpack.c.1.s8 %v3404
        %v3565 = vunpack.c.1.s8 %v3405
        %v3566 = vunpack.c.1.s8 %v3406
        %v3567 = vunpack.c.1.s8 %v3407
        %v3568 = vunpack.c.1.s8 %v3408
        %v3569 = vunpack.c.1.s8 %v3409
        %v3570 = vunpack.c.1.s8 %v3410
        %v3571 = vunpack.c.1.s8 %v3411
        %v3572 = vunpack.c.2.s8 %v3404
        %v3573 = vunpack.c.2.s8 %v3405
        %v3574 = vunpack.c.2.s8 %v3406
        %v3575 = vunpack.c.2.s8 %v3407
        %v3576 = vunpack.c.2.s8 %v3408
        %v3577 = vunpack.c.2.s8 %v3409
        %v3578 = vunpack.c.2.s8 %v3410
        %v3579 = vunpack.c.2.s8 %v3411
        %v3580 = vunpack.c.3.s8 %v3404
        %v3581 = vunpack.c.3.s8 %v3405
        %v3582 = vunpack.c.3.s8 %v3406
        %v3583 = vunpack.c.3.s8 %v3407
        %v3584 = vunpack.c.3.s8 %v3408
        %v3585 = vunpack.c.3.s8 %v3409
        %v3586 = vunpack.c.3.s8 %v3410
        %v3587 = vunpack.c.3.s8 %v3411
        %v3588 = vunpack.c.0.s8 %v3412
        %v3589 = vunpack.c.0.s8 %v3413
        %v3590 = vunpack.c.0.s8 %v3414
        %v3591 = vunpack.c.0.s8 %v3415
        %v3592 = vunpack.c.0.s8 %v3416
        %v3593 = vunpack.c.0.s8 %v3417
        %v3594 = vunpack.c.0.s8 %v3418
        %v3595 = vunpack.c.0.s8 %v3419
        %v3596 = vunpack.c.1.s8 %v3412
        %v3597 = vunpack.c.1.s8 %v3413
        %v3598 = vunpack.c.1.s8 %v3414
        %v3599 = vunpack.c.1.s8 %v3415
        %v3600 = vunpack.c.1.s8 %v3416
        %v3601 = vunpack.c.1.s8 %v3417
        %v3602 = vunpack.c.1.s8 %v3418
        %v3603 = vunpack.c.1.s8 %v3419
        %v3604 = vunpack.c.2.s8 %v3412
        %v3605 = vunpack.c.2.s8 %v3413
        %v3606 = vunpack.c.2.s8 %v3414
        %v3607 = vunpack.c.2.s8 %v3415
        %v3608 = vunpack.c.2.s8 %v3416
        %v3609 = vunpack.c.2.s8 %v3417
        %v3610 = vunpack.c.2.s8 %v3418
        %v3611 = vunpack.c.2.s8 %v3419
        %v3612 = vunpack.c.3.s8 %v3412
        %v3613 = vunpack.c.3.s8 %v3413
        %v3614 = vunpack.c.3.s8 %v3414
        %v3615 = vunpack.c.3.s8 %v3415
        %v3616 = vunpack.c.3.s8 %v3416
        %v3617 = vunpack.c.3.s8 %v3417
        %v3618 = vunpack.c.3.s8 %v3418
        %v3619 = vunpack.c.3.s8 %v3419
        %v3620 = vunpack.c.0.s8 %v3420
        %v3621 = vunpack.c.0.s8 %v3421
        %v3622 = vunpack.c.0.s8 %v3422
        %v3623 = vunpack.c.0.s8 %v3423
        %v3624 = vunpack.c.0.s8 %v3424
        %v3625 = vunpack.c.0.s8 %v3425
        %v3626 = vunpack.c.0.s8 %v3426
        %v3627 = vunpack.c.0.s8 %v3427
        %v3628 = vunpack.c.1.s8 %v3420
        %v3629 = vunpack.c.1.s8 %v3421
        %v3630 = vunpack.c.1.s8 %v3422
        %v3631 = vunpack.c.1.s8 %v3423
        %v3632 = vunpack.c.1.s8 %v3424
        %v3633 = vunpack.c.1.s8 %v3425
        %v3634 = vunpack.c.1.s8 %v3426
        %v3635 = vunpack.c.1.s8 %v3427
        %v3636 = vunpack.c.2.s8 %v3420
        %v3637 = vunpack.c.2.s8 %v3421
        %v3638 = vunpack.c.2.s8 %v3422
        %v3639 = vunpack.c.2.s8 %v3423
        %v3640 = vunpack.c.2.s8 %v3424
        %v3641 = vunpack.c.2.s8 %v3425
        %v3642 = vunpack.c.2.s8 %v3426
        %v3643 = vunpack.c.2.s8 %v3427
        %v3644 = vunpack.c.3.s8 %v3420
        %v3645 = vunpack.c.3.s8 %v3421
        %v3646 = vunpack.c.3.s8 %v3422
        %v3647 = vunpack.c.3.s8 %v3423
        %v3648 = vunpack.c.3.s8 %v3424
        %v3649 = vunpack.c.3.s8 %v3425
        %v3650 = vunpack.c.3.s8 %v3426
        %v3651 = vunpack.c.3.s8 %v3427
        %v3652 = vunpack.c.0.s8 %v3428
        %v3653 = vunpack.c.0.s8 %v3429
        %v3654 = vunpack.c.0.s8 %v3430
        %v3655 = vunpack.c.0.s8 %v3431
        %v3656 = vunpack.c.0.s8 %v3432
        %v3657 = vunpack.c.0.s8 %v3433
        %v3658 = vunpack.c.0.s8 %v3434
        %v3659 = vunpack.c.0.s8 %v3435
        %v3660 = vunpack.c.1.s8 %v3428
        %v3661 = vunpack.c.1.s8 %v3429
        %v3662 = vunpack.c.1.s8 %v3430
        %v3663 = vunpack.c.1.s8 %v3431
        %v3664 = vunpack.c.1.s8 %v3432
        %v3665 = vunpack.c.1.s8 %v3433
        %v3666 = vunpack.c.1.s8 %v3434
        %v3667 = vunpack.c.1.s8 %v3435
        %v3668 = vunpack.c.2.s8 %v3428
        %v3669 = vunpack.c.2.s8 %v3429
        %v3670 = vunpack.c.2.s8 %v3430
        %v3671 = vunpack.c.2.s8 %v3431
        %v3672 = vunpack.c.2.s8 %v3432
        %v3673 = vunpack.c.2.s8 %v3433
        %v3674 = vunpack.c.2.s8 %v3434
        %v3675 = vunpack.c.2.s8 %v3435
        %v3676 = vunpack.c.3.s8 %v3428
        %v3677 = vunpack.c.3.s8 %v3429
        %v3678 = vunpack.c.3.s8 %v3430
        %v3679 = vunpack.c.3.s8 %v3431
        %v3680 = vunpack.c.3.s8 %v3432
        %v3681 = vunpack.c.3.s8 %v3433
        %v3682 = vunpack.c.3.s8 %v3434
        %v3683 = vunpack.c.3.s8 %v3435
        %v3684 = vunpack.c.0.s8 %v3436
        %v3685 = vunpack.c.0.s8 %v3437
        %v3686 = vunpack.c.0.s8 %v3438
        %v3687 = vunpack.c.0.s8 %v3439
        %v3688 = vunpack.c.0.s8 %v3440
        %v3689 = vunpack.c.0.s8 %v3441
        %v3690 = vunpack.c.0.s8 %v3442
        %v3691 = vunpack.c.0.s8 %v3443
        %v3692 = vunpack.c.1.s8 %v3436
        %v3693 = vunpack.c.1.s8 %v3437
        %v3694 = vunpack.c.1.s8 %v3438
        %v3695 = vunpack.c.1.s8 %v3439
        %v3696 = vunpack.c.1.s8 %v3440
        %v3697 = vunpack.c.1.s8 %v3441
        %v3698 = vunpack.c.1.s8 %v3442
        %v3699 = vunpack.c.1.s8 %v3443
        %v3700 = vunpack.c.2.s8 %v3436
        %v3701 = vunpack.c.2.s8 %v3437
        %v3702 = vunpack.c.2.s8 %v3438
        %v3703 = vunpack.c.2.s8 %v3439
        %v3704 = vunpack.c.2.s8 %v3440
        %v3705 = vunpack.c.2.s8 %v3441
        %v3706 = vunpack.c.2.s8 %v3442
        %v3707 = vunpack.c.2.s8 %v3443
        %v3708 = vunpack.c.3.s8 %v3436
        %v3709 = vunpack.c.3.s8 %v3437
        %v3710 = vunpack.c.3.s8 %v3438
        %v3711 = vunpack.c.3.s8 %v3439
        %v3712 = vunpack.c.3.s8 %v3440
        %v3713 = vunpack.c.3.s8 %v3441
        %v3714 = vunpack.c.3.s8 %v3442
        %v3715 = vunpack.c.3.s8 %v3443
        %v3716 = vunpack.c.0.s8 %v3444
        %v3717 = vunpack.c.0.s8 %v3445
        %v3718 = vunpack.c.0.s8 %v3446
        %v3719 = vunpack.c.0.s8 %v3447
        %v3720 = vunpack.c.0.s8 %v3448
        %v3721 = vunpack.c.0.s8 %v3449
        %v3722 = vunpack.c.0.s8 %v3450
        %v3723 = vunpack.c.0.s8 %v3451
        %v3724 = vunpack.c.1.s8 %v3444
        %v3725 = vunpack.c.1.s8 %v3445
        %v3726 = vunpack.c.1.s8 %v3446
        %v3727 = vunpack.c.1.s8 %v3447
        %v3728 = vunpack.c.1.s8 %v3448
        %v3729 = vunpack.c.1.s8 %v3449
        %v3730 = vunpack.c.1.s8 %v3450
        %v3731 = vunpack.c.1.s8 %v3451
        %v3732 = vunpack.c.2.s8 %v3444
        %v3733 = vunpack.c.2.s8 %v3445
        %v3734 = vunpack.c.2.s8 %v3446
        %v3735 = vunpack.c.2.s8 %v3447
        %v3736 = vunpack.c.2.s8 %v3448
        %v3737 = vunpack.c.2.s8 %v3449
        %v3738 = vunpack.c.2.s8 %v3450
        %v3739 = vunpack.c.2.s8 %v3451
        %v3740 = vunpack.c.3.s8 %v3444
        %v3741 = vunpack.c.3.s8 %v3445
        %v3742 = vunpack.c.3.s8 %v3446
        %v3743 = vunpack.c.3.s8 %v3447
        %v3744 = vunpack.c.3.s8 %v3448
        %v3745 = vunpack.c.3.s8 %v3449
        %v3746 = vunpack.c.3.s8 %v3450
        %v3747 = vunpack.c.3.s8 %v3451
        %v3748 = vunpack.c.0.s8 %v3452
        %v3749 = vunpack.c.0.s8 %v3453
        %v3750 = vunpack.c.0.s8 %v3454
        %v3751 = vunpack.c.0.s8 %v3455
        %v3752 = vunpack.c.0.s8 %v3456
        %v3753 = vunpack.c.0.s8 %v3457
        %v3754 = vunpack.c.0.s8 %v3458
        %v3755 = vunpack.c.0.s8 %v3459
        %v3756 = vunpack.c.1.s8 %v3452
        %v3757 = vunpack.c.1.s8 %v3453
        %v3758 = vunpack.c.1.s8 %v3454
        %v3759 = vunpack.c.1.s8 %v3455
        %v3760 = vunpack.c.1.s8 %v3456
        %v3761 = vunpack.c.1.s8 %v3457
        %v3762 = vunpack.c.1.s8 %v3458
        %v3763 = vunpack.c.1.s8 %v3459
        %v3764 = vunpack.c.2.s8 %v3452
        %v3765 = vunpack.c.2.s8 %v3453
        %v3766 = vunpack.c.2.s8 %v3454
        %v3767 = vunpack.c.2.s8 %v3455
        %v3768 = vunpack.c.2.s8 %v3456
        %v3769 = vunpack.c.2.s8 %v3457
        %v3770 = vunpack.c.2.s8 %v3458
        %v3771 = vunpack.c.2.s8 %v3459
        %v3772 = vunpack.c.3.s8 %v3452
        %v3773 = vunpack.c.3.s8 %v3453
        %v3774 = vunpack.c.3.s8 %v3454
        %v3775 = vunpack.c.3.s8 %v3455
        %v3776 = vunpack.c.3.s8 %v3456
        %v3777 = vunpack.c.3.s8 %v3457
        %v3778 = vunpack.c.3.s8 %v3458
        %v3779 = vunpack.c.3.s8 %v3459
        %v3780 = vunpack.c.0.s8 %v3460
        %v3781 = vunpack.c.0.s8 %v3461
        %v3782 = vunpack.c.0.s8 %v3462
        %v3783 = vunpack.c.0.s8 %v3463
        %v3784 = vunpack.c.0.s8 %v3464
        %v3785 = vunpack.c.0.s8 %v3465
        %v3786 = vunpack.c.0.s8 %v3466
        %v3787 = vunpack.c.0.s8 %v3467
        %v3788 = vunpack.c.1.s8 %v3460
        %v3789 = vunpack.c.1.s8 %v3461
        %v3790 = vunpack.c.1.s8 %v3462
        %v3791 = vunpack.c.1.s8 %v3463
        %v3792 = vunpack.c.1.s8 %v3464
        %v3793 = vunpack.c.1.s8 %v3465
        %v3794 = vunpack.c.1.s8 %v3466
        %v3795 = vunpack.c.1.s8 %v3467
        %v3796 = vunpack.c.2.s8 %v3460
        %v3797 = vunpack.c.2.s8 %v3461
        %v3798 = vunpack.c.2.s8 %v3462
        %v3799 = vunpack.c.2.s8 %v3463
        %v3800 = vunpack.c.2.s8 %v3464
        %v3801 = vunpack.c.2.s8 %v3465
        %v3802 = vunpack.c.2.s8 %v3466
        %v3803 = vunpack.c.2.s8 %v3467
        %v3804 = vunpack.c.3.s8 %v3460
        %v3805 = vunpack.c.3.s8 %v3461
        %v3806 = vunpack.c.3.s8 %v3462
        %v3807 = vunpack.c.3.s8 %v3463
        %v3808 = vunpack.c.3.s8 %v3464
        %v3809 = vunpack.c.3.s8 %v3465
        %v3810 = vunpack.c.3.s8 %v3466
        %v3811 = vunpack.c.3.s8 %v3467
        %v3812 = vunpack.c.0.s8 %v3468
        %v3813 = vunpack.c.0.s8 %v3469
        %v3814 = vunpack.c.0.s8 %v3470
        %v3815 = vunpack.c.0.s8 %v3471
        %v3816 = vunpack.c.0.s8 %v3472
        %v3817 = vunpack.c.0.s8 %v3473
        %v3818 = vunpack.c.0.s8 %v3474
        %v3819 = vunpack.c.0.s8 %v3475
        %v3820 = vunpack.c.1.s8 %v3468
        %v3821 = vunpack.c.1.s8 %v3469
        %v3822 = vunpack.c.1.s8 %v3470
        %v3823 = vunpack.c.1.s8 %v3471
        %v3824 = vunpack.c.1.s8 %v3472
        %v3825 = vunpack.c.1.s8 %v3473
        %v3826 = vunpack.c.1.s8 %v3474
        %v3827 = vunpack.c.1.s8 %v3475
        %v3828 = vunpack.c.2.s8 %v3468
        %v3829 = vunpack.c.2.s8 %v3469
        %v3830 = vunpack.c.2.s8 %v3470
        %v3831 = vunpack.c.2.s8 %v3471
        %v3832 = vunpack.c.2.s8 %v3472
        %v3833 = vunpack.c.2.s8 %v3473
        %v3834 = vunpack.c.2.s8 %v3474
        %v3835 = vunpack.c.2.s8 %v3475
        %v3836 = vunpack.c.3.s8 %v3468
        %v3837 = vunpack.c.3.s8 %v3469
        %v3838 = vunpack.c.3.s8 %v3470
        %v3839 = vunpack.c.3.s8 %v3471
        %v3840 = vunpack.c.3.s8 %v3472
        %v3841 = vunpack.c.3.s8 %v3473
        %v3842 = vunpack.c.3.s8 %v3474
        %v3843 = vunpack.c.3.s8 %v3475
        %v3844 = vunpack.c.0.s8 %v3476
        %v3845 = vunpack.c.0.s8 %v3477
        %v3846 = vunpack.c.0.s8 %v3478
        %v3847 = vunpack.c.0.s8 %v3479
        %v3848 = vunpack.c.0.s8 %v3480
        %v3849 = vunpack.c.0.s8 %v3481
        %v3850 = vunpack.c.0.s8 %v3482
        %v3851 = vunpack.c.0.s8 %v3483
        %v3852 = vunpack.c.1.s8 %v3476
        %v3853 = vunpack.c.1.s8 %v3477
        %v3854 = vunpack.c.1.s8 %v3478
        %v3855 = vunpack.c.1.s8 %v3479
        %v3856 = vunpack.c.1.s8 %v3480
        %v3857 = vunpack.c.1.s8 %v3481
        %v3858 = vunpack.c.1.s8 %v3482
        %v3859 = vunpack.c.1.s8 %v3483
        %v3860 = vunpack.c.2.s8 %v3476
        %v3861 = vunpack.c.2.s8 %v3477
        %v3862 = vunpack.c.2.s8 %v3478
        %v3863 = vunpack.c.2.s8 %v3479
        %v3864 = vunpack.c.2.s8 %v3480
        %v3865 = vunpack.c.2.s8 %v3481
        %v3866 = vunpack.c.2.s8 %v3482
        %v3867 = vunpack.c.2.s8 %v3483
        %v3868 = vunpack.c.3.s8 %v3476
        %v3869 = vunpack.c.3.s8 %v3477
        %v3870 = vunpack.c.3.s8 %v3478
        %v3871 = vunpack.c.3.s8 %v3479
        %v3872 = vunpack.c.3.s8 %v3480
        %v3873 = vunpack.c.3.s8 %v3481
        %v3874 = vunpack.c.3.s8 %v3482
        %v3875 = vunpack.c.3.s8 %v3483
        %v3876 = vunpack.c.0.s8 %v3484
        %v3877 = vunpack.c.0.s8 %v3485
        %v3878 = vunpack.c.0.s8 %v3486
        %v3879 = vunpack.c.0.s8 %v3487
        %v3880 = vunpack.c.0.s8 %v3488
        %v3881 = vunpack.c.0.s8 %v3489
        %v3882 = vunpack.c.0.s8 %v3490
        %v3883 = vunpack.c.0.s8 %v3491
        %v3884 = vunpack.c.1.s8 %v3484
        %v3885 = vunpack.c.1.s8 %v3485
        %v3886 = vunpack.c.1.s8 %v3486
        %v3887 = vunpack.c.1.s8 %v3487
        %v3888 = vunpack.c.1.s8 %v3488
        %v3889 = vunpack.c.1.s8 %v3489
        %v3890 = vunpack.c.1.s8 %v3490
        %v3891 = vunpack.c.1.s8 %v3491
        %v3892 = vunpack.c.2.s8 %v3484
        %v3893 = vunpack.c.2.s8 %v3485
        %v3894 = vunpack.c.2.s8 %v3486
        %v3895 = vunpack.c.2.s8 %v3487
        %v3896 = vunpack.c.2.s8 %v3488
        %v3897 = vunpack.c.2.s8 %v3489
        %v3898 = vunpack.c.2.s8 %v3490
        %v3899 = vunpack.c.2.s8 %v3491
        %v3900 = vunpack.c.3.s8 %v3484
        %v3901 = vunpack.c.3.s8 %v3485
        %v3902 = vunpack.c.3.s8 %v3486
        %v3903 = vunpack.c.3.s8 %v3487
        %v3904 = vunpack.c.3.s8 %v3488
        %v3905 = vunpack.c.3.s8 %v3489
        %v3906 = vunpack.c.3.s8 %v3490
        %v3907 = vunpack.c.3.s8 %v3491
        %v3908 = vunpack.c.0.s8 %v3492
        %v3909 = vunpack.c.0.s8 %v3493
        %v3910 = vunpack.c.0.s8 %v3494
        %v3911 = vunpack.c.0.s8 %v3495
        %v3912 = vunpack.c.0.s8 %v3496
        %v3913 = vunpack.c.0.s8 %v3497
        %v3914 = vunpack.c.0.s8 %v3498
        %v3915 = vunpack.c.0.s8 %v3499
        %v3916 = vunpack.c.1.s8 %v3492
        %v3917 = vunpack.c.1.s8 %v3493
        %v3918 = vunpack.c.1.s8 %v3494
        %v3919 = vunpack.c.1.s8 %v3495
        %v3920 = vunpack.c.1.s8 %v3496
        %v3921 = vunpack.c.1.s8 %v3497
        %v3922 = vunpack.c.1.s8 %v3498
        %v3923 = vunpack.c.1.s8 %v3499
        %v3924 = vunpack.c.2.s8 %v3492
        %v3925 = vunpack.c.2.s8 %v3493
        %v3926 = vunpack.c.2.s8 %v3494
        %v3927 = vunpack.c.2.s8 %v3495
        %v3928 = vunpack.c.2.s8 %v3496
        %v3929 = vunpack.c.2.s8 %v3497
        %v3930 = vunpack.c.2.s8 %v3498
        %v3931 = vunpack.c.2.s8 %v3499
        %v3932 = vunpack.c.3.s8 %v3492
        %v3933 = vunpack.c.3.s8 %v3493
        %v3934 = vunpack.c.3.s8 %v3494
        %v3935 = vunpack.c.3.s8 %v3495
        %v3936 = vunpack.c.3.s8 %v3496
        %v3937 = vunpack.c.3.s8 %v3497
        %v3938 = vunpack.c.3.s8 %v3498
        %v3939 = vunpack.c.3.s8 %v3499
        %v3940 = vunpack.c.0.s8 %v3500
        %v3941 = vunpack.c.0.s8 %v3501
        %v3942 = vunpack.c.0.s8 %v3502
        %v3943 = vunpack.c.0.s8 %v3503
        %v3944 = vunpack.c.0.s8 %v3504
        %v3945 = vunpack.c.0.s8 %v3505
        %v3946 = vunpack.c.0.s8 %v3506
        %v3947 = vunpack.c.0.s8 %v3507
        %v3948 = vunpack.c.1.s8 %v3500
        %v3949 = vunpack.c.1.s8 %v3501
        %v3950 = vunpack.c.1.s8 %v3502
        %v3951 = vunpack.c.1.s8 %v3503
        %v3952 = vunpack.c.1.s8 %v3504
        %v3953 = vunpack.c.1.s8 %v3505
        %v3954 = vunpack.c.1.s8 %v3506
        %v3955 = vunpack.c.1.s8 %v3507
        %v3956 = vunpack.c.2.s8 %v3500
        %v3957 = vunpack.c.2.s8 %v3501
        %v3958 = vunpack.c.2.s8 %v3502
        %v3959 = vunpack.c.2.s8 %v3503
        %v3960 = vunpack.c.2.s8 %v3504
        %v3961 = vunpack.c.2.s8 %v3505
        %v3962 = vunpack.c.2.s8 %v3506
        %v3963 = vunpack.c.2.s8 %v3507
        %v3964 = vunpack.c.3.s8 %v3500
        %v3965 = vunpack.c.3.s8 %v3501
        %v3966 = vunpack.c.3.s8 %v3502
        %v3967 = vunpack.c.3.s8 %v3503
        %v3968 = vunpack.c.3.s8 %v3504
        %v3969 = vunpack.c.3.s8 %v3505
        %v3970 = vunpack.c.3.s8 %v3506
        %v3971 = vunpack.c.3.s8 %v3507
        %v3972 = vunpack.c.0.s8 %v3508
        %v3973 = vunpack.c.0.s8 %v3509
        %v3974 = vunpack.c.0.s8 %v3510
        %v3975 = vunpack.c.0.s8 %v3511
        %v3976 = vunpack.c.0.s8 %v3512
        %v3977 = vunpack.c.0.s8 %v3513
        %v3978 = vunpack.c.0.s8 %v3514
        %v3979 = vunpack.c.0.s8 %v3515
        %v3980 = vunpack.c.1.s8 %v3508
        %v3981 = vunpack.c.1.s8 %v3509
        %v3982 = vunpack.c.1.s8 %v3510
        %v3983 = vunpack.c.1.s8 %v3511
        %v3984 = vunpack.c.1.s8 %v3512
        %v3985 = vunpack.c.1.s8 %v3513
        %v3986 = vunpack.c.1.s8 %v3514
        %v3987 = vunpack.c.1.s8 %v3515
        %v3988 = vunpack.c.2.s8 %v3508
        %v3989 = vunpack.c.2.s8 %v3509
        %v3990 = vunpack.c.2.s8 %v3510
        %v3991 = vunpack.c.2.s8 %v3511
        %v3992 = vunpack.c.2.s8 %v3512
        %v3993 = vunpack.c.2.s8 %v3513
        %v3994 = vunpack.c.2.s8 %v3514
        %v3995 = vunpack.c.2.s8 %v3515
        %v3996 = vunpack.c.3.s8 %v3508
        %v3997 = vunpack.c.3.s8 %v3509
        %v3998 = vunpack.c.3.s8 %v3510
        %v3999 = vunpack.c.3.s8 %v3511
        %v4000 = vunpack.c.3.s8 %v3512
        %v4001 = vunpack.c.3.s8 %v3513
        %v4002 = vunpack.c.3.s8 %v3514
        %v4003 = vunpack.c.3.s8 %v3515
        %v4004 = vunpack.c.0.s8 %v3516
        %v4005 = vunpack.c.0.s8 %v3517
        %v4006 = vunpack.c.0.s8 %v3518
        %v4007 = vunpack.c.0.s8 %v3519
        %v4008 = vunpack.c.0.s8 %v3520
        %v4009 = vunpack.c.0.s8 %v3521
        %v4010 = vunpack.c.0.s8 %v3522
        %v4011 = vunpack.c.0.s8 %v3523
        %v4012 = vunpack.c.1.s8 %v3516
        %v4013 = vunpack.c.1.s8 %v3517
        %v4014 = vunpack.c.1.s8 %v3518
        %v4015 = vunpack.c.1.s8 %v3519
        %v4016 = vunpack.c.1.s8 %v3520
        %v4017 = vunpack.c.1.s8 %v3521
        %v4018 = vunpack.c.1.s8 %v3522
        %v4019 = vunpack.c.1.s8 %v3523
        %v4020 = vunpack.c.2.s8 %v3516
        %v4021 = vunpack.c.2.s8 %v3517
        %v4022 = vunpack.c.2.s8 %v3518
        %v4023 = vunpack.c.2.s8 %v3519
        %v4024 = vunpack.c.2.s8 %v3520
        %v4025 = vunpack.c.2.s8 %v3521
        %v4026 = vunpack.c.2.s8 %v3522
        %v4027 = vunpack.c.2.s8 %v3523
        %v4028 = vunpack.c.3.s8 %v3516
        %v4029 = vunpack.c.3.s8 %v3517
        %v4030 = vunpack.c.3.s8 %v3518
        %v4031 = vunpack.c.3.s8 %v3519
        %v4032 = vunpack.c.3.s8 %v3520
        %v4033 = vunpack.c.3.s8 %v3521
        %v4034 = vunpack.c.3.s8 %v3522
        %v4035 = vunpack.c.3.s8 %v3523
        %v4036 = vcvt.s32.f32 %v3524
        %v4037 = vcvt.s32.f32 %v3525
        %v4038 = vcvt.s32.f32 %v3526
        %v4039 = vcvt.s32.f32 %v3527
        %v4040 = vcvt.s32.f32 %v3528
        %v4041 = vcvt.s32.f32 %v3529
        %v4042 = vcvt.s32.f32 %v3530
        %v4043 = vcvt.s32.f32 %v3531
        %v4044 = vcvt.s32.f32 %v3532
        %v4045 = vcvt.s32.f32 %v3533
        %v4046 = vcvt.s32.f32 %v3534
        %v4047 = vcvt.s32.f32 %v3535
        %v4048 = vcvt.s32.f32 %v3536
        %v4049 = vcvt.s32.f32 %v3537
        %v4050 = vcvt.s32.f32 %v3538
        %v4051 = vcvt.s32.f32 %v3539
        %v4052 = vcvt.s32.f32 %v3540
        %v4053 = vcvt.s32.f32 %v3541
        %v4054 = vcvt.s32.f32 %v3542
        %v4055 = vcvt.s32.f32 %v3543
        %v4056 = vcvt.s32.f32 %v3544
        %v4057 = vcvt.s32.f32 %v3545
        %v4058 = vcvt.s32.f32 %v3546
        %v4059 = vcvt.s32.f32 %v3547
        %v4060 = vcvt.s32.f32 %v3548
        %v4061 = vcvt.s32.f32 %v3549
        %v4062 = vcvt.s32.f32 %v3550
        %v4063 = vcvt.s32.f32 %v3551
        %v4064 = vcvt.s32.f32 %v3552
        %v4065 = vcvt.s32.f32 %v3553
        %v4066 = vcvt.s32.f32 %v3554
        %v4067 = vcvt.s32.f32 %v3555
        %v4068 = vcvt.s32.f32 %v3556
        %v4069 = vcvt.s32.f32 %v3557
        %v4070 = vcvt.s32.f32 %v3558
        %v4071 = vcvt.s32.f32 %v3559
        %v4072 = vcvt.s32.f32 %v3560
        %v4073 = vcvt.s32.f32 %v3561
        %v4074 = vcvt.s32.f32 %v3562
        %v4075 = vcvt.s32.f32 %v3563
        %v4076 = vcvt.s32.f32 %v3564
        %v4077 = vcvt.s32.f32 %v3565
        %v4078 = vcvt.s32.f32 %v3566
        %v4079 = vcvt.s32.f32 %v3567
        %v4080 = vcvt.s32.f32 %v3568
        %v4081 = vcvt.s32.f32 %v3569
        %v4082 = vcvt.s32.f32 %v3570
        %v4083 = vcvt.s32.f32 %v3571
        %v4084 = vcvt.s32.f32 %v3572
        %v4085 = vcvt.s32.f32 %v3573
        %v4086 = vcvt.s32.f32 %v3574
        %v4087 = vcvt.s32.f32 %v3575
        %v4088 = vcvt.s32.f32 %v3576
        %v4089 = vcvt.s32.f32 %v3577
        %v4090 = vcvt.s32.f32 %v3578
        %v4091 = vcvt.s32.f32 %v3579
        %v4092 = vcvt.s32.f32 %v3580
        %v4093 = vcvt.s32.f32 %v3581
        %v4094 = vcvt.s32.f32 %v3582
        %v4095 = vcvt.s32.f32 %v3583
        %v4096 = vcvt.s32.f32 %v3584
        %v4097 = vcvt.s32.f32 %v3585
        %v4098 = vcvt.s32.f32 %v3586
        %v4099 = vcvt.s32.f32 %v3587
        %v4100 = vcvt.s32.f32 %v3588
        %v4101 = vcvt.s32.f32 %v3589
        %v4102 = vcvt.s32.f32 %v3590
        %v4103 = vcvt.s32.f32 %v3591
        %v4104 = vcvt.s32.f32 %v3592
        %v4105 = vcvt.s32.f32 %v3593
        %v4106 = vcvt.s32.f32 %v3594
        %v4107 = vcvt.s32.f32 %v3595
        %v4108 = vcvt.s32.f32 %v3596
        %v4109 = vcvt.s32.f32 %v3597
        %v4110 = vcvt.s32.f32 %v3598
        %v4111 = vcvt.s32.f32 %v3599
        %v4112 = vcvt.s32.f32 %v3600
        %v4113 = vcvt.s32.f32 %v3601
        %v4114 = vcvt.s32.f32 %v3602
        %v4115 = vcvt.s32.f32 %v3603
        %v4116 = vcvt.s32.f32 %v3604
        %v4117 = vcvt.s32.f32 %v3605
        %v4118 = vcvt.s32.f32 %v3606
        %v4119 = vcvt.s32.f32 %v3607
        %v4120 = vcvt.s32.f32 %v3608
        %v4121 = vcvt.s32.f32 %v3609
        %v4122 = vcvt.s32.f32 %v3610
        %v4123 = vcvt.s32.f32 %v3611
        %v4124 = vcvt.s32.f32 %v3612
        %v4125 = vcvt.s32.f32 %v3613
        %v4126 = vcvt.s32.f32 %v3614
        %v4127 = vcvt.s32.f32 %v3615
        %v4128 = vcvt.s32.f32 %v3616
        %v4129 = vcvt.s32.f32 %v3617
        %v4130 = vcvt.s32.f32 %v3618
        %v4131 = vcvt.s32.f32 %v3619
        %v4132 = vcvt.s32.f32 %v3620
        %v4133 = vcvt.s32.f32 %v3621
        %v4134 = vcvt.s32.f32 %v3622
        %v4135 = vcvt.s32.f32 %v3623
        %v4136 = vcvt.s32.f32 %v3624
        %v4137 = vcvt.s32.f32 %v3625
        %v4138 = vcvt.s32.f32 %v3626
        %v4139 = vcvt.s32.f32 %v3627
        %v4140 = vcvt.s32.f32 %v3628
        %v4141 = vcvt.s32.f32 %v3629
        %v4142 = vcvt.s32.f32 %v3630
        %v4143 = vcvt.s32.f32 %v3631
        %v4144 = vcvt.s32.f32 %v3632
        %v4145 = vcvt.s32.f32 %v3633
        %v4146 = vcvt.s32.f32 %v3634
        %v4147 = vcvt.s32.f32 %v3635
        %v4148 = vcvt.s32.f32 %v3636
        %v4149 = vcvt.s32.f32 %v3637
        %v4150 = vcvt.s32.f32 %v3638
        %v4151 = vcvt.s32.f32 %v3639
        %v4152 = vcvt.s32.f32 %v3640
        %v4153 = vcvt.s32.f32 %v3641
        %v4154 = vcvt.s32.f32 %v3642
        %v4155 = vcvt.s32.f32 %v3643
        %v4156 = vcvt.s32.f32 %v3644
        %v4157 = vcvt.s32.f32 %v3645
        %v4158 = vcvt.s32.f32 %v3646
        %v4159 = vcvt.s32.f32 %v3647
        %v4160 = vcvt.s32.f32 %v3648
        %v4161 = vcvt.s32.f32 %v3649
        %v4162 = vcvt.s32.f32 %v3650
        %v4163 = vcvt.s32.f32 %v3651
        %v4164 = vcvt.s32.f32 %v3652
        %v4165 = vcvt.s32.f32 %v3653
        %v4166 = vcvt.s32.f32 %v3654
        %v4167 = vcvt.s32.f32 %v3655
        %v4168 = vcvt.s32.f32 %v3656
        %v4169 = vcvt.s32.f32 %v3657
        %v4170 = vcvt.s32.f32 %v3658
        %v4171 = vcvt.s32.f32 %v3659
        %v4172 = vcvt.s32.f32 %v3660
        %v4173 = vcvt.s32.f32 %v3661
        %v4174 = vcvt.s32.f32 %v3662
        %v4175 = vcvt.s32.f32 %v3663
        %v4176 = vcvt.s32.f32 %v3664
        %v4177 = vcvt.s32.f32 %v3665
        %v4178 = vcvt.s32.f32 %v3666
        %v4179 = vcvt.s32.f32 %v3667
        %v4180 = vcvt.s32.f32 %v3668
        %v4181 = vcvt.s32.f32 %v3669
        %v4182 = vcvt.s32.f32 %v3670
        %v4183 = vcvt.s32.f32 %v3671
        %v4184 = vcvt.s32.f32 %v3672
        %v4185 = vcvt.s32.f32 %v3673
        %v4186 = vcvt.s32.f32 %v3674
        %v4187 = vcvt.s32.f32 %v3675
        %v4188 = vcvt.s32.f32 %v3676
        %v4189 = vcvt.s32.f32 %v3677
        %v4190 = vcvt.s32.f32 %v3678
        %v4191 = vcvt.s32.f32 %v3679
        %v4192 = vcvt.s32.f32 %v3680
        %v4193 = vcvt.s32.f32 %v3681
        %v4194 = vcvt.s32.f32 %v3682
        %v4195 = vcvt.s32.f32 %v3683
        %v4196 = vcvt.s32.f32 %v3684
        %v4197 = vcvt.s32.f32 %v3685
        %v4198 = vcvt.s32.f32 %v3686
        %v4199 = vcvt.s32.f32 %v3687
        %v4200 = vcvt.s32.f32 %v3688
        %v4201 = vcvt.s32.f32 %v3689
        %v4202 = vcvt.s32.f32 %v3690
        %v4203 = vcvt.s32.f32 %v3691
        %v4204 = vcvt.s32.f32 %v3692
        %v4205 = vcvt.s32.f32 %v3693
        %v4206 = vcvt.s32.f32 %v3694
        %v4207 = vcvt.s32.f32 %v3695
        %v4208 = vcvt.s32.f32 %v3696
        %v4209 = vcvt.s32.f32 %v3697
        %v4210 = vcvt.s32.f32 %v3698
        %v4211 = vcvt.s32.f32 %v3699
        %v4212 = vcvt.s32.f32 %v3700
        %v4213 = vcvt.s32.f32 %v3701
        %v4214 = vcvt.s32.f32 %v3702
        %v4215 = vcvt.s32.f32 %v3703
        %v4216 = vcvt.s32.f32 %v3704
        %v4217 = vcvt.s32.f32 %v3705
        %v4218 = vcvt.s32.f32 %v3706
        %v4219 = vcvt.s32.f32 %v3707
        %v4220 = vcvt.s32.f32 %v3708
        %v4221 = vcvt.s32.f32 %v3709
        %v4222 = vcvt.s32.f32 %v3710
        %v4223 = vcvt.s32.f32 %v3711
        %v4224 = vcvt.s32.f32 %v3712
        %v4225 = vcvt.s32.f32 %v3713
        %v4226 = vcvt.s32.f32 %v3714
        %v4227 = vcvt.s32.f32 %v3715
        %v4228 = vcvt.s32.f32 %v3716
        %v4229 = vcvt.s32.f32 %v3717
        %v4230 = vcvt.s32.f32 %v3718
        %v4231 = vcvt.s32.f32 %v3719
        %v4232 = vcvt.s32.f32 %v3720
        %v4233 = vcvt.s32.f32 %v3721
        %v4234 = vcvt.s32.f32 %v3722
        %v4235 = vcvt.s32.f32 %v3723
        %v4236 = vcvt.s32.f32 %v3724
        %v4237 = vcvt.s32.f32 %v3725
        %v4238 = vcvt.s32.f32 %v3726
        %v4239 = vcvt.s32.f32 %v3727
        %v4240 = vcvt.s32.f32 %v3728
        %v4241 = vcvt.s32.f32 %v3729
        %v4242 = vcvt.s32.f32 %v3730
        %v4243 = vcvt.s32.f32 %v3731
        %v4244 = vcvt.s32.f32 %v3732
        %v4245 = vcvt.s32.f32 %v3733
        %v4246 = vcvt.s32.f32 %v3734
        %v4247 = vcvt.s32.f32 %v3735
        %v4248 = vcvt.s32.f32 %v3736
        %v4249 = vcvt.s32.f32 %v3737
        %v4250 = vcvt.s32.f32 %v3738
        %v4251 = vcvt.s32.f32 %v3739
        %v4252 = vcvt.s32.f32 %v3740
        %v4253 = vcvt.s32.f32 %v3741
        %v4254 = vcvt.s32.f32 %v3742
        %v4255 = vcvt.s32.f32 %v3743
        %v4256 = vcvt.s32.f32 %v3744
        %v4257 = vcvt.s32.f32 %v3745
        %v4258 = vcvt.s32.f32 %v3746
        %v4259 = vcvt.s32.f32 %v3747
        %v4260 = vcvt.s32.f32 %v3748
        %v4261 = vcvt.s32.f32 %v3749
        %v4262 = vcvt.s32.f32 %v3750
        %v4263 = vcvt.s32.f32 %v3751
        %v4264 = vcvt.s32.f32 %v3752
        %v4265 = vcvt.s32.f32 %v3753
        %v4266 = vcvt.s32.f32 %v3754
        %v4267 = vcvt.s32.f32 %v3755
        %v4268 = vcvt.s32.f32 %v3756
        %v4269 = vcvt.s32.f32 %v3757
        %v4270 = vcvt.s32.f32 %v3758
        %v4271 = vcvt.s32.f32 %v3759
        %v4272 = vcvt.s32.f32 %v3760
        %v4273 = vcvt.s32.f32 %v3761
        %v4274 = vcvt.s32.f32 %v3762
        %v4275 = vcvt.s32.f32 %v3763
        %v4276 = vcvt.s32.f32 %v3764
        %v4277 = vcvt.s32.f32 %v3765
        %v4278 = vcvt.s32.f32 %v3766
        %v4279 = vcvt.s32.f32 %v3767
        %v4280 = vcvt.s32.f32 %v3768
        %v4281 = vcvt.s32.f32 %v3769
        %v4282 = vcvt.s32.f32 %v3770
        %v4283 = vcvt.s32.f32 %v3771
        %v4284 = vcvt.s32.f32 %v3772
        %v4285 = vcvt.s32.f32 %v3773
        %v4286 = vcvt.s32.f32 %v3774
        %v4287 = vcvt.s32.f32 %v3775
        %v4288 = vcvt.s32.f32 %v3776
        %v4289 = vcvt.s32.f32 %v3777
        %v4290 = vcvt.s32.f32 %v3778
        %v4291 = vcvt.s32.f32 %v3779
        %v4292 = vcvt.s32.f32 %v3780
        %v4293 = vcvt.s32.f32 %v3781
        %v4294 = vcvt.s32.f32 %v3782
        %v4295 = vcvt.s32.f32 %v3783
        %v4296 = vcvt.s32.f32 %v3784
        %v4297 = vcvt.s32.f32 %v3785
        %v4298 = vcvt.s32.f32 %v3786
        %v4299 = vcvt.s32.f32 %v3787
        %v4300 = vcvt.s32.f32 %v3788
        %v4301 = vcvt.s32.f32 %v3789
        %v4302 = vcvt.s32.f32 %v3790
        %v4303 = vcvt.s32.f32 %v3791
        %v4304 = vcvt.s32.f32 %v3792
        %v4305 = vcvt.s32.f32 %v3793
        %v4306 = vcvt.s32.f32 %v3794
        %v4307 = vcvt.s32.f32 %v3795
        %v4308 = vcvt.s32.f32 %v3796
        %v4309 = vcvt.s32.f32 %v3797
        %v4310 = vcvt.s32.f32 %v3798
        %v4311 = vcvt.s32.f32 %v3799
        %v4312 = vcvt.s32.f32 %v3800
        %v4313 = vcvt.s32.f32 %v3801
        %v4314 = vcvt.s32.f32 %v3802
        %v4315 = vcvt.s32.f32 %v3803
        %v4316 = vcvt.s32.f32 %v3804
        %v4317 = vcvt.s32.f32 %v3805
        %v4318 = vcvt.s32.f32 %v3806
        %v4319 = vcvt.s32.f32 %v3807
        %v4320 = vcvt.s32.f32 %v3808
        %v4321 = vcvt.s32.f32 %v3809
        %v4322 = vcvt.s32.f32 %v3810
        %v4323 = vcvt.s32.f32 %v3811
        %v4324 = vcvt.s32.f32 %v3812
        %v4325 = vcvt.s32.f32 %v3813
        %v4326 = vcvt.s32.f32 %v3814
        %v4327 = vcvt.s32.f32 %v3815
        %v4328 = vcvt.s32.f32 %v3816
        %v4329 = vcvt.s32.f32 %v3817
        %v4330 = vcvt.s32.f32 %v3818
        %v4331 = vcvt.s32.f32 %v3819
        %v4332 = vcvt.s32.f32 %v3820
        %v4333 = vcvt.s32.f32 %v3821
        %v4334 = vcvt.s32.f32 %v3822
        %v4335 = vcvt.s32.f32 %v3823
        %v4336 = vcvt.s32.f32 %v3824
        %v4337 = vcvt.s32.f32 %v3825
        %v4338 = vcvt.s32.f32 %v3826
        %v4339 = vcvt.s32.f32 %v3827
        %v4340 = vcvt.s32.f32 %v3828
        %v4341 = vcvt.s32.f32 %v3829
        %v4342 = vcvt.s32.f32 %v3830
        %v4343 = vcvt.s32.f32 %v3831
        %v4344 = vcvt.s32.f32 %v3832
        %v4345 = vcvt.s32.f32 %v3833
        %v4346 = vcvt.s32.f32 %v3834
        %v4347 = vcvt.s32.f32 %v3835
        %v4348 = vcvt.s32.f32 %v3836
        %v4349 = vcvt.s32.f32 %v3837
        %v4350 = vcvt.s32.f32 %v3838
        %v4351 = vcvt.s32.f32 %v3839
        %v4352 = vcvt.s32.f32 %v3840
        %v4353 = vcvt.s32.f32 %v3841
        %v4354 = vcvt.s32.f32 %v3842
        %v4355 = vcvt.s32.f32 %v3843
        %v4356 = vcvt.s32.f32 %v3844
        %v4357 = vcvt.s32.f32 %v3845
        %v4358 = vcvt.s32.f32 %v3846
        %v4359 = vcvt.s32.f32 %v3847
        %v4360 = vcvt.s32.f32 %v3848
        %v4361 = vcvt.s32.f32 %v3849
        %v4362 = vcvt.s32.f32 %v3850
        %v4363 = vcvt.s32.f32 %v3851
        %v4364 = vcvt.s32.f32 %v3852
        %v4365 = vcvt.s32.f32 %v3853
        %v4366 = vcvt.s32.f32 %v3854
        %v4367 = vcvt.s32.f32 %v3855
        %v4368 = vcvt.s32.f32 %v3856
        %v4369 = vcvt.s32.f32 %v3857
        %v4370 = vcvt.s32.f32 %v3858
        %v4371 = vcvt.s32.f32 %v3859
        %v4372 = vcvt.s32.f32 %v3860
        %v4373 = vcvt.s32.f32 %v3861
        %v4374 = vcvt.s32.f32 %v3862
        %v4375 = vcvt.s32.f32 %v3863
        %v4376 = vcvt.s32.f32 %v3864
        %v4377 = vcvt.s32.f32 %v3865
        %v4378 = vcvt.s32.f32 %v3866
        %v4379 = vcvt.s32.f32 %v3867
        %v4380 = vcvt.s32.f32 %v3868
        %v4381 = vcvt.s32.f32 %v3869
        %v4382 = vcvt.s32.f32 %v3870
        %v4383 = vcvt.s32.f32 %v3871
        %v4384 = vcvt.s32.f32 %v3872
        %v4385 = vcvt.s32.f32 %v3873
        %v4386 = vcvt.s32.f32 %v3874
        %v4387 = vcvt.s32.f32 %v3875
        %v4388 = vcvt.s32.f32 %v3876
        %v4389 = vcvt.s32.f32 %v3877
        %v4390 = vcvt.s32.f32 %v3878
        %v4391 = vcvt.s32.f32 %v3879
        %v4392 = vcvt.s32.f32 %v3880
        %v4393 = vcvt.s32.f32 %v3881
        %v4394 = vcvt.s32.f32 %v3882
        %v4395 = vcvt.s32.f32 %v3883
        %v4396 = vcvt.s32.f32 %v3884
        %v4397 = vcvt.s32.f32 %v3885
        %v4398 = vcvt.s32.f32 %v3886
        %v4399 = vcvt.s32.f32 %v3887
        %v4400 = vcvt.s32.f32 %v3888
        %v4401 = vcvt.s32.f32 %v3889
        %v4402 = vcvt.s32.f32 %v3890
        %v4403 = vcvt.s32.f32 %v3891
        %v4404 = vcvt.s32.f32 %v3892
        %v4405 = vcvt.s32.f32 %v3893
        %v4406 = vcvt.s32.f32 %v3894
        %v4407 = vcvt.s32.f32 %v3895
        %v4408 = vcvt.s32.f32 %v3896
        %v4409 = vcvt.s32.f32 %v3897
        %v4410 = vcvt.s32.f32 %v3898
        %v4411 = vcvt.s32.f32 %v3899
        %v4412 = vcvt.s32.f32 %v3900
        %v4413 = vcvt.s32.f32 %v3901
        %v4414 = vcvt.s32.f32 %v3902
        %v4415 = vcvt.s32.f32 %v3903
        %v4416 = vcvt.s32.f32 %v3904
        %v4417 = vcvt.s32.f32 %v3905
        %v4418 = vcvt.s32.f32 %v3906
        %v4419 = vcvt.s32.f32 %v3907
        %v4420 = vcvt.s32.f32 %v3908
        %v4421 = vcvt.s32.f32 %v3909
        %v4422 = vcvt.s32.f32 %v3910
        %v4423 = vcvt.s32.f32 %v3911
        %v4424 = vcvt.s32.f32 %v3912
        %v4425 = vcvt.s32.f32 %v3913
        %v4426 = vcvt.s32.f32 %v3914
        %v4427 = vcvt.s32.f32 %v3915
        %v4428 = vcvt.s32.f32 %v3916
        %v4429 = vcvt.s32.f32 %v3917
        %v4430 = vcvt.s32.f32 %v3918
        %v4431 = vcvt.s32.f32 %v3919
        %v4432 = vcvt.s32.f32 %v3920
        %v4433 = vcvt.s32.f32 %v3921
        %v4434 = vcvt.s32.f32 %v3922
        %v4435 = vcvt.s32.f32 %v3923
        %v4436 = vcvt.s32.f32 %v3924
        %v4437 = vcvt.s32.f32 %v3925
        %v4438 = vcvt.s32.f32 %v3926
        %v4439 = vcvt.s32.f32 %v3927
        %v4440 = vcvt.s32.f32 %v3928
        %v4441 = vcvt.s32.f32 %v3929
        %v4442 = vcvt.s32.f32 %v3930
        %v4443 = vcvt.s32.f32 %v3931
        %v4444 = vcvt.s32.f32 %v3932
        %v4445 = vcvt.s32.f32 %v3933
        %v4446 = vcvt.s32.f32 %v3934
        %v4447 = vcvt.s32.f32 %v3935
        %v4448 = vcvt.s32.f32 %v3936
        %v4449 = vcvt.s32.f32 %v3937
        %v4450 = vcvt.s32.f32 %v3938
        %v4451 = vcvt.s32.f32 %v3939
        %v4452 = vcvt.s32.f32 %v3940
        %v4453 = vcvt.s32.f32 %v3941
        %v4454 = vcvt.s32.f32 %v3942
        %v4455 = vcvt.s32.f32 %v3943
        %v4456 = vcvt.s32.f32 %v3944
        %v4457 = vcvt.s32.f32 %v3945
        %v4458 = vcvt.s32.f32 %v3946
        %v4459 = vcvt.s32.f32 %v3947
        %v4460 = vcvt.s32.f32 %v3948
        %v4461 = vcvt.s32.f32 %v3949
        %v4462 = vcvt.s32.f32 %v3950
        %v4463 = vcvt.s32.f32 %v3951
        %v4464 = vcvt.s32.f32 %v3952
        %v4465 = vcvt.s32.f32 %v3953
        %v4466 = vcvt.s32.f32 %v3954
        %v4467 = vcvt.s32.f32 %v3955
        %v4468 = vcvt.s32.f32 %v3956
        %v4469 = vcvt.s32.f32 %v3957
        %v4470 = vcvt.s32.f32 %v3958
        %v4471 = vcvt.s32.f32 %v3959
        %v4472 = vcvt.s32.f32 %v3960
        %v4473 = vcvt.s32.f32 %v3961
        %v4474 = vcvt.s32.f32 %v3962
        %v4475 = vcvt.s32.f32 %v3963
        %v4476 = vcvt.s32.f32 %v3964
        %v4477 = vcvt.s32.f32 %v3965
        %v4478 = vcvt.s32.f32 %v3966
        %v4479 = vcvt.s32.f32 %v3967
        %v4480 = vcvt.s32.f32 %v3968
        %v4481 = vcvt.s32.f32 %v3969
        %v4482 = vcvt.s32.f32 %v3970
        %v4483 = vcvt.s32.f32 %v3971
        %v4484 = vcvt.s32.f32 %v3972
        %v4485 = vcvt.s32.f32 %v3973
        %v4486 = vcvt.s32.f32 %v3974
        %v4487 = vcvt.s32.f32 %v3975
        %v4488 = vcvt.s32.f32 %v3976
        %v4489 = vcvt.s32.f32 %v3977
        %v4490 = vcvt.s32.f32 %v3978
        %v4491 = vcvt.s32.f32 %v3979
        %v4492 = vcvt.s32.f32 %v3980
        %v4493 = vcvt.s32.f32 %v3981
        %v4494 = vcvt.s32.f32 %v3982
        %v4495 = vcvt.s32.f32 %v3983
        %v4496 = vcvt.s32.f32 %v3984
        %v4497 = vcvt.s32.f32 %v3985
        %v4498 = vcvt.s32.f32 %v3986
        %v4499 = vcvt.s32.f32 %v3987
        %v4500 = vcvt.s32.f32 %v3988
        %v4501 = vcvt.s32.f32 %v3989
        %v4502 = vcvt.s32.f32 %v3990
        %v4503 = vcvt.s32.f32 %v3991
        %v4504 = vcvt.s32.f32 %v3992
        %v4505 = vcvt.s32.f32 %v3993
        %v4506 = vcvt.s32.f32 %v3994
        %v4507 = vcvt.s32.f32 %v3995
        %v4508 = vcvt.s32.f32 %v3996
        %v4509 = vcvt.s32.f32 %v3997
        %v4510 = vcvt.s32.f32 %v3998
        %v4511 = vcvt.s32.f32 %v3999
        %v4512 = vcvt.s32.f32 %v4000
        %v4513 = vcvt.s32.f32 %v4001
        %v4514 = vcvt.s32.f32 %v4002
        %v4515 = vcvt.s32.f32 %v4003
        %v4516 = vcvt.s32.f32 %v4004
        %v4517 = vcvt.s32.f32 %v4005
        %v4518 = vcvt.s32.f32 %v4006
        %v4519 = vcvt.s32.f32 %v4007
        %v4520 = vcvt.s32.f32 %v4008
        %v4521 = vcvt.s32.f32 %v4009
        %v4522 = vcvt.s32.f32 %v4010
        %v4523 = vcvt.s32.f32 %v4011
        %v4524 = vcvt.s32.f32 %v4012
        %v4525 = vcvt.s32.f32 %v4013
        %v4526 = vcvt.s32.f32 %v4014
        %v4527 = vcvt.s32.f32 %v4015
        %v4528 = vcvt.s32.f32 %v4016
        %v4529 = vcvt.s32.f32 %v4017
        %v4530 = vcvt.s32.f32 %v4018
        %v4531 = vcvt.s32.f32 %v4019
        %v4532 = vcvt.s32.f32 %v4020
        %v4533 = vcvt.s32.f32 %v4021
        %v4534 = vcvt.s32.f32 %v4022
        %v4535 = vcvt.s32.f32 %v4023
        %v4536 = vcvt.s32.f32 %v4024
        %v4537 = vcvt.s32.f32 %v4025
        %v4538 = vcvt.s32.f32 %v4026
        %v4539 = vcvt.s32.f32 %v4027
        %v4540 = vcvt.s32.f32 %v4028
        %v4541 = vcvt.s32.f32 %v4029
        %v4542 = vcvt.s32.f32 %v4030
        %v4543 = vcvt.s32.f32 %v4031
        %v4544 = vcvt.s32.f32 %v4032
        %v4545 = vcvt.s32.f32 %v4033
        %v4546 = vcvt.s32.f32 %v4034
        %v4547 = vcvt.s32.f32 %v4035
        %v4548 = vpack.c.bf16 %v4044, %v4036
        %v4549 = vpack.c.bf16 %v4045, %v4037
        %v4550 = vpack.c.bf16 %v4046, %v4038
        %v4551 = vpack.c.bf16 %v4047, %v4039
        %v4552 = vpack.c.bf16 %v4048, %v4040
        %v4553 = vpack.c.bf16 %v4049, %v4041
        %v4554 = vpack.c.bf16 %v4050, %v4042
        %v4555 = vpack.c.bf16 %v4051, %v4043
        %v4556 = vpack.c.bf16 %v4060, %v4052
        %v4557 = vpack.c.bf16 %v4061, %v4053
        %v4558 = vpack.c.bf16 %v4062, %v4054
        %v4559 = vpack.c.bf16 %v4063, %v4055
        %v4560 = vpack.c.bf16 %v4064, %v4056
        %v4561 = vpack.c.bf16 %v4065, %v4057
        %v4562 = vpack.c.bf16 %v4066, %v4058
        %v4563 = vpack.c.bf16 %v4067, %v4059
        %v4564 = vpack.c.bf16 %v4076, %v4068
        %v4565 = vpack.c.bf16 %v4077, %v4069
        %v4566 = vpack.c.bf16 %v4078, %v4070
        %v4567 = vpack.c.bf16 %v4079, %v4071
        %v4568 = vpack.c.bf16 %v4080, %v4072
        %v4569 = vpack.c.bf16 %v4081, %v4073
        %v4570 = vpack.c.bf16 %v4082, %v4074
        %v4571 = vpack.c.bf16 %v4083, %v4075
        %v4572 = vpack.c.bf16 %v4092, %v4084
        %v4573 = vpack.c.bf16 %v4093, %v4085
        %v4574 = vpack.c.bf16 %v4094, %v4086
        %v4575 = vpack.c.bf16 %v4095, %v4087
        %v4576 = vpack.c.bf16 %v4096, %v4088
        %v4577 = vpack.c.bf16 %v4097, %v4089
        %v4578 = vpack.c.bf16 %v4098, %v4090
        %v4579 = vpack.c.bf16 %v4099, %v4091
        %v4580 = vpack.c.bf16 %v4108, %v4100
        %v4581 = vpack.c.bf16 %v4109, %v4101
        %v4582 = vpack.c.bf16 %v4110, %v4102
        %v4583 = vpack.c.bf16 %v4111, %v4103
        %v4584 = vpack.c.bf16 %v4112, %v4104
        %v4585 = vpack.c.bf16 %v4113, %v4105
        %v4586 = vpack.c.bf16 %v4114, %v4106
        %v4587 = vpack.c.bf16 %v4115, %v4107
        %v4588 = vpack.c.bf16 %v4124, %v4116
        %v4589 = vpack.c.bf16 %v4125, %v4117
        %v4590 = vpack.c.bf16 %v4126, %v4118
        %v4591 = vpack.c.bf16 %v4127, %v4119
        %v4592 = vpack.c.bf16 %v4128, %v4120
        %v4593 = vpack.c.bf16 %v4129, %v4121
        %v4594 = vpack.c.bf16 %v4130, %v4122
        %v4595 = vpack.c.bf16 %v4131, %v4123
        %v4596 = vpack.c.bf16 %v4140, %v4132
        %v4597 = vpack.c.bf16 %v4141, %v4133
        %v4598 = vpack.c.bf16 %v4142, %v4134
        %v4599 = vpack.c.bf16 %v4143, %v4135
        %v4600 = vpack.c.bf16 %v4144, %v4136
        %v4601 = vpack.c.bf16 %v4145, %v4137
        %v4602 = vpack.c.bf16 %v4146, %v4138
        %v4603 = vpack.c.bf16 %v4147, %v4139
        %v4604 = vpack.c.bf16 %v4156, %v4148
        %v4605 = vpack.c.bf16 %v4157, %v4149
        %v4606 = vpack.c.bf16 %v4158, %v4150
        %v4607 = vpack.c.bf16 %v4159, %v4151
        %v4608 = vpack.c.bf16 %v4160, %v4152
        %v4609 = vpack.c.bf16 %v4161, %v4153
        %v4610 = vpack.c.bf16 %v4162, %v4154
        %v4611 = vpack.c.bf16 %v4163, %v4155
        %v4612 = vpack.c.bf16 %v4172, %v4164
        %v4613 = vpack.c.bf16 %v4173, %v4165
        %v4614 = vpack.c.bf16 %v4174, %v4166
        %v4615 = vpack.c.bf16 %v4175, %v4167
        %v4616 = vpack.c.bf16 %v4176, %v4168
        %v4617 = vpack.c.bf16 %v4177, %v4169
        %v4618 = vpack.c.bf16 %v4178, %v4170
        %v4619 = vpack.c.bf16 %v4179, %v4171
        %v4620 = vpack.c.bf16 %v4188, %v4180
        %v4621 = vpack.c.bf16 %v4189, %v4181
        %v4622 = vpack.c.bf16 %v4190, %v4182
        %v4623 = vpack.c.bf16 %v4191, %v4183
        %v4624 = vpack.c.bf16 %v4192, %v4184
        %v4625 = vpack.c.bf16 %v4193, %v4185
        %v4626 = vpack.c.bf16 %v4194, %v4186
        %v4627 = vpack.c.bf16 %v4195, %v4187
        %v4628 = vpack.c.bf16 %v4204, %v4196
        %v4629 = vpack.c.bf16 %v4205, %v4197
        %v4630 = vpack.c.bf16 %v4206, %v4198
        %v4631 = vpack.c.bf16 %v4207, %v4199
        %v4632 = vpack.c.bf16 %v4208, %v4200
        %v4633 = vpack.c.bf16 %v4209, %v4201
        %v4634 = vpack.c.bf16 %v4210, %v4202
        %v4635 = vpack.c.bf16 %v4211, %v4203
        %v4636 = vpack.c.bf16 %v4220, %v4212
        %v4637 = vpack.c.bf16 %v4221, %v4213
        %v4638 = vpack.c.bf16 %v4222, %v4214
        %v4639 = vpack.c.bf16 %v4223, %v4215
        %v4640 = vpack.c.bf16 %v4224, %v4216
        %v4641 = vpack.c.bf16 %v4225, %v4217
        %v4642 = vpack.c.bf16 %v4226, %v4218
        %v4643 = vpack.c.bf16 %v4227, %v4219
        %v4644 = vpack.c.bf16 %v4236, %v4228
        %v4645 = vpack.c.bf16 %v4237, %v4229
        %v4646 = vpack.c.bf16 %v4238, %v4230
        %v4647 = vpack.c.bf16 %v4239, %v4231
        %v4648 = vpack.c.bf16 %v4240, %v4232
        %v4649 = vpack.c.bf16 %v4241, %v4233
        %v4650 = vpack.c.bf16 %v4242, %v4234
        %v4651 = vpack.c.bf16 %v4243, %v4235
        %v4652 = vpack.c.bf16 %v4252, %v4244
        %v4653 = vpack.c.bf16 %v4253, %v4245
        %v4654 = vpack.c.bf16 %v4254, %v4246
        %v4655 = vpack.c.bf16 %v4255, %v4247
        %v4656 = vpack.c.bf16 %v4256, %v4248
        %v4657 = vpack.c.bf16 %v4257, %v4249
        %v4658 = vpack.c.bf16 %v4258, %v4250
        %v4659 = vpack.c.bf16 %v4259, %v4251
        %v4660 = vpack.c.bf16 %v4268, %v4260
        %v4661 = vpack.c.bf16 %v4269, %v4261
        %v4662 = vpack.c.bf16 %v4270, %v4262
        %v4663 = vpack.c.bf16 %v4271, %v4263
        %v4664 = vpack.c.bf16 %v4272, %v4264
        %v4665 = vpack.c.bf16 %v4273, %v4265
        %v4666 = vpack.c.bf16 %v4274, %v4266
        %v4667 = vpack.c.bf16 %v4275, %v4267
        %v4668 = vpack.c.bf16 %v4284, %v4276
        %v4669 = vpack.c.bf16 %v4285, %v4277
        %v4670 = vpack.c.bf16 %v4286, %v4278
        %v4671 = vpack.c.bf16 %v4287, %v4279
        %v4672 = vpack.c.bf16 %v4288, %v4280
        %v4673 = vpack.c.bf16 %v4289, %v4281
        %v4674 = vpack.c.bf16 %v4290, %v4282
        %v4675 = vpack.c.bf16 %v4291, %v4283
        %v4676 = vpack.c.bf16 %v4300, %v4292
        %v4677 = vpack.c.bf16 %v4301, %v4293
        %v4678 = vpack.c.bf16 %v4302, %v4294
        %v4679 = vpack.c.bf16 %v4303, %v4295
        %v4680 = vpack.c.bf16 %v4304, %v4296
        %v4681 = vpack.c.bf16 %v4305, %v4297
        %v4682 = vpack.c.bf16 %v4306, %v4298
        %v4683 = vpack.c.bf16 %v4307, %v4299
        %v4684 = vpack.c.bf16 %v4316, %v4308
        %v4685 = vpack.c.bf16 %v4317, %v4309
        %v4686 = vpack.c.bf16 %v4318, %v4310
        %v4687 = vpack.c.bf16 %v4319, %v4311
        %v4688 = vpack.c.bf16 %v4320, %v4312
        %v4689 = vpack.c.bf16 %v4321, %v4313
        %v4690 = vpack.c.bf16 %v4322, %v4314
        %v4691 = vpack.c.bf16 %v4323, %v4315
        %v4692 = vpack.c.bf16 %v4332, %v4324
        %v4693 = vpack.c.bf16 %v4333, %v4325
        %v4694 = vpack.c.bf16 %v4334, %v4326
        %v4695 = vpack.c.bf16 %v4335, %v4327
        %v4696 = vpack.c.bf16 %v4336, %v4328
        %v4697 = vpack.c.bf16 %v4337, %v4329
        %v4698 = vpack.c.bf16 %v4338, %v4330
        %v4699 = vpack.c.bf16 %v4339, %v4331
        %v4700 = vpack.c.bf16 %v4348, %v4340
        %v4701 = vpack.c.bf16 %v4349, %v4341
        %v4702 = vpack.c.bf16 %v4350, %v4342
        %v4703 = vpack.c.bf16 %v4351, %v4343
        %v4704 = vpack.c.bf16 %v4352, %v4344
        %v4705 = vpack.c.bf16 %v4353, %v4345
        %v4706 = vpack.c.bf16 %v4354, %v4346
        %v4707 = vpack.c.bf16 %v4355, %v4347
        %v4708 = vpack.c.bf16 %v4364, %v4356
        %v4709 = vpack.c.bf16 %v4365, %v4357
        %v4710 = vpack.c.bf16 %v4366, %v4358
        %v4711 = vpack.c.bf16 %v4367, %v4359
        %v4712 = vpack.c.bf16 %v4368, %v4360
        %v4713 = vpack.c.bf16 %v4369, %v4361
        %v4714 = vpack.c.bf16 %v4370, %v4362
        %v4715 = vpack.c.bf16 %v4371, %v4363
        %v4716 = vpack.c.bf16 %v4380, %v4372
        %v4717 = vpack.c.bf16 %v4381, %v4373
        %v4718 = vpack.c.bf16 %v4382, %v4374
        %v4719 = vpack.c.bf16 %v4383, %v4375
        %v4720 = vpack.c.bf16 %v4384, %v4376
        %v4721 = vpack.c.bf16 %v4385, %v4377
        %v4722 = vpack.c.bf16 %v4386, %v4378
        %v4723 = vpack.c.bf16 %v4387, %v4379
        %v4724 = vpack.c.bf16 %v4396, %v4388
        %v4725 = vpack.c.bf16 %v4397, %v4389
        %v4726 = vpack.c.bf16 %v4398, %v4390
        %v4727 = vpack.c.bf16 %v4399, %v4391
        %v4728 = vpack.c.bf16 %v4400, %v4392
        %v4729 = vpack.c.bf16 %v4401, %v4393
        %v4730 = vpack.c.bf16 %v4402, %v4394
        %v4731 = vpack.c.bf16 %v4403, %v4395
        %v4732 = vpack.c.bf16 %v4412, %v4404
        %v4733 = vpack.c.bf16 %v4413, %v4405
        %v4734 = vpack.c.bf16 %v4414, %v4406
        %v4735 = vpack.c.bf16 %v4415, %v4407
        %v4736 = vpack.c.bf16 %v4416, %v4408
        %v4737 = vpack.c.bf16 %v4417, %v4409
        %v4738 = vpack.c.bf16 %v4418, %v4410
        %v4739 = vpack.c.bf16 %v4419, %v4411
        %v4740 = vpack.c.bf16 %v4428, %v4420
        %v4741 = vpack.c.bf16 %v4429, %v4421
        %v4742 = vpack.c.bf16 %v4430, %v4422
        %v4743 = vpack.c.bf16 %v4431, %v4423
        %v4744 = vpack.c.bf16 %v4432, %v4424
        %v4745 = vpack.c.bf16 %v4433, %v4425
        %v4746 = vpack.c.bf16 %v4434, %v4426
        %v4747 = vpack.c.bf16 %v4435, %v4427
        %v4748 = vpack.c.bf16 %v4444, %v4436
        %v4749 = vpack.c.bf16 %v4445, %v4437
        %v4750 = vpack.c.bf16 %v4446, %v4438
        %v4751 = vpack.c.bf16 %v4447, %v4439
        %v4752 = vpack.c.bf16 %v4448, %v4440
        %v4753 = vpack.c.bf16 %v4449, %v4441
        %v4754 = vpack.c.bf16 %v4450, %v4442
        %v4755 = vpack.c.bf16 %v4451, %v4443
        %v4756 = vpack.c.bf16 %v4460, %v4452
        %v4757 = vpack.c.bf16 %v4461, %v4453
        %v4758 = vpack.c.bf16 %v4462, %v4454
        %v4759 = vpack.c.bf16 %v4463, %v4455
        %v4760 = vpack.c.bf16 %v4464, %v4456
        %v4761 = vpack.c.bf16 %v4465, %v4457
        %v4762 = vpack.c.bf16 %v4466, %v4458
        %v4763 = vpack.c.bf16 %v4467, %v4459
        %v4764 = vpack.c.bf16 %v4476, %v4468
        %v4765 = vpack.c.bf16 %v4477, %v4469
        %v4766 = vpack.c.bf16 %v4478, %v4470
        %v4767 = vpack.c.bf16 %v4479, %v4471
        %v4768 = vpack.c.bf16 %v4480, %v4472
        %v4769 = vpack.c.bf16 %v4481, %v4473
        %v4770 = vpack.c.bf16 %v4482, %v4474
        %v4771 = vpack.c.bf16 %v4483, %v4475
        %v4772 = vpack.c.bf16 %v4492, %v4484
        %v4773 = vpack.c.bf16 %v4493, %v4485
        %v4774 = vpack.c.bf16 %v4494, %v4486
        %v4775 = vpack.c.bf16 %v4495, %v4487
        %v4776 = vpack.c.bf16 %v4496, %v4488
        %v4777 = vpack.c.bf16 %v4497, %v4489
        %v4778 = vpack.c.bf16 %v4498, %v4490
        %v4779 = vpack.c.bf16 %v4499, %v4491
        %v4780 = vpack.c.bf16 %v4508, %v4500
        %v4781 = vpack.c.bf16 %v4509, %v4501
        %v4782 = vpack.c.bf16 %v4510, %v4502
        %v4783 = vpack.c.bf16 %v4511, %v4503
        %v4784 = vpack.c.bf16 %v4512, %v4504
        %v4785 = vpack.c.bf16 %v4513, %v4505
        %v4786 = vpack.c.bf16 %v4514, %v4506
        %v4787 = vpack.c.bf16 %v4515, %v4507
        %v4788 = vpack.c.bf16 %v4524, %v4516
        %v4789 = vpack.c.bf16 %v4525, %v4517
        %v4790 = vpack.c.bf16 %v4526, %v4518
        %v4791 = vpack.c.bf16 %v4527, %v4519
        %v4792 = vpack.c.bf16 %v4528, %v4520
        %v4793 = vpack.c.bf16 %v4529, %v4521
        %v4794 = vpack.c.bf16 %v4530, %v4522
        %v4795 = vpack.c.bf16 %v4531, %v4523
        %v4796 = vpack.c.bf16 %v4540, %v4532
        %v4797 = vpack.c.bf16 %v4541, %v4533
        %v4798 = vpack.c.bf16 %v4542, %v4534
        %v4799 = vpack.c.bf16 %v4543, %v4535
        %v4800 = vpack.c.bf16 %v4544, %v4536
        %v4801 = vpack.c.bf16 %v4545, %v4537
        %v4802 = vpack.c.bf16 %v4546, %v4538
        %v4803 = vpack.c.bf16 %v4547, %v4539
        %v4804 = vld [vmem:[#allocation2] sm:$0xff]
        %v4805 = vld [vmem:[#allocation2 + $0x8] sm:$0xff]
        %s4806 = scalar_lea.vmem %s1432, 1
        %v4807 = vld [vmem:[%s4806] sm:$0x1]
        %v4809 = vsel %vm2887, %v4807, 0
        %4811 = vmatpush.bf16.msra.mxu0 0
        %4812 = vmatpush.bf16.msra.mxu0 0
        %4813 = vmatpush.bf16.msra.mxu0 0
        %4814 = vmatpush.bf16.msra.mxu0 0
        %4815 = vmatpush.bf16.msra.mxu0 0
        %4816 = vmatpush.bf16.msra.mxu0 0
        %4817 = vmatpush.bf16.msra.mxu0 0
        %4818 = vmatpush.bf16.msra.mxu0 %v2879
        %4819 = vmatmul.bf16.gmra.mxu0 %v4809
        %v4820 = vpop.f32.mrf.mxu0
        %v4821 = vadd.f32 %v2859, %v4820
        %v4822 = vpop.f32.mrf.mxu0
        %4823 = vdwg.mxu0
        %4824 = vmatpush.bf16.msra.mxu0 0
        %4825 = vmatpush.bf16.msra.mxu0 0
        %4826 = vmatpush.bf16.msra.mxu0 0
        %4827 = vmatpush.bf16.msra.mxu0 0
        %4828 = vmatpush.bf16.msra.mxu0 0
        %4829 = vmatpush.bf16.msra.mxu0 0
        %4830 = vmatpush.bf16.msra.mxu0 0
        %4831 = vmatpush.bf16.msra.mxu0 %v2880
        %4832 = vmatmul.bf16.gmra.mxu0 %v4809
        %v4833 = vpop.f32.mrf.mxu0
        %v4834 = vadd.f32 %v2860, %v4833
        %v4835 = vpop.f32.mrf.mxu0
        %4836 = vdwg.mxu0
        %4837 = vmatpush.bf16.msra.mxu0 0
        %4838 = vmatpush.bf16.msra.mxu0 0
        %4839 = vmatpush.bf16.msra.mxu0 0
        %4840 = vmatpush.bf16.msra.mxu0 0
        %4841 = vmatpush.bf16.msra.mxu0 0
        %4842 = vmatpush.bf16.msra.mxu0 0
        %4843 = vmatpush.bf16.msra.mxu0 0
        %4844 = vmatpush.bf16.msra.mxu0 %v2881
        %4845 = vmatmul.bf16.gmra.mxu0 %v4809
        %v4846 = vpop.f32.mrf.mxu0
        %v4847 = vadd.f32 %v2861, %v4846
        %v4848 = vpop.f32.mrf.mxu0
        %4849 = vdwg.mxu0
        %4850 = vmatpush.bf16.msra.mxu0 0
        %4851 = vmatpush.bf16.msra.mxu0 0
        %4852 = vmatpush.bf16.msra.mxu0 0
        %4853 = vmatpush.bf16.msra.mxu0 0
        %4854 = vmatpush.bf16.msra.mxu0 0
        %4855 = vmatpush.bf16.msra.mxu0 0
        %4856 = vmatpush.bf16.msra.mxu0 0
        %4857 = vmatpush.bf16.msra.mxu0 %v2882
        %4858 = vmatmul.bf16.gmra.mxu0 %v4809
        %v4859 = vpop.f32.mrf.mxu0
        %v4860 = vadd.f32 %v2862, %v4859
        %v4861 = vpop.f32.mrf.mxu0
        %4862 = vdwg.mxu0
        %v4863 = vmax.f32 %v4821, 0.0
        %v4864 = vmax.f32 %v4834, 0.0
        %v4865 = vmax.f32 %v4847, 0.0
        %v4866 = vmax.f32 %v4860, 0.0
        %v4867 = vpack.c.bf16 %v4863, %v4863
        %v4868 = vpack.c.bf16 %v4864, %v4864
        %v4869 = vpack.c.bf16 %v4865, %v4865
        %v4870 = vpack.c.bf16 %v4866, %v4866
        %4871 = vmatpush.bf16.msra.mxu0 %v4604
        %4872 = vmatpush.bf16.msra.mxu0 %v4596
        %4873 = vmatpush.bf16.msra.mxu0 %v4588
        %4874 = vmatpush.bf16.msra.mxu0 %v4580
        %4875 = vmatpush.bf16.msra.mxu0 %v4572
        %4876 = vmatpush.bf16.msra.mxu0 %v4564
        %4877 = vmatpush.bf16.msra.mxu0 %v4556
        %4878 = vmatpush.bf16.msra.mxu0 %v4548
        %4879 = vmatmul.bf16.gmra.mxu0 %v4867
        %v4880 = vpop.f32.mrf.mxu0
        %v4881 = vadd.f32 0.0, %v4880
        %v4882 = vpop.f32.mrf.mxu0
        %4883 = vdwg.mxu0
        %4884 = vmatpush.bf16.msra.mxu0 %v4668
        %4885 = vmatpush.bf16.msra.mxu0 %v4660
        %4886 = vmatpush.bf16.msra.mxu0 %v4652
        %4887 = vmatpush.bf16.msra.mxu0 %v4644
        %4888 = vmatpush.bf16.msra.mxu0 %v4636
        %4889 = vmatpush.bf16.msra.mxu0 %v4628
        %4890 = vmatpush.bf16.msra.mxu0 %v4620
        %4891 = vmatpush.bf16.msra.mxu0 %v4612
        %4892 = vmatmul.bf16.gmra.mxu0 %v4868
        %v4893 = vpop.f32.mrf.mxu0
        %v4894 = vadd.f32 %v4881, %v4893
        %v4895 = vpop.f32.mrf.mxu0
        %4896 = vdwg.mxu0
        %4897 = vmatpush.bf16.msra.mxu0 %v4732
        %4898 = vmatpush.bf16.msra.mxu0 %v4724
        %4899 = vmatpush.bf16.msra.mxu0 %v4716
        %4900 = vmatpush.bf16.msra.mxu0 %v4708
        %4901 = vmatpush.bf16.msra.mxu0 %v4700
        %4902 = vmatpush.bf16.msra.mxu0 %v4692
        %4903 = vmatpush.bf16.msra.mxu0 %v4684
        %4904 = vmatpush.bf16.msra.mxu0 %v4676
        %4905 = vmatmul.bf16.gmra.mxu0 %v4869
        %v4906 = vpop.f32.mrf.mxu0
        %v4907 = vadd.f32 %v4894, %v4906
        %v4908 = vpop.f32.mrf.mxu0
        %4909 = vdwg.mxu0
        %4910 = vmatpush.bf16.msra.mxu0 %v4796
        %4911 = vmatpush.bf16.msra.mxu0 %v4788
        %4912 = vmatpush.bf16.msra.mxu0 %v4780
        %4913 = vmatpush.bf16.msra.mxu0 %v4772
        %4914 = vmatpush.bf16.msra.mxu0 %v4764
        %4915 = vmatpush.bf16.msra.mxu0 %v4756
        %4916 = vmatpush.bf16.msra.mxu0 %v4748
        %4917 = vmatpush.bf16.msra.mxu0 %v4740
        %4918 = vmatmul.bf16.gmra.mxu0 %v4870
        %v4919 = vpop.f32.mrf.mxu0
        %v4920 = vadd.f32 %v4907, %v4919
        %v4921 = vpop.f32.mrf.mxu0
        %4922 = vdwg.mxu0
        %4923 = vmatpush.bf16.msra.mxu0 %v4605
        %4924 = vmatpush.bf16.msra.mxu0 %v4597
        %4925 = vmatpush.bf16.msra.mxu0 %v4589
        %4926 = vmatpush.bf16.msra.mxu0 %v4581
        %4927 = vmatpush.bf16.msra.mxu0 %v4573
        %4928 = vmatpush.bf16.msra.mxu0 %v4565
        %4929 = vmatpush.bf16.msra.mxu0 %v4557
        %4930 = vmatpush.bf16.msra.mxu0 %v4549
        %4931 = vmatmul.bf16.gmra.mxu0 %v4867
        %v4932 = vpop.f32.mrf.mxu0
        %v4933 = vadd.f32 0.0, %v4932
        %v4934 = vpop.f32.mrf.mxu0
        %4935 = vdwg.mxu0
        %4936 = vmatpush.bf16.msra.mxu0 %v4669
        %4937 = vmatpush.bf16.msra.mxu0 %v4661
        %4938 = vmatpush.bf16.msra.mxu0 %v4653
        %4939 = vmatpush.bf16.msra.mxu0 %v4645
        %4940 = vmatpush.bf16.msra.mxu0 %v4637
        %4941 = vmatpush.bf16.msra.mxu0 %v4629
        %4942 = vmatpush.bf16.msra.mxu0 %v4621
        %4943 = vmatpush.bf16.msra.mxu0 %v4613
        %4944 = vmatmul.bf16.gmra.mxu0 %v4868
        %v4945 = vpop.f32.mrf.mxu0
        %v4946 = vadd.f32 %v4933, %v4945
        %v4947 = vpop.f32.mrf.mxu0
        %4948 = vdwg.mxu0
        %4949 = vmatpush.bf16.msra.mxu0 %v4733
        %4950 = vmatpush.bf16.msra.mxu0 %v4725
        %4951 = vmatpush.bf16.msra.mxu0 %v4717
        %4952 = vmatpush.bf16.msra.mxu0 %v4709
        %4953 = vmatpush.bf16.msra.mxu0 %v4701
        %4954 = vmatpush.bf16.msra.mxu0 %v4693
        %4955 = vmatpush.bf16.msra.mxu0 %v4685
        %4956 = vmatpush.bf16.msra.mxu0 %v4677
        %4957 = vmatmul.bf16.gmra.mxu0 %v4869
        %v4958 = vpop.f32.mrf.mxu0
        %v4959 = vadd.f32 %v4946, %v4958
        %v4960 = vpop.f32.mrf.mxu0
        %4961 = vdwg.mxu0
        %4962 = vmatpush.bf16.msra.mxu0 %v4797
        %4963 = vmatpush.bf16.msra.mxu0 %v4789
        %4964 = vmatpush.bf16.msra.mxu0 %v4781
        %4965 = vmatpush.bf16.msra.mxu0 %v4773
        %4966 = vmatpush.bf16.msra.mxu0 %v4765
        %4967 = vmatpush.bf16.msra.mxu0 %v4757
        %4968 = vmatpush.bf16.msra.mxu0 %v4749
        %4969 = vmatpush.bf16.msra.mxu0 %v4741
        %4970 = vmatmul.bf16.gmra.mxu0 %v4870
        %v4971 = vpop.f32.mrf.mxu0
        %v4972 = vadd.f32 %v4959, %v4971
        %v4973 = vpop.f32.mrf.mxu0
        %4974 = vdwg.mxu0
        %4975 = vmatpush.bf16.msra.mxu0 %v4606
        %4976 = vmatpush.bf16.msra.mxu0 %v4598
        %4977 = vmatpush.bf16.msra.mxu0 %v4590
        %4978 = vmatpush.bf16.msra.mxu0 %v4582
        %4979 = vmatpush.bf16.msra.mxu0 %v4574
        %4980 = vmatpush.bf16.msra.mxu0 %v4566
        %4981 = vmatpush.bf16.msra.mxu0 %v4558
        %4982 = vmatpush.bf16.msra.mxu0 %v4550
        %4983 = vmatmul.bf16.gmra.mxu0 %v4867
        %v4984 = vpop.f32.mrf.mxu0
        %v4985 = vadd.f32 0.0, %v4984
        %v4986 = vpop.f32.mrf.mxu0
        %4987 = vdwg.mxu0
        %4988 = vmatpush.bf16.msra.mxu0 %v4670
        %4989 = vmatpush.bf16.msra.mxu0 %v4662
        %4990 = vmatpush.bf16.msra.mxu0 %v4654
        %4991 = vmatpush.bf16.msra.mxu0 %v4646
        %4992 = vmatpush.bf16.msra.mxu0 %v4638
        %4993 = vmatpush.bf16.msra.mxu0 %v4630
        %4994 = vmatpush.bf16.msra.mxu0 %v4622
        %4995 = vmatpush.bf16.msra.mxu0 %v4614
        %4996 = vmatmul.bf16.gmra.mxu0 %v4868
        %v4997 = vpop.f32.mrf.mxu0
        %v4998 = vadd.f32 %v4985, %v4997
        %v4999 = vpop.f32.mrf.mxu0
        %5000 = vdwg.mxu0
        %5001 = vmatpush.bf16.msra.mxu0 %v4734
        %5002 = vmatpush.bf16.msra.mxu0 %v4726
        %5003 = vmatpush.bf16.msra.mxu0 %v4718
        %5004 = vmatpush.bf16.msra.mxu0 %v4710
        %5005 = vmatpush.bf16.msra.mxu0 %v4702
        %5006 = vmatpush.bf16.msra.mxu0 %v4694
        %5007 = vmatpush.bf16.msra.mxu0 %v4686
        %5008 = vmatpush.bf16.msra.mxu0 %v4678
        %5009 = vmatmul.bf16.gmra.mxu0 %v4869
        %v5010 = vpop.f32.mrf.mxu0
        %v5011 = vadd.f32 %v4998, %v5010
        %v5012 = vpop.f32.mrf.mxu0
        %5013 = vdwg.mxu0
        %5014 = vmatpush.bf16.msra.mxu0 %v4798
        %5015 = vmatpush.bf16.msra.mxu0 %v4790
        %5016 = vmatpush.bf16.msra.mxu0 %v4782
        %5017 = vmatpush.bf16.msra.mxu0 %v4774
        %5018 = vmatpush.bf16.msra.mxu0 %v4766
        %5019 = vmatpush.bf16.msra.mxu0 %v4758
        %5020 = vmatpush.bf16.msra.mxu0 %v4750
        %5021 = vmatpush.bf16.msra.mxu0 %v4742
        %5022 = vmatmul.bf16.gmra.mxu0 %v4870
        %v5023 = vpop.f32.mrf.mxu0
        %v5024 = vadd.f32 %v5011, %v5023
        %v5025 = vpop.f32.mrf.mxu0
        %5026 = vdwg.mxu0
        %5027 = vmatpush.bf16.msra.mxu0 %v4607
        %5028 = vmatpush.bf16.msra.mxu0 %v4599
        %5029 = vmatpush.bf16.msra.mxu0 %v4591
        %5030 = vmatpush.bf16.msra.mxu0 %v4583
        %5031 = vmatpush.bf16.msra.mxu0 %v4575
        %5032 = vmatpush.bf16.msra.mxu0 %v4567
        %5033 = vmatpush.bf16.msra.mxu0 %v4559
        %5034 = vmatpush.bf16.msra.mxu0 %v4551
        %5035 = vmatmul.bf16.gmra.mxu0 %v4867
        %v5036 = vpop.f32.mrf.mxu0
        %v5037 = vadd.f32 0.0, %v5036
        %v5038 = vpop.f32.mrf.mxu0
        %5039 = vdwg.mxu0
        %5040 = vmatpush.bf16.msra.mxu0 %v4671
        %5041 = vmatpush.bf16.msra.mxu0 %v4663
        %5042 = vmatpush.bf16.msra.mxu0 %v4655
        %5043 = vmatpush.bf16.msra.mxu0 %v4647
        %5044 = vmatpush.bf16.msra.mxu0 %v4639
        %5045 = vmatpush.bf16.msra.mxu0 %v4631
        %5046 = vmatpush.bf16.msra.mxu0 %v4623
        %5047 = vmatpush.bf16.msra.mxu0 %v4615
        %5048 = vmatmul.bf16.gmra.mxu0 %v4868
        %v5049 = vpop.f32.mrf.mxu0
        %v5050 = vadd.f32 %v5037, %v5049
        %v5051 = vpop.f32.mrf.mxu0
        %5052 = vdwg.mxu0
        %5053 = vmatpush.bf16.msra.mxu0 %v4735
        %5054 = vmatpush.bf16.msra.mxu0 %v4727
        %5055 = vmatpush.bf16.msra.mxu0 %v4719
        %5056 = vmatpush.bf16.msra.mxu0 %v4711
        %5057 = vmatpush.bf16.msra.mxu0 %v4703
        %5058 = vmatpush.bf16.msra.mxu0 %v4695
        %5059 = vmatpush.bf16.msra.mxu0 %v4687
        %5060 = vmatpush.bf16.msra.mxu0 %v4679
        %5061 = vmatmul.bf16.gmra.mxu0 %v4869
        %v5062 = vpop.f32.mrf.mxu0
        %v5063 = vadd.f32 %v5050, %v5062
        %v5064 = vpop.f32.mrf.mxu0
        %5065 = vdwg.mxu0
        %5066 = vmatpush.bf16.msra.mxu0 %v4799
        %5067 = vmatpush.bf16.msra.mxu0 %v4791
        %5068 = vmatpush.bf16.msra.mxu0 %v4783
        %5069 = vmatpush.bf16.msra.mxu0 %v4775
        %5070 = vmatpush.bf16.msra.mxu0 %v4767
        %5071 = vmatpush.bf16.msra.mxu0 %v4759
        %5072 = vmatpush.bf16.msra.mxu0 %v4751
        %5073 = vmatpush.bf16.msra.mxu0 %v4743
        %5074 = vmatmul.bf16.gmra.mxu0 %v4870
        %v5075 = vpop.f32.mrf.mxu0
        %v5076 = vadd.f32 %v5063, %v5075
        %v5077 = vpop.f32.mrf.mxu0
        %5078 = vdwg.mxu0
        %5079 = vmatpush.bf16.msra.mxu0 %v4608
        %5080 = vmatpush.bf16.msra.mxu0 %v4600
        %5081 = vmatpush.bf16.msra.mxu0 %v4592
        %5082 = vmatpush.bf16.msra.mxu0 %v4584
        %5083 = vmatpush.bf16.msra.mxu0 %v4576
        %5084 = vmatpush.bf16.msra.mxu0 %v4568
        %5085 = vmatpush.bf16.msra.mxu0 %v4560
        %5086 = vmatpush.bf16.msra.mxu0 %v4552
        %5087 = vmatmul.bf16.gmra.mxu0 %v4867
        %v5088 = vpop.f32.mrf.mxu0
        %v5089 = vadd.f32 0.0, %v5088
        %v5090 = vpop.f32.mrf.mxu0
        %5091 = vdwg.mxu0
        %5092 = vmatpush.bf16.msra.mxu0 %v4672
        %5093 = vmatpush.bf16.msra.mxu0 %v4664
        %5094 = vmatpush.bf16.msra.mxu0 %v4656
        %5095 = vmatpush.bf16.msra.mxu0 %v4648
        %5096 = vmatpush.bf16.msra.mxu0 %v4640
        %5097 = vmatpush.bf16.msra.mxu0 %v4632
        %5098 = vmatpush.bf16.msra.mxu0 %v4624
        %5099 = vmatpush.bf16.msra.mxu0 %v4616
        %5100 = vmatmul.bf16.gmra.mxu0 %v4868
        %v5101 = vpop.f32.mrf.mxu0
        %v5102 = vadd.f32 %v5089, %v5101
        %v5103 = vpop.f32.mrf.mxu0
        %5104 = vdwg.mxu0
        %5105 = vmatpush.bf16.msra.mxu0 %v4736
        %5106 = vmatpush.bf16.msra.mxu0 %v4728
        %5107 = vmatpush.bf16.msra.mxu0 %v4720
        %5108 = vmatpush.bf16.msra.mxu0 %v4712
        %5109 = vmatpush.bf16.msra.mxu0 %v4704
        %5110 = vmatpush.bf16.msra.mxu0 %v4696
        %5111 = vmatpush.bf16.msra.mxu0 %v4688
        %5112 = vmatpush.bf16.msra.mxu0 %v4680
        %5113 = vmatmul.bf16.gmra.mxu0 %v4869
        %v5114 = vpop.f32.mrf.mxu0
        %v5115 = vadd.f32 %v5102, %v5114
        %v5116 = vpop.f32.mrf.mxu0
        %5117 = vdwg.mxu0
        %5118 = vmatpush.bf16.msra.mxu0 %v4800
        %5119 = vmatpush.bf16.msra.mxu0 %v4792
        %5120 = vmatpush.bf16.msra.mxu0 %v4784
        %5121 = vmatpush.bf16.msra.mxu0 %v4776
        %5122 = vmatpush.bf16.msra.mxu0 %v4768
        %5123 = vmatpush.bf16.msra.mxu0 %v4760
        %5124 = vmatpush.bf16.msra.mxu0 %v4752
        %5125 = vmatpush.bf16.msra.mxu0 %v4744
        %5126 = vmatmul.bf16.gmra.mxu0 %v4870
        %v5127 = vpop.f32.mrf.mxu0
        %v5128 = vadd.f32 %v5115, %v5127
        %v5129 = vpop.f32.mrf.mxu0
        %5130 = vdwg.mxu0
        %5131 = vmatpush.bf16.msra.mxu0 %v4609
        %5132 = vmatpush.bf16.msra.mxu0 %v4601
        %5133 = vmatpush.bf16.msra.mxu0 %v4593
        %5134 = vmatpush.bf16.msra.mxu0 %v4585
        %5135 = vmatpush.bf16.msra.mxu0 %v4577
        %5136 = vmatpush.bf16.msra.mxu0 %v4569
        %5137 = vmatpush.bf16.msra.mxu0 %v4561
        %5138 = vmatpush.bf16.msra.mxu0 %v4553
        %5139 = vmatmul.bf16.gmra.mxu0 %v4867
        %v5140 = vpop.f32.mrf.mxu0
        %v5141 = vadd.f32 0.0, %v5140
        %v5142 = vpop.f32.mrf.mxu0
        %5143 = vdwg.mxu0
        %5144 = vmatpush.bf16.msra.mxu0 %v4673
        %5145 = vmatpush.bf16.msra.mxu0 %v4665
        %5146 = vmatpush.bf16.msra.mxu0 %v4657
        %5147 = vmatpush.bf16.msra.mxu0 %v4649
        %5148 = vmatpush.bf16.msra.mxu0 %v4641
        %5149 = vmatpush.bf16.msra.mxu0 %v4633
        %5150 = vmatpush.bf16.msra.mxu0 %v4625
        %5151 = vmatpush.bf16.msra.mxu0 %v4617
        %5152 = vmatmul.bf16.gmra.mxu0 %v4868
        %v5153 = vpop.f32.mrf.mxu0
        %v5154 = vadd.f32 %v5141, %v5153
        %v5155 = vpop.f32.mrf.mxu0
        %5156 = vdwg.mxu0
        %5157 = vmatpush.bf16.msra.mxu0 %v4737
        %5158 = vmatpush.bf16.msra.mxu0 %v4729
        %5159 = vmatpush.bf16.msra.mxu0 %v4721
        %5160 = vmatpush.bf16.msra.mxu0 %v4713
        %5161 = vmatpush.bf16.msra.mxu0 %v4705
        %5162 = vmatpush.bf16.msra.mxu0 %v4697
        %5163 = vmatpush.bf16.msra.mxu0 %v4689
        %5164 = vmatpush.bf16.msra.mxu0 %v4681
        %5165 = vmatmul.bf16.gmra.mxu0 %v4869
        %v5166 = vpop.f32.mrf.mxu0
        %v5167 = vadd.f32 %v5154, %v5166
        %v5168 = vpop.f32.mrf.mxu0
        %5169 = vdwg.mxu0
        %5170 = vmatpush.bf16.msra.mxu0 %v4801
        %5171 = vmatpush.bf16.msra.mxu0 %v4793
        %5172 = vmatpush.bf16.msra.mxu0 %v4785
        %5173 = vmatpush.bf16.msra.mxu0 %v4777
        %5174 = vmatpush.bf16.msra.mxu0 %v4769
        %5175 = vmatpush.bf16.msra.mxu0 %v4761
        %5176 = vmatpush.bf16.msra.mxu0 %v4753
        %5177 = vmatpush.bf16.msra.mxu0 %v4745
        %5178 = vmatmul.bf16.gmra.mxu0 %v4870
        %v5179 = vpop.f32.mrf.mxu0
        %v5180 = vadd.f32 %v5167, %v5179
        %v5181 = vpop.f32.mrf.mxu0
        %5182 = vdwg.mxu0
        %5183 = vmatpush.bf16.msra.mxu0 %v4610
        %5184 = vmatpush.bf16.msra.mxu0 %v4602
        %5185 = vmatpush.bf16.msra.mxu0 %v4594
        %5186 = vmatpush.bf16.msra.mxu0 %v4586
        %5187 = vmatpush.bf16.msra.mxu0 %v4578
        %5188 = vmatpush.bf16.msra.mxu0 %v4570
        %5189 = vmatpush.bf16.msra.mxu0 %v4562
        %5190 = vmatpush.bf16.msra.mxu0 %v4554
        %5191 = vmatmul.bf16.gmra.mxu0 %v4867
        %v5192 = vpop.f32.mrf.mxu0
        %v5193 = vadd.f32 0.0, %v5192
        %v5194 = vpop.f32.mrf.mxu0
        %5195 = vdwg.mxu0
        %5196 = vmatpush.bf16.msra.mxu0 %v4674
        %5197 = vmatpush.bf16.msra.mxu0 %v4666
        %5198 = vmatpush.bf16.msra.mxu0 %v4658
        %5199 = vmatpush.bf16.msra.mxu0 %v4650
        %5200 = vmatpush.bf16.msra.mxu0 %v4642
        %5201 = vmatpush.bf16.msra.mxu0 %v4634
        %5202 = vmatpush.bf16.msra.mxu0 %v4626
        %5203 = vmatpush.bf16.msra.mxu0 %v4618
        %5204 = vmatmul.bf16.gmra.mxu0 %v4868
        %v5205 = vpop.f32.mrf.mxu0
        %v5206 = vadd.f32 %v5193, %v5205
        %v5207 = vpop.f32.mrf.mxu0
        %5208 = vdwg.mxu0
        %5209 = vmatpush.bf16.msra.mxu0 %v4738
        %5210 = vmatpush.bf16.msra.mxu0 %v4730
        %5211 = vmatpush.bf16.msra.mxu0 %v4722
        %5212 = vmatpush.bf16.msra.mxu0 %v4714
        %5213 = vmatpush.bf16.msra.mxu0 %v4706
        %5214 = vmatpush.bf16.msra.mxu0 %v4698
        %5215 = vmatpush.bf16.msra.mxu0 %v4690
        %5216 = vmatpush.bf16.msra.mxu0 %v4682
        %5217 = vmatmul.bf16.gmra.mxu0 %v4869
        %v5218 = vpop.f32.mrf.mxu0
        %v5219 = vadd.f32 %v5206, %v5218
        %v5220 = vpop.f32.mrf.mxu0
        %5221 = vdwg.mxu0
        %5222 = vmatpush.bf16.msra.mxu0 %v4802
        %5223 = vmatpush.bf16.msra.mxu0 %v4794
        %5224 = vmatpush.bf16.msra.mxu0 %v4786
        %5225 = vmatpush.bf16.msra.mxu0 %v4778
        %5226 = vmatpush.bf16.msra.mxu0 %v4770
        %5227 = vmatpush.bf16.msra.mxu0 %v4762
        %5228 = vmatpush.bf16.msra.mxu0 %v4754
        %5229 = vmatpush.bf16.msra.mxu0 %v4746
        %5230 = vmatmul.bf16.gmra.mxu0 %v4870
        %v5231 = vpop.f32.mrf.mxu0
        %v5232 = vadd.f32 %v5219, %v5231
        %v5233 = vpop.f32.mrf.mxu0
        %5234 = vdwg.mxu0
        %5235 = vmatpush.bf16.msra.mxu0 %v4611
        %5236 = vmatpush.bf16.msra.mxu0 %v4603
        %5237 = vmatpush.bf16.msra.mxu0 %v4595
        %5238 = vmatpush.bf16.msra.mxu0 %v4587
        %5239 = vmatpush.bf16.msra.mxu0 %v4579
        %5240 = vmatpush.bf16.msra.mxu0 %v4571
        %5241 = vmatpush.bf16.msra.mxu0 %v4563
        %5242 = vmatpush.bf16.msra.mxu0 %v4555
        %5243 = vmatmul.bf16.gmra.mxu0 %v4867
        %v5244 = vpop.f32.mrf.mxu0
        %v5245 = vadd.f32 0.0, %v5244
        %v5246 = vpop.f32.mrf.mxu0
        %5247 = vdwg.mxu0
        %5248 = vmatpush.bf16.msra.mxu0 %v4675
        %5249 = vmatpush.bf16.msra.mxu0 %v4667
        %5250 = vmatpush.bf16.msra.mxu0 %v4659
        %5251 = vmatpush.bf16.msra.mxu0 %v4651
        %5252 = vmatpush.bf16.msra.mxu0 %v4643
        %5253 = vmatpush.bf16.msra.mxu0 %v4635
        %5254 = vmatpush.bf16.msra.mxu0 %v4627
        %5255 = vmatpush.bf16.msra.mxu0 %v4619
        %5256 = vmatmul.bf16.gmra.mxu0 %v4868
        %v5257 = vpop.f32.mrf.mxu0
        %v5258 = vadd.f32 %v5245, %v5257
        %v5259 = vpop.f32.mrf.mxu0
        %5260 = vdwg.mxu0
        %5261 = vmatpush.bf16.msra.mxu0 %v4739
        %5262 = vmatpush.bf16.msra.mxu0 %v4731
        %5263 = vmatpush.bf16.msra.mxu0 %v4723
        %5264 = vmatpush.bf16.msra.mxu0 %v4715
        %5265 = vmatpush.bf16.msra.mxu0 %v4707
        %5266 = vmatpush.bf16.msra.mxu0 %v4699
        %5267 = vmatpush.bf16.msra.mxu0 %v4691
        %5268 = vmatpush.bf16.msra.mxu0 %v4683
        %5269 = vmatmul.bf16.gmra.mxu0 %v4869
        %v5270 = vpop.f32.mrf.mxu0
        %v5271 = vadd.f32 %v5258, %v5270
        %v5272 = vpop.f32.mrf.mxu0
        %5273 = vdwg.mxu0
        %5274 = vmatpush.bf16.msra.mxu0 %v4803
        %5275 = vmatpush.bf16.msra.mxu0 %v4795
        %5276 = vmatpush.bf16.msra.mxu0 %v4787
        %5277 = vmatpush.bf16.msra.mxu0 %v4779
        %5278 = vmatpush.bf16.msra.mxu0 %v4771
        %5279 = vmatpush.bf16.msra.mxu0 %v4763
        %5280 = vmatpush.bf16.msra.mxu0 %v4755
        %5281 = vmatpush.bf16.msra.mxu0 %v4747
        %5282 = vmatmul.bf16.gmra.mxu0 %v4870
        %v5283 = vpop.f32.mrf.mxu0
        %v5284 = vadd.f32 %v5271, %v5283
        %v5285 = vpop.f32.mrf.mxu0
        %5286 = vdwg.mxu0
        %v5295 = vrot.slane %v4972, 6
        %v5296 = vrot.slane %v5024, 4
        %v5297 = vrot.slane %v5076, 2
        %v5298 = vrot.slane %v5180, 6
        %v5299 = vrot.slane %v5232, 4
        %v5300 = vrot.slane %v5284, 2
        %v5301 = vsel %vm3381, %v4920, %v5295
        %v5302 = vsel %vm3383, %v5296, %v5297
        %v5303 = vsel %vm3385, %v5301, %v5302
        %v5304 = vsel %vm3381, %v5128, %v5298
        %v5305 = vsel %vm3383, %v5299, %v5300
        %v5306 = vsel %vm3385, %v5304, %v5305
        %v5309 = vadd.f32 %v4804, %v5303
        %v5310 = vadd.f32 %v4805, %v5306
        %5311 = vst [vmem:[#allocation2] sm:$0xff] %v5309
        %5312 = vst [vmem:[#allocation2 + $0x8] sm:$0xff] %v5310
        %p5313 = scmp.eq.s32.totalorder %s95, 3
        // Predicated region
        $region261: #{nasr_forward_pallas.1} parent=155 // pred_check
          %p5314 = pneg %p5313
        $region262: #{nasr_forward_pallas.1} parent=155 // pred_check_branch
          %5316 = sbr.rel (%p5314) target = $region264
        $region263: #{nasr_forward_pallas.1} parent=155 // pred_region
          %v5317 = vld [vmem:[#allocation16] sm:$0xf]
          %v5318 = vld [vmem:[#allocation16 + $0x4] sm:$0xf]
          %v5319 = vld [vmem:[#allocation16 + $0x8] sm:$0xf]
          %v5320 = vld [vmem:[#allocation16 + $0xc] sm:$0xf]
          %v5321 = vld [vmem:[#allocation16 + $0x10] sm:$0xf]
          %v5322 = vld [vmem:[#allocation16 + $0x14] sm:$0xf]
          %v5323 = vld [vmem:[#allocation16 + $0x18] sm:$0xf]
          %v5324 = vld [vmem:[#allocation16 + $0x1c] sm:$0xf]
          %v5325 = vld [vmem:[#allocation16 + $0x20] sm:$0xf]
          %v5326 = vld [vmem:[#allocation16 + $0x24] sm:$0xf]
          %v5327 = vld [vmem:[#allocation16 + $0x28] sm:$0xf]
          %v5328 = vld [vmem:[#allocation16 + $0x2c] sm:$0xf]
          %v5329 = vld [vmem:[#allocation16 + $0x30] sm:$0xf]
          %v5330 = vld [vmem:[#allocation16 + $0x34] sm:$0xf]
          %v5331 = vld [vmem:[#allocation16 + $0x38] sm:$0xf]
          %v5332 = vld [vmem:[#allocation16 + $0x3c] sm:$0xf]
          %v5333 = vld [vmem:[#allocation16 + $0x40] sm:$0xf]
          %v5334 = vld [vmem:[#allocation16 + $0x44] sm:$0xf]
          %v5335 = vld [vmem:[#allocation16 + $0x48] sm:$0xf]
          %v5336 = vld [vmem:[#allocation16 + $0x4c] sm:$0xf]
          %v5337 = vld [vmem:[#allocation16 + $0x50] sm:$0xf]
          %v5338 = vld [vmem:[#allocation16 + $0x54] sm:$0xf]
          %v5339 = vld [vmem:[#allocation16 + $0x58] sm:$0xf]
          %v5340 = vld [vmem:[#allocation16 + $0x5c] sm:$0xf]
          %v5341 = vld [vmem:[#allocation16 + $0x60] sm:$0xf]
          %v5342 = vld [vmem:[#allocation16 + $0x64] sm:$0xf]
          %v5343 = vld [vmem:[#allocation16 + $0x68] sm:$0xf]
          %v5344 = vld [vmem:[#allocation16 + $0x6c] sm:$0xf]
          %v5345 = vld [vmem:[#allocation16 + $0x70] sm:$0xf]
          %v5346 = vld [vmem:[#allocation16 + $0x74] sm:$0xf]
          %v5347 = vld [vmem:[#allocation16 + $0x78] sm:$0xf]
          %v5348 = vld [vmem:[#allocation16 + $0x7c] sm:$0xf]
          %v5349 = vld [vmem:[#allocation16 + $0x80] sm:$0xf]
          %v5350 = vld [vmem:[#allocation16 + $0x84] sm:$0xf]
          %v5351 = vld [vmem:[#allocation16 + $0x88] sm:$0xf]
          %v5352 = vld [vmem:[#allocation16 + $0x8c] sm:$0xf]
          %v5353 = vld [vmem:[#allocation16 + $0x90] sm:$0xf]
          %v5354 = vld [vmem:[#allocation16 + $0x94] sm:$0xf]
          %v5355 = vld [vmem:[#allocation16 + $0x98] sm:$0xf]
          %v5356 = vld [vmem:[#allocation16 + $0x9c] sm:$0xf]
          %v5357 = vld [vmem:[#allocation16 + $0xa0] sm:$0xf]
          %v5358 = vld [vmem:[#allocation16 + $0xa4] sm:$0xf]
          %v5359 = vld [vmem:[#allocation16 + $0xa8] sm:$0xf]
          %v5360 = vld [vmem:[#allocation16 + $0xac] sm:$0xf]
          %v5361 = vld [vmem:[#allocation16 + $0xb0] sm:$0xf]
          %v5362 = vld [vmem:[#allocation16 + $0xb4] sm:$0xf]
          %v5363 = vld [vmem:[#allocation16 + $0xb8] sm:$0xf]
          %v5364 = vld [vmem:[#allocation16 + $0xbc] sm:$0xf]
          %v5365 = vld [vmem:[#allocation16 + $0xc0] sm:$0xf]
          %v5366 = vld [vmem:[#allocation16 + $0xc4] sm:$0xf]
          %v5367 = vld [vmem:[#allocation16 + $0xc8] sm:$0xf]
          %v5368 = vld [vmem:[#allocation16 + $0xcc] sm:$0xf]
          %v5369 = vld [vmem:[#allocation16 + $0xd0] sm:$0xf]
          %v5370 = vld [vmem:[#allocation16 + $0xd4] sm:$0xf]
          %v5371 = vld [vmem:[#allocation16 + $0xd8] sm:$0xf]
          %v5372 = vld [vmem:[#allocation16 + $0xdc] sm:$0xf]
          %v5373 = vld [vmem:[#allocation16 + $0xe0] sm:$0xf]
          %v5374 = vld [vmem:[#allocation16 + $0xe4] sm:$0xf]
          %v5375 = vld [vmem:[#allocation16 + $0xe8] sm:$0xf]
          %v5376 = vld [vmem:[#allocation16 + $0xec] sm:$0xf]
          %v5377 = vld [vmem:[#allocation16 + $0xf0] sm:$0xf]
          %v5378 = vld [vmem:[#allocation16 + $0xf4] sm:$0xf]
          %v5379 = vld [vmem:[#allocation16 + $0xf8] sm:$0xf]
          %v5380 = vld [vmem:[#allocation16 + $0xfc] sm:$0xf]
          %v5381 = vld [vmem:[#allocation18] sm:$0x1]
          %v5382 = vld [vmem:[#allocation19] sm:$0xf]
          %v5383 = vld [vmem:[#allocation19 + $0x4] sm:$0x1]
          %v5384 = vld [vmem:[#allocation21] sm:$0x1]
          %v5385 = vld [vmem:[%s33] sm:$0xf]
          %v5386 = vld [vmem:[%s33 + $0x4] sm:$0xf]
          %v5387 = vld [vmem:[%s33 + $0x8] sm:$0xf]
          %v5388 = vld [vmem:[%s33 + $0xc] sm:$0xf]
          %v5389 = vld [vmem:[%s33 + $0x10] sm:$0xf]
          %v5390 = vld [vmem:[%s33 + $0x14] sm:$0xf]
          %v5391 = vld [vmem:[%s33 + $0x18] sm:$0xf]
          %v5392 = vld [vmem:[%s33 + $0x1c] sm:$0xf]
          %v5393 = vld [vmem:[%s33 + $0x20] sm:$0xf]
          %v5394 = vld [vmem:[%s33 + $0x24] sm:$0xf]
          %v5395 = vld [vmem:[%s33 + $0x28] sm:$0xf]
          %v5396 = vld [vmem:[%s33 + $0x2c] sm:$0xf]
          %v5397 = vld [vmem:[%s33 + $0x30] sm:$0xf]
          %v5398 = vld [vmem:[%s33 + $0x34] sm:$0xf]
          %v5399 = vld [vmem:[%s33 + $0x38] sm:$0xf]
          %v5400 = vld [vmem:[%s33 + $0x3c] sm:$0xf]
          %v5401 = vld [vmem:[#allocation22] sm:$0x1]
          %v5402 = vld [vmem:[#allocation24] sm:$0xf]
          %v5403 = vld [vmem:[#allocation24 + $0x4] sm:$0x1]
          %v5404 = vld [vmem:[#allocation25] sm:$0x1]
          %v5405 = vld [vmem:[%s41] sm:$0xf]
          %v5406 = vld [vmem:[%s41 + $0x4] sm:$0xf]
          %v5407 = vld [vmem:[%s41 + $0x8] sm:$0xf]
          %v5408 = vld [vmem:[%s41 + $0xc] sm:$0xf]
          %v5409 = vld [vmem:[%s41 + $0x10] sm:$0xf]
          %v5410 = vld [vmem:[%s41 + $0x14] sm:$0xf]
          %v5411 = vld [vmem:[%s41 + $0x18] sm:$0xf]
          %v5412 = vld [vmem:[%s41 + $0x1c] sm:$0xf]
          %v5413 = vld [vmem:[%s41 + $0x20] sm:$0xf]
          %v5414 = vld [vmem:[%s41 + $0x24] sm:$0xf]
          %v5415 = vld [vmem:[%s41 + $0x28] sm:$0xf]
          %v5416 = vld [vmem:[%s41 + $0x2c] sm:$0xf]
          %v5417 = vld [vmem:[%s41 + $0x30] sm:$0x3]
          %v5418 = vld [vmem:[#allocation27] sm:$0x1]
          %v5419 = vld [vmem:[#allocation28] sm:$0x1]
          %v5420 = vld [vmem:[#allocation30] sm:$0x1]
          %v5421 = vld [vmem:[#allocation31] sm:$0xf]
          %v5422 = vld [vmem:[#allocation31 + $0x4] sm:$0x1]
          %v5423 = vld [vmem:[#allocation33] sm:$0x1]
          %v5424 = vld [vmem:[#allocation34] sm:$0xff]
          %v5425 = vld [vmem:[#allocation34 + $0x8] sm:$0xff]
          %v5426 = vld [vmem:[#allocation34 + $0x10] sm:$0xff]
          %v5427 = vld [vmem:[#allocation34 + $0x18] sm:$0xff]
          %v5428 = vld [vmem:[#allocation34 + $0x20] sm:$0xff]
          %v5429 = vld [vmem:[#allocation34 + $0x28] sm:$0xff]
          %v5430 = vld [vmem:[#allocation34 + $0x30] sm:$0xff]
          %v5431 = vld [vmem:[#allocation34 + $0x38] sm:$0xff]
          %v5432 = vld [vmem:[#allocation34 + $0x40] sm:$0xff]
          %v5433 = vld [vmem:[#allocation34 + $0x48] sm:$0xff]
          %v5434 = vld [vmem:[#allocation34 + $0x50] sm:$0xff]
          %v5435 = vld [vmem:[#allocation34 + $0x58] sm:$0xff]
          %v5436 = vld [vmem:[#allocation34 + $0x60] sm:$0xff]
          %v5437 = vld [vmem:[#allocation34 + $0x68] sm:$0xff]
          %v5438 = vld [vmem:[#allocation34 + $0x70] sm:$0xff]
          %v5439 = vld [vmem:[#allocation34 + $0x78] sm:$0xff]
          %v5440 = vld [vmem:[#allocation34 + $0x80] sm:$0xff]
          %v5441 = vld [vmem:[#allocation34 + $0x88] sm:$0xff]
          %v5442 = vld [vmem:[#allocation34 + $0x90] sm:$0xff]
          %v5443 = vld [vmem:[#allocation34 + $0x98] sm:$0xff]
          %v5444 = vld [vmem:[#allocation34 + $0xa0] sm:$0xff]
          %v5445 = vld [vmem:[#allocation34 + $0xa8] sm:$0xff]
          %v5446 = vld [vmem:[#allocation34 + $0xb0] sm:$0xff]
          %v5447 = vld [vmem:[#allocation34 + $0xb8] sm:$0xff]
          %v5448 = vld [vmem:[#allocation34 + $0xc0] sm:$0xff]
          %v5449 = vld [vmem:[#allocation34 + $0xc8] sm:$0xff]
          %v5450 = vld [vmem:[#allocation34 + $0xd0] sm:$0xff]
          %v5451 = vld [vmem:[#allocation34 + $0xd8] sm:$0xff]
          %v5452 = vld [vmem:[#allocation34 + $0xe0] sm:$0xff]
          %v5453 = vld [vmem:[#allocation34 + $0xe8] sm:$0xff]
          %v5454 = vld [vmem:[#allocation34 + $0xf0] sm:$0xff]
          %v5455 = vld [vmem:[#allocation34 + $0xf8] sm:$0xff]
          %v5456 = vld [vmem:[#allocation34 + $0x100] sm:$0xff]
          %v5457 = vld [vmem:[#allocation34 + $0x108] sm:$0xff]
          %v5458 = vld [vmem:[#allocation34 + $0x110] sm:$0xff]
          %v5459 = vld [vmem:[#allocation34 + $0x118] sm:$0xff]
          %v5460 = vld [vmem:[#allocation34 + $0x120] sm:$0xff]
          %v5461 = vld [vmem:[#allocation34 + $0x128] sm:$0xff]
          %v5462 = vld [vmem:[#allocation34 + $0x130] sm:$0xff]
          %v5463 = vld [vmem:[#allocation34 + $0x138] sm:$0xff]
          %v5464 = vld [vmem:[#allocation36] sm:$0x3]
          %v5465 = vld [vmem:[#allocation37] sm:$0xf]
          %v5466 = vld [vmem:[#allocation37 + $0x4] sm:$0xf]
          %v5467 = vld [vmem:[#allocation37 + $0x8] sm:$0xf]
          %v5468 = vld [vmem:[#allocation37 + $0xc] sm:$0xf]
          %v5469 = vld [vmem:[#allocation37 + $0x10] sm:$0xf]
          %v5470 = vld [vmem:[#allocation37 + $0x14] sm:$0xf]
          %v5471 = vld [vmem:[#allocation37 + $0x18] sm:$0xf]
          %v5472 = vld [vmem:[#allocation37 + $0x1c] sm:$0xf]
          %v5473 = vld [vmem:[#allocation37 + $0x20] sm:$0xf]
          %v5474 = vld [vmem:[#allocation37 + $0x24] sm:$0xf]
          %v5475 = vld [vmem:[#allocation37 + $0x28] sm:$0xf]
          %v5476 = vld [vmem:[#allocation37 + $0x2c] sm:$0xf]
          %v5477 = vld [vmem:[#allocation37 + $0x30] sm:$0xf]
          %v5478 = vld [vmem:[#allocation37 + $0x34] sm:$0xf]
          %v5479 = vld [vmem:[#allocation37 + $0x38] sm:$0xf]
          %v5480 = vld [vmem:[#allocation37 + $0x3c] sm:$0xf]
          %v5481 = vld [vmem:[#allocation37 + $0x40] sm:$0xf]
          %v5482 = vld [vmem:[#allocation37 + $0x44] sm:$0xf]
          %v5483 = vld [vmem:[#allocation37 + $0x48] sm:$0xf]
          %v5484 = vld [vmem:[#allocation37 + $0x4c] sm:$0xf]
          %v5485 = vld [vmem:[#allocation37 + $0x50] sm:$0xf]
          %v5486 = vld [vmem:[#allocation37 + $0x54] sm:$0xf]
          %v5487 = vld [vmem:[#allocation37 + $0x58] sm:$0xf]
          %v5488 = vld [vmem:[#allocation37 + $0x5c] sm:$0xf]
          %v5489 = vld [vmem:[#allocation37 + $0x60] sm:$0xf]
          %v5490 = vld [vmem:[#allocation37 + $0x64] sm:$0xf]
          %v5491 = vld [vmem:[#allocation37 + $0x68] sm:$0xf]
          %v5492 = vld [vmem:[#allocation37 + $0x6c] sm:$0xf]
          %v5493 = vld [vmem:[#allocation37 + $0x70] sm:$0xf]
          %v5494 = vld [vmem:[#allocation37 + $0x74] sm:$0xf]
          %v5495 = vld [vmem:[#allocation37 + $0x78] sm:$0xf]
          %v5496 = vld [vmem:[#allocation37 + $0x7c] sm:$0xf]
          %v5497 = vld [vmem:[#allocation39] sm:$0x1]
          %v5498 = vld [vmem:[%s61] sm:$0xf]
          %v5499 = vld [vmem:[%s61 + $0x4] sm:$0xf]
          %v5500 = vld [vmem:[%s61 + $0x8] sm:$0xf]
          %v5501 = vld [vmem:[%s61 + $0xc] sm:$0xf]
          %v5502 = vld [vmem:[%s61 + $0x10] sm:$0xf]
          %v5503 = vld [vmem:[%s61 + $0x14] sm:$0xf]
          %v5504 = vld [vmem:[%s61 + $0x18] sm:$0xf]
          %v5505 = vld [vmem:[%s61 + $0x1c] sm:$0xf]
          %v5506 = vld [vmem:[%s61 + $0x20] sm:$0xf]
          %v5507 = vld [vmem:[%s61 + $0x24] sm:$0xf]
          %v5508 = vld [vmem:[%s61 + $0x28] sm:$0xf]
          %v5509 = vld [vmem:[%s61 + $0x2c] sm:$0xf]
          %v5510 = vld [vmem:[%s61 + $0x30] sm:$0xf]
          %v5511 = vld [vmem:[%s61 + $0x34] sm:$0xf]
          %v5512 = vld [vmem:[%s61 + $0x38] sm:$0xf]
          %v5513 = vld [vmem:[%s61 + $0x3c] sm:$0xf]
          %v5514 = vld [vmem:[#allocation40] sm:$0x1]
          %v5515 = vld [vmem:[%s65] sm:$0xff]
          %v5516 = vld [vmem:[%s65 + $0x8] sm:$0xff]
          %v5517 = vld [vmem:[%s65 + $0x10] sm:$0xff]
          %v5518 = vld [vmem:[%s65 + $0x18] sm:$0xff]
          %v5519 = vld [vmem:[%s65 + $0x20] sm:$0xff]
          %v5520 = vld [vmem:[%s65 + $0x28] sm:$0xff]
          %v5521 = vld [vmem:[%s65 + $0x30] sm:$0xff]
          %v5522 = vld [vmem:[%s65 + $0x38] sm:$0xff]
          %v5523 = vld [vmem:[#allocation3] sm:$0x1]
          %v5524 = vld [vmem:[#allocation2] sm:$0xff]
          %v5525 = vld [vmem:[#allocation2 + $0x8] sm:$0xff]
          %v5526 = vld [vmem:[#allocation9] sm:$0xff]
          %v5527 = vld [vmem:[#allocation10] sm:$0xff]
          %v5528 = vld [vmem:[#allocation12] sm:$0xff]
          %v5529 = vld [vmem:[#allocation12 + $0x8] sm:$0xff]
          %v5530 = vld [vmem:[#allocation12 + $0x10] sm:$0xff]
          %v5531 = vld [vmem:[#allocation12 + $0x18] sm:$0xff]
          %v5532 = vld [vmem:[#allocation12 + $0x20] sm:$0xff]
          %v5533 = vld [vmem:[#allocation12 + $0x28] sm:$0xff]
          %v5534 = vld [vmem:[#allocation12 + $0x30] sm:$0xff]
          %v5535 = vld [vmem:[#allocation12 + $0x38] sm:$0xff]
          %v5536 = vld [vmem:[#allocation12 + $0x40] sm:$0xff]
          %v5537 = vld [vmem:[#allocation12 + $0x48] sm:$0xff]
          %v5538 = vld [vmem:[#allocation12 + $0x50] sm:$0xff]
          %v5539 = vld [vmem:[#allocation12 + $0x58] sm:$0xff]
          %v5540 = vld [vmem:[#allocation12 + $0x60] sm:$0xff]
          %v5541 = vld [vmem:[#allocation12 + $0x68] sm:$0xff]
          %v5542 = vld [vmem:[#allocation12 + $0x70] sm:$0xff]
          %v5543 = vld [vmem:[#allocation12 + $0x78] sm:$0xff]
          %v5544 = vld [vmem:[#allocation12 + $0x80] sm:$0xff]
          %v5545 = vld [vmem:[#allocation12 + $0x88] sm:$0xff]
          %v5546 = vld [vmem:[#allocation12 + $0x90] sm:$0xff]
          %v5547 = vld [vmem:[#allocation12 + $0x98] sm:$0xff]
          %v5548 = vld [vmem:[#allocation12 + $0xa0] sm:$0xff]
          %v5549 = vld [vmem:[#allocation12 + $0xa8] sm:$0xff]
          %v5550 = vld [vmem:[#allocation12 + $0xb0] sm:$0xff]
          %v5551 = vld [vmem:[#allocation12 + $0xb8] sm:$0xff]
          %v5552 = vld [vmem:[#allocation12 + $0xc0] sm:$0xff]
          %v5553 = vld [vmem:[#allocation12 + $0xc8] sm:$0xff]
          %v5554 = vld [vmem:[#allocation12 + $0xd0] sm:$0xff]
          %v5555 = vld [vmem:[#allocation12 + $0xd8] sm:$0xff]
          %v5556 = vld [vmem:[#allocation12 + $0xe0] sm:$0xff]
          %v5557 = vld [vmem:[#allocation12 + $0xe8] sm:$0xff]
          %v5558 = vld [vmem:[#allocation12 + $0xf0] sm:$0xff]
          %v5559 = vld [vmem:[#allocation12 + $0xf8] sm:$0xff]
          %v5560 = vld [vmem:[#allocation12 + $0x100] sm:$0xff]
          %v5561 = vld [vmem:[#allocation12 + $0x108] sm:$0xff]
          %v5562 = vld [vmem:[#allocation12 + $0x110] sm:$0xff]
          %v5563 = vld [vmem:[#allocation12 + $0x118] sm:$0xff]
          %v5564 = vld [vmem:[#allocation12 + $0x120] sm:$0xff]
          %v5565 = vld [vmem:[#allocation12 + $0x128] sm:$0xff]
          %v5566 = vld [vmem:[#allocation12 + $0x130] sm:$0xff]
          %v5567 = vld [vmem:[#allocation12 + $0x138] sm:$0xff]
          %v5568 = vld [vmem:[#allocation12 + $0x140] sm:$0xff]
          %v5569 = vld [vmem:[#allocation12 + $0x148] sm:$0xff]
          %v5570 = vld [vmem:[#allocation12 + $0x150] sm:$0xff]
          %v5571 = vld [vmem:[#allocation12 + $0x158] sm:$0xff]
          %v5572 = vld [vmem:[#allocation12 + $0x160] sm:$0xff]
          %v5573 = vld [vmem:[#allocation12 + $0x168] sm:$0xff]
          %v5574 = vld [vmem:[#allocation12 + $0x170] sm:$0xff]
          %v5575 = vld [vmem:[#allocation12 + $0x178] sm:$0xff]
          %v5576 = vld [vmem:[#allocation12 + $0x180] sm:$0xff]
          %v5577 = vld [vmem:[#allocation12 + $0x188] sm:$0xff]
          %v5578 = vld [vmem:[#allocation12 + $0x190] sm:$0xff]
          %v5579 = vld [vmem:[#allocation12 + $0x198] sm:$0xff]
          %v5580 = vld [vmem:[#allocation12 + $0x1a0] sm:$0xff]
          %v5581 = vld [vmem:[#allocation12 + $0x1a8] sm:$0xff]
          %v5582 = vld [vmem:[#allocation12 + $0x1b0] sm:$0xff]
          %v5583 = vld [vmem:[#allocation12 + $0x1b8] sm:$0xff]
          %v5584 = vld [vmem:[#allocation12 + $0x1c0] sm:$0xff]
          %v5585 = vld [vmem:[#allocation12 + $0x1c8] sm:$0xff]
          %v5586 = vld [vmem:[#allocation12 + $0x1d0] sm:$0xff]
          %v5587 = vld [vmem:[#allocation12 + $0x1d8] sm:$0xff]
          %v5588 = vld [vmem:[#allocation12 + $0x1e0] sm:$0xff]
          %v5589 = vld [vmem:[#allocation12 + $0x1e8] sm:$0xff]
          %v5590 = vld [vmem:[#allocation12 + $0x1f0] sm:$0xff]
          %v5591 = vld [vmem:[#allocation12 + $0x1f8] sm:$0xff]
          %v5592 = vld [vmem:[#allocation12 + $0x200] sm:$0xff]
          %v5593 = vld [vmem:[#allocation12 + $0x208] sm:$0xff]
          %v5594 = vld [vmem:[#allocation12 + $0x210] sm:$0xff]
          %v5595 = vld [vmem:[#allocation12 + $0x218] sm:$0xff]
          %v5596 = vld [vmem:[#allocation12 + $0x220] sm:$0xff]
          %v5597 = vld [vmem:[#allocation12 + $0x228] sm:$0xff]
          %v5598 = vld [vmem:[#allocation12 + $0x230] sm:$0xff]
          %v5599 = vld [vmem:[#allocation12 + $0x238] sm:$0xff]
          %v5600 = vld [vmem:[#allocation12 + $0x240] sm:$0xff]
          %v5601 = vld [vmem:[#allocation12 + $0x248] sm:$0xff]
          %v5602 = vld [vmem:[#allocation12 + $0x250] sm:$0xff]
          %v5603 = vld [vmem:[#allocation12 + $0x258] sm:$0xff]
          %v5604 = vld [vmem:[#allocation12 + $0x260] sm:$0xff]
          %v5605 = vld [vmem:[#allocation12 + $0x268] sm:$0xff]
          %v5606 = vld [vmem:[#allocation12 + $0x270] sm:$0xff]
          %v5607 = vld [vmem:[#allocation12 + $0x278] sm:$0xff]
          %v5608 = vld [vmem:[#allocation12 + $0x280] sm:$0xff]
          %v5609 = vld [vmem:[#allocation12 + $0x288] sm:$0xff]
          %v5610 = vld [vmem:[#allocation12 + $0x290] sm:$0xff]
          %v5611 = vld [vmem:[#allocation12 + $0x298] sm:$0xff]
          %v5612 = vld [vmem:[#allocation12 + $0x2a0] sm:$0xff]
          %v5613 = vld [vmem:[#allocation12 + $0x2a8] sm:$0xff]
          %v5614 = vld [vmem:[#allocation12 + $0x2b0] sm:$0xff]
          %v5615 = vld [vmem:[#allocation12 + $0x2b8] sm:$0xff]
          %v5616 = vld [vmem:[#allocation12 + $0x2c0] sm:$0xff]
          %v5617 = vld [vmem:[#allocation12 + $0x2c8] sm:$0xff]
          %v5618 = vld [vmem:[#allocation12 + $0x2d0] sm:$0xff]
          %v5619 = vld [vmem:[#allocation12 + $0x2d8] sm:$0xff]
          %v5620 = vld [vmem:[#allocation12 + $0x2e0] sm:$0xff]
          %v5621 = vld [vmem:[#allocation12 + $0x2e8] sm:$0xff]
          %v5622 = vld [vmem:[#allocation12 + $0x2f0] sm:$0xff]
          %v5623 = vld [vmem:[#allocation12 + $0x2f8] sm:$0xff]
          %v5624 = vld [vmem:[#allocation12 + $0x300] sm:$0xff]
          %v5625 = vld [vmem:[#allocation12 + $0x308] sm:$0xff]
          %v5626 = vld [vmem:[#allocation12 + $0x310] sm:$0xff]
          %v5627 = vld [vmem:[#allocation12 + $0x318] sm:$0xff]
          %v5628 = vld [vmem:[#allocation12 + $0x320] sm:$0xff]
          %v5629 = vld [vmem:[#allocation12 + $0x328] sm:$0xff]
          %v5630 = vld [vmem:[#allocation12 + $0x330] sm:$0xff]
          %v5631 = vld [vmem:[#allocation12 + $0x338] sm:$0xff]
          %v5632 = vld [vmem:[#allocation12 + $0x340] sm:$0xff]
          %v5633 = vld [vmem:[#allocation12 + $0x348] sm:$0xff]
          %v5634 = vld [vmem:[#allocation12 + $0x350] sm:$0xff]
          %v5635 = vld [vmem:[#allocation12 + $0x358] sm:$0xff]
          %v5636 = vld [vmem:[#allocation12 + $0x360] sm:$0xff]
          %v5637 = vld [vmem:[#allocation12 + $0x368] sm:$0xff]
          %v5638 = vld [vmem:[#allocation12 + $0x370] sm:$0xff]
          %v5639 = vld [vmem:[#allocation12 + $0x378] sm:$0xff]
          %v5640 = vld [vmem:[#allocation12 + $0x380] sm:$0xff]
          %v5641 = vld [vmem:[#allocation12 + $0x388] sm:$0xff]
          %v5642 = vld [vmem:[#allocation12 + $0x390] sm:$0xff]
          %v5643 = vld [vmem:[#allocation12 + $0x398] sm:$0xff]
          %v5644 = vld [vmem:[#allocation12 + $0x3a0] sm:$0xff]
          %v5645 = vld [vmem:[#allocation12 + $0x3a8] sm:$0xff]
          %v5646 = vld [vmem:[#allocation12 + $0x3b0] sm:$0xff]
          %v5647 = vld [vmem:[#allocation12 + $0x3b8] sm:$0xff]
          %v5648 = vld [vmem:[#allocation12 + $0x3c0] sm:$0xff]
          %v5649 = vld [vmem:[#allocation12 + $0x3c8] sm:$0xff]
          %v5650 = vld [vmem:[#allocation12 + $0x3d0] sm:$0xff]
          %v5651 = vld [vmem:[#allocation12 + $0x3d8] sm:$0xff]
          %v5652 = vld [vmem:[#allocation12 + $0x3e0] sm:$0xff]
          %v5653 = vld [vmem:[#allocation12 + $0x3e8] sm:$0xff]
          %v5654 = vld [vmem:[#allocation12 + $0x3f0] sm:$0xff]
          %v5655 = vld [vmem:[#allocation12 + $0x3f8] sm:$0xff]
          %v5656 = vld [vmem:[#allocation13] sm:$0xf]
          %v5657 = vld [vmem:[#allocation15] sm:$0xf]
          %v5659 = vperm.slane %v5526, 0
          %v5660 = vperm.slane %v5526, 1
          %v5661 = vperm.slane %v5526, 2
          %v5662 = vperm.slane %v5526, 3
          %v5663 = vperm.slane %v5526, 4
          %v5664 = vperm.slane %v5526, 5
          %v5665 = vperm.slane %v5526, 6
          %v5666 = vperm.slane %v5526, 7
          %v5667 = vrot.slane %v5660, 6
          %v5668 = vrot.slane %v5661, 4
          %v5669 = vrot.slane %v5662, 2
          %v5670 = vrot.slane %v5664, 6
          %v5671 = vrot.slane %v5665, 4
          %v5672 = vrot.slane %v5666, 2
          %v5673 = vsel %vm3381, %v5659, %v5667
          %v5674 = vsel %vm3383, %v5668, %v5669
          %v5675 = vsel %vm3385, %v5673, %v5674
          %v5676 = vsel %vm3381, %v5663, %v5670
          %v5677 = vsel %vm3383, %v5671, %v5672
          %v5678 = vsel %vm3385, %v5676, %v5677
          %v5681 = vmul.f32 %v5524, %v5675
          %v5682 = vmul.f32 %v5525, %v5678
          %v5684 = vperm.slane %v5527, 0
          %v5685 = vperm.slane %v5527, 1
          %v5686 = vperm.slane %v5527, 2
          %v5687 = vperm.slane %v5527, 3
          %v5688 = vperm.slane %v5527, 4
          %v5689 = vperm.slane %v5527, 5
          %v5690 = vperm.slane %v5527, 6
          %v5691 = vperm.slane %v5527, 7
          %v5692 = vrot.slane %v5685, 6
          %v5693 = vrot.slane %v5686, 4
          %v5694 = vrot.slane %v5687, 2
          %v5695 = vrot.slane %v5689, 6
          %v5696 = vrot.slane %v5690, 4
          %v5697 = vrot.slane %v5691, 2
          %v5698 = vsel %vm3381, %v5684, %v5692
          %v5699 = vsel %vm3383, %v5693, %v5694
          %v5700 = vsel %vm3385, %v5698, %v5699
          %v5701 = vsel %vm3381, %v5688, %v5695
          %v5702 = vsel %vm3383, %v5696, %v5697
          %v5703 = vsel %vm3385, %v5701, %v5702
          %v5706 = vadd.f32 %v5681, %v5700
          %v5707 = vadd.f32 %v5682, %v5703
          %v5708 = vmax.f32 %v5706, 0.0
          %v5709 = vmax.f32 %v5707, 0.0
          %5712 = vst [vmem:[#allocation1] ss:$4 sm:$0xff] %v5708
          %s5713 = scalar_lea.vmem [#allocation1], 32
          %5714 = vst [vmem:[%s5713] ss:$4 sm:$0xff] %v5709
          %v5715 = vld.sshfl [vmem:[#allocation1] sm:$0xff pattern:$0x73625140]
          %v5716 = vld.sshfl [vmem:[#allocation1 + $0x8] sm:$0xff pattern:$0x73625140]
          %v5717 = vld.sshfl [vmem:[#allocation1 + $0x10] sm:$0xff pattern:$0x73625140]
          %v5718 = vld.sshfl [vmem:[#allocation1 + $0x18] sm:$0xff pattern:$0x73625140]
          %v5719 = vld.sshfl [vmem:[#allocation1 + $0x20] sm:$0xff pattern:$0x73625140]
          %v5720 = vld.sshfl [vmem:[#allocation1 + $0x28] sm:$0xff pattern:$0x73625140]
          %v5721 = vld.sshfl [vmem:[#allocation1 + $0x30] sm:$0xff pattern:$0x73625140]
          %v5722 = vld.sshfl [vmem:[#allocation1 + $0x38] sm:$0xff pattern:$0x73625140]
          %v5731 = vpack.c.bf16 %v5715, %v5715
          %v5732 = vpack.c.bf16 %v5716, %v5716
          %v5733 = vpack.c.bf16 %v5717, %v5717
          %v5734 = vpack.c.bf16 %v5718, %v5718
          %v5735 = vpack.c.bf16 %v5719, %v5719
          %v5736 = vpack.c.bf16 %v5720, %v5720
          %v5737 = vpack.c.bf16 %v5721, %v5721
          %v5738 = vpack.c.bf16 %v5722, %v5722
          %v5739 = vunpack.c.0.s8 %v5528
          %v5740 = vunpack.c.0.s8 %v5529
          %v5741 = vunpack.c.0.s8 %v5530
          %v5742 = vunpack.c.0.s8 %v5531
          %v5743 = vunpack.c.1.s8 %v5528
          %v5744 = vunpack.c.1.s8 %v5529
          %v5745 = vunpack.c.1.s8 %v5530
          %v5746 = vunpack.c.1.s8 %v5531
          %v5747 = vunpack.c.2.s8 %v5528
          %v5748 = vunpack.c.2.s8 %v5529
          %v5749 = vunpack.c.2.s8 %v5530
          %v5750 = vunpack.c.2.s8 %v5531
          %v5751 = vunpack.c.3.s8 %v5528
          %v5752 = vunpack.c.3.s8 %v5529
          %v5753 = vunpack.c.3.s8 %v5530
          %v5754 = vunpack.c.3.s8 %v5531
          %v5755 = vunpack.c.0.s8 %v5532
          %v5756 = vunpack.c.0.s8 %v5533
          %v5757 = vunpack.c.0.s8 %v5534
          %v5758 = vunpack.c.0.s8 %v5535
          %v5759 = vunpack.c.1.s8 %v5532
          %v5760 = vunpack.c.1.s8 %v5533
          %v5761 = vunpack.c.1.s8 %v5534
          %v5762 = vunpack.c.1.s8 %v5535
          %v5763 = vunpack.c.2.s8 %v5532
          %v5764 = vunpack.c.2.s8 %v5533
          %v5765 = vunpack.c.2.s8 %v5534
          %v5766 = vunpack.c.2.s8 %v5535
          %v5767 = vunpack.c.3.s8 %v5532
          %v5768 = vunpack.c.3.s8 %v5533
          %v5769 = vunpack.c.3.s8 %v5534
          %v5770 = vunpack.c.3.s8 %v5535
          %v5771 = vunpack.c.0.s8 %v5536
          %v5772 = vunpack.c.0.s8 %v5537
          %v5773 = vunpack.c.0.s8 %v5538
          %v5774 = vunpack.c.0.s8 %v5539
          %v5775 = vunpack.c.1.s8 %v5536
          %v5776 = vunpack.c.1.s8 %v5537
          %v5777 = vunpack.c.1.s8 %v5538
          %v5778 = vunpack.c.1.s8 %v5539
          %v5779 = vunpack.c.2.s8 %v5536
          %v5780 = vunpack.c.2.s8 %v5537
          %v5781 = vunpack.c.2.s8 %v5538
          %v5782 = vunpack.c.2.s8 %v5539
          %v5783 = vunpack.c.3.s8 %v5536
          %v5784 = vunpack.c.3.s8 %v5537
          %v5785 = vunpack.c.3.s8 %v5538
          %v5786 = vunpack.c.3.s8 %v5539
          %v5787 = vunpack.c.0.s8 %v5540
          %v5788 = vunpack.c.0.s8 %v5541
          %v5789 = vunpack.c.0.s8 %v5542
          %v5790 = vunpack.c.0.s8 %v5543
          %v5791 = vunpack.c.1.s8 %v5540
          %v5792 = vunpack.c.1.s8 %v5541
          %v5793 = vunpack.c.1.s8 %v5542
          %v5794 = vunpack.c.1.s8 %v5543
          %v5795 = vunpack.c.2.s8 %v5540
          %v5796 = vunpack.c.2.s8 %v5541
          %v5797 = vunpack.c.2.s8 %v5542
          %v5798 = vunpack.c.2.s8 %v5543
          %v5799 = vunpack.c.3.s8 %v5540
          %v5800 = vunpack.c.3.s8 %v5541
          %v5801 = vunpack.c.3.s8 %v5542
          %v5802 = vunpack.c.3.s8 %v5543
          %v5803 = vunpack.c.0.s8 %v5544
          %v5804 = vunpack.c.0.s8 %v5545
          %v5805 = vunpack.c.0.s8 %v5546
          %v5806 = vunpack.c.0.s8 %v5547
          %v5807 = vunpack.c.1.s8 %v5544
          %v5808 = vunpack.c.1.s8 %v5545
          %v5809 = vunpack.c.1.s8 %v5546
          %v5810 = vunpack.c.1.s8 %v5547
          %v5811 = vunpack.c.2.s8 %v5544
          %v5812 = vunpack.c.2.s8 %v5545
          %v5813 = vunpack.c.2.s8 %v5546
          %v5814 = vunpack.c.2.s8 %v5547
          %v5815 = vunpack.c.3.s8 %v5544
          %v5816 = vunpack.c.3.s8 %v5545
          %v5817 = vunpack.c.3.s8 %v5546
          %v5818 = vunpack.c.3.s8 %v5547
          %v5819 = vunpack.c.0.s8 %v5548
          %v5820 = vunpack.c.0.s8 %v5549
          %v5821 = vunpack.c.0.s8 %v5550
          %v5822 = vunpack.c.0.s8 %v5551
          %v5823 = vunpack.c.1.s8 %v5548
          %v5824 = vunpack.c.1.s8 %v5549
          %v5825 = vunpack.c.1.s8 %v5550
          %v5826 = vunpack.c.1.s8 %v5551
          %v5827 = vunpack.c.2.s8 %v5548
          %v5828 = vunpack.c.2.s8 %v5549
          %v5829 = vunpack.c.2.s8 %v5550
          %v5830 = vunpack.c.2.s8 %v5551
          %v5831 = vunpack.c.3.s8 %v5548
          %v5832 = vunpack.c.3.s8 %v5549
          %v5833 = vunpack.c.3.s8 %v5550
          %v5834 = vunpack.c.3.s8 %v5551
          %v5835 = vunpack.c.0.s8 %v5552
          %v5836 = vunpack.c.0.s8 %v5553
          %v5837 = vunpack.c.0.s8 %v5554
          %v5838 = vunpack.c.0.s8 %v5555
          %v5839 = vunpack.c.1.s8 %v5552
          %v5840 = vunpack.c.1.s8 %v5553
          %v5841 = vunpack.c.1.s8 %v5554
          %v5842 = vunpack.c.1.s8 %v5555
          %v5843 = vunpack.c.2.s8 %v5552
          %v5844 = vunpack.c.2.s8 %v5553
          %v5845 = vunpack.c.2.s8 %v5554
          %v5846 = vunpack.c.2.s8 %v5555
          %v5847 = vunpack.c.3.s8 %v5552
          %v5848 = vunpack.c.3.s8 %v5553
          %v5849 = vunpack.c.3.s8 %v5554
          %v5850 = vunpack.c.3.s8 %v5555
          %v5851 = vunpack.c.0.s8 %v5556
          %v5852 = vunpack.c.0.s8 %v5557
          %v5853 = vunpack.c.0.s8 %v5558
          %v5854 = vunpack.c.0.s8 %v5559
          %v5855 = vunpack.c.1.s8 %v5556
          %v5856 = vunpack.c.1.s8 %v5557
          %v5857 = vunpack.c.1.s8 %v5558
          %v5858 = vunpack.c.1.s8 %v5559
          %v5859 = vunpack.c.2.s8 %v5556
          %v5860 = vunpack.c.2.s8 %v5557
          %v5861 = vunpack.c.2.s8 %v5558
          %v5862 = vunpack.c.2.s8 %v5559
          %v5863 = vunpack.c.3.s8 %v5556
          %v5864 = vunpack.c.3.s8 %v5557
          %v5865 = vunpack.c.3.s8 %v5558
          %v5866 = vunpack.c.3.s8 %v5559
          %v5867 = vunpack.c.0.s8 %v5560
          %v5868 = vunpack.c.0.s8 %v5561
          %v5869 = vunpack.c.0.s8 %v5562
          %v5870 = vunpack.c.0.s8 %v5563
          %v5871 = vunpack.c.1.s8 %v5560
          %v5872 = vunpack.c.1.s8 %v5561
          %v5873 = vunpack.c.1.s8 %v5562
          %v5874 = vunpack.c.1.s8 %v5563
          %v5875 = vunpack.c.2.s8 %v5560
          %v5876 = vunpack.c.2.s8 %v5561
          %v5877 = vunpack.c.2.s8 %v5562
          %v5878 = vunpack.c.2.s8 %v5563
          %v5879 = vunpack.c.3.s8 %v5560
          %v5880 = vunpack.c.3.s8 %v5561
          %v5881 = vunpack.c.3.s8 %v5562
          %v5882 = vunpack.c.3.s8 %v5563
          %v5883 = vunpack.c.0.s8 %v5564
          %v5884 = vunpack.c.0.s8 %v5565
          %v5885 = vunpack.c.0.s8 %v5566
          %v5886 = vunpack.c.0.s8 %v5567
          %v5887 = vunpack.c.1.s8 %v5564
          %v5888 = vunpack.c.1.s8 %v5565
          %v5889 = vunpack.c.1.s8 %v5566
          %v5890 = vunpack.c.1.s8 %v5567
          %v5891 = vunpack.c.2.s8 %v5564
          %v5892 = vunpack.c.2.s8 %v5565
          %v5893 = vunpack.c.2.s8 %v5566
          %v5894 = vunpack.c.2.s8 %v5567
          %v5895 = vunpack.c.3.s8 %v5564
          %v5896 = vunpack.c.3.s8 %v5565
          %v5897 = vunpack.c.3.s8 %v5566
          %v5898 = vunpack.c.3.s8 %v5567
          %v5899 = vunpack.c.0.s8 %v5568
          %v5900 = vunpack.c.0.s8 %v5569
          %v5901 = vunpack.c.0.s8 %v5570
          %v5902 = vunpack.c.0.s8 %v5571
          %v5903 = vunpack.c.1.s8 %v5568
          %v5904 = vunpack.c.1.s8 %v5569
          %v5905 = vunpack.c.1.s8 %v5570
          %v5906 = vunpack.c.1.s8 %v5571
          %v5907 = vunpack.c.2.s8 %v5568
          %v5908 = vunpack.c.2.s8 %v5569
          %v5909 = vunpack.c.2.s8 %v5570
          %v5910 = vunpack.c.2.s8 %v5571
          %v5911 = vunpack.c.3.s8 %v5568
          %v5912 = vunpack.c.3.s8 %v5569
          %v5913 = vunpack.c.3.s8 %v5570
          %v5914 = vunpack.c.3.s8 %v5571
          %v5915 = vunpack.c.0.s8 %v5572
          %v5916 = vunpack.c.0.s8 %v5573
          %v5917 = vunpack.c.0.s8 %v5574
          %v5918 = vunpack.c.0.s8 %v5575
          %v5919 = vunpack.c.1.s8 %v5572
          %v5920 = vunpack.c.1.s8 %v5573
          %v5921 = vunpack.c.1.s8 %v5574
          %v5922 = vunpack.c.1.s8 %v5575
          %v5923 = vunpack.c.2.s8 %v5572
          %v5924 = vunpack.c.2.s8 %v5573
          %v5925 = vunpack.c.2.s8 %v5574
          %v5926 = vunpack.c.2.s8 %v5575
          %v5927 = vunpack.c.3.s8 %v5572
          %v5928 = vunpack.c.3.s8 %v5573
          %v5929 = vunpack.c.3.s8 %v5574
          %v5930 = vunpack.c.3.s8 %v5575
          %v5931 = vunpack.c.0.s8 %v5576
          %v5932 = vunpack.c.0.s8 %v5577
          %v5933 = vunpack.c.0.s8 %v5578
          %v5934 = vunpack.c.0.s8 %v5579
          %v5935 = vunpack.c.1.s8 %v5576
          %v5936 = vunpack.c.1.s8 %v5577
          %v5937 = vunpack.c.1.s8 %v5578
          %v5938 = vunpack.c.1.s8 %v5579
          %v5939 = vunpack.c.2.s8 %v5576
          %v5940 = vunpack.c.2.s8 %v5577
          %v5941 = vunpack.c.2.s8 %v5578
          %v5942 = vunpack.c.2.s8 %v5579
          %v5943 = vunpack.c.3.s8 %v5576
          %v5944 = vunpack.c.3.s8 %v5577
          %v5945 = vunpack.c.3.s8 %v5578
          %v5946 = vunpack.c.3.s8 %v5579
          %v5947 = vunpack.c.0.s8 %v5580
          %v5948 = vunpack.c.0.s8 %v5581
          %v5949 = vunpack.c.0.s8 %v5582
          %v5950 = vunpack.c.0.s8 %v5583
          %v5951 = vunpack.c.1.s8 %v5580
          %v5952 = vunpack.c.1.s8 %v5581
          %v5953 = vunpack.c.1.s8 %v5582
          %v5954 = vunpack.c.1.s8 %v5583
          %v5955 = vunpack.c.2.s8 %v5580
          %v5956 = vunpack.c.2.s8 %v5581
          %v5957 = vunpack.c.2.s8 %v5582
          %v5958 = vunpack.c.2.s8 %v5583
          %v5959 = vunpack.c.3.s8 %v5580
          %v5960 = vunpack.c.3.s8 %v5581
          %v5961 = vunpack.c.3.s8 %v5582
          %v5962 = vunpack.c.3.s8 %v5583
          %v5963 = vunpack.c.0.s8 %v5584
          %v5964 = vunpack.c.0.s8 %v5585
          %v5965 = vunpack.c.0.s8 %v5586
          %v5966 = vunpack.c.0.s8 %v5587
          %v5967 = vunpack.c.1.s8 %v5584
          %v5968 = vunpack.c.1.s8 %v5585
          %v5969 = vunpack.c.1.s8 %v5586
          %v5970 = vunpack.c.1.s8 %v5587
          %v5971 = vunpack.c.2.s8 %v5584
          %v5972 = vunpack.c.2.s8 %v5585
          %v5973 = vunpack.c.2.s8 %v5586
          %v5974 = vunpack.c.2.s8 %v5587
          %v5975 = vunpack.c.3.s8 %v5584
          %v5976 = vunpack.c.3.s8 %v5585
          %v5977 = vunpack.c.3.s8 %v5586
          %v5978 = vunpack.c.3.s8 %v5587
          %v5979 = vunpack.c.0.s8 %v5588
          %v5980 = vunpack.c.0.s8 %v5589
          %v5981 = vunpack.c.0.s8 %v5590
          %v5982 = vunpack.c.0.s8 %v5591
          %v5983 = vunpack.c.1.s8 %v5588
          %v5984 = vunpack.c.1.s8 %v5589
          %v5985 = vunpack.c.1.s8 %v5590
          %v5986 = vunpack.c.1.s8 %v5591
          %v5987 = vunpack.c.2.s8 %v5588
          %v5988 = vunpack.c.2.s8 %v5589
          %v5989 = vunpack.c.2.s8 %v5590
          %v5990 = vunpack.c.2.s8 %v5591
          %v5991 = vunpack.c.3.s8 %v5588
          %v5992 = vunpack.c.3.s8 %v5589
          %v5993 = vunpack.c.3.s8 %v5590
          %v5994 = vunpack.c.3.s8 %v5591
          %v5995 = vunpack.c.0.s8 %v5592
          %v5996 = vunpack.c.0.s8 %v5593
          %v5997 = vunpack.c.0.s8 %v5594
          %v5998 = vunpack.c.0.s8 %v5595
          %v5999 = vunpack.c.1.s8 %v5592
          %v6000 = vunpack.c.1.s8 %v5593
          %v6001 = vunpack.c.1.s8 %v5594
          %v6002 = vunpack.c.1.s8 %v5595
          %v6003 = vunpack.c.2.s8 %v5592
          %v6004 = vunpack.c.2.s8 %v5593
          %v6005 = vunpack.c.2.s8 %v5594
          %v6006 = vunpack.c.2.s8 %v5595
          %v6007 = vunpack.c.3.s8 %v5592
          %v6008 = vunpack.c.3.s8 %v5593
          %v6009 = vunpack.c.3.s8 %v5594
          %v6010 = vunpack.c.3.s8 %v5595
          %v6011 = vunpack.c.0.s8 %v5596
          %v6012 = vunpack.c.0.s8 %v5597
          %v6013 = vunpack.c.0.s8 %v5598
          %v6014 = vunpack.c.0.s8 %v5599
          %v6015 = vunpack.c.1.s8 %v5596
          %v6016 = vunpack.c.1.s8 %v5597
          %v6017 = vunpack.c.1.s8 %v5598
          %v6018 = vunpack.c.1.s8 %v5599
          %v6019 = vunpack.c.2.s8 %v5596
          %v6020 = vunpack.c.2.s8 %v5597
          %v6021 = vunpack.c.2.s8 %v5598
          %v6022 = vunpack.c.2.s8 %v5599
          %v6023 = vunpack.c.3.s8 %v5596
          %v6024 = vunpack.c.3.s8 %v5597
          %v6025 = vunpack.c.3.s8 %v5598
          %v6026 = vunpack.c.3.s8 %v5599
          %v6027 = vunpack.c.0.s8 %v5600
          %v6028 = vunpack.c.0.s8 %v5601
          %v6029 = vunpack.c.0.s8 %v5602
          %v6030 = vunpack.c.0.s8 %v5603
          %v6031 = vunpack.c.1.s8 %v5600
          %v6032 = vunpack.c.1.s8 %v5601
          %v6033 = vunpack.c.1.s8 %v5602
          %v6034 = vunpack.c.1.s8 %v5603
          %v6035 = vunpack.c.2.s8 %v5600
          %v6036 = vunpack.c.2.s8 %v5601
          %v6037 = vunpack.c.2.s8 %v5602
          %v6038 = vunpack.c.2.s8 %v5603
          %v6039 = vunpack.c.3.s8 %v5600
          %v6040 = vunpack.c.3.s8 %v5601
          %v6041 = vunpack.c.3.s8 %v5602
          %v6042 = vunpack.c.3.s8 %v5603
          %v6043 = vunpack.c.0.s8 %v5604
          %v6044 = vunpack.c.0.s8 %v5605
          %v6045 = vunpack.c.0.s8 %v5606
          %v6046 = vunpack.c.0.s8 %v5607
          %v6047 = vunpack.c.1.s8 %v5604
          %v6048 = vunpack.c.1.s8 %v5605
          %v6049 = vunpack.c.1.s8 %v5606
          %v6050 = vunpack.c.1.s8 %v5607
          %v6051 = vunpack.c.2.s8 %v5604
          %v6052 = vunpack.c.2.s8 %v5605
          %v6053 = vunpack.c.2.s8 %v5606
          %v6054 = vunpack.c.2.s8 %v5607
          %v6055 = vunpack.c.3.s8 %v5604
          %v6056 = vunpack.c.3.s8 %v5605
          %v6057 = vunpack.c.3.s8 %v5606
          %v6058 = vunpack.c.3.s8 %v5607
          %v6059 = vunpack.c.0.s8 %v5608
          %v6060 = vunpack.c.0.s8 %v5609
          %v6061 = vunpack.c.0.s8 %v5610
          %v6062 = vunpack.c.0.s8 %v5611
          %v6063 = vunpack.c.1.s8 %v5608
          %v6064 = vunpack.c.1.s8 %v5609
          %v6065 = vunpack.c.1.s8 %v5610
          %v6066 = vunpack.c.1.s8 %v5611
          %v6067 = vunpack.c.2.s8 %v5608
          %v6068 = vunpack.c.2.s8 %v5609
          %v6069 = vunpack.c.2.s8 %v5610
          %v6070 = vunpack.c.2.s8 %v5611
          %v6071 = vunpack.c.3.s8 %v5608
          %v6072 = vunpack.c.3.s8 %v5609
          %v6073 = vunpack.c.3.s8 %v5610
          %v6074 = vunpack.c.3.s8 %v5611
          %v6075 = vunpack.c.0.s8 %v5612
          %v6076 = vunpack.c.0.s8 %v5613
          %v6077 = vunpack.c.0.s8 %v5614
          %v6078 = vunpack.c.0.s8 %v5615
          %v6079 = vunpack.c.1.s8 %v5612
          %v6080 = vunpack.c.1.s8 %v5613
          %v6081 = vunpack.c.1.s8 %v5614
          %v6082 = vunpack.c.1.s8 %v5615
          %v6083 = vunpack.c.2.s8 %v5612
          %v6084 = vunpack.c.2.s8 %v5613
          %v6085 = vunpack.c.2.s8 %v5614
          %v6086 = vunpack.c.2.s8 %v5615
          %v6087 = vunpack.c.3.s8 %v5612
          %v6088 = vunpack.c.3.s8 %v5613
          %v6089 = vunpack.c.3.s8 %v5614
          %v6090 = vunpack.c.3.s8 %v5615
          %v6091 = vunpack.c.0.s8 %v5616
          %v6092 = vunpack.c.0.s8 %v5617
          %v6093 = vunpack.c.0.s8 %v5618
          %v6094 = vunpack.c.0.s8 %v5619
          %v6095 = vunpack.c.1.s8 %v5616
          %v6096 = vunpack.c.1.s8 %v5617
          %v6097 = vunpack.c.1.s8 %v5618
          %v6098 = vunpack.c.1.s8 %v5619
          %v6099 = vunpack.c.2.s8 %v5616
          %v6100 = vunpack.c.2.s8 %v5617
          %v6101 = vunpack.c.2.s8 %v5618
          %v6102 = vunpack.c.2.s8 %v5619
          %v6103 = vunpack.c.3.s8 %v5616
          %v6104 = vunpack.c.3.s8 %v5617
          %v6105 = vunpack.c.3.s8 %v5618
          %v6106 = vunpack.c.3.s8 %v5619
          %v6107 = vunpack.c.0.s8 %v5620
          %v6108 = vunpack.c.0.s8 %v5621
          %v6109 = vunpack.c.0.s8 %v5622
          %v6110 = vunpack.c.0.s8 %v5623
          %v6111 = vunpack.c.1.s8 %v5620
          %v6112 = vunpack.c.1.s8 %v5621
          %v6113 = vunpack.c.1.s8 %v5622
          %v6114 = vunpack.c.1.s8 %v5623
          %v6115 = vunpack.c.2.s8 %v5620
          %v6116 = vunpack.c.2.s8 %v5621
          %v6117 = vunpack.c.2.s8 %v5622
          %v6118 = vunpack.c.2.s8 %v5623
          %v6119 = vunpack.c.3.s8 %v5620
          %v6120 = vunpack.c.3.s8 %v5621
          %v6121 = vunpack.c.3.s8 %v5622
          %v6122 = vunpack.c.3.s8 %v5623
          %v6123 = vunpack.c.0.s8 %v5624
          %v6124 = vunpack.c.0.s8 %v5625
          %v6125 = vunpack.c.0.s8 %v5626
          %v6126 = vunpack.c.0.s8 %v5627
          %v6127 = vunpack.c.1.s8 %v5624
          %v6128 = vunpack.c.1.s8 %v5625
          %v6129 = vunpack.c.1.s8 %v5626
          %v6130 = vunpack.c.1.s8 %v5627
          %v6131 = vunpack.c.2.s8 %v5624
          %v6132 = vunpack.c.2.s8 %v5625
          %v6133 = vunpack.c.2.s8 %v5626
          %v6134 = vunpack.c.2.s8 %v5627
          %v6135 = vunpack.c.3.s8 %v5624
          %v6136 = vunpack.c.3.s8 %v5625
          %v6137 = vunpack.c.3.s8 %v5626
          %v6138 = vunpack.c.3.s8 %v5627
          %v6139 = vunpack.c.0.s8 %v5628
          %v6140 = vunpack.c.0.s8 %v5629
          %v6141 = vunpack.c.0.s8 %v5630
          %v6142 = vunpack.c.0.s8 %v5631
          %v6143 = vunpack.c.1.s8 %v5628
          %v6144 = vunpack.c.1.s8 %v5629
          %v6145 = vunpack.c.1.s8 %v5630
          %v6146 = vunpack.c.1.s8 %v5631
          %v6147 = vunpack.c.2.s8 %v5628
          %v6148 = vunpack.c.2.s8 %v5629
          %v6149 = vunpack.c.2.s8 %v5630
          %v6150 = vunpack.c.2.s8 %v5631
          %v6151 = vunpack.c.3.s8 %v5628
          %v6152 = vunpack.c.3.s8 %v5629
          %v6153 = vunpack.c.3.s8 %v5630
          %v6154 = vunpack.c.3.s8 %v5631
          %v6155 = vunpack.c.0.s8 %v5632
          %v6156 = vunpack.c.0.s8 %v5633
          %v6157 = vunpack.c.0.s8 %v5634
          %v6158 = vunpack.c.0.s8 %v5635
          %v6159 = vunpack.c.1.s8 %v5632
          %v6160 = vunpack.c.1.s8 %v5633
          %v6161 = vunpack.c.1.s8 %v5634
          %v6162 = vunpack.c.1.s8 %v5635
          %v6163 = vunpack.c.2.s8 %v5632
          %v6164 = vunpack.c.2.s8 %v5633
          %v6165 = vunpack.c.2.s8 %v5634
          %v6166 = vunpack.c.2.s8 %v5635
          %v6167 = vunpack.c.3.s8 %v5632
          %v6168 = vunpack.c.3.s8 %v5633
          %v6169 = vunpack.c.3.s8 %v5634
          %v6170 = vunpack.c.3.s8 %v5635
          %v6171 = vunpack.c.0.s8 %v5636
          %v6172 = vunpack.c.0.s8 %v5637
          %v6173 = vunpack.c.0.s8 %v5638
          %v6174 = vunpack.c.0.s8 %v5639
          %v6175 = vunpack.c.1.s8 %v5636
          %v6176 = vunpack.c.1.s8 %v5637
          %v6177 = vunpack.c.1.s8 %v5638
          %v6178 = vunpack.c.1.s8 %v5639
          %v6179 = vunpack.c.2.s8 %v5636
          %v6180 = vunpack.c.2.s8 %v5637
          %v6181 = vunpack.c.2.s8 %v5638
          %v6182 = vunpack.c.2.s8 %v5639
          %v6183 = vunpack.c.3.s8 %v5636
          %v6184 = vunpack.c.3.s8 %v5637
          %v6185 = vunpack.c.3.s8 %v5638
          %v6186 = vunpack.c.3.s8 %v5639
          %v6187 = vunpack.c.0.s8 %v5640
          %v6188 = vunpack.c.0.s8 %v5641
          %v6189 = vunpack.c.0.s8 %v5642
          %v6190 = vunpack.c.0.s8 %v5643
          %v6191 = vunpack.c.1.s8 %v5640
          %v6192 = vunpack.c.1.s8 %v5641
          %v6193 = vunpack.c.1.s8 %v5642
          %v6194 = vunpack.c.1.s8 %v5643
          %v6195 = vunpack.c.2.s8 %v5640
          %v6196 = vunpack.c.2.s8 %v5641
          %v6197 = vunpack.c.2.s8 %v5642
          %v6198 = vunpack.c.2.s8 %v5643
          %v6199 = vunpack.c.3.s8 %v5640
          %v6200 = vunpack.c.3.s8 %v5641
          %v6201 = vunpack.c.3.s8 %v5642
          %v6202 = vunpack.c.3.s8 %v5643
          %v6203 = vunpack.c.0.s8 %v5644
          %v6204 = vunpack.c.0.s8 %v5645
          %v6205 = vunpack.c.0.s8 %v5646
          %v6206 = vunpack.c.0.s8 %v5647
          %v6207 = vunpack.c.1.s8 %v5644
          %v6208 = vunpack.c.1.s8 %v5645
          %v6209 = vunpack.c.1.s8 %v5646
          %v6210 = vunpack.c.1.s8 %v5647
          %v6211 = vunpack.c.2.s8 %v5644
          %v6212 = vunpack.c.2.s8 %v5645
          %v6213 = vunpack.c.2.s8 %v5646
          %v6214 = vunpack.c.2.s8 %v5647
          %v6215 = vunpack.c.3.s8 %v5644
          %v6216 = vunpack.c.3.s8 %v5645
          %v6217 = vunpack.c.3.s8 %v5646
          %v6218 = vunpack.c.3.s8 %v5647
          %v6219 = vunpack.c.0.s8 %v5648
          %v6220 = vunpack.c.0.s8 %v5649
          %v6221 = vunpack.c.0.s8 %v5650
          %v6222 = vunpack.c.0.s8 %v5651
          %v6223 = vunpack.c.1.s8 %v5648
          %v6224 = vunpack.c.1.s8 %v5649
          %v6225 = vunpack.c.1.s8 %v5650
          %v6226 = vunpack.c.1.s8 %v5651
          %v6227 = vunpack.c.2.s8 %v5648
          %v6228 = vunpack.c.2.s8 %v5649
          %v6229 = vunpack.c.2.s8 %v5650
          %v6230 = vunpack.c.2.s8 %v5651
          %v6231 = vunpack.c.3.s8 %v5648
          %v6232 = vunpack.c.3.s8 %v5649
          %v6233 = vunpack.c.3.s8 %v5650
          %v6234 = vunpack.c.3.s8 %v5651
          %v6235 = vunpack.c.0.s8 %v5652
          %v6236 = vunpack.c.0.s8 %v5653
          %v6237 = vunpack.c.0.s8 %v5654
          %v6238 = vunpack.c.0.s8 %v5655
          %v6239 = vunpack.c.1.s8 %v5652
          %v6240 = vunpack.c.1.s8 %v5653
          %v6241 = vunpack.c.1.s8 %v5654
          %v6242 = vunpack.c.1.s8 %v5655
          %v6243 = vunpack.c.2.s8 %v5652
          %v6244 = vunpack.c.2.s8 %v5653
          %v6245 = vunpack.c.2.s8 %v5654
          %v6246 = vunpack.c.2.s8 %v5655
          %v6247 = vunpack.c.3.s8 %v5652
          %v6248 = vunpack.c.3.s8 %v5653
          %v6249 = vunpack.c.3.s8 %v5654
          %v6250 = vunpack.c.3.s8 %v5655
          %v6251 = vcvt.s32.f32 %v5739
          %v6252 = vcvt.s32.f32 %v5740
          %v6253 = vcvt.s32.f32 %v5741
          %v6254 = vcvt.s32.f32 %v5742
          %v6255 = vcvt.s32.f32 %v5743
          %v6256 = vcvt.s32.f32 %v5744
          %v6257 = vcvt.s32.f32 %v5745
          %v6258 = vcvt.s32.f32 %v5746
          %v6259 = vcvt.s32.f32 %v5747
          %v6260 = vcvt.s32.f32 %v5748
          %v6261 = vcvt.s32.f32 %v5749
          %v6262 = vcvt.s32.f32 %v5750
          %v6263 = vcvt.s32.f32 %v5751
          %v6264 = vcvt.s32.f32 %v5752
          %v6265 = vcvt.s32.f32 %v5753
          %v6266 = vcvt.s32.f32 %v5754
          %v6267 = vcvt.s32.f32 %v5755
          %v6268 = vcvt.s32.f32 %v5756
          %v6269 = vcvt.s32.f32 %v5757
          %v6270 = vcvt.s32.f32 %v5758
          %v6271 = vcvt.s32.f32 %v5759
          %v6272 = vcvt.s32.f32 %v5760
          %v6273 = vcvt.s32.f32 %v5761
          %v6274 = vcvt.s32.f32 %v5762
          %v6275 = vcvt.s32.f32 %v5763
          %v6276 = vcvt.s32.f32 %v5764
          %v6277 = vcvt.s32.f32 %v5765
          %v6278 = vcvt.s32.f32 %v5766
          %v6279 = vcvt.s32.f32 %v5767
          %v6280 = vcvt.s32.f32 %v5768
          %v6281 = vcvt.s32.f32 %v5769
          %v6282 = vcvt.s32.f32 %v5770
          %v6283 = vcvt.s32.f32 %v5771
          %v6284 = vcvt.s32.f32 %v5772
          %v6285 = vcvt.s32.f32 %v5773
          %v6286 = vcvt.s32.f32 %v5774
          %v6287 = vcvt.s32.f32 %v5775
          %v6288 = vcvt.s32.f32 %v5776
          %v6289 = vcvt.s32.f32 %v5777
          %v6290 = vcvt.s32.f32 %v5778
          %v6291 = vcvt.s32.f32 %v5779
          %v6292 = vcvt.s32.f32 %v5780
          %v6293 = vcvt.s32.f32 %v5781
          %v6294 = vcvt.s32.f32 %v5782
          %v6295 = vcvt.s32.f32 %v5783
          %v6296 = vcvt.s32.f32 %v5784
          %v6297 = vcvt.s32.f32 %v5785
          %v6298 = vcvt.s32.f32 %v5786
          %v6299 = vcvt.s32.f32 %v5787
          %v6300 = vcvt.s32.f32 %v5788
          %v6301 = vcvt.s32.f32 %v5789
          %v6302 = vcvt.s32.f32 %v5790
          %v6303 = vcvt.s32.f32 %v5791
          %v6304 = vcvt.s32.f32 %v5792
          %v6305 = vcvt.s32.f32 %v5793
          %v6306 = vcvt.s32.f32 %v5794
          %v6307 = vcvt.s32.f32 %v5795
          %v6308 = vcvt.s32.f32 %v5796
          %v6309 = vcvt.s32.f32 %v5797
          %v6310 = vcvt.s32.f32 %v5798
          %v6311 = vcvt.s32.f32 %v5799
          %v6312 = vcvt.s32.f32 %v5800
          %v6313 = vcvt.s32.f32 %v5801
          %v6314 = vcvt.s32.f32 %v5802
          %v6315 = vcvt.s32.f32 %v5803
          %v6316 = vcvt.s32.f32 %v5804
          %v6317 = vcvt.s32.f32 %v5805
          %v6318 = vcvt.s32.f32 %v5806
          %v6319 = vcvt.s32.f32 %v5807
          %v6320 = vcvt.s32.f32 %v5808
          %v6321 = vcvt.s32.f32 %v5809
          %v6322 = vcvt.s32.f32 %v5810
          %v6323 = vcvt.s32.f32 %v5811
          %v6324 = vcvt.s32.f32 %v5812
          %v6325 = vcvt.s32.f32 %v5813
          %v6326 = vcvt.s32.f32 %v5814
          %v6327 = vcvt.s32.f32 %v5815
          %v6328 = vcvt.s32.f32 %v5816
          %v6329 = vcvt.s32.f32 %v5817
          %v6330 = vcvt.s32.f32 %v5818
          %v6331 = vcvt.s32.f32 %v5819
          %v6332 = vcvt.s32.f32 %v5820
          %v6333 = vcvt.s32.f32 %v5821
          %v6334 = vcvt.s32.f32 %v5822
          %v6335 = vcvt.s32.f32 %v5823
          %v6336 = vcvt.s32.f32 %v5824
          %v6337 = vcvt.s32.f32 %v5825
          %v6338 = vcvt.s32.f32 %v5826
          %v6339 = vcvt.s32.f32 %v5827
          %v6340 = vcvt.s32.f32 %v5828
          %v6341 = vcvt.s32.f32 %v5829
          %v6342 = vcvt.s32.f32 %v5830
          %v6343 = vcvt.s32.f32 %v5831
          %v6344 = vcvt.s32.f32 %v5832
          %v6345 = vcvt.s32.f32 %v5833
          %v6346 = vcvt.s32.f32 %v5834
          %v6347 = vcvt.s32.f32 %v5835
          %v6348 = vcvt.s32.f32 %v5836
          %v6349 = vcvt.s32.f32 %v5837
          %v6350 = vcvt.s32.f32 %v5838
          %v6351 = vcvt.s32.f32 %v5839
          %v6352 = vcvt.s32.f32 %v5840
          %v6353 = vcvt.s32.f32 %v5841
          %v6354 = vcvt.s32.f32 %v5842
          %v6355 = vcvt.s32.f32 %v5843
          %v6356 = vcvt.s32.f32 %v5844
          %v6357 = vcvt.s32.f32 %v5845
          %v6358 = vcvt.s32.f32 %v5846
          %v6359 = vcvt.s32.f32 %v5847
          %v6360 = vcvt.s32.f32 %v5848
          %v6361 = vcvt.s32.f32 %v5849
          %v6362 = vcvt.s32.f32 %v5850
          %v6363 = vcvt.s32.f32 %v5851
          %v6364 = vcvt.s32.f32 %v5852
          %v6365 = vcvt.s32.f32 %v5853
          %v6366 = vcvt.s32.f32 %v5854
          %v6367 = vcvt.s32.f32 %v5855
          %v6368 = vcvt.s32.f32 %v5856
          %v6369 = vcvt.s32.f32 %v5857
          %v6370 = vcvt.s32.f32 %v5858
          %v6371 = vcvt.s32.f32 %v5859
          %v6372 = vcvt.s32.f32 %v5860
          %v6373 = vcvt.s32.f32 %v5861
          %v6374 = vcvt.s32.f32 %v5862
          %v6375 = vcvt.s32.f32 %v5863
          %v6376 = vcvt.s32.f32 %v5864
          %v6377 = vcvt.s32.f32 %v5865
          %v6378 = vcvt.s32.f32 %v5866
          %v6379 = vcvt.s32.f32 %v5867
          %v6380 = vcvt.s32.f32 %v5868
          %v6381 = vcvt.s32.f32 %v5869
          %v6382 = vcvt.s32.f32 %v5870
          %v6383 = vcvt.s32.f32 %v5871
          %v6384 = vcvt.s32.f32 %v5872
          %v6385 = vcvt.s32.f32 %v5873
          %v6386 = vcvt.s32.f32 %v5874
          %v6387 = vcvt.s32.f32 %v5875
          %v6388 = vcvt.s32.f32 %v5876
          %v6389 = vcvt.s32.f32 %v5877
          %v6390 = vcvt.s32.f32 %v5878
          %v6391 = vcvt.s32.f32 %v5879
          %v6392 = vcvt.s32.f32 %v5880
          %v6393 = vcvt.s32.f32 %v5881
          %v6394 = vcvt.s32.f32 %v5882
          %v6395 = vcvt.s32.f32 %v5883
          %v6396 = vcvt.s32.f32 %v5884
          %v6397 = vcvt.s32.f32 %v5885
          %v6398 = vcvt.s32.f32 %v5886
          %v6399 = vcvt.s32.f32 %v5887
          %v6400 = vcvt.s32.f32 %v5888
          %v6401 = vcvt.s32.f32 %v5889
          %v6402 = vcvt.s32.f32 %v5890
          %v6403 = vcvt.s32.f32 %v5891
          %v6404 = vcvt.s32.f32 %v5892
          %v6405 = vcvt.s32.f32 %v5893
          %v6406 = vcvt.s32.f32 %v5894
          %v6407 = vcvt.s32.f32 %v5895
          %v6408 = vcvt.s32.f32 %v5896
          %v6409 = vcvt.s32.f32 %v5897
          %v6410 = vcvt.s32.f32 %v5898
          %v6411 = vcvt.s32.f32 %v5899
          %v6412 = vcvt.s32.f32 %v5900
          %v6413 = vcvt.s32.f32 %v5901
          %v6414 = vcvt.s32.f32 %v5902
          %v6415 = vcvt.s32.f32 %v5903
          %v6416 = vcvt.s32.f32 %v5904
          %v6417 = vcvt.s32.f32 %v5905
          %v6418 = vcvt.s32.f32 %v5906
          %v6419 = vcvt.s32.f32 %v5907
          %v6420 = vcvt.s32.f32 %v5908
          %v6421 = vcvt.s32.f32 %v5909
          %v6422 = vcvt.s32.f32 %v5910
          %v6423 = vcvt.s32.f32 %v5911
          %v6424 = vcvt.s32.f32 %v5912
          %v6425 = vcvt.s32.f32 %v5913
          %v6426 = vcvt.s32.f32 %v5914
          %v6427 = vcvt.s32.f32 %v5915
          %v6428 = vcvt.s32.f32 %v5916
          %v6429 = vcvt.s32.f32 %v5917
          %v6430 = vcvt.s32.f32 %v5918
          %v6431 = vcvt.s32.f32 %v5919
          %v6432 = vcvt.s32.f32 %v5920
          %v6433 = vcvt.s32.f32 %v5921
          %v6434 = vcvt.s32.f32 %v5922
          %v6435 = vcvt.s32.f32 %v5923
          %v6436 = vcvt.s32.f32 %v5924
          %v6437 = vcvt.s32.f32 %v5925
          %v6438 = vcvt.s32.f32 %v5926
          %v6439 = vcvt.s32.f32 %v5927
          %v6440 = vcvt.s32.f32 %v5928
          %v6441 = vcvt.s32.f32 %v5929
          %v6442 = vcvt.s32.f32 %v5930
          %v6443 = vcvt.s32.f32 %v5931
          %v6444 = vcvt.s32.f32 %v5932
          %v6445 = vcvt.s32.f32 %v5933
          %v6446 = vcvt.s32.f32 %v5934
          %v6447 = vcvt.s32.f32 %v5935
          %v6448 = vcvt.s32.f32 %v5936
          %v6449 = vcvt.s32.f32 %v5937
          %v6450 = vcvt.s32.f32 %v5938
          %v6451 = vcvt.s32.f32 %v5939
          %v6452 = vcvt.s32.f32 %v5940
          %v6453 = vcvt.s32.f32 %v5941
          %v6454 = vcvt.s32.f32 %v5942
          %v6455 = vcvt.s32.f32 %v5943
          %v6456 = vcvt.s32.f32 %v5944
          %v6457 = vcvt.s32.f32 %v5945
          %v6458 = vcvt.s32.f32 %v5946
          %v6459 = vcvt.s32.f32 %v5947
          %v6460 = vcvt.s32.f32 %v5948
          %v6461 = vcvt.s32.f32 %v5949
          %v6462 = vcvt.s32.f32 %v5950
          %v6463 = vcvt.s32.f32 %v5951
          %v6464 = vcvt.s32.f32 %v5952
          %v6465 = vcvt.s32.f32 %v5953
          %v6466 = vcvt.s32.f32 %v5954
          %v6467 = vcvt.s32.f32 %v5955
          %v6468 = vcvt.s32.f32 %v5956
          %v6469 = vcvt.s32.f32 %v5957
          %v6470 = vcvt.s32.f32 %v5958
          %v6471 = vcvt.s32.f32 %v5959
          %v6472 = vcvt.s32.f32 %v5960
          %v6473 = vcvt.s32.f32 %v5961
          %v6474 = vcvt.s32.f32 %v5962
          %v6475 = vcvt.s32.f32 %v5963
          %v6476 = vcvt.s32.f32 %v5964
          %v6477 = vcvt.s32.f32 %v5965
          %v6478 = vcvt.s32.f32 %v5966
          %v6479 = vcvt.s32.f32 %v5967
          %v6480 = vcvt.s32.f32 %v5968
          %v6481 = vcvt.s32.f32 %v5969
          %v6482 = vcvt.s32.f32 %v5970
          %v6483 = vcvt.s32.f32 %v5971
          %v6484 = vcvt.s32.f32 %v5972
          %v6485 = vcvt.s32.f32 %v5973
          %v6486 = vcvt.s32.f32 %v5974
          %v6487 = vcvt.s32.f32 %v5975
          %v6488 = vcvt.s32.f32 %v5976
          %v6489 = vcvt.s32.f32 %v5977
          %v6490 = vcvt.s32.f32 %v5978
          %v6491 = vcvt.s32.f32 %v5979
          %v6492 = vcvt.s32.f32 %v5980
          %v6493 = vcvt.s32.f32 %v5981
          %v6494 = vcvt.s32.f32 %v5982
          %v6495 = vcvt.s32.f32 %v5983
          %v6496 = vcvt.s32.f32 %v5984
          %v6497 = vcvt.s32.f32 %v5985
          %v6498 = vcvt.s32.f32 %v5986
          %v6499 = vcvt.s32.f32 %v5987
          %v6500 = vcvt.s32.f32 %v5988
          %v6501 = vcvt.s32.f32 %v5989
          %v6502 = vcvt.s32.f32 %v5990
          %v6503 = vcvt.s32.f32 %v5991
          %v6504 = vcvt.s32.f32 %v5992
          %v6505 = vcvt.s32.f32 %v5993
          %v6506 = vcvt.s32.f32 %v5994
          %v6507 = vcvt.s32.f32 %v5995
          %v6508 = vcvt.s32.f32 %v5996
          %v6509 = vcvt.s32.f32 %v5997
          %v6510 = vcvt.s32.f32 %v5998
          %v6511 = vcvt.s32.f32 %v5999
          %v6512 = vcvt.s32.f32 %v6000
          %v6513 = vcvt.s32.f32 %v6001
          %v6514 = vcvt.s32.f32 %v6002
          %v6515 = vcvt.s32.f32 %v6003
          %v6516 = vcvt.s32.f32 %v6004
          %v6517 = vcvt.s32.f32 %v6005
          %v6518 = vcvt.s32.f32 %v6006
          %v6519 = vcvt.s32.f32 %v6007
          %v6520 = vcvt.s32.f32 %v6008
          %v6521 = vcvt.s32.f32 %v6009
          %v6522 = vcvt.s32.f32 %v6010
          %v6523 = vcvt.s32.f32 %v6011
          %v6524 = vcvt.s32.f32 %v6012
          %v6525 = vcvt.s32.f32 %v6013
          %v6526 = vcvt.s32.f32 %v6014
          %v6527 = vcvt.s32.f32 %v6015
          %v6528 = vcvt.s32.f32 %v6016
          %v6529 = vcvt.s32.f32 %v6017
          %v6530 = vcvt.s32.f32 %v6018
          %v6531 = vcvt.s32.f32 %v6019
          %v6532 = vcvt.s32.f32 %v6020
          %v6533 = vcvt.s32.f32 %v6021
          %v6534 = vcvt.s32.f32 %v6022
          %v6535 = vcvt.s32.f32 %v6023
          %v6536 = vcvt.s32.f32 %v6024
          %v6537 = vcvt.s32.f32 %v6025
          %v6538 = vcvt.s32.f32 %v6026
          %v6539 = vcvt.s32.f32 %v6027
          %v6540 = vcvt.s32.f32 %v6028
          %v6541 = vcvt.s32.f32 %v6029
          %v6542 = vcvt.s32.f32 %v6030
          %v6543 = vcvt.s32.f32 %v6031
          %v6544 = vcvt.s32.f32 %v6032
          %v6545 = vcvt.s32.f32 %v6033
          %v6546 = vcvt.s32.f32 %v6034
          %v6547 = vcvt.s32.f32 %v6035
          %v6548 = vcvt.s32.f32 %v6036
          %v6549 = vcvt.s32.f32 %v6037
          %v6550 = vcvt.s32.f32 %v6038
          %v6551 = vcvt.s32.f32 %v6039
          %v6552 = vcvt.s32.f32 %v6040
          %v6553 = vcvt.s32.f32 %v6041
          %v6554 = vcvt.s32.f32 %v6042
          %v6555 = vcvt.s32.f32 %v6043
          %v6556 = vcvt.s32.f32 %v6044
          %v6557 = vcvt.s32.f32 %v6045
          %v6558 = vcvt.s32.f32 %v6046
          %v6559 = vcvt.s32.f32 %v6047
          %v6560 = vcvt.s32.f32 %v6048
          %v6561 = vcvt.s32.f32 %v6049
          %v6562 = vcvt.s32.f32 %v6050
          %v6563 = vcvt.s32.f32 %v6051
          %v6564 = vcvt.s32.f32 %v6052
          %v6565 = vcvt.s32.f32 %v6053
          %v6566 = vcvt.s32.f32 %v6054
          %v6567 = vcvt.s32.f32 %v6055
          %v6568 = vcvt.s32.f32 %v6056
          %v6569 = vcvt.s32.f32 %v6057
          %v6570 = vcvt.s32.f32 %v6058
          %v6571 = vcvt.s32.f32 %v6059
          %v6572 = vcvt.s32.f32 %v6060
          %v6573 = vcvt.s32.f32 %v6061
          %v6574 = vcvt.s32.f32 %v6062
          %v6575 = vcvt.s32.f32 %v6063
          %v6576 = vcvt.s32.f32 %v6064
          %v6577 = vcvt.s32.f32 %v6065
          %v6578 = vcvt.s32.f32 %v6066
          %v6579 = vcvt.s32.f32 %v6067
          %v6580 = vcvt.s32.f32 %v6068
          %v6581 = vcvt.s32.f32 %v6069
          %v6582 = vcvt.s32.f32 %v6070
          %v6583 = vcvt.s32.f32 %v6071
          %v6584 = vcvt.s32.f32 %v6072
          %v6585 = vcvt.s32.f32 %v6073
          %v6586 = vcvt.s32.f32 %v6074
          %v6587 = vcvt.s32.f32 %v6075
          %v6588 = vcvt.s32.f32 %v6076
          %v6589 = vcvt.s32.f32 %v6077
          %v6590 = vcvt.s32.f32 %v6078
          %v6591 = vcvt.s32.f32 %v6079
          %v6592 = vcvt.s32.f32 %v6080
          %v6593 = vcvt.s32.f32 %v6081
          %v6594 = vcvt.s32.f32 %v6082
          %v6595 = vcvt.s32.f32 %v6083
          %v6596 = vcvt.s32.f32 %v6084
          %v6597 = vcvt.s32.f32 %v6085
          %v6598 = vcvt.s32.f32 %v6086
          %v6599 = vcvt.s32.f32 %v6087
          %v6600 = vcvt.s32.f32 %v6088
          %v6601 = vcvt.s32.f32 %v6089
          %v6602 = vcvt.s32.f32 %v6090
          %v6603 = vcvt.s32.f32 %v6091
          %v6604 = vcvt.s32.f32 %v6092
          %v6605 = vcvt.s32.f32 %v6093
          %v6606 = vcvt.s32.f32 %v6094
          %v6607 = vcvt.s32.f32 %v6095
          %v6608 = vcvt.s32.f32 %v6096
          %v6609 = vcvt.s32.f32 %v6097
          %v6610 = vcvt.s32.f32 %v6098
          %v6611 = vcvt.s32.f32 %v6099
          %v6612 = vcvt.s32.f32 %v6100
          %v6613 = vcvt.s32.f32 %v6101
          %v6614 = vcvt.s32.f32 %v6102
          %v6615 = vcvt.s32.f32 %v6103
          %v6616 = vcvt.s32.f32 %v6104
          %v6617 = vcvt.s32.f32 %v6105
          %v6618 = vcvt.s32.f32 %v6106
          %v6619 = vcvt.s32.f32 %v6107
          %v6620 = vcvt.s32.f32 %v6108
          %v6621 = vcvt.s32.f32 %v6109
          %v6622 = vcvt.s32.f32 %v6110
          %v6623 = vcvt.s32.f32 %v6111
          %v6624 = vcvt.s32.f32 %v6112
          %v6625 = vcvt.s32.f32 %v6113
          %v6626 = vcvt.s32.f32 %v6114
          %v6627 = vcvt.s32.f32 %v6115
          %v6628 = vcvt.s32.f32 %v6116
          %v6629 = vcvt.s32.f32 %v6117
          %v6630 = vcvt.s32.f32 %v6118
          %v6631 = vcvt.s32.f32 %v6119
          %v6632 = vcvt.s32.f32 %v6120
          %v6633 = vcvt.s32.f32 %v6121
          %v6634 = vcvt.s32.f32 %v6122
          %v6635 = vcvt.s32.f32 %v6123
          %v6636 = vcvt.s32.f32 %v6124
          %v6637 = vcvt.s32.f32 %v6125
          %v6638 = vcvt.s32.f32 %v6126
          %v6639 = vcvt.s32.f32 %v6127
          %v6640 = vcvt.s32.f32 %v6128
          %v6641 = vcvt.s32.f32 %v6129
          %v6642 = vcvt.s32.f32 %v6130
          %v6643 = vcvt.s32.f32 %v6131
          %v6644 = vcvt.s32.f32 %v6132
          %v6645 = vcvt.s32.f32 %v6133
          %v6646 = vcvt.s32.f32 %v6134
          %v6647 = vcvt.s32.f32 %v6135
          %v6648 = vcvt.s32.f32 %v6136
          %v6649 = vcvt.s32.f32 %v6137
          %v6650 = vcvt.s32.f32 %v6138
          %v6651 = vcvt.s32.f32 %v6139
          %v6652 = vcvt.s32.f32 %v6140
          %v6653 = vcvt.s32.f32 %v6141
          %v6654 = vcvt.s32.f32 %v6142
          %v6655 = vcvt.s32.f32 %v6143
          %v6656 = vcvt.s32.f32 %v6144
          %v6657 = vcvt.s32.f32 %v6145
          %v6658 = vcvt.s32.f32 %v6146
          %v6659 = vcvt.s32.f32 %v6147
          %v6660 = vcvt.s32.f32 %v6148
          %v6661 = vcvt.s32.f32 %v6149
          %v6662 = vcvt.s32.f32 %v6150
          %v6663 = vcvt.s32.f32 %v6151
          %v6664 = vcvt.s32.f32 %v6152
          %v6665 = vcvt.s32.f32 %v6153
          %v6666 = vcvt.s32.f32 %v6154
          %v6667 = vcvt.s32.f32 %v6155
          %v6668 = vcvt.s32.f32 %v6156
          %v6669 = vcvt.s32.f32 %v6157
          %v6670 = vcvt.s32.f32 %v6158
          %v6671 = vcvt.s32.f32 %v6159
          %v6672 = vcvt.s32.f32 %v6160
          %v6673 = vcvt.s32.f32 %v6161
          %v6674 = vcvt.s32.f32 %v6162
          %v6675 = vcvt.s32.f32 %v6163
          %v6676 = vcvt.s32.f32 %v6164
          %v6677 = vcvt.s32.f32 %v6165
          %v6678 = vcvt.s32.f32 %v6166
          %v6679 = vcvt.s32.f32 %v6167
          %v6680 = vcvt.s32.f32 %v6168
          %v6681 = vcvt.s32.f32 %v6169
          %v6682 = vcvt.s32.f32 %v6170
          %v6683 = vcvt.s32.f32 %v6171
          %v6684 = vcvt.s32.f32 %v6172
          %v6685 = vcvt.s32.f32 %v6173
          %v6686 = vcvt.s32.f32 %v6174
          %v6687 = vcvt.s32.f32 %v6175
          %v6688 = vcvt.s32.f32 %v6176
          %v6689 = vcvt.s32.f32 %v6177
          %v6690 = vcvt.s32.f32 %v6178
          %v6691 = vcvt.s32.f32 %v6179
          %v6692 = vcvt.s32.f32 %v6180
          %v6693 = vcvt.s32.f32 %v6181
          %v6694 = vcvt.s32.f32 %v6182
          %v6695 = vcvt.s32.f32 %v6183
          %v6696 = vcvt.s32.f32 %v6184
          %v6697 = vcvt.s32.f32 %v6185
          %v6698 = vcvt.s32.f32 %v6186
          %v6699 = vcvt.s32.f32 %v6187
          %v6700 = vcvt.s32.f32 %v6188
          %v6701 = vcvt.s32.f32 %v6189
          %v6702 = vcvt.s32.f32 %v6190
          %v6703 = vcvt.s32.f32 %v6191
          %v6704 = vcvt.s32.f32 %v6192
          %v6705 = vcvt.s32.f32 %v6193
          %v6706 = vcvt.s32.f32 %v6194
          %v6707 = vcvt.s32.f32 %v6195
          %v6708 = vcvt.s32.f32 %v6196
          %v6709 = vcvt.s32.f32 %v6197
          %v6710 = vcvt.s32.f32 %v6198
          %v6711 = vcvt.s32.f32 %v6199
          %v6712 = vcvt.s32.f32 %v6200
          %v6713 = vcvt.s32.f32 %v6201
          %v6714 = vcvt.s32.f32 %v6202
          %v6715 = vcvt.s32.f32 %v6203
          %v6716 = vcvt.s32.f32 %v6204
          %v6717 = vcvt.s32.f32 %v6205
          %v6718 = vcvt.s32.f32 %v6206
          %v6719 = vcvt.s32.f32 %v6207
          %v6720 = vcvt.s32.f32 %v6208
          %v6721 = vcvt.s32.f32 %v6209
          %v6722 = vcvt.s32.f32 %v6210
          %v6723 = vcvt.s32.f32 %v6211
          %v6724 = vcvt.s32.f32 %v6212
          %v6725 = vcvt.s32.f32 %v6213
          %v6726 = vcvt.s32.f32 %v6214
          %v6727 = vcvt.s32.f32 %v6215
          %v6728 = vcvt.s32.f32 %v6216
          %v6729 = vcvt.s32.f32 %v6217
          %v6730 = vcvt.s32.f32 %v6218
          %v6731 = vcvt.s32.f32 %v6219
          %v6732 = vcvt.s32.f32 %v6220
          %v6733 = vcvt.s32.f32 %v6221
          %v6734 = vcvt.s32.f32 %v6222
          %v6735 = vcvt.s32.f32 %v6223
          %v6736 = vcvt.s32.f32 %v6224
          %v6737 = vcvt.s32.f32 %v6225
          %v6738 = vcvt.s32.f32 %v6226
          %v6739 = vcvt.s32.f32 %v6227
          %v6740 = vcvt.s32.f32 %v6228
          %v6741 = vcvt.s32.f32 %v6229
          %v6742 = vcvt.s32.f32 %v6230
          %v6743 = vcvt.s32.f32 %v6231
          %v6744 = vcvt.s32.f32 %v6232
          %v6745 = vcvt.s32.f32 %v6233
          %v6746 = vcvt.s32.f32 %v6234
          %v6747 = vcvt.s32.f32 %v6235
          %v6748 = vcvt.s32.f32 %v6236
          %v6749 = vcvt.s32.f32 %v6237
          %v6750 = vcvt.s32.f32 %v6238
          %v6751 = vcvt.s32.f32 %v6239
          %v6752 = vcvt.s32.f32 %v6240
          %v6753 = vcvt.s32.f32 %v6241
          %v6754 = vcvt.s32.f32 %v6242
          %v6755 = vcvt.s32.f32 %v6243
          %v6756 = vcvt.s32.f32 %v6244
          %v6757 = vcvt.s32.f32 %v6245
          %v6758 = vcvt.s32.f32 %v6246
          %v6759 = vcvt.s32.f32 %v6247
          %v6760 = vcvt.s32.f32 %v6248
          %v6761 = vcvt.s32.f32 %v6249
          %v6762 = vcvt.s32.f32 %v6250
          %v6763 = vpack.c.bf16 %v6255, %v6251
          %v6764 = vpack.c.bf16 %v6256, %v6252
          %v6765 = vpack.c.bf16 %v6257, %v6253
          %v6766 = vpack.c.bf16 %v6258, %v6254
          %v6767 = vpack.c.bf16 %v6263, %v6259
          %v6768 = vpack.c.bf16 %v6264, %v6260
          %v6769 = vpack.c.bf16 %v6265, %v6261
          %v6770 = vpack.c.bf16 %v6266, %v6262
          %v6771 = vpack.c.bf16 %v6271, %v6267
          %v6772 = vpack.c.bf16 %v6272, %v6268
          %v6773 = vpack.c.bf16 %v6273, %v6269
          %v6774 = vpack.c.bf16 %v6274, %v6270
          %v6775 = vpack.c.bf16 %v6279, %v6275
          %v6776 = vpack.c.bf16 %v6280, %v6276
          %v6777 = vpack.c.bf16 %v6281, %v6277
          %v6778 = vpack.c.bf16 %v6282, %v6278
          %v6779 = vpack.c.bf16 %v6287, %v6283
          %v6780 = vpack.c.bf16 %v6288, %v6284
          %v6781 = vpack.c.bf16 %v6289, %v6285
          %v6782 = vpack.c.bf16 %v6290, %v6286
          %v6783 = vpack.c.bf16 %v6295, %v6291
          %v6784 = vpack.c.bf16 %v6296, %v6292
          %v6785 = vpack.c.bf16 %v6297, %v6293
          %v6786 = vpack.c.bf16 %v6298, %v6294
          %v6787 = vpack.c.bf16 %v6303, %v6299
          %v6788 = vpack.c.bf16 %v6304, %v6300
          %v6789 = vpack.c.bf16 %v6305, %v6301
          %v6790 = vpack.c.bf16 %v6306, %v6302
          %v6791 = vpack.c.bf16 %v6311, %v6307
          %v6792 = vpack.c.bf16 %v6312, %v6308
          %v6793 = vpack.c.bf16 %v6313, %v6309
          %v6794 = vpack.c.bf16 %v6314, %v6310
          %v6795 = vpack.c.bf16 %v6319, %v6315
          %v6796 = vpack.c.bf16 %v6320, %v6316
          %v6797 = vpack.c.bf16 %v6321, %v6317
          %v6798 = vpack.c.bf16 %v6322, %v6318
          %v6799 = vpack.c.bf16 %v6327, %v6323
          %v6800 = vpack.c.bf16 %v6328, %v6324
          %v6801 = vpack.c.bf16 %v6329, %v6325
          %v6802 = vpack.c.bf16 %v6330, %v6326
          %v6803 = vpack.c.bf16 %v6335, %v6331
          %v6804 = vpack.c.bf16 %v6336, %v6332
          %v6805 = vpack.c.bf16 %v6337, %v6333
          %v6806 = vpack.c.bf16 %v6338, %v6334
          %v6807 = vpack.c.bf16 %v6343, %v6339
          %v6808 = vpack.c.bf16 %v6344, %v6340
          %v6809 = vpack.c.bf16 %v6345, %v6341
          %v6810 = vpack.c.bf16 %v6346, %v6342
          %v6811 = vpack.c.bf16 %v6351, %v6347
          %v6812 = vpack.c.bf16 %v6352, %v6348
          %v6813 = vpack.c.bf16 %v6353, %v6349
          %v6814 = vpack.c.bf16 %v6354, %v6350
          %v6815 = vpack.c.bf16 %v6359, %v6355
          %v6816 = vpack.c.bf16 %v6360, %v6356
          %v6817 = vpack.c.bf16 %v6361, %v6357
          %v6818 = vpack.c.bf16 %v6362, %v6358
          %v6819 = vpack.c.bf16 %v6367, %v6363
          %v6820 = vpack.c.bf16 %v6368, %v6364
          %v6821 = vpack.c.bf16 %v6369, %v6365
          %v6822 = vpack.c.bf16 %v6370, %v6366
          %v6823 = vpack.c.bf16 %v6375, %v6371
          %v6824 = vpack.c.bf16 %v6376, %v6372
          %v6825 = vpack.c.bf16 %v6377, %v6373
          %v6826 = vpack.c.bf16 %v6378, %v6374
          %v6827 = vpack.c.bf16 %v6383, %v6379
          %v6828 = vpack.c.bf16 %v6384, %v6380
          %v6829 = vpack.c.bf16 %v6385, %v6381
          %v6830 = vpack.c.bf16 %v6386, %v6382
          %v6831 = vpack.c.bf16 %v6391, %v6387
          %v6832 = vpack.c.bf16 %v6392, %v6388
          %v6833 = vpack.c.bf16 %v6393, %v6389
          %v6834 = vpack.c.bf16 %v6394, %v6390
          %v6835 = vpack.c.bf16 %v6399, %v6395
          %v6836 = vpack.c.bf16 %v6400, %v6396
          %v6837 = vpack.c.bf16 %v6401, %v6397
          %v6838 = vpack.c.bf16 %v6402, %v6398
          %v6839 = vpack.c.bf16 %v6407, %v6403
          %v6840 = vpack.c.bf16 %v6408, %v6404
          %v6841 = vpack.c.bf16 %v6409, %v6405
          %v6842 = vpack.c.bf16 %v6410, %v6406
          %v6843 = vpack.c.bf16 %v6415, %v6411
          %v6844 = vpack.c.bf16 %v6416, %v6412
          %v6845 = vpack.c.bf16 %v6417, %v6413
          %v6846 = vpack.c.bf16 %v6418, %v6414
          %v6847 = vpack.c.bf16 %v6423, %v6419
          %v6848 = vpack.c.bf16 %v6424, %v6420
          %v6849 = vpack.c.bf16 %v6425, %v6421
          %v6850 = vpack.c.bf16 %v6426, %v6422
          %v6851 = vpack.c.bf16 %v6431, %v6427
          %v6852 = vpack.c.bf16 %v6432, %v6428
          %v6853 = vpack.c.bf16 %v6433, %v6429
          %v6854 = vpack.c.bf16 %v6434, %v6430
          %v6855 = vpack.c.bf16 %v6439, %v6435
          %v6856 = vpack.c.bf16 %v6440, %v6436
          %v6857 = vpack.c.bf16 %v6441, %v6437
          %v6858 = vpack.c.bf16 %v6442, %v6438
          %v6859 = vpack.c.bf16 %v6447, %v6443
          %v6860 = vpack.c.bf16 %v6448, %v6444
          %v6861 = vpack.c.bf16 %v6449, %v6445
          %v6862 = vpack.c.bf16 %v6450, %v6446
          %v6863 = vpack.c.bf16 %v6455, %v6451
          %v6864 = vpack.c.bf16 %v6456, %v6452
          %v6865 = vpack.c.bf16 %v6457, %v6453
          %v6866 = vpack.c.bf16 %v6458, %v6454
          %v6867 = vpack.c.bf16 %v6463, %v6459
          %v6868 = vpack.c.bf16 %v6464, %v6460
          %v6869 = vpack.c.bf16 %v6465, %v6461
          %v6870 = vpack.c.bf16 %v6466, %v6462
          %v6871 = vpack.c.bf16 %v6471, %v6467
          %v6872 = vpack.c.bf16 %v6472, %v6468
          %v6873 = vpack.c.bf16 %v6473, %v6469
          %v6874 = vpack.c.bf16 %v6474, %v6470
          %v6875 = vpack.c.bf16 %v6479, %v6475
          %v6876 = vpack.c.bf16 %v6480, %v6476
          %v6877 = vpack.c.bf16 %v6481, %v6477
          %v6878 = vpack.c.bf16 %v6482, %v6478
          %v6879 = vpack.c.bf16 %v6487, %v6483
          %v6880 = vpack.c.bf16 %v6488, %v6484
          %v6881 = vpack.c.bf16 %v6489, %v6485
          %v6882 = vpack.c.bf16 %v6490, %v6486
          %v6883 = vpack.c.bf16 %v6495, %v6491
          %v6884 = vpack.c.bf16 %v6496, %v6492
          %v6885 = vpack.c.bf16 %v6497, %v6493
          %v6886 = vpack.c.bf16 %v6498, %v6494
          %v6887 = vpack.c.bf16 %v6503, %v6499
          %v6888 = vpack.c.bf16 %v6504, %v6500
          %v6889 = vpack.c.bf16 %v6505, %v6501
          %v6890 = vpack.c.bf16 %v6506, %v6502
          %v6891 = vpack.c.bf16 %v6511, %v6507
          %v6892 = vpack.c.bf16 %v6512, %v6508
          %v6893 = vpack.c.bf16 %v6513, %v6509
          %v6894 = vpack.c.bf16 %v6514, %v6510
          %v6895 = vpack.c.bf16 %v6519, %v6515
          %v6896 = vpack.c.bf16 %v6520, %v6516
          %v6897 = vpack.c.bf16 %v6521, %v6517
          %v6898 = vpack.c.bf16 %v6522, %v6518
          %v6899 = vpack.c.bf16 %v6527, %v6523
          %v6900 = vpack.c.bf16 %v6528, %v6524
          %v6901 = vpack.c.bf16 %v6529, %v6525
          %v6902 = vpack.c.bf16 %v6530, %v6526
          %v6903 = vpack.c.bf16 %v6535, %v6531
          %v6904 = vpack.c.bf16 %v6536, %v6532
          %v6905 = vpack.c.bf16 %v6537, %v6533
          %v6906 = vpack.c.bf16 %v6538, %v6534
          %v6907 = vpack.c.bf16 %v6543, %v6539
          %v6908 = vpack.c.bf16 %v6544, %v6540
          %v6909 = vpack.c.bf16 %v6545, %v6541
          %v6910 = vpack.c.bf16 %v6546, %v6542
          %v6911 = vpack.c.bf16 %v6551, %v6547
          %v6912 = vpack.c.bf16 %v6552, %v6548
          %v6913 = vpack.c.bf16 %v6553, %v6549
          %v6914 = vpack.c.bf16 %v6554, %v6550
          %v6915 = vpack.c.bf16 %v6559, %v6555
          %v6916 = vpack.c.bf16 %v6560, %v6556
          %v6917 = vpack.c.bf16 %v6561, %v6557
          %v6918 = vpack.c.bf16 %v6562, %v6558
          %v6919 = vpack.c.bf16 %v6567, %v6563
          %v6920 = vpack.c.bf16 %v6568, %v6564
          %v6921 = vpack.c.bf16 %v6569, %v6565
          %v6922 = vpack.c.bf16 %v6570, %v6566
          %v6923 = vpack.c.bf16 %v6575, %v6571
          %v6924 = vpack.c.bf16 %v6576, %v6572
          %v6925 = vpack.c.bf16 %v6577, %v6573
          %v6926 = vpack.c.bf16 %v6578, %v6574
          %v6927 = vpack.c.bf16 %v6583, %v6579
          %v6928 = vpack.c.bf16 %v6584, %v6580
          %v6929 = vpack.c.bf16 %v6585, %v6581
          %v6930 = vpack.c.bf16 %v6586, %v6582
          %v6931 = vpack.c.bf16 %v6591, %v6587
          %v6932 = vpack.c.bf16 %v6592, %v6588
          %v6933 = vpack.c.bf16 %v6593, %v6589
          %v6934 = vpack.c.bf16 %v6594, %v6590
          %v6935 = vpack.c.bf16 %v6599, %v6595
          %v6936 = vpack.c.bf16 %v6600, %v6596
          %v6937 = vpack.c.bf16 %v6601, %v6597
          %v6938 = vpack.c.bf16 %v6602, %v6598
          %v6939 = vpack.c.bf16 %v6607, %v6603
          %v6940 = vpack.c.bf16 %v6608, %v6604
          %v6941 = vpack.c.bf16 %v6609, %v6605
          %v6942 = vpack.c.bf16 %v6610, %v6606
          %v6943 = vpack.c.bf16 %v6615, %v6611
          %v6944 = vpack.c.bf16 %v6616, %v6612
          %v6945 = vpack.c.bf16 %v6617, %v6613
          %v6946 = vpack.c.bf16 %v6618, %v6614
          %v6947 = vpack.c.bf16 %v6623, %v6619
          %v6948 = vpack.c.bf16 %v6624, %v6620
          %v6949 = vpack.c.bf16 %v6625, %v6621
          %v6950 = vpack.c.bf16 %v6626, %v6622
          %v6951 = vpack.c.bf16 %v6631, %v6627
          %v6952 = vpack.c.bf16 %v6632, %v6628
          %v6953 = vpack.c.bf16 %v6633, %v6629
          %v6954 = vpack.c.bf16 %v6634, %v6630
          %v6955 = vpack.c.bf16 %v6639, %v6635
          %v6956 = vpack.c.bf16 %v6640, %v6636
          %v6957 = vpack.c.bf16 %v6641, %v6637
          %v6958 = vpack.c.bf16 %v6642, %v6638
          %v6959 = vpack.c.bf16 %v6647, %v6643
          %v6960 = vpack.c.bf16 %v6648, %v6644
          %v6961 = vpack.c.bf16 %v6649, %v6645
          %v6962 = vpack.c.bf16 %v6650, %v6646
          %v6963 = vpack.c.bf16 %v6655, %v6651
          %v6964 = vpack.c.bf16 %v6656, %v6652
          %v6965 = vpack.c.bf16 %v6657, %v6653
          %v6966 = vpack.c.bf16 %v6658, %v6654
          %v6967 = vpack.c.bf16 %v6663, %v6659
          %v6968 = vpack.c.bf16 %v6664, %v6660
          %v6969 = vpack.c.bf16 %v6665, %v6661
          %v6970 = vpack.c.bf16 %v6666, %v6662
          %v6971 = vpack.c.bf16 %v6671, %v6667
          %v6972 = vpack.c.bf16 %v6672, %v6668
          %v6973 = vpack.c.bf16 %v6673, %v6669
          %v6974 = vpack.c.bf16 %v6674, %v6670
          %v6975 = vpack.c.bf16 %v6679, %v6675
          %v6976 = vpack.c.bf16 %v6680, %v6676
          %v6977 = vpack.c.bf16 %v6681, %v6677
          %v6978 = vpack.c.bf16 %v6682, %v6678
          %v6979 = vpack.c.bf16 %v6687, %v6683
          %v6980 = vpack.c.bf16 %v6688, %v6684
          %v6981 = vpack.c.bf16 %v6689, %v6685
          %v6982 = vpack.c.bf16 %v6690, %v6686
          %v6983 = vpack.c.bf16 %v6695, %v6691
          %v6984 = vpack.c.bf16 %v6696, %v6692
          %v6985 = vpack.c.bf16 %v6697, %v6693
          %v6986 = vpack.c.bf16 %v6698, %v6694
          %v6987 = vpack.c.bf16 %v6703, %v6699
          %v6988 = vpack.c.bf16 %v6704, %v6700
          %v6989 = vpack.c.bf16 %v6705, %v6701
          %v6990 = vpack.c.bf16 %v6706, %v6702
          %v6991 = vpack.c.bf16 %v6711, %v6707
          %v6992 = vpack.c.bf16 %v6712, %v6708
          %v6993 = vpack.c.bf16 %v6713, %v6709
          %v6994 = vpack.c.bf16 %v6714, %v6710
          %v6995 = vpack.c.bf16 %v6719, %v6715
          %v6996 = vpack.c.bf16 %v6720, %v6716
          %v6997 = vpack.c.bf16 %v6721, %v6717
          %v6998 = vpack.c.bf16 %v6722, %v6718
          %v6999 = vpack.c.bf16 %v6727, %v6723
          %v7000 = vpack.c.bf16 %v6728, %v6724
          %v7001 = vpack.c.bf16 %v6729, %v6725
          %v7002 = vpack.c.bf16 %v6730, %v6726
          %v7003 = vpack.c.bf16 %v6735, %v6731
          %v7004 = vpack.c.bf16 %v6736, %v6732
          %v7005 = vpack.c.bf16 %v6737, %v6733
          %v7006 = vpack.c.bf16 %v6738, %v6734
          %v7007 = vpack.c.bf16 %v6743, %v6739
          %v7008 = vpack.c.bf16 %v6744, %v6740
          %v7009 = vpack.c.bf16 %v6745, %v6741
          %v7010 = vpack.c.bf16 %v6746, %v6742
          %v7011 = vpack.c.bf16 %v6751, %v6747
          %v7012 = vpack.c.bf16 %v6752, %v6748
          %v7013 = vpack.c.bf16 %v6753, %v6749
          %v7014 = vpack.c.bf16 %v6754, %v6750
          %v7015 = vpack.c.bf16 %v6759, %v6755
          %v7016 = vpack.c.bf16 %v6760, %v6756
          %v7017 = vpack.c.bf16 %v6761, %v6757
          %v7018 = vpack.c.bf16 %v6762, %v6758
          %7019 = vmatpush.bf16.msra.mxu0 %v6791
          %7020 = vmatpush.bf16.msra.mxu0 %v6787
          %7021 = vmatpush.bf16.msra.mxu0 %v6783
          %7022 = vmatpush.bf16.msra.mxu0 %v6779
          %7023 = vmatpush.bf16.msra.mxu0 %v6775
          %7024 = vmatpush.bf16.msra.mxu0 %v6771
          %7025 = vmatpush.bf16.msra.mxu0 %v6767
          %7026 = vmatpush.bf16.msra.mxu0 %v6763
          %7027 = vmatmul.bf16.gmra.mxu0 %v5731
          %v7028 = vpop.f32.mrf.mxu0
          %v7029 = vadd.f32 0.0, %v7028
          %v7030 = vpop.f32.mrf.mxu0
          %7031 = vdwg.mxu0
          %7032 = vmatpush.bf16.msra.mxu0 %v6823
          %7033 = vmatpush.bf16.msra.mxu0 %v6819
          %7034 = vmatpush.bf16.msra.mxu0 %v6815
          %7035 = vmatpush.bf16.msra.mxu0 %v6811
          %7036 = vmatpush.bf16.msra.mxu0 %v6807
          %7037 = vmatpush.bf16.msra.mxu0 %v6803
          %7038 = vmatpush.bf16.msra.mxu0 %v6799
          %7039 = vmatpush.bf16.msra.mxu0 %v6795
          %7040 = vmatmul.bf16.gmra.mxu0 %v5732
          %v7041 = vpop.f32.mrf.mxu0
          %v7042 = vadd.f32 %v7029, %v7041
          %v7043 = vpop.f32.mrf.mxu0
          %7044 = vdwg.mxu0
          %7045 = vmatpush.bf16.msra.mxu0 %v6855
          %7046 = vmatpush.bf16.msra.mxu0 %v6851
          %7047 = vmatpush.bf16.msra.mxu0 %v6847
          %7048 = vmatpush.bf16.msra.mxu0 %v6843
          %7049 = vmatpush.bf16.msra.mxu0 %v6839
          %7050 = vmatpush.bf16.msra.mxu0 %v6835
          %7051 = vmatpush.bf16.msra.mxu0 %v6831
          %7052 = vmatpush.bf16.msra.mxu0 %v6827
          %7053 = vmatmul.bf16.gmra.mxu0 %v5733
          %v7054 = vpop.f32.mrf.mxu0
          %v7055 = vadd.f32 %v7042, %v7054
          %v7056 = vpop.f32.mrf.mxu0
          %7057 = vdwg.mxu0
          %7058 = vmatpush.bf16.msra.mxu0 %v6887
          %7059 = vmatpush.bf16.msra.mxu0 %v6883
          %7060 = vmatpush.bf16.msra.mxu0 %v6879
          %7061 = vmatpush.bf16.msra.mxu0 %v6875
          %7062 = vmatpush.bf16.msra.mxu0 %v6871
          %7063 = vmatpush.bf16.msra.mxu0 %v6867
          %7064 = vmatpush.bf16.msra.mxu0 %v6863
          %7065 = vmatpush.bf16.msra.mxu0 %v6859
          %7066 = vmatmul.bf16.gmra.mxu0 %v5734
          %v7067 = vpop.f32.mrf.mxu0
          %v7068 = vadd.f32 %v7055, %v7067
          %v7069 = vpop.f32.mrf.mxu0
          %7070 = vdwg.mxu0
          %7071 = vmatpush.bf16.msra.mxu0 %v6919
          %7072 = vmatpush.bf16.msra.mxu0 %v6915
          %7073 = vmatpush.bf16.msra.mxu0 %v6911
          %7074 = vmatpush.bf16.msra.mxu0 %v6907
          %7075 = vmatpush.bf16.msra.mxu0 %v6903
          %7076 = vmatpush.bf16.msra.mxu0 %v6899
          %7077 = vmatpush.bf16.msra.mxu0 %v6895
          %7078 = vmatpush.bf16.msra.mxu0 %v6891
          %7079 = vmatmul.bf16.gmra.mxu0 %v5735
          %v7080 = vpop.f32.mrf.mxu0
          %v7081 = vadd.f32 %v7068, %v7080
          %v7082 = vpop.f32.mrf.mxu0
          %7083 = vdwg.mxu0
          %7084 = vmatpush.bf16.msra.mxu0 %v6951
          %7085 = vmatpush.bf16.msra.mxu0 %v6947
          %7086 = vmatpush.bf16.msra.mxu0 %v6943
          %7087 = vmatpush.bf16.msra.mxu0 %v6939
          %7088 = vmatpush.bf16.msra.mxu0 %v6935
          %7089 = vmatpush.bf16.msra.mxu0 %v6931
          %7090 = vmatpush.bf16.msra.mxu0 %v6927
          %7091 = vmatpush.bf16.msra.mxu0 %v6923
          %7092 = vmatmul.bf16.gmra.mxu0 %v5736
          %v7093 = vpop.f32.mrf.mxu0
          %v7094 = vadd.f32 %v7081, %v7093
          %v7095 = vpop.f32.mrf.mxu0
          %7096 = vdwg.mxu0
          %7097 = vmatpush.bf16.msra.mxu0 %v6983
          %7098 = vmatpush.bf16.msra.mxu0 %v6979
          %7099 = vmatpush.bf16.msra.mxu0 %v6975
          %7100 = vmatpush.bf16.msra.mxu0 %v6971
          %7101 = vmatpush.bf16.msra.mxu0 %v6967
          %7102 = vmatpush.bf16.msra.mxu0 %v6963
          %7103 = vmatpush.bf16.msra.mxu0 %v6959
          %7104 = vmatpush.bf16.msra.mxu0 %v6955
          %7105 = vmatmul.bf16.gmra.mxu0 %v5737
          %v7106 = vpop.f32.mrf.mxu0
          %v7107 = vadd.f32 %v7094, %v7106
          %v7108 = vpop.f32.mrf.mxu0
          %7109 = vdwg.mxu0
          %7110 = vmatpush.bf16.msra.mxu0 %v7015
          %7111 = vmatpush.bf16.msra.mxu0 %v7011
          %7112 = vmatpush.bf16.msra.mxu0 %v7007
          %7113 = vmatpush.bf16.msra.mxu0 %v7003
          %7114 = vmatpush.bf16.msra.mxu0 %v6999
          %7115 = vmatpush.bf16.msra.mxu0 %v6995
          %7116 = vmatpush.bf16.msra.mxu0 %v6991
          %7117 = vmatpush.bf16.msra.mxu0 %v6987
          %7118 = vmatmul.bf16.gmra.mxu0 %v5738
          %v7119 = vpop.f32.mrf.mxu0
          %v7120 = vadd.f32 %v7107, %v7119
          %v7121 = vpop.f32.mrf.mxu0
          %7122 = vdwg.mxu0
          %7123 = vmatpush.bf16.msra.mxu0 %v6792
          %7124 = vmatpush.bf16.msra.mxu0 %v6788
          %7125 = vmatpush.bf16.msra.mxu0 %v6784
          %7126 = vmatpush.bf16.msra.mxu0 %v6780
          %7127 = vmatpush.bf16.msra.mxu0 %v6776
          %7128 = vmatpush.bf16.msra.mxu0 %v6772
          %7129 = vmatpush.bf16.msra.mxu0 %v6768
          %7130 = vmatpush.bf16.msra.mxu0 %v6764
          %7131 = vmatmul.bf16.gmra.mxu0 %v5731
          %v7132 = vpop.f32.mrf.mxu0
          %v7133 = vadd.f32 0.0, %v7132
          %v7134 = vpop.f32.mrf.mxu0
          %7135 = vdwg.mxu0
          %7136 = vmatpush.bf16.msra.mxu0 %v6824
          %7137 = vmatpush.bf16.msra.mxu0 %v6820
          %7138 = vmatpush.bf16.msra.mxu0 %v6816
          %7139 = vmatpush.bf16.msra.mxu0 %v6812
          %7140 = vmatpush.bf16.msra.mxu0 %v6808
          %7141 = vmatpush.bf16.msra.mxu0 %v6804
          %7142 = vmatpush.bf16.msra.mxu0 %v6800
          %7143 = vmatpush.bf16.msra.mxu0 %v6796
          %7144 = vmatmul.bf16.gmra.mxu0 %v5732
          %v7145 = vpop.f32.mrf.mxu0
          %v7146 = vadd.f32 %v7133, %v7145
          %v7147 = vpop.f32.mrf.mxu0
          %7148 = vdwg.mxu0
          %7149 = vmatpush.bf16.msra.mxu0 %v6856
          %7150 = vmatpush.bf16.msra.mxu0 %v6852
          %7151 = vmatpush.bf16.msra.mxu0 %v6848
          %7152 = vmatpush.bf16.msra.mxu0 %v6844
          %7153 = vmatpush.bf16.msra.mxu0 %v6840
          %7154 = vmatpush.bf16.msra.mxu0 %v6836
          %7155 = vmatpush.bf16.msra.mxu0 %v6832
          %7156 = vmatpush.bf16.msra.mxu0 %v6828
          %7157 = vmatmul.bf16.gmra.mxu0 %v5733
          %v7158 = vpop.f32.mrf.mxu0
          %v7159 = vadd.f32 %v7146, %v7158
          %v7160 = vpop.f32.mrf.mxu0
          %7161 = vdwg.mxu0
          %7162 = vmatpush.bf16.msra.mxu0 %v6888
          %7163 = vmatpush.bf16.msra.mxu0 %v6884
          %7164 = vmatpush.bf16.msra.mxu0 %v6880
          %7165 = vmatpush.bf16.msra.mxu0 %v6876
          %7166 = vmatpush.bf16.msra.mxu0 %v6872
          %7167 = vmatpush.bf16.msra.mxu0 %v6868
          %7168 = vmatpush.bf16.msra.mxu0 %v6864
          %7169 = vmatpush.bf16.msra.mxu0 %v6860
          %7170 = vmatmul.bf16.gmra.mxu0 %v5734
          %v7171 = vpop.f32.mrf.mxu0
          %v7172 = vadd.f32 %v7159, %v7171
          %v7173 = vpop.f32.mrf.mxu0
          %7174 = vdwg.mxu0
          %7175 = vmatpush.bf16.msra.mxu0 %v6920
          %7176 = vmatpush.bf16.msra.mxu0 %v6916
          %7177 = vmatpush.bf16.msra.mxu0 %v6912
          %7178 = vmatpush.bf16.msra.mxu0 %v6908
          %7179 = vmatpush.bf16.msra.mxu0 %v6904
          %7180 = vmatpush.bf16.msra.mxu0 %v6900
          %7181 = vmatpush.bf16.msra.mxu0 %v6896
          %7182 = vmatpush.bf16.msra.mxu0 %v6892
          %7183 = vmatmul.bf16.gmra.mxu0 %v5735
          %v7184 = vpop.f32.mrf.mxu0
          %v7185 = vadd.f32 %v7172, %v7184
          %v7186 = vpop.f32.mrf.mxu0
          %7187 = vdwg.mxu0
          %7188 = vmatpush.bf16.msra.mxu0 %v6952
          %7189 = vmatpush.bf16.msra.mxu0 %v6948
          %7190 = vmatpush.bf16.msra.mxu0 %v6944
          %7191 = vmatpush.bf16.msra.mxu0 %v6940
          %7192 = vmatpush.bf16.msra.mxu0 %v6936
          %7193 = vmatpush.bf16.msra.mxu0 %v6932
          %7194 = vmatpush.bf16.msra.mxu0 %v6928
          %7195 = vmatpush.bf16.msra.mxu0 %v6924
          %7196 = vmatmul.bf16.gmra.mxu0 %v5736
          %v7197 = vpop.f32.mrf.mxu0
          %v7198 = vadd.f32 %v7185, %v7197
          %v7199 = vpop.f32.mrf.mxu0
          %7200 = vdwg.mxu0
          %7201 = vmatpush.bf16.msra.mxu0 %v6984
          %7202 = vmatpush.bf16.msra.mxu0 %v6980
          %7203 = vmatpush.bf16.msra.mxu0 %v6976
          %7204 = vmatpush.bf16.msra.mxu0 %v6972
          %7205 = vmatpush.bf16.msra.mxu0 %v6968
          %7206 = vmatpush.bf16.msra.mxu0 %v6964
          %7207 = vmatpush.bf16.msra.mxu0 %v6960
          %7208 = vmatpush.bf16.msra.mxu0 %v6956
          %7209 = vmatmul.bf16.gmra.mxu0 %v5737
          %v7210 = vpop.f32.mrf.mxu0
          %v7211 = vadd.f32 %v7198, %v7210
          %v7212 = vpop.f32.mrf.mxu0
          %7213 = vdwg.mxu0
          %7214 = vmatpush.bf16.msra.mxu0 %v7016
          %7215 = vmatpush.bf16.msra.mxu0 %v7012
          %7216 = vmatpush.bf16.msra.mxu0 %v7008
          %7217 = vmatpush.bf16.msra.mxu0 %v7004
          %7218 = vmatpush.bf16.msra.mxu0 %v7000
          %7219 = vmatpush.bf16.msra.mxu0 %v6996
          %7220 = vmatpush.bf16.msra.mxu0 %v6992
          %7221 = vmatpush.bf16.msra.mxu0 %v6988
          %7222 = vmatmul.bf16.gmra.mxu0 %v5738
          %v7223 = vpop.f32.mrf.mxu0
          %v7224 = vadd.f32 %v7211, %v7223
          %v7225 = vpop.f32.mrf.mxu0
          %7226 = vdwg.mxu0
          %7227 = vmatpush.bf16.msra.mxu0 %v6793
          %7228 = vmatpush.bf16.msra.mxu0 %v6789
          %7229 = vmatpush.bf16.msra.mxu0 %v6785
          %7230 = vmatpush.bf16.msra.mxu0 %v6781
          %7231 = vmatpush.bf16.msra.mxu0 %v6777
          %7232 = vmatpush.bf16.msra.mxu0 %v6773
          %7233 = vmatpush.bf16.msra.mxu0 %v6769
          %7234 = vmatpush.bf16.msra.mxu0 %v6765
          %7235 = vmatmul.bf16.gmra.mxu0 %v5731
          %v7236 = vpop.f32.mrf.mxu0
          %v7237 = vadd.f32 0.0, %v7236
          %v7238 = vpop.f32.mrf.mxu0
          %7239 = vdwg.mxu0
          %7240 = vmatpush.bf16.msra.mxu0 %v6825
          %7241 = vmatpush.bf16.msra.mxu0 %v6821
          %7242 = vmatpush.bf16.msra.mxu0 %v6817
          %7243 = vmatpush.bf16.msra.mxu0 %v6813
          %7244 = vmatpush.bf16.msra.mxu0 %v6809
          %7245 = vmatpush.bf16.msra.mxu0 %v6805
          %7246 = vmatpush.bf16.msra.mxu0 %v6801
          %7247 = vmatpush.bf16.msra.mxu0 %v6797
          %7248 = vmatmul.bf16.gmra.mxu0 %v5732
          %v7249 = vpop.f32.mrf.mxu0
          %v7250 = vadd.f32 %v7237, %v7249
          %v7251 = vpop.f32.mrf.mxu0
          %7252 = vdwg.mxu0
          %7253 = vmatpush.bf16.msra.mxu0 %v6857
          %7254 = vmatpush.bf16.msra.mxu0 %v6853
          %7255 = vmatpush.bf16.msra.mxu0 %v6849
          %7256 = vmatpush.bf16.msra.mxu0 %v6845
          %7257 = vmatpush.bf16.msra.mxu0 %v6841
          %7258 = vmatpush.bf16.msra.mxu0 %v6837
          %7259 = vmatpush.bf16.msra.mxu0 %v6833
          %7260 = vmatpush.bf16.msra.mxu0 %v6829
          %7261 = vmatmul.bf16.gmra.mxu0 %v5733
          %v7262 = vpop.f32.mrf.mxu0
          %v7263 = vadd.f32 %v7250, %v7262
          %v7264 = vpop.f32.mrf.mxu0
          %7265 = vdwg.mxu0
          %7266 = vmatpush.bf16.msra.mxu0 %v6889
          %7267 = vmatpush.bf16.msra.mxu0 %v6885
          %7268 = vmatpush.bf16.msra.mxu0 %v6881
          %7269 = vmatpush.bf16.msra.mxu0 %v6877
          %7270 = vmatpush.bf16.msra.mxu0 %v6873
          %7271 = vmatpush.bf16.msra.mxu0 %v6869
          %7272 = vmatpush.bf16.msra.mxu0 %v6865
          %7273 = vmatpush.bf16.msra.mxu0 %v6861
          %7274 = vmatmul.bf16.gmra.mxu0 %v5734
          %v7275 = vpop.f32.mrf.mxu0
          %v7276 = vadd.f32 %v7263, %v7275
          %v7277 = vpop.f32.mrf.mxu0
          %7278 = vdwg.mxu0
          %7279 = vmatpush.bf16.msra.mxu0 %v6921
          %7280 = vmatpush.bf16.msra.mxu0 %v6917
          %7281 = vmatpush.bf16.msra.mxu0 %v6913
          %7282 = vmatpush.bf16.msra.mxu0 %v6909
          %7283 = vmatpush.bf16.msra.mxu0 %v6905
          %7284 = vmatpush.bf16.msra.mxu0 %v6901
          %7285 = vmatpush.bf16.msra.mxu0 %v6897
          %7286 = vmatpush.bf16.msra.mxu0 %v6893
          %7287 = vmatmul.bf16.gmra.mxu0 %v5735
          %v7288 = vpop.f32.mrf.mxu0
          %v7289 = vadd.f32 %v7276, %v7288
          %v7290 = vpop.f32.mrf.mxu0
          %7291 = vdwg.mxu0
          %7292 = vmatpush.bf16.msra.mxu0 %v6953
          %7293 = vmatpush.bf16.msra.mxu0 %v6949
          %7294 = vmatpush.bf16.msra.mxu0 %v6945
          %7295 = vmatpush.bf16.msra.mxu0 %v6941
          %7296 = vmatpush.bf16.msra.mxu0 %v6937
          %7297 = vmatpush.bf16.msra.mxu0 %v6933
          %7298 = vmatpush.bf16.msra.mxu0 %v6929
          %7299 = vmatpush.bf16.msra.mxu0 %v6925
          %7300 = vmatmul.bf16.gmra.mxu0 %v5736
          %v7301 = vpop.f32.mrf.mxu0
          %v7302 = vadd.f32 %v7289, %v7301
          %v7303 = vpop.f32.mrf.mxu0
          %7304 = vdwg.mxu0
          %7305 = vmatpush.bf16.msra.mxu0 %v6985
          %7306 = vmatpush.bf16.msra.mxu0 %v6981
          %7307 = vmatpush.bf16.msra.mxu0 %v6977
          %7308 = vmatpush.bf16.msra.mxu0 %v6973
          %7309 = vmatpush.bf16.msra.mxu0 %v6969
          %7310 = vmatpush.bf16.msra.mxu0 %v6965
          %7311 = vmatpush.bf16.msra.mxu0 %v6961
          %7312 = vmatpush.bf16.msra.mxu0 %v6957
          %7313 = vmatmul.bf16.gmra.mxu0 %v5737
          %v7314 = vpop.f32.mrf.mxu0
          %v7315 = vadd.f32 %v7302, %v7314
          %v7316 = vpop.f32.mrf.mxu0
          %7317 = vdwg.mxu0
          %7318 = vmatpush.bf16.msra.mxu0 %v7017
          %7319 = vmatpush.bf16.msra.mxu0 %v7013
          %7320 = vmatpush.bf16.msra.mxu0 %v7009
          %7321 = vmatpush.bf16.msra.mxu0 %v7005
          %7322 = vmatpush.bf16.msra.mxu0 %v7001
          %7323 = vmatpush.bf16.msra.mxu0 %v6997
          %7324 = vmatpush.bf16.msra.mxu0 %v6993
          %7325 = vmatpush.bf16.msra.mxu0 %v6989
          %7326 = vmatmul.bf16.gmra.mxu0 %v5738
          %v7327 = vpop.f32.mrf.mxu0
          %v7328 = vadd.f32 %v7315, %v7327
          %v7329 = vpop.f32.mrf.mxu0
          %7330 = vdwg.mxu0
          %7331 = vmatpush.bf16.msra.mxu0 %v6794
          %7332 = vmatpush.bf16.msra.mxu0 %v6790
          %7333 = vmatpush.bf16.msra.mxu0 %v6786
          %7334 = vmatpush.bf16.msra.mxu0 %v6782
          %7335 = vmatpush.bf16.msra.mxu0 %v6778
          %7336 = vmatpush.bf16.msra.mxu0 %v6774
          %7337 = vmatpush.bf16.msra.mxu0 %v6770
          %7338 = vmatpush.bf16.msra.mxu0 %v6766
          %7339 = vmatmul.bf16.gmra.mxu0 %v5731
          %v7340 = vpop.f32.mrf.mxu0
          %v7341 = vadd.f32 0.0, %v7340
          %v7342 = vpop.f32.mrf.mxu0
          %7343 = vdwg.mxu0
          %7344 = vmatpush.bf16.msra.mxu0 %v6826
          %7345 = vmatpush.bf16.msra.mxu0 %v6822
          %7346 = vmatpush.bf16.msra.mxu0 %v6818
          %7347 = vmatpush.bf16.msra.mxu0 %v6814
          %7348 = vmatpush.bf16.msra.mxu0 %v6810
          %7349 = vmatpush.bf16.msra.mxu0 %v6806
          %7350 = vmatpush.bf16.msra.mxu0 %v6802
          %7351 = vmatpush.bf16.msra.mxu0 %v6798
          %7352 = vmatmul.bf16.gmra.mxu0 %v5732
          %v7353 = vpop.f32.mrf.mxu0
          %v7354 = vadd.f32 %v7341, %v7353
          %v7355 = vpop.f32.mrf.mxu0
          %7356 = vdwg.mxu0
          %7357 = vmatpush.bf16.msra.mxu0 %v6858
          %7358 = vmatpush.bf16.msra.mxu0 %v6854
          %7359 = vmatpush.bf16.msra.mxu0 %v6850
          %7360 = vmatpush.bf16.msra.mxu0 %v6846
          %7361 = vmatpush.bf16.msra.mxu0 %v6842
          %7362 = vmatpush.bf16.msra.mxu0 %v6838
          %7363 = vmatpush.bf16.msra.mxu0 %v6834
          %7364 = vmatpush.bf16.msra.mxu0 %v6830
          %7365 = vmatmul.bf16.gmra.mxu0 %v5733
          %v7366 = vpop.f32.mrf.mxu0
          %v7367 = vadd.f32 %v7354, %v7366
          %v7368 = vpop.f32.mrf.mxu0
          %7369 = vdwg.mxu0
          %7370 = vmatpush.bf16.msra.mxu0 %v6890
          %7371 = vmatpush.bf16.msra.mxu0 %v6886
          %7372 = vmatpush.bf16.msra.mxu0 %v6882
          %7373 = vmatpush.bf16.msra.mxu0 %v6878
          %7374 = vmatpush.bf16.msra.mxu0 %v6874
          %7375 = vmatpush.bf16.msra.mxu0 %v6870
          %7376 = vmatpush.bf16.msra.mxu0 %v6866
          %7377 = vmatpush.bf16.msra.mxu0 %v6862
          %7378 = vmatmul.bf16.gmra.mxu0 %v5734
          %v7379 = vpop.f32.mrf.mxu0
          %v7380 = vadd.f32 %v7367, %v7379
          %v7381 = vpop.f32.mrf.mxu0
          %7382 = vdwg.mxu0
          %7383 = vmatpush.bf16.msra.mxu0 %v6922
          %7384 = vmatpush.bf16.msra.mxu0 %v6918
          %7385 = vmatpush.bf16.msra.mxu0 %v6914
          %7386 = vmatpush.bf16.msra.mxu0 %v6910
          %7387 = vmatpush.bf16.msra.mxu0 %v6906
          %7388 = vmatpush.bf16.msra.mxu0 %v6902
          %7389 = vmatpush.bf16.msra.mxu0 %v6898
          %7390 = vmatpush.bf16.msra.mxu0 %v6894
          %7391 = vmatmul.bf16.gmra.mxu0 %v5735
          %v7392 = vpop.f32.mrf.mxu0
          %v7393 = vadd.f32 %v7380, %v7392
          %v7394 = vpop.f32.mrf.mxu0
          %7395 = vdwg.mxu0
          %7396 = vmatpush.bf16.msra.mxu0 %v6954
          %7397 = vmatpush.bf16.msra.mxu0 %v6950
          %7398 = vmatpush.bf16.msra.mxu0 %v6946
          %7399 = vmatpush.bf16.msra.mxu0 %v6942
          %7400 = vmatpush.bf16.msra.mxu0 %v6938
          %7401 = vmatpush.bf16.msra.mxu0 %v6934
          %7402 = vmatpush.bf16.msra.mxu0 %v6930
          %7403 = vmatpush.bf16.msra.mxu0 %v6926
          %7404 = vmatmul.bf16.gmra.mxu0 %v5736
          %v7405 = vpop.f32.mrf.mxu0
          %v7406 = vadd.f32 %v7393, %v7405
          %v7407 = vpop.f32.mrf.mxu0
          %7408 = vdwg.mxu0
          %7409 = vmatpush.bf16.msra.mxu0 %v6986
          %7410 = vmatpush.bf16.msra.mxu0 %v6982
          %7411 = vmatpush.bf16.msra.mxu0 %v6978
          %7412 = vmatpush.bf16.msra.mxu0 %v6974
          %7413 = vmatpush.bf16.msra.mxu0 %v6970
          %7414 = vmatpush.bf16.msra.mxu0 %v6966
          %7415 = vmatpush.bf16.msra.mxu0 %v6962
          %7416 = vmatpush.bf16.msra.mxu0 %v6958
          %7417 = vmatmul.bf16.gmra.mxu0 %v5737
          %v7418 = vpop.f32.mrf.mxu0
          %v7419 = vadd.f32 %v7406, %v7418
          %v7420 = vpop.f32.mrf.mxu0
          %7421 = vdwg.mxu0
          %7422 = vmatpush.bf16.msra.mxu0 %v7018
          %7423 = vmatpush.bf16.msra.mxu0 %v7014
          %7424 = vmatpush.bf16.msra.mxu0 %v7010
          %7425 = vmatpush.bf16.msra.mxu0 %v7006
          %7426 = vmatpush.bf16.msra.mxu0 %v7002
          %7427 = vmatpush.bf16.msra.mxu0 %v6998
          %7428 = vmatpush.bf16.msra.mxu0 %v6994
          %7429 = vmatpush.bf16.msra.mxu0 %v6990
          %7430 = vmatmul.bf16.gmra.mxu0 %v5738
          %v7431 = vpop.f32.mrf.mxu0
          %v7432 = vadd.f32 %v7419, %v7431
          %v7433 = vpop.f32.mrf.mxu0
          %7434 = vdwg.mxu0
          %v7436 = vperm.slane %v5656, 0
          %v7437 = vperm.slane %v5656, 1
          %v7438 = vperm.slane %v5656, 2
          %v7439 = vperm.slane %v5656, 3
          %v7444 = vmul.f32 %v7120, %v7436
          %v7445 = vmul.f32 %v7224, %v7437
          %v7446 = vmul.f32 %v7328, %v7438
          %v7447 = vmul.f32 %v7432, %v7439
          %v7449 = vperm.slane %v5657, 0
          %v7450 = vperm.slane %v5657, 1
          %v7451 = vperm.slane %v5657, 2
          %v7452 = vperm.slane %v5657, 3
          %v7457 = vadd.f32 %v7444, %v7449
          %v7458 = vadd.f32 %v7445, %v7450
          %v7459 = vadd.f32 %v7446, %v7451
          %v7460 = vadd.f32 %v7447, %v7452
          %v7461 = vmax.f32 %v7457, 0.0
          %v7462 = vmax.f32 %v7458, 0.0
          %v7463 = vmax.f32 %v7459, 0.0
          %v7464 = vmax.f32 %v7460, 0.0
          %v7465 = vld [vmem:[%s7] sm:$0x1]
          %v7466 = vld [vmem:[%s9] sm:$0x3]
          %v7467 = vld [vmem:[%s11] sm:$0x1]
          %v7468 = vpack.c.bf16 %v7461, %v7461
          %v7469 = vpack.c.bf16 %v7462, %v7462
          %v7470 = vpack.c.bf16 %v7463, %v7463
          %v7471 = vpack.c.bf16 %v7464, %v7464
          %v7473 = vperm.slane %v5381, 0
          %v7539 = vunpack.c.l.b16 %v5317
          %v7540 = vunpack.c.l.b16 %v5318
          %v7541 = vunpack.c.l.b16 %v5319
          %v7542 = vunpack.c.l.b16 %v5320
          %v7543 = vunpack.c.l.b16 %v5321
          %v7544 = vunpack.c.l.b16 %v5322
          %v7545 = vunpack.c.l.b16 %v5323
          %v7546 = vunpack.c.l.b16 %v5324
          %v7547 = vunpack.c.l.b16 %v5325
          %v7548 = vunpack.c.l.b16 %v5326
          %v7549 = vunpack.c.l.b16 %v5327
          %v7550 = vunpack.c.l.b16 %v5328
          %v7551 = vunpack.c.l.b16 %v5329
          %v7552 = vunpack.c.l.b16 %v5330
          %v7553 = vunpack.c.l.b16 %v5331
          %v7554 = vunpack.c.l.b16 %v5332
          %v7555 = vunpack.c.l.b16 %v5333
          %v7556 = vunpack.c.l.b16 %v5334
          %v7557 = vunpack.c.l.b16 %v5335
          %v7558 = vunpack.c.l.b16 %v5336
          %v7559 = vunpack.c.l.b16 %v5337
          %v7560 = vunpack.c.l.b16 %v5338
          %v7561 = vunpack.c.l.b16 %v5339
          %v7562 = vunpack.c.l.b16 %v5340
          %v7563 = vunpack.c.l.b16 %v5341
          %v7564 = vunpack.c.l.b16 %v5342
          %v7565 = vunpack.c.l.b16 %v5343
          %v7566 = vunpack.c.l.b16 %v5344
          %v7567 = vunpack.c.l.b16 %v5345
          %v7568 = vunpack.c.l.b16 %v5346
          %v7569 = vunpack.c.l.b16 %v5347
          %v7570 = vunpack.c.l.b16 %v5348
          %v7571 = vunpack.c.l.b16 %v5349
          %v7572 = vunpack.c.l.b16 %v5350
          %v7573 = vunpack.c.l.b16 %v5351
          %v7574 = vunpack.c.l.b16 %v5352
          %v7575 = vunpack.c.l.b16 %v5353
          %v7576 = vunpack.c.l.b16 %v5354
          %v7577 = vunpack.c.l.b16 %v5355
          %v7578 = vunpack.c.l.b16 %v5356
          %v7579 = vunpack.c.l.b16 %v5357
          %v7580 = vunpack.c.l.b16 %v5358
          %v7581 = vunpack.c.l.b16 %v5359
          %v7582 = vunpack.c.l.b16 %v5360
          %v7583 = vunpack.c.l.b16 %v5361
          %v7584 = vunpack.c.l.b16 %v5362
          %v7585 = vunpack.c.l.b16 %v5363
          %v7586 = vunpack.c.l.b16 %v5364
          %v7587 = vunpack.c.l.b16 %v5365
          %v7588 = vunpack.c.l.b16 %v5366
          %v7589 = vunpack.c.l.b16 %v5367
          %v7590 = vunpack.c.l.b16 %v5368
          %v7591 = vunpack.c.l.b16 %v5369
          %v7592 = vunpack.c.l.b16 %v5370
          %v7593 = vunpack.c.l.b16 %v5371
          %v7594 = vunpack.c.l.b16 %v5372
          %v7595 = vunpack.c.l.b16 %v5373
          %v7596 = vunpack.c.l.b16 %v5374
          %v7597 = vunpack.c.l.b16 %v5375
          %v7598 = vunpack.c.l.b16 %v5376
          %v7599 = vunpack.c.l.b16 %v5377
          %v7600 = vunpack.c.l.b16 %v5378
          %v7601 = vunpack.c.l.b16 %v5379
          %v7602 = vunpack.c.l.b16 %v5380
          %v7603 = vpack.c.b16 %v7540, %v7539
          %v7604 = vpack.c.b16 %v7542, %v7541
          %v7605 = vpack.c.b16 %v7544, %v7543
          %v7606 = vpack.c.b16 %v7546, %v7545
          %v7607 = vpack.c.b16 %v7548, %v7547
          %v7608 = vpack.c.b16 %v7550, %v7549
          %v7609 = vpack.c.b16 %v7552, %v7551
          %v7610 = vpack.c.b16 %v7554, %v7553
          %v7611 = vpack.c.b16 %v7556, %v7555
          %v7612 = vpack.c.b16 %v7558, %v7557
          %v7613 = vpack.c.b16 %v7560, %v7559
          %v7614 = vpack.c.b16 %v7562, %v7561
          %v7615 = vpack.c.b16 %v7564, %v7563
          %v7616 = vpack.c.b16 %v7566, %v7565
          %v7617 = vpack.c.b16 %v7568, %v7567
          %v7618 = vpack.c.b16 %v7570, %v7569
          %v7619 = vpack.c.b16 %v7572, %v7571
          %v7620 = vpack.c.b16 %v7574, %v7573
          %v7621 = vpack.c.b16 %v7576, %v7575
          %v7622 = vpack.c.b16 %v7578, %v7577
          %v7623 = vpack.c.b16 %v7580, %v7579
          %v7624 = vpack.c.b16 %v7582, %v7581
          %v7625 = vpack.c.b16 %v7584, %v7583
          %v7626 = vpack.c.b16 %v7586, %v7585
          %v7627 = vpack.c.b16 %v7588, %v7587
          %v7628 = vpack.c.b16 %v7590, %v7589
          %v7629 = vpack.c.b16 %v7592, %v7591
          %v7630 = vpack.c.b16 %v7594, %v7593
          %v7631 = vpack.c.b16 %v7596, %v7595
          %v7632 = vpack.c.b16 %v7598, %v7597
          %v7633 = vpack.c.b16 %v7600, %v7599
          %v7634 = vpack.c.b16 %v7602, %v7601
          %7667 = vmatpush.bf16.msra.mxu0 %v7610
          %7668 = vmatpush.bf16.msra.mxu0 %v7609
          %7669 = vmatpush.bf16.msra.mxu0 %v7608
          %7670 = vmatpush.bf16.msra.mxu0 %v7607
          %7671 = vmatpush.bf16.msra.mxu0 %v7606
          %7672 = vmatpush.bf16.msra.mxu0 %v7605
          %7673 = vmatpush.bf16.msra.mxu0 %v7604
          %7674 = vmatpush.bf16.msra.mxu0 %v7603
          %7675 = vmatmul.bf16.gmra.mxu0 %v7468
          %v7676 = vpop.f32.mrf.mxu0
          %v7677 = vadd.f32 %v7473, %v7676
          %v7678 = vpop.f32.mrf.mxu0
          %7679 = vdwg.mxu0
          %7680 = vmatpush.bf16.msra.mxu0 %v7618
          %7681 = vmatpush.bf16.msra.mxu0 %v7617
          %7682 = vmatpush.bf16.msra.mxu0 %v7616
          %7683 = vmatpush.bf16.msra.mxu0 %v7615
          %7684 = vmatpush.bf16.msra.mxu0 %v7614
          %7685 = vmatpush.bf16.msra.mxu0 %v7613
          %7686 = vmatpush.bf16.msra.mxu0 %v7612
          %7687 = vmatpush.bf16.msra.mxu0 %v7611
          %7688 = vmatmul.bf16.gmra.mxu0 %v7469
          %v7689 = vpop.f32.mrf.mxu0
          %v7690 = vadd.f32 %v7677, %v7689
          %v7691 = vpop.f32.mrf.mxu0
          %7692 = vdwg.mxu0
          %7693 = vmatpush.bf16.msra.mxu0 %v7626
          %7694 = vmatpush.bf16.msra.mxu0 %v7625
          %7695 = vmatpush.bf16.msra.mxu0 %v7624
          %7696 = vmatpush.bf16.msra.mxu0 %v7623
          %7697 = vmatpush.bf16.msra.mxu0 %v7622
          %7698 = vmatpush.bf16.msra.mxu0 %v7621
          %7699 = vmatpush.bf16.msra.mxu0 %v7620
          %7700 = vmatpush.bf16.msra.mxu0 %v7619
          %7701 = vmatmul.bf16.gmra.mxu0 %v7470
          %v7702 = vpop.f32.mrf.mxu0
          %v7703 = vadd.f32 %v7690, %v7702
          %v7704 = vpop.f32.mrf.mxu0
          %7705 = vdwg.mxu0
          %7706 = vmatpush.bf16.msra.mxu0 %v7634
          %7707 = vmatpush.bf16.msra.mxu0 %v7633
          %7708 = vmatpush.bf16.msra.mxu0 %v7632
          %7709 = vmatpush.bf16.msra.mxu0 %v7631
          %7710 = vmatpush.bf16.msra.mxu0 %v7630
          %7711 = vmatpush.bf16.msra.mxu0 %v7629
          %7712 = vmatpush.bf16.msra.mxu0 %v7628
          %7713 = vmatpush.bf16.msra.mxu0 %v7627
          %7714 = vmatmul.bf16.gmra.mxu0 %v7471
          %v7715 = vpop.f32.mrf.mxu0
          %v7716 = vadd.f32 %v7703, %v7715
          %v7717 = vpop.f32.mrf.mxu0
          %7718 = vdwg.mxu0
          %v7719 = vmax.f32 %v7716, 0.0
          %v7721 = vperm.slane %v5384, 0
          %v7725 = vunpack.c.l.b16 %v5382
          %v7726 = vunpack.c.l.b16 %v5383
          %v7727 = vpack.c.b16 %v7726, %v7725
          %vm7728 = vcmask 80896
          %v7730 = vsel %vm7728, %v7465, 0
          %vm7732 = vcmask 1044480
          %v7734 = vsel %vm7732, %v7727, 0
          %7736 = vmatpush.bf16.msra.mxu0 0
          %7737 = vmatpush.bf16.msra.mxu0 0
          %7738 = vmatpush.bf16.msra.mxu0 0
          %7739 = vmatpush.bf16.msra.mxu0 0
          %7740 = vmatpush.bf16.msra.mxu0 0
          %7741 = vmatpush.bf16.msra.mxu0 0
          %7742 = vmatpush.bf16.msra.mxu0 0
          %7743 = vmatpush.bf16.msra.mxu0 %v7734
          %7744 = vmatmul.bf16.gmra.mxu0 %v7730
          %v7745 = vpop.f32.mrf.mxu0
          %v7746 = vadd.f32 %v7721, %v7745
          %v7747 = vpop.f32.mrf.mxu0
          %7748 = vdwg.mxu0
          %v7749 = vmax.f32 %v7746, 0.0
          %v7750 = vpack.c.bf16 %v7749, %v7749
          %v7752 = vperm.slane %v5401, 0
          %v7770 = vunpack.c.l.b16 %v5385
          %v7771 = vunpack.c.l.b16 %v5386
          %v7772 = vunpack.c.l.b16 %v5387
          %v7773 = vunpack.c.l.b16 %v5388
          %v7774 = vunpack.c.l.b16 %v5389
          %v7775 = vunpack.c.l.b16 %v5390
          %v7776 = vunpack.c.l.b16 %v5391
          %v7777 = vunpack.c.l.b16 %v5392
          %v7778 = vunpack.c.l.b16 %v5393
          %v7779 = vunpack.c.l.b16 %v5394
          %v7780 = vunpack.c.l.b16 %v5395
          %v7781 = vunpack.c.l.b16 %v5396
          %v7782 = vunpack.c.l.b16 %v5397
          %v7783 = vunpack.c.l.b16 %v5398
          %v7784 = vunpack.c.l.b16 %v5399
          %v7785 = vunpack.c.l.b16 %v5400
          %v7786 = vpack.c.b16 %v7771, %v7770
          %v7787 = vpack.c.b16 %v7773, %v7772
          %v7788 = vpack.c.b16 %v7775, %v7774
          %v7789 = vpack.c.b16 %v7777, %v7776
          %v7790 = vpack.c.b16 %v7779, %v7778
          %v7791 = vpack.c.b16 %v7781, %v7780
          %v7792 = vpack.c.b16 %v7783, %v7782
          %v7793 = vpack.c.b16 %v7785, %v7784
          %7802 = vmatpush.bf16.msra.mxu0 %v7793
          %7803 = vmatpush.bf16.msra.mxu0 %v7792
          %7804 = vmatpush.bf16.msra.mxu0 %v7791
          %7805 = vmatpush.bf16.msra.mxu0 %v7790
          %7806 = vmatpush.bf16.msra.mxu0 %v7789
          %7807 = vmatpush.bf16.msra.mxu0 %v7788
          %7808 = vmatpush.bf16.msra.mxu0 %v7787
          %7809 = vmatpush.bf16.msra.mxu0 %v7786
          %7810 = vmatmul.bf16.gmra.mxu0 %v7750
          %v7811 = vpop.f32.mrf.mxu0
          %v7812 = vadd.f32 %v7752, %v7811
          %v7813 = vpop.f32.mrf.mxu0
          %7814 = vdwg.mxu0
          %v7815 = vmax.f32 %v7812, 0.0
          %7817 = vset.pattern.permute.xlu0 0
          %7818 = vperm.xlu0 %7817, %v7466
          %v7819 = vpop.permute.xlu0 %7818
          %v7822 = vperm.slane %v5419, 0
          %v7824 = vmul.f32 %v7819, %v7822
          %v7826 = vperm.slane %v5420, 0
          %v7828 = vadd.f32 %v7824, %v7826
          %v7829 = vmax.f32 %v7828, 0.0
          %v7830 = vpack.c.bf16 %v7829, %v7829
          %v7832 = vperm.slane %v5423, 0
          %v7836 = vunpack.c.l.b16 %v5421
          %v7837 = vunpack.c.l.b16 %v5422
          %v7838 = vpack.c.b16 %v7837, %v7836
          %v7840 = vsel %vm7728, %v7830, 0
          %v7843 = vsel %vm7732, %v7838, 0
          %7845 = vmatpush.bf16.msra.mxu0 0
          %7846 = vmatpush.bf16.msra.mxu0 0
          %7847 = vmatpush.bf16.msra.mxu0 0
          %7848 = vmatpush.bf16.msra.mxu0 0
          %7849 = vmatpush.bf16.msra.mxu0 0
          %7850 = vmatpush.bf16.msra.mxu0 0
          %7851 = vmatpush.bf16.msra.mxu0 0
          %7852 = vmatpush.bf16.msra.mxu0 %v7843
          %7853 = vmatmul.bf16.gmra.mxu0 %v7840
          %v7854 = vpop.f32.mrf.mxu0
          %v7855 = vadd.f32 %v7832, %v7854
          %v7856 = vpop.f32.mrf.mxu0
          %7857 = vdwg.mxu0
          %v7858 = vmax.f32 %v7855, 0.0
          %v7860 = vperm.slane %v5404, 0
          %v7864 = vunpack.c.l.b16 %v5402
          %v7865 = vunpack.c.l.b16 %v5403
          %v7866 = vpack.c.b16 %v7865, %v7864
          %v7868 = vsel %vm7728, %v7467, 0
          %v7871 = vsel %vm7732, %v7866, 0
          %7873 = vmatpush.bf16.msra.mxu0 0
          %7874 = vmatpush.bf16.msra.mxu0 0
          %7875 = vmatpush.bf16.msra.mxu0 0
          %7876 = vmatpush.bf16.msra.mxu0 0
          %7877 = vmatpush.bf16.msra.mxu0 0
          %7878 = vmatpush.bf16.msra.mxu0 0
          %7879 = vmatpush.bf16.msra.mxu0 0
          %7880 = vmatpush.bf16.msra.mxu0 %v7871
          %7881 = vmatmul.bf16.gmra.mxu0 %v7868
          %v7882 = vpop.f32.mrf.mxu0
          %v7883 = vadd.f32 %v7860, %v7882
          %v7884 = vpop.f32.mrf.mxu0
          %7885 = vdwg.mxu0
          %v7886 = vmax.f32 %v7883, 0.0
          %v7887 = vpack.c.bf16 %v7886, %v7886
          %v7889 = vperm.slane %v5418, 0
          %v7904 = vunpack.c.l.b16 %v5405
          %v7905 = vunpack.c.l.b16 %v5406
          %v7906 = vunpack.c.l.b16 %v5407
          %v7907 = vunpack.c.l.b16 %v5408
          %v7908 = vunpack.c.l.b16 %v5409
          %v7909 = vunpack.c.l.b16 %v5410
          %v7910 = vunpack.c.l.b16 %v5411
          %v7911 = vunpack.c.l.b16 %v5412
          %v7912 = vunpack.c.l.b16 %v5413
          %v7913 = vunpack.c.l.b16 %v5414
          %v7914 = vunpack.c.l.b16 %v5415
          %v7915 = vunpack.c.l.b16 %v5416
          %v7916 = vunpack.c.l.b16 %v5417
          %v7917 = vpack.c.b16 %v7905, %v7904
          %v7918 = vpack.c.b16 %v7907, %v7906
          %v7919 = vpack.c.b16 %v7909, %v7908
          %v7920 = vpack.c.b16 %v7911, %v7910
          %v7921 = vpack.c.b16 %v7913, %v7912
          %v7922 = vpack.c.b16 %v7915, %v7914
          %v7923 = vpack.c.b16 %v7916, %v7916
          %vm7930 = vcmask 818176
          %v7932 = vsel %vm7930, %v7887, 0
          %v7935 = vsel %vm3381, %v7923, 0
          %7937 = vmatpush.bf16.msra.mxu0 0
          %7938 = vmatpush.bf16.msra.mxu0 %v7935
          %7939 = vmatpush.bf16.msra.mxu0 %v7922
          %7940 = vmatpush.bf16.msra.mxu0 %v7921
          %7941 = vmatpush.bf16.msra.mxu0 %v7920
          %7942 = vmatpush.bf16.msra.mxu0 %v7919
          %7943 = vmatpush.bf16.msra.mxu0 %v7918
          %7944 = vmatpush.bf16.msra.mxu0 %v7917
          %7945 = vmatmul.bf16.gmra.mxu0 %v7932
          %v7946 = vpop.f32.mrf.mxu0
          %v7947 = vadd.f32 %v7889, %v7946
          %v7948 = vpop.f32.mrf.mxu0
          %7949 = vdwg.mxu0
          %v7950 = vmax.f32 %v7947, 0.0
          %v7951 = vpack.c.bf16 %v7719, %v7719
          %v7952 = vpack.c.bf16 %v7815, %v7815
          %v7961 = vunpack.c.l.b16 %v5440
          %v7962 = vunpack.c.h.b16 %v5440
          %v7963 = vunpack.c.l.b16 %v5441
          %v7964 = vunpack.c.h.b16 %v5441
          %v7965 = vunpack.c.l.b16 %v5442
          %v7966 = vunpack.c.h.b16 %v5442
          %v7967 = vunpack.c.l.b16 %v5443
          %v7968 = vunpack.c.h.b16 %v5443
          %v7969 = vunpack.c.l.b16 %v5444
          %v7970 = vunpack.c.h.b16 %v5444
          %v7971 = vunpack.c.l.b16 %v5445
          %v7972 = vunpack.c.h.b16 %v5445
          %v7973 = vunpack.c.l.b16 %v5446
          %v7974 = vunpack.c.h.b16 %v5446
          %v7975 = vunpack.c.l.b16 %v5447
          %v7976 = vunpack.c.h.b16 %v5447
          %v7977 = vpack.c.b16 %v7963, %v7961
          %v7978 = vpack.c.b16 %v7964, %v7962
          %v7979 = vpack.c.b16 %v7967, %v7965
          %v7980 = vpack.c.b16 %v7968, %v7966
          %v7981 = vpack.c.b16 %v7971, %v7969
          %v7982 = vpack.c.b16 %v7972, %v7970
          %v7983 = vpack.c.b16 %v7975, %v7973
          %v7984 = vpack.c.b16 %v7976, %v7974
          %vm7993 = vcmask 523264
          %v7995 = vsel %vm7993, %v7952, 0
          %7997 = vmatpush.bf16.msra.mxu0 0
          %7998 = vmatpush.bf16.msra.mxu0 0
          %7999 = vmatpush.bf16.msra.mxu0 0
          %8000 = vmatpush.bf16.msra.mxu0 0
          %8001 = vmatpush.bf16.msra.mxu0 %v7983
          %8002 = vmatpush.bf16.msra.mxu0 %v7981
          %8003 = vmatpush.bf16.msra.mxu0 %v7979
          %8004 = vmatpush.bf16.msra.mxu0 %v7977
          %8005 = vmatmul.bf16.gmra.mxu0 %v7995
          %v8006 = vpop.f32.mrf.mxu0
          %v8007 = vadd.f32 0.0, %v8006
          %v8008 = vpop.f32.mrf.mxu0
          %8009 = vdwg.mxu0
          %8010 = vmatpush.bf16.msra.mxu0 0
          %8011 = vmatpush.bf16.msra.mxu0 0
          %8012 = vmatpush.bf16.msra.mxu0 0
          %8013 = vmatpush.bf16.msra.mxu0 0
          %8014 = vmatpush.bf16.msra.mxu0 %v7984
          %8015 = vmatpush.bf16.msra.mxu0 %v7982
          %8016 = vmatpush.bf16.msra.mxu0 %v7980
          %8017 = vmatpush.bf16.msra.mxu0 %v7978
          %8018 = vmatmul.bf16.gmra.mxu0 %v7995
          %v8019 = vpop.f32.mrf.mxu0
          %v8020 = vadd.f32 0.0, %v8019
          %v8021 = vpop.f32.mrf.mxu0
          %8022 = vdwg.mxu0
          %v8039 = vunpack.c.l.b16 %v5424
          %v8040 = vunpack.c.h.b16 %v5424
          %v8041 = vunpack.c.l.b16 %v5425
          %v8042 = vunpack.c.h.b16 %v5425
          %v8043 = vunpack.c.l.b16 %v5426
          %v8044 = vunpack.c.h.b16 %v5426
          %v8045 = vunpack.c.l.b16 %v5427
          %v8046 = vunpack.c.h.b16 %v5427
          %v8047 = vunpack.c.l.b16 %v5428
          %v8048 = vunpack.c.h.b16 %v5428
          %v8049 = vunpack.c.l.b16 %v5429
          %v8050 = vunpack.c.h.b16 %v5429
          %v8051 = vunpack.c.l.b16 %v5430
          %v8052 = vunpack.c.h.b16 %v5430
          %v8053 = vunpack.c.l.b16 %v5431
          %v8054 = vunpack.c.h.b16 %v5431
          %v8055 = vunpack.c.l.b16 %v5432
          %v8056 = vunpack.c.h.b16 %v5432
          %v8057 = vunpack.c.l.b16 %v5433
          %v8058 = vunpack.c.h.b16 %v5433
          %v8059 = vunpack.c.l.b16 %v5434
          %v8060 = vunpack.c.h.b16 %v5434
          %v8061 = vunpack.c.l.b16 %v5435
          %v8062 = vunpack.c.h.b16 %v5435
          %v8063 = vunpack.c.l.b16 %v5436
          %v8064 = vunpack.c.h.b16 %v5436
          %v8065 = vunpack.c.l.b16 %v5437
          %v8066 = vunpack.c.h.b16 %v5437
          %v8067 = vunpack.c.l.b16 %v5438
          %v8068 = vunpack.c.h.b16 %v5438
          %v8069 = vunpack.c.l.b16 %v5439
          %v8070 = vunpack.c.h.b16 %v5439
          %v8071 = vpack.c.b16 %v8041, %v8039
          %v8072 = vpack.c.b16 %v8042, %v8040
          %v8073 = vpack.c.b16 %v8045, %v8043
          %v8074 = vpack.c.b16 %v8046, %v8044
          %v8075 = vpack.c.b16 %v8049, %v8047
          %v8076 = vpack.c.b16 %v8050, %v8048
          %v8077 = vpack.c.b16 %v8053, %v8051
          %v8078 = vpack.c.b16 %v8054, %v8052
          %v8079 = vpack.c.b16 %v8057, %v8055
          %v8080 = vpack.c.b16 %v8058, %v8056
          %v8081 = vpack.c.b16 %v8061, %v8059
          %v8082 = vpack.c.b16 %v8062, %v8060
          %v8083 = vpack.c.b16 %v8065, %v8063
          %v8084 = vpack.c.b16 %v8066, %v8064
          %v8085 = vpack.c.b16 %v8069, %v8067
          %v8086 = vpack.c.b16 %v8070, %v8068
          %8103 = vmatpush.bf16.msra.mxu0 %v8085
          %8104 = vmatpush.bf16.msra.mxu0 %v8083
          %8105 = vmatpush.bf16.msra.mxu0 %v8081
          %8106 = vmatpush.bf16.msra.mxu0 %v8079
          %8107 = vmatpush.bf16.msra.mxu0 %v8077
          %8108 = vmatpush.bf16.msra.mxu0 %v8075
          %8109 = vmatpush.bf16.msra.mxu0 %v8073
          %8110 = vmatpush.bf16.msra.mxu0 %v8071
          %8111 = vmatmul.bf16.gmra.mxu0 %v7951
          %v8112 = vpop.f32.mrf.mxu0
          %v8113 = vadd.f32 %v8007, %v8112
          %v8114 = vpop.f32.mrf.mxu0
          %8115 = vdwg.mxu0
          %8116 = vmatpush.bf16.msra.mxu0 %v8086
          %8117 = vmatpush.bf16.msra.mxu0 %v8084
          %8118 = vmatpush.bf16.msra.mxu0 %v8082
          %8119 = vmatpush.bf16.msra.mxu0 %v8080
          %8120 = vmatpush.bf16.msra.mxu0 %v8078
          %8121 = vmatpush.bf16.msra.mxu0 %v8076
          %8122 = vmatpush.bf16.msra.mxu0 %v8074
          %8123 = vmatpush.bf16.msra.mxu0 %v8072
          %8124 = vmatmul.bf16.gmra.mxu0 %v7951
          %v8125 = vpop.f32.mrf.mxu0
          %v8126 = vadd.f32 %v8020, %v8125
          %v8127 = vpop.f32.mrf.mxu0
          %8128 = vdwg.mxu0
          %v8129 = vpack.c.bf16 %v7858, %v7858
          %v8138 = vunpack.c.l.b16 %v5448
          %v8139 = vunpack.c.h.b16 %v5448
          %v8140 = vunpack.c.l.b16 %v5449
          %v8141 = vunpack.c.h.b16 %v5449
          %v8142 = vunpack.c.l.b16 %v5450
          %v8143 = vunpack.c.h.b16 %v5450
          %v8144 = vunpack.c.l.b16 %v5451
          %v8145 = vunpack.c.h.b16 %v5451
          %v8146 = vunpack.c.l.b16 %v5452
          %v8147 = vunpack.c.h.b16 %v5452
          %v8148 = vunpack.c.l.b16 %v5453
          %v8149 = vunpack.c.h.b16 %v5453
          %v8150 = vunpack.c.l.b16 %v5454
          %v8151 = vunpack.c.h.b16 %v5454
          %v8152 = vunpack.c.l.b16 %v5455
          %v8153 = vunpack.c.h.b16 %v5455
          %v8154 = vpack.c.b16 %v8140, %v8138
          %v8155 = vpack.c.b16 %v8141, %v8139
          %v8156 = vpack.c.b16 %v8144, %v8142
          %v8157 = vpack.c.b16 %v8145, %v8143
          %v8158 = vpack.c.b16 %v8148, %v8146
          %v8159 = vpack.c.b16 %v8149, %v8147
          %v8160 = vpack.c.b16 %v8152, %v8150
          %v8161 = vpack.c.b16 %v8153, %v8151
          %v8171 = vsel %vm7993, %v8129, 0
          %8173 = vmatpush.bf16.msra.mxu0 0
          %8174 = vmatpush.bf16.msra.mxu0 0
          %8175 = vmatpush.bf16.msra.mxu0 0
          %8176 = vmatpush.bf16.msra.mxu0 0
          %8177 = vmatpush.bf16.msra.mxu0 %v8160
          %8178 = vmatpush.bf16.msra.mxu0 %v8158
          %8179 = vmatpush.bf16.msra.mxu0 %v8156
          %8180 = vmatpush.bf16.msra.mxu0 %v8154
          %8181 = vmatmul.bf16.gmra.mxu0 %v8171
          %v8182 = vpop.f32.mrf.mxu0
          %v8183 = vadd.f32 0.0, %v8182
          %v8184 = vpop.f32.mrf.mxu0
          %8185 = vdwg.mxu0
          %8186 = vmatpush.bf16.msra.mxu0 0
          %8187 = vmatpush.bf16.msra.mxu0 0
          %8188 = vmatpush.bf16.msra.mxu0 0
          %8189 = vmatpush.bf16.msra.mxu0 0
          %8190 = vmatpush.bf16.msra.mxu0 %v8161
          %8191 = vmatpush.bf16.msra.mxu0 %v8159
          %8192 = vmatpush.bf16.msra.mxu0 %v8157
          %8193 = vmatpush.bf16.msra.mxu0 %v8155
          %8194 = vmatmul.bf16.gmra.mxu0 %v8171
          %v8195 = vpop.f32.mrf.mxu0
          %v8196 = vadd.f32 0.0, %v8195
          %v8197 = vpop.f32.mrf.mxu0
          %8198 = vdwg.mxu0
          %v8199 = vadd.f32 %v8113, %v8183
          %v8200 = vadd.f32 %v8126, %v8196
          %v8201 = vpack.c.bf16 %v7950, %v7950
          %v8210 = vunpack.c.l.b16 %v5456
          %v8211 = vunpack.c.h.b16 %v5456
          %v8212 = vunpack.c.l.b16 %v5457
          %v8213 = vunpack.c.h.b16 %v5457
          %v8214 = vunpack.c.l.b16 %v5458
          %v8215 = vunpack.c.h.b16 %v5458
          %v8216 = vunpack.c.l.b16 %v5459
          %v8217 = vunpack.c.h.b16 %v5459
          %v8218 = vunpack.c.l.b16 %v5460
          %v8219 = vunpack.c.h.b16 %v5460
          %v8220 = vunpack.c.l.b16 %v5461
          %v8221 = vunpack.c.h.b16 %v5461
          %v8222 = vunpack.c.l.b16 %v5462
          %v8223 = vunpack.c.h.b16 %v5462
          %v8224 = vunpack.c.l.b16 %v5463
          %v8225 = vunpack.c.h.b16 %v5463
          %v8226 = vpack.c.b16 %v8212, %v8210
          %v8227 = vpack.c.b16 %v8213, %v8211
          %v8228 = vpack.c.b16 %v8216, %v8214
          %v8229 = vpack.c.b16 %v8217, %v8215
          %v8230 = vpack.c.b16 %v8220, %v8218
          %v8231 = vpack.c.b16 %v8221, %v8219
          %v8232 = vpack.c.b16 %v8224, %v8222
          %v8233 = vpack.c.b16 %v8225, %v8223
          %v8243 = vsel %vm7993, %v8201, 0
          %8245 = vmatpush.bf16.msra.mxu0 0
          %8246 = vmatpush.bf16.msra.mxu0 0
          %8247 = vmatpush.bf16.msra.mxu0 0
          %8248 = vmatpush.bf16.msra.mxu0 0
          %8249 = vmatpush.bf16.msra.mxu0 %v8232
          %8250 = vmatpush.bf16.msra.mxu0 %v8230
          %8251 = vmatpush.bf16.msra.mxu0 %v8228
          %8252 = vmatpush.bf16.msra.mxu0 %v8226
          %8253 = vmatmul.bf16.gmra.mxu0 %v8243
          %v8254 = vpop.f32.mrf.mxu0
          %v8255 = vadd.f32 0.0, %v8254
          %v8256 = vpop.f32.mrf.mxu0
          %8257 = vdwg.mxu0
          %8258 = vmatpush.bf16.msra.mxu0 0
          %8259 = vmatpush.bf16.msra.mxu0 0
          %8260 = vmatpush.bf16.msra.mxu0 0
          %8261 = vmatpush.bf16.msra.mxu0 0
          %8262 = vmatpush.bf16.msra.mxu0 %v8233
          %8263 = vmatpush.bf16.msra.mxu0 %v8231
          %8264 = vmatpush.bf16.msra.mxu0 %v8229
          %8265 = vmatpush.bf16.msra.mxu0 %v8227
          %8266 = vmatmul.bf16.gmra.mxu0 %v8243
          %v8267 = vpop.f32.mrf.mxu0
          %v8268 = vadd.f32 0.0, %v8267
          %v8269 = vpop.f32.mrf.mxu0
          %8270 = vdwg.mxu0
          %v8271 = vadd.f32 %v8199, %v8255
          %v8272 = vadd.f32 %v8200, %v8268
          %v8274 = vperm.slane %v5464, 0
          %v8275 = vperm.slane %v5464, 1
          %v8278 = vadd.f32 %v8271, %v8274
          %v8279 = vadd.f32 %v8272, %v8275
          %v8280 = vmax.f32 %v8278, 0.0
          %v8281 = vmax.f32 %v8279, 0.0
          %v8282 = vpack.c.bf16 %v8280, %v8280
          %v8283 = vpack.c.bf16 %v8281, %v8281
          %v8285 = vperm.slane %v5497, 0
          %v8319 = vunpack.c.l.b16 %v5465
          %v8320 = vunpack.c.l.b16 %v5466
          %v8321 = vunpack.c.l.b16 %v5467
          %v8322 = vunpack.c.l.b16 %v5468
          %v8323 = vunpack.c.l.b16 %v5469
          %v8324 = vunpack.c.l.b16 %v5470
          %v8325 = vunpack.c.l.b16 %v5471
          %v8326 = vunpack.c.l.b16 %v5472
          %v8327 = vunpack.c.l.b16 %v5473
          %v8328 = vunpack.c.l.b16 %v5474
          %v8329 = vunpack.c.l.b16 %v5475
          %v8330 = vunpack.c.l.b16 %v5476
          %v8331 = vunpack.c.l.b16 %v5477
          %v8332 = vunpack.c.l.b16 %v5478
          %v8333 = vunpack.c.l.b16 %v5479
          %v8334 = vunpack.c.l.b16 %v5480
          %v8335 = vunpack.c.l.b16 %v5481
          %v8336 = vunpack.c.l.b16 %v5482
          %v8337 = vunpack.c.l.b16 %v5483
          %v8338 = vunpack.c.l.b16 %v5484
          %v8339 = vunpack.c.l.b16 %v5485
          %v8340 = vunpack.c.l.b16 %v5486
          %v8341 = vunpack.c.l.b16 %v5487
          %v8342 = vunpack.c.l.b16 %v5488
          %v8343 = vunpack.c.l.b16 %v5489
          %v8344 = vunpack.c.l.b16 %v5490
          %v8345 = vunpack.c.l.b16 %v5491
          %v8346 = vunpack.c.l.b16 %v5492
          %v8347 = vunpack.c.l.b16 %v5493
          %v8348 = vunpack.c.l.b16 %v5494
          %v8349 = vunpack.c.l.b16 %v5495
          %v8350 = vunpack.c.l.b16 %v5496
          %v8351 = vpack.c.b16 %v8320, %v8319
          %v8352 = vpack.c.b16 %v8322, %v8321
          %v8353 = vpack.c.b16 %v8324, %v8323
          %v8354 = vpack.c.b16 %v8326, %v8325
          %v8355 = vpack.c.b16 %v8328, %v8327
          %v8356 = vpack.c.b16 %v8330, %v8329
          %v8357 = vpack.c.b16 %v8332, %v8331
          %v8358 = vpack.c.b16 %v8334, %v8333
          %v8359 = vpack.c.b16 %v8336, %v8335
          %v8360 = vpack.c.b16 %v8338, %v8337
          %v8361 = vpack.c.b16 %v8340, %v8339
          %v8362 = vpack.c.b16 %v8342, %v8341
          %v8363 = vpack.c.b16 %v8344, %v8343
          %v8364 = vpack.c.b16 %v8346, %v8345
          %v8365 = vpack.c.b16 %v8348, %v8347
          %v8366 = vpack.c.b16 %v8350, %v8349
          %8383 = vmatpush.bf16.msra.mxu0 %v8358
          %8384 = vmatpush.bf16.msra.mxu0 %v8357
          %8385 = vmatpush.bf16.msra.mxu0 %v8356
          %8386 = vmatpush.bf16.msra.mxu0 %v8355
          %8387 = vmatpush.bf16.msra.mxu0 %v8354
          %8388 = vmatpush.bf16.msra.mxu0 %v8353
          %8389 = vmatpush.bf16.msra.mxu0 %v8352
          %8390 = vmatpush.bf16.msra.mxu0 %v8351
          %8391 = vmatmul.bf16.gmra.mxu0 %v8282
          %v8392 = vpop.f32.mrf.mxu0
          %v8393 = vadd.f32 %v8285, %v8392
          %v8394 = vpop.f32.mrf.mxu0
          %8395 = vdwg.mxu0
          %8396 = vmatpush.bf16.msra.mxu0 %v8366
          %8397 = vmatpush.bf16.msra.mxu0 %v8365
          %8398 = vmatpush.bf16.msra.mxu0 %v8364
          %8399 = vmatpush.bf16.msra.mxu0 %v8363
          %8400 = vmatpush.bf16.msra.mxu0 %v8362
          %8401 = vmatpush.bf16.msra.mxu0 %v8361
          %8402 = vmatpush.bf16.msra.mxu0 %v8360
          %8403 = vmatpush.bf16.msra.mxu0 %v8359
          %8404 = vmatmul.bf16.gmra.mxu0 %v8283
          %v8405 = vpop.f32.mrf.mxu0
          %v8406 = vadd.f32 %v8393, %v8405
          %v8407 = vpop.f32.mrf.mxu0
          %8408 = vdwg.mxu0
          %v8409 = vmax.f32 %v8406, 0.0
          %v8410 = vpack.c.bf16 %v8409, %v8409
          %v8412 = vperm.slane %v5514, 0
          %v8430 = vunpack.c.l.b16 %v5498
          %v8431 = vunpack.c.l.b16 %v5499
          %v8432 = vunpack.c.l.b16 %v5500
          %v8433 = vunpack.c.l.b16 %v5501
          %v8434 = vunpack.c.l.b16 %v5502
          %v8435 = vunpack.c.l.b16 %v5503
          %v8436 = vunpack.c.l.b16 %v5504
          %v8437 = vunpack.c.l.b16 %v5505
          %v8438 = vunpack.c.l.b16 %v5506
          %v8439 = vunpack.c.l.b16 %v5507
          %v8440 = vunpack.c.l.b16 %v5508
          %v8441 = vunpack.c.l.b16 %v5509
          %v8442 = vunpack.c.l.b16 %v5510
          %v8443 = vunpack.c.l.b16 %v5511
          %v8444 = vunpack.c.l.b16 %v5512
          %v8445 = vunpack.c.l.b16 %v5513
          %v8446 = vpack.c.b16 %v8431, %v8430
          %v8447 = vpack.c.b16 %v8433, %v8432
          %v8448 = vpack.c.b16 %v8435, %v8434
          %v8449 = vpack.c.b16 %v8437, %v8436
          %v8450 = vpack.c.b16 %v8439, %v8438
          %v8451 = vpack.c.b16 %v8441, %v8440
          %v8452 = vpack.c.b16 %v8443, %v8442
          %v8453 = vpack.c.b16 %v8445, %v8444
          %8462 = vmatpush.bf16.msra.mxu0 %v8453
          %8463 = vmatpush.bf16.msra.mxu0 %v8452
          %8464 = vmatpush.bf16.msra.mxu0 %v8451
          %8465 = vmatpush.bf16.msra.mxu0 %v8450
          %8466 = vmatpush.bf16.msra.mxu0 %v8449
          %8467 = vmatpush.bf16.msra.mxu0 %v8448
          %8468 = vmatpush.bf16.msra.mxu0 %v8447
          %8469 = vmatpush.bf16.msra.mxu0 %v8446
          %8470 = vmatmul.bf16.gmra.mxu0 %v8410
          %v8471 = vpop.f32.mrf.mxu0
          %v8472 = vadd.f32 %v8412, %v8471
          %v8473 = vpop.f32.mrf.mxu0
          %8474 = vdwg.mxu0
          %v8475 = vmax.f32 %v8472, 0.0
          %v8477 = vperm.slane %v5523, 0
          %v8480 = vsel %vm7993, %v8475, 0
          %8482 = vmatpush.msra.mxu0 0.0
          %8483 = vmatpush.msra.mxu0 0.0
          %8484 = vmatpush.msra.mxu0 0.0
          %8485 = vmatpush.msra.mxu0 0.0
          %8486 = vmatpush.msra.mxu0 0.0
          %8487 = vmatpush.msra.mxu0 0.0
          %8488 = vmatpush.msra.mxu0 0.0
          %8489 = vmatpush.msra.mxu0 0.0
          %8490 = vmatpush.msra.mxu0 %v5522
          %8491 = vmatpush.msra.mxu0 %v5521
          %8492 = vmatpush.msra.mxu0 %v5520
          %8493 = vmatpush.msra.mxu0 %v5519
          %8494 = vmatpush.msra.mxu0 %v5518
          %8495 = vmatpush.msra.mxu0 %v5517
          %8496 = vmatpush.msra.mxu0 %v5516
          %8497 = vmatpush.msra.mxu0 %v5515
          %8498 = vmatmul.f32.gmra.mxu0 %v8480
          %v8499 = vpop.f32.mrf.mxu0
          %v8500 = vadd.f32 %v8477, %v8499
          %8501 = vdwg.mxu0
          %v8502 = vsub.f32 0.0, %v8500
          %v8503 = vmul.f32 %v8502, 1.442695
          %v8504 = vpow.pop %v8503
          %v8505 = vadd.f32 %v8504, 1.0
          %v8506 = vrcp.pop %v8505
          %v8507 = vmul.f32 %v8505, %v8506
          %v8508 = vsub.f32 1.0, %v8507
          %v8509 = vmul.f32 %v8506, %v8508
          %v8510 = vadd.f32 %v8506, %v8509
          %vm8511 = vweird.f32 %v8505
          %vm8512 = vweird.f32 %v8506
          %vm8513 = vmor %vm8511, %vm8512
          %v8514 = vsel %vm8513, %v8506, %v8510
          %v8515 = vand.u32 2147483647, %v8505
          %vm8516 = vcmp.eq.f32.partialorder %v8515, 8.507059e+37
          %v8517 = vand.u32 %v8505, 2147483648
          %v8518 = vor.u32 1.1754944e-38, %v8517
          %v8519 = vsel %vm8516, %v8518, %v8514
          %v8520 = vmul.f32 1.0, %v8519
          %vm8521 = vcmask 1024
          %8522 = vst.msk [vmem:[%s69] sm:$0x3] %vm8521, %v8520
        $region264: #{nasr_forward_pallas.1} parent=155 // pred_fallthru
          _
        // Predicated region
        $region265: #{nasr_forward_pallas.1} parent=155 // pred_check
          %p8523 = pneg %p832
        $region266: #{nasr_forward_pallas.1} parent=155 // pred_check_branch
          %8525 = sbr.rel (%p8523) target = $region268
        $region267: #{nasr_forward_pallas.1} parent=155 // pred_region
          _
        $region268: #{nasr_forward_pallas.1} parent=155 // pred_fallthru
          _
        // Predicated region
        $region269: #{nasr_forward_pallas.1} parent=155 // pred_check
          %p8526 = pneg %p832
        $region270: #{nasr_forward_pallas.1} parent=155 // pred_check_branch
          %8528 = sbr.rel (%p8526) target = $region272
        $region271: #{nasr_forward_pallas.1} parent=155 // pred_region
          _
        $region272: #{nasr_forward_pallas.1} parent=155 // pred_fallthru
          _
      $region156: #{nasr_forward_pallas.1} parent=5 // pred_fallthru
        _
      %p8529 = scmp.le.s32.totalorder 2, %s90
      // Predicated region
      $region273: #{nasr_forward_pallas.1} parent=5 // pred_check
        %p8530 = pneg %p8529
      $region274: #{nasr_forward_pallas.1} parent=5 // pred_check_branch
        %8532 = sbr.rel (%p8530) target = $region276
      $region275: #{nasr_forward_pallas.1} parent=5 // pred_region
        %s8533 = ssub.s32 %s90, 2
      $region276: #{nasr_forward_pallas.1} parent=5 // pred_fallthru
        _
    $region6: #{nasr_forward_pallas.1} parent=1 // loop_footer
      %s94 = sadd.s32 1, %s90
    $region7: #{nasr_forward_pallas.1} parent=1 // loop_footer_branch
      %89 = sbr.rel target = $region3
    $region8: #{nasr_forward_pallas.1} parent=1 // loop_exit
      _
    %8534 = vsyncpa [#allocation5], 1
    %s8535 = scalar_lea.sflag [#allocation5], 1
    %8536 = vsyncpa %s8535, 1
    %8537 = vsyncpa [#allocation7], 1
    %8538 = vsyncpa [#allocation11], 1
    %8539 = vsyncpa [#allocation14], 1
    %8540 = vsyncpa [#allocation17], 1
    %8541 = vsyncpa [#allocation20], 1
    %8542 = vsyncpa [#allocation23], 1
    %8543 = vsyncpa [#allocation26], 1
    %8544 = vsyncpa [#allocation29], 1
    %8545 = vsyncpa [#allocation32], 1
    %8546 = vsyncpa [#allocation35], 1
    %8547 = vsyncpa [#allocation38], 1
    %8548 = vsyncpa [#allocation41], 1

</llo_original>
